<compile_context>
chip_gen: v5e
topology: v5e:2x2
jax: 0.10.0
libtpu: 0.0.40
codegen_flags: <defaults>
</compile_context>

<pallas_src>
import jax
import jax.numpy as jnp
from jax.experimental import pallas as pl
from jax.experimental.pallas import tpu as pltpu

# ---- small, module-consistent sizes -----------------------------------------
N = 512                     # batch rows
NUM_CF = 4                  # number of continuous features
HIDDEN = 2 * NUM_CF         # c1 output width
EMBED_DIM = 128             # embedding dimension (lane-dense)
VOCABS = (16, 16)           # two discrete features, vocab sizes
NUM_DISC = len(VOCABS)
FUSED_VOCAB = sum(VOCABS)   # 32

PACKED_LANES = 8            # cf (4) + idx0 + idx1 + 2 pad lanes

# ---- parameter-slab layout (rows of a [48, 128] f32 block) ------------------
W1_ROW = 0                  # rows 0..3, lanes 0:HIDDEN      -> c1 weight [4, 8]
B1_ROW = 4                  # row 4,     lanes 0:HIDDEN      -> c1 bias
B2_ROW = 5                  # row 5,     all lanes           -> c2 bias
SCALE_ROW = 6               # row 6,     all lanes           -> wc0 (broadcast)
W2_ROW = 8                  # rows 8..15                     -> c2 weight [8, 128]
TABLE_ROW = 16              # rows 16..47                    -> fused, pre-scaled tables
SLAB_ROWS = TABLE_ROW + FUSED_VOCAB  # 48


def combined_embedder_kernel(packed_ref, p_ref, out_ref):
    tile_n = packed_ref.shape[0]
    packed = packed_ref[...]                                   # [tile_n, 8]

    # ----- continuous path ----------------------------------------------------
    cf = packed[:, 0:NUM_CF]                                   # [tile_n, 4]
    cf = jnp.where(jnp.isnan(cf), jnp.zeros_like(cf), cf)      # cf[cf.isnan()] = 0

    # c1: K = 4 -> stays on the VPU as unrolled rank-1 broadcast-MACs.
    h = jnp.broadcast_to(p_ref[B1_ROW:B1_ROW + 1, 0:HIDDEN], (tile_n, HIDDEN))
    for k in range(NUM_CF):
        h = h + cf[:, k:k + 1] * p_ref[W1_ROW + k:W1_ROW + k + 1, 0:HIDDEN]
    h = jnp.maximum(h, 0.0)                                    # relu(c1(cf))
    # dropout(p=drop_rate=0.0, training=False) -> identity

    # c2: K = 8 -> MXU (keeps vreg pressure flat for large row tiles).
    z = jnp.dot(h, p_ref[W2_ROW:W2_ROW + HIDDEN, :],
                preferred_element_type=jnp.float32,
                precision=jax.lax.Precision.HIGHEST)           # [tile_n, 128]
    z = z + p_ref[B2_ROW:B2_ROW + 1, :]
    cf_emb = jnp.maximum(z, 0.0)                               # relu(c2(.))

    # ----- fused discrete lookup: single one-hot matmul on the MXU ------------
    # packed[:, 4] = idx0, packed[:, 5] = idx1 + VOCABS[0] (pre-offset), both
    # carried as exact small-integer f32 values.  The fused table already holds
    # [wc1*emb0 + bc ; wc2*emb1], so one matmul yields wc1*d0 + wc2*d1 + bc.
    idx = packed[:, NUM_CF:NUM_CF + NUM_DISC].astype(jnp.int32)  # [tile_n, 2]
    iota = jax.lax.broadcasted_iota(jnp.int32, (tile_n, FUSED_VOCAB), 1)
    one_hot = jnp.logical_or(idx[:, 0:1] == iota,
                             idx[:, 1:2] == iota).astype(jnp.float32)
    fused = jnp.dot(one_hot, p_ref[TABLE_ROW:TABLE_ROW + FUSED_VOCAB, :],
                    preferred_element_type=jnp.float32,
                    precision=jax.lax.Precision.HIGHEST)       # [tile_n, 128]

    # TODO(synk): original code calls F.dropout(disc_emb) with torch defaults
    # (p=0.5, training=True); implemented as identity (inference semantics).

    # ----- combine (folded): broadcast-row scale + single add -----------------
    out_ref[...] = p_ref[SCALE_ROW:SCALE_ROW + 1, :] * cf_emb + fused


def fold_params(params):
    """Fold the combine Linear and pack all invariant params into one slab."""
    (w1, b1, w2, b2, emb0, emb1, wc, bc) = params
    # wc1*d0 + wc2*d1 + bc  ==  one_hot @ concat([wc1*emb0 + bc, wc2*emb1])
    table = jnp.concatenate([wc[0, 1] * emb0 + bc[0, 0],
                             wc[0, 2] * emb1], axis=0)         # [FUSED_VOCAB, E]
    slab = jnp.zeros((SLAB_ROWS, EMBED_DIM), jnp.float32)
    slab = slab.at[W1_ROW:W1_ROW + NUM_CF, 0:HIDDEN].set(w1)
    slab = slab.at[B1_ROW, 0:HIDDEN].set(b1)
    slab = slab.at[B2_ROW, :].set(b2)
    slab = slab.at[SCALE_ROW, :].set(wc[0, 0])                 # post-ReLU scale
    slab = slab.at[W2_ROW:W2_ROW + HIDDEN, :].set(w2)
    slab = slab.at[TABLE_ROW:TABLE_ROW + FUSED_VOCAB, :].set(table)
    return slab


def combined_embedder(cf, idx0, idx1, params, *, tile_n=None):
    slab = fold_params(params)
    n = cf.shape[0]
    if tile_n is None:
        # Latency-bound at small N: one grid step.  For production N use
        # 2048-row tiles (>=2 "parallel" steps -> both TensorCores on v7x).
        tile_n = n if n <= 2048 else 2048
    assert n % tile_n == 0, "row count must be a multiple of the row tile"

    # pack cf + both index vectors into one [N, 8] f32 operand (one DMA stream);
    # idx1 is pre-offset by vocab0 so the fused one-hot needs no in-kernel add.
    idxp = jnp.stack([idx0.astype(jnp.float32),
                      (idx1.astype(jnp.int32) + VOCABS[0]).astype(jnp.float32)],
                     axis=1)                                   # [N, 2]
    pad = jnp.zeros((n, PACKED_LANES - NUM_CF - NUM_DISC), jnp.float32)
    packed = jnp.concatenate([cf.astype(jnp.float32), idxp, pad], axis=1)

    return pl.pallas_call(
        combined_embedder_kernel,
        out_shape=jax.ShapeDtypeStruct((n, EMBED_DIM), jnp.float32),
        grid=(n // tile_n,),
        in_specs=[
            pl.BlockSpec((tile_n, PACKED_LANES), lambda i: (i, 0)),   # cf + idx
            pl.BlockSpec((SLAB_ROWS, EMBED_DIM), lambda i: (0, 0)),   # param slab
        ],
        out_specs=pl.BlockSpec((tile_n, EMBED_DIM), lambda i: (i, 0)),
        compiler_params=pltpu.CompilerParams(
            dimension_semantics=("parallel",)),
    )(packed, slab)


def reference(cf, idx0, idx1, params):
    (w1, b1, w2, b2, emb0, emb1, wc, bc) = params
    cfz = jnp.where(jnp.isnan(cf), 0.0, cf)
    h = jax.nn.relu(cfz @ w1 + b1)
    cf_emb = jax.nn.relu(h @ w2 + b2)
    d0 = emb0[idx0]
    d1 = emb1[idx1]
    stacked = jnp.stack([cf_emb, d0, d1], axis=-1)             # [N, E, NUM_DISC+1]
    return jnp.einsum("nef,f->ne", stacked, wc[0]) + bc[0, 0]


if __name__ == "__main__":
    key = jax.random.PRNGKey(0)
    ks = jax.random.split(key, 16)

    # deterministic synthetic parameters (no checkpoint load)
    w1 = 0.1 * jax.random.normal(ks[0], (NUM_CF, HIDDEN), jnp.float32)     # c1.weight.T
    b1 = 0.1 * jax.random.normal(ks[1], (HIDDEN,), jnp.float32)            # c1.bias
    w2 = 0.1 * jax.random.normal(ks[2], (HIDDEN, EMBED_DIM), jnp.float32)  # c2.weight.T
    b2 = 0.1 * jax.random.normal(ks[3], (EMBED_DIM,), jnp.float32)         # c2.bias
    emb0 = 0.1 * jax.random.normal(ks[4], (VOCABS[0], EMBED_DIM), jnp.float32)
    emb1 = 0.1 * jax.random.normal(ks[5], (VOCABS[1], EMBED_DIM), jnp.float32)
    wc = 0.5 * jax.random.normal(ks[6], (1, NUM_DISC + 1), jnp.float32)    # combine.weight
    bc = 0.1 * jax.random.normal(ks[7], (1, 1), jnp.float32)               # combine.bias
    params = (w1, b1, w2, b2, emb0, emb1, wc, bc)

    # inputs: continuous features [N, NUM_CF] with a couple of NaNs,
    # discrete features as integer index vectors [N]
    cf = jax.random.normal(ks[8], (N, NUM_CF), jnp.float32)
    cf = cf.at[0, 0].set(jnp.nan)
    cf = cf.at[129, 3].set(jnp.nan)
    idx0 = jax.random.randint(ks[9], (N,), 0, VOCABS[0], jnp.int32)
    idx1 = jax.random.randint(ks[10], (N,), 0, VOCABS[1], jnp.int32)

    out = combined_embedder(cf, idx0, idx1, params)
    out = jax.block_until_ready(out)

    ref = reference(cf, idx0, idx1, params)
    assert out.shape == (N, EMBED_DIM)
    assert jnp.allclose(out, ref, atol=2e-5, rtol=2e-5)
    print("KERNEL_OK")
</pallas_src>

<mosaic_0001>
module attributes {stable_mosaic.version = 11 : i64} {
  func.func @combined_embedder_kernel(%arg0: i32, %arg1: memref<512x8xf32, #tpu.memory_space<vmem>>, %arg2: memref<48x128xf32, #tpu.memory_space<vmem>>, %arg3: memref<512x128xf32, #tpu.memory_space<vmem>>) attributes {dimension_semantics = [#tpu.dimension_semantics<parallel>], iteration_bounds = array<i64: 1>, scalar_prefetch = 0 : i64, scratch_operands = 0 : i64, tpu.core_type = #tpu.core_type<tc>, window_params = [{transform_indices = @transform_0, window_bounds = array<i64: 512, 8>}, {pipeline_mode = #tpu.pipeline_mode<synchronous>, transform_indices = @transform_1, window_bounds = array<i64: 48, 128>}, {transform_indices = @transform_2, window_bounds = array<i64: 512, 128>}]} {
    %c0 = arith.constant 0 : index
    %c0_0 = arith.constant 0 : index
    %0 = vector.load %arg1[%c0, %c0_0] : memref<512x8xf32, #tpu.memory_space<vmem>>, vector<512x8xf32>
    %1 = vector.extract_strided_slice %0 {offsets = [0, 0], sizes = [512, 4], strides = [1, 1]} : vector<512x8xf32> to vector<512x4xf32>
    %2 = arith.cmpf one, %1, %1 : vector<512x4xf32>
    %cst = arith.constant 0.000000e+00 : f32
    %3 = vector.broadcast %cst : f32 to vector<512x4xf32>
    %4 = arith.select %2, %3, %1 : vector<512x4xi1>, vector<512x4xf32>
    %c4 = arith.constant 4 : index
    %c0_1 = arith.constant 0 : index
    %5 = vector.load %arg2[%c4, %c0_1] : memref<48x128xf32, #tpu.memory_space<vmem>>, vector<1x8xf32>
    %6 = vector.shape_cast %5 : vector<1x8xf32> to vector<1x8xf32>
    %7 = vector.broadcast %6 : vector<1x8xf32> to vector<512x8xf32>
    %8 = vector.extract_strided_slice %4 {offsets = [0, 0], sizes = [512, 1], strides = [1, 1]} : vector<512x4xf32> to vector<512x1xf32>
    %c0_2 = arith.constant 0 : index
    %c0_3 = arith.constant 0 : index
    %9 = vector.load %arg2[%c0_2, %c0_3] : memref<48x128xf32, #tpu.memory_space<vmem>>, vector<1x8xf32>
    %10 = vector.broadcast %8 : vector<512x1xf32> to vector<512x8xf32>
    %11 = vector.broadcast %9 : vector<1x8xf32> to vector<512x8xf32>
    %12 = arith.mulf %10, %11 : vector<512x8xf32>
    %13 = arith.addf %7, %12 : vector<512x8xf32>
    %14 = vector.extract_strided_slice %4 {offsets = [0, 1], sizes = [512, 1], strides = [1, 1]} : vector<512x4xf32> to vector<512x1xf32>
    %c1 = arith.constant 1 : index
    %c0_4 = arith.constant 0 : index
    %15 = vector.load %arg2[%c1, %c0_4] : memref<48x128xf32, #tpu.memory_space<vmem>>, vector<1x8xf32>
    %16 = vector.broadcast %14 : vector<512x1xf32> to vector<512x8xf32>
    %17 = vector.broadcast %15 : vector<1x8xf32> to vector<512x8xf32>
    %18 = arith.mulf %16, %17 : vector<512x8xf32>
    %19 = arith.addf %13, %18 : vector<512x8xf32>
    %20 = vector.extract_strided_slice %4 {offsets = [0, 2], sizes = [512, 1], strides = [1, 1]} : vector<512x4xf32> to vector<512x1xf32>
    %c2 = arith.constant 2 : index
    %c0_5 = arith.constant 0 : index
    %21 = vector.load %arg2[%c2, %c0_5] : memref<48x128xf32, #tpu.memory_space<vmem>>, vector<1x8xf32>
    %22 = vector.broadcast %20 : vector<512x1xf32> to vector<512x8xf32>
    %23 = vector.broadcast %21 : vector<1x8xf32> to vector<512x8xf32>
    %24 = arith.mulf %22, %23 : vector<512x8xf32>
    %25 = arith.addf %19, %24 : vector<512x8xf32>
    %26 = vector.extract_strided_slice %4 {offsets = [0, 3], sizes = [512, 1], strides = [1, 1]} : vector<512x4xf32> to vector<512x1xf32>
    %c3 = arith.constant 3 : index
    %c0_6 = arith.constant 0 : index
    %27 = vector.load %arg2[%c3, %c0_6] : memref<48x128xf32, #tpu.memory_space<vmem>>, vector<1x8xf32>
    %28 = vector.broadcast %26 : vector<512x1xf32> to vector<512x8xf32>
    %29 = vector.broadcast %27 : vector<1x8xf32> to vector<512x8xf32>
    %30 = arith.mulf %28, %29 : vector<512x8xf32>
    %31 = arith.addf %25, %30 : vector<512x8xf32>
    %cst_7 = arith.constant 0.000000e+00 : f32
    %32 = vector.broadcast %cst_7 : f32 to vector<512x8xf32>
    %33 = arith.maximumf %31, %32 : vector<512x8xf32>
    %c8 = arith.constant 8 : index
    %c0_8 = arith.constant 0 : index
    %34 = vector.load %arg2[%c8, %c0_8] : memref<48x128xf32, #tpu.memory_space<vmem>>, vector<8x128xf32>
    %cst_9 = arith.constant dense<0.000000e+00> : vector<512x128xf32>
    %35 = tpu.matmul %33, %34, %cst_9 {dimension_numbers = #tpu.dot_dimension_numbers<[1], [0], [0], [1], [0, 0, 1, 1], [], []>, precision = #tpu.contract_precision<fp32>} : vector<512x8xf32>, vector<8x128xf32>, vector<512x128xf32> -> vector<512x128xf32>
    %c5 = arith.constant 5 : index
    %c0_10 = arith.constant 0 : index
    %36 = vector.load %arg2[%c5, %c0_10] : memref<48x128xf32, #tpu.memory_space<vmem>>, vector<1x128xf32>
    %37 = vector.broadcast %36 : vector<1x128xf32> to vector<512x128xf32>
    %38 = arith.addf %35, %37 : vector<512x128xf32>
    %cst_11 = arith.constant 0.000000e+00 : f32
    %39 = vector.broadcast %cst_11 : f32 to vector<512x128xf32>
    %40 = arith.maximumf %38, %39 : vector<512x128xf32>
    %41 = vector.extract_strided_slice %0 {offsets = [0, 4], sizes = [512, 2], strides = [1, 1]} : vector<512x8xf32> to vector<512x2xf32>
    %42 = arith.fptosi %41 : vector<512x2xf32> to vector<512x2xi32>
    %43 = tpu.iota {dimensions = array<i32: 1>} : vector<512x32xi32>
    %44 = vector.extract_strided_slice %42 {offsets = [0, 0], sizes = [512, 1], strides = [1, 1]} : vector<512x2xi32> to vector<512x1xi32>
    %45 = vector.broadcast %44 : vector<512x1xi32> to vector<512x32xi32>
    %46 = arith.cmpi eq, %45, %43 : vector<512x32xi32>
    %47 = vector.extract_strided_slice %42 {offsets = [0, 1], sizes = [512, 1], strides = [1, 1]} : vector<512x2xi32> to vector<512x1xi32>
    %48 = vector.broadcast %47 : vector<512x1xi32> to vector<512x32xi32>
    %49 = arith.cmpi eq, %48, %43 : vector<512x32xi32>
    %50 = arith.ori %46, %49 : vector<512x32xi1>
    %51 = arith.extui %50 : vector<512x32xi1> to vector<512x32xi32>
    %52 = arith.sitofp %51 : vector<512x32xi32> to vector<512x32xf32>
    %c16 = arith.constant 16 : index
    %c0_12 = arith.constant 0 : index
    %53 = vector.load %arg2[%c16, %c0_12] : memref<48x128xf32, #tpu.memory_space<vmem>>, vector<32x128xf32>
    %cst_13 = arith.constant dense<0.000000e+00> : vector<512x128xf32>
    %54 = tpu.matmul %52, %53, %cst_13 {dimension_numbers = #tpu.dot_dimension_numbers<[1], [0], [0], [1], [0, 0, 1, 1], [], []>, precision = #tpu.contract_precision<fp32>} : vector<512x32xf32>, vector<32x128xf32>, vector<512x128xf32> -> vector<512x128xf32>
    %c6 = arith.constant 6 : index
    %c0_14 = arith.constant 0 : index
    %55 = vector.load %arg2[%c6, %c0_14] : memref<48x128xf32, #tpu.memory_space<vmem>>, vector<1x128xf32>
    %56 = vector.broadcast %55 : vector<1x128xf32> to vector<512x128xf32>
    %57 = arith.mulf %56, %40 : vector<512x128xf32>
    %58 = arith.addf %57, %54 : vector<512x128xf32>
    %c0_15 = arith.constant 0 : index
    %c0_16 = arith.constant 0 : index
    %59 = vector.load %arg3[%c0_15, %c0_16] : memref<512x128xf32, #tpu.memory_space<vmem>>, vector<512x128xf32>
    tpu.vector_store %arg3[%c0_15, %c0_16], %58 {strides = array<i32>} : memref<512x128xf32, #tpu.memory_space<vmem>>, vector<512x128xf32>,
    return
  }
  func.func @transform_0(%arg0: i32) -> (i32, i32) {
    %c0_i32 = arith.constant 0 : i32
    %c0_i32_0 = arith.constant 0 : i32
    return %arg0, %c0_i32 : i32, i32
  }
  func.func @transform_1(%arg0: i32) -> (i32, i32) {
    %c0_i32 = arith.constant 0 : i32
    %c0_i32_0 = arith.constant 0 : i32
    %c0_i32_1 = arith.constant 0 : i32
    return %c0_i32, %c0_i32_0 : i32, i32
  }
  func.func @transform_2(%arg0: i32) -> (i32, i32) {
    %c0_i32 = arith.constant 0 : i32
    %c0_i32_0 = arith.constant 0 : i32
    return %arg0, %c0_i32 : i32, i32
  }
}

</mosaic_0001>

<llo_original>
// kernel: tpu_custom_call.1
$region0: #{tpu_custom_call.1}
  #allocation0 [shape = 'u32[]', space=smem, size = 0x4, offset = 0x4, fixed_abs, tag = 'smem constant byte address 0x4 - core index']
  #allocation1 [shape = 'u32[72,128]{1,0:T(1,128)}', space=vmem, size = 0x9000, scoped, tag = 'internal scratch']
  %s0 = inlined_call_operand.vmem [shape: f32[512,8], index: 0, kind: input, shape index: {}]
  %s1 = inlined_call_operand.vmem [shape: f32[48,128], index: 1, kind: input, shape index: {}]
  %s2 = inlined_call_operand.hbm [shape: f32[512,128], index: 2, kind: output, shape index: {}]
  %s3 = sld [smem:[#allocation0]]
  $region18: #{tpu_custom_call.1} parent=0
    _
  %s5 = ssub.s32 1, %s3
  %s6 = scalar_select 0, %s5, %s3
  $region1: #{tpu_custom_call.1} parent=0
    #allocation2 [shape = 'u8[262144]{0}', space=vmem, size = 0x40000, scoped, tag = 'output window, operand 0, single buffered']
    #allocation3 [shape = 's32[1]{0}', space=sflag, size = 0x4, scoped, tag = 'scoped memory for tpu_custom_call.1']
    %7 = vsyncpa [#allocation3], 0
    // Predicated region
    $region2: #{tpu_custom_call.1} parent=1 // pred_check
      _
    $region3: #{tpu_custom_call.1} parent=1 // pred_check_branch
      %9 = sbr.rel (0) target = $region5
    $region4: #{tpu_custom_call.1} parent=1 // pred_region
      _
    $region5: #{tpu_custom_call.1} parent=1 // pred_fallthru
      _
    // Predicated region
    $region6: #{tpu_custom_call.1} parent=1 // pred_check
      _
    $region7: #{tpu_custom_call.1} parent=1 // pred_check_branch
      %11 = sbr.rel (0) target = $region9
    $region8: #{tpu_custom_call.1} parent=1 // pred_region
      _
    $region9: #{tpu_custom_call.1} parent=1 // pred_fallthru
      _
    %v12 = vld [vmem:[%s0] sm:$0xff]
    %v13 = vld [vmem:[%s0 + $0x8] sm:$0xff]
    %v14 = vld [vmem:[%s0 + $0x10] sm:$0xff]
    %v15 = vld [vmem:[%s0 + $0x18] sm:$0xff]
    %v16 = vld [vmem:[%s0 + $0x20] sm:$0xff]
    %v17 = vld [vmem:[%s0 + $0x28] sm:$0xff]
    %v18 = vld [vmem:[%s0 + $0x30] sm:$0xff]
    %v19 = vld [vmem:[%s0 + $0x38] sm:$0xff]
    %v20 = vld [vmem:[%s0 + $0x40] sm:$0xff]
    %v21 = vld [vmem:[%s0 + $0x48] sm:$0xff]
    %v22 = vld [vmem:[%s0 + $0x50] sm:$0xff]
    %v23 = vld [vmem:[%s0 + $0x58] sm:$0xff]
    %v24 = vld [vmem:[%s0 + $0x60] sm:$0xff]
    %v25 = vld [vmem:[%s0 + $0x68] sm:$0xff]
    %v26 = vld [vmem:[%s0 + $0x70] sm:$0xff]
    %v27 = vld [vmem:[%s0 + $0x78] sm:$0xff]
    %v28 = vld [vmem:[%s0 + $0x80] sm:$0xff]
    %v29 = vld [vmem:[%s0 + $0x88] sm:$0xff]
    %v30 = vld [vmem:[%s0 + $0x90] sm:$0xff]
    %v31 = vld [vmem:[%s0 + $0x98] sm:$0xff]
    %v32 = vld [vmem:[%s0 + $0xa0] sm:$0xff]
    %v33 = vld [vmem:[%s0 + $0xa8] sm:$0xff]
    %v34 = vld [vmem:[%s0 + $0xb0] sm:$0xff]
    %v35 = vld [vmem:[%s0 + $0xb8] sm:$0xff]
    %v36 = vld [vmem:[%s0 + $0xc0] sm:$0xff]
    %v37 = vld [vmem:[%s0 + $0xc8] sm:$0xff]
    %v38 = vld [vmem:[%s0 + $0xd0] sm:$0xff]
    %v39 = vld [vmem:[%s0 + $0xd8] sm:$0xff]
    %v40 = vld [vmem:[%s0 + $0xe0] sm:$0xff]
    %v41 = vld [vmem:[%s0 + $0xe8] sm:$0xff]
    %v42 = vld [vmem:[%s0 + $0xf0] sm:$0xff]
    %v43 = vld [vmem:[%s0 + $0xf8] sm:$0xff]
    %v44 = vld [vmem:[%s0 + $0x100] sm:$0xff]
    %v45 = vld [vmem:[%s0 + $0x108] sm:$0xff]
    %v46 = vld [vmem:[%s0 + $0x110] sm:$0xff]
    %v47 = vld [vmem:[%s0 + $0x118] sm:$0xff]
    %v48 = vld [vmem:[%s0 + $0x120] sm:$0xff]
    %v49 = vld [vmem:[%s0 + $0x128] sm:$0xff]
    %v50 = vld [vmem:[%s0 + $0x130] sm:$0xff]
    %v51 = vld [vmem:[%s0 + $0x138] sm:$0xff]
    %v52 = vld [vmem:[%s0 + $0x140] sm:$0xff]
    %v53 = vld [vmem:[%s0 + $0x148] sm:$0xff]
    %v54 = vld [vmem:[%s0 + $0x150] sm:$0xff]
    %v55 = vld [vmem:[%s0 + $0x158] sm:$0xff]
    %v56 = vld [vmem:[%s0 + $0x160] sm:$0xff]
    %v57 = vld [vmem:[%s0 + $0x168] sm:$0xff]
    %v58 = vld [vmem:[%s0 + $0x170] sm:$0xff]
    %v59 = vld [vmem:[%s0 + $0x178] sm:$0xff]
    %v60 = vld [vmem:[%s0 + $0x180] sm:$0xff]
    %v61 = vld [vmem:[%s0 + $0x188] sm:$0xff]
    %v62 = vld [vmem:[%s0 + $0x190] sm:$0xff]
    %v63 = vld [vmem:[%s0 + $0x198] sm:$0xff]
    %v64 = vld [vmem:[%s0 + $0x1a0] sm:$0xff]
    %v65 = vld [vmem:[%s0 + $0x1a8] sm:$0xff]
    %v66 = vld [vmem:[%s0 + $0x1b0] sm:$0xff]
    %v67 = vld [vmem:[%s0 + $0x1b8] sm:$0xff]
    %v68 = vld [vmem:[%s0 + $0x1c0] sm:$0xff]
    %v69 = vld [vmem:[%s0 + $0x1c8] sm:$0xff]
    %v70 = vld [vmem:[%s0 + $0x1d0] sm:$0xff]
    %v71 = vld [vmem:[%s0 + $0x1d8] sm:$0xff]
    %v72 = vld [vmem:[%s0 + $0x1e0] sm:$0xff]
    %v73 = vld [vmem:[%s0 + $0x1e8] sm:$0xff]
    %v74 = vld [vmem:[%s0 + $0x1f0] sm:$0xff]
    %v75 = vld [vmem:[%s0 + $0x1f8] sm:$0xff]
    %vm76 = vcmp.ne.f32.partialorder %v12, %v12
    %vm77 = vcmp.ne.f32.partialorder %v13, %v13
    %vm78 = vcmp.ne.f32.partialorder %v14, %v14
    %vm79 = vcmp.ne.f32.partialorder %v15, %v15
    %vm80 = vcmp.ne.f32.partialorder %v16, %v16
    %vm81 = vcmp.ne.f32.partialorder %v17, %v17
    %vm82 = vcmp.ne.f32.partialorder %v18, %v18
    %vm83 = vcmp.ne.f32.partialorder %v19, %v19
    %vm84 = vcmp.ne.f32.partialorder %v20, %v20
    %vm85 = vcmp.ne.f32.partialorder %v21, %v21
    %vm86 = vcmp.ne.f32.partialorder %v22, %v22
    %vm87 = vcmp.ne.f32.partialorder %v23, %v23
    %vm88 = vcmp.ne.f32.partialorder %v24, %v24
    %vm89 = vcmp.ne.f32.partialorder %v25, %v25
    %vm90 = vcmp.ne.f32.partialorder %v26, %v26
    %vm91 = vcmp.ne.f32.partialorder %v27, %v27
    %vm92 = vcmp.ne.f32.partialorder %v28, %v28
    %vm93 = vcmp.ne.f32.partialorder %v29, %v29
    %vm94 = vcmp.ne.f32.partialorder %v30, %v30
    %vm95 = vcmp.ne.f32.partialorder %v31, %v31
    %vm96 = vcmp.ne.f32.partialorder %v32, %v32
    %vm97 = vcmp.ne.f32.partialorder %v33, %v33
    %vm98 = vcmp.ne.f32.partialorder %v34, %v34
    %vm99 = vcmp.ne.f32.partialorder %v35, %v35
    %vm100 = vcmp.ne.f32.partialorder %v36, %v36
    %vm101 = vcmp.ne.f32.partialorder %v37, %v37
    %vm102 = vcmp.ne.f32.partialorder %v38, %v38
    %vm103 = vcmp.ne.f32.partialorder %v39, %v39
    %vm104 = vcmp.ne.f32.partialorder %v40, %v40
    %vm105 = vcmp.ne.f32.partialorder %v41, %v41
    %vm106 = vcmp.ne.f32.partialorder %v42, %v42
    %vm107 = vcmp.ne.f32.partialorder %v43, %v43
    %vm108 = vcmp.ne.f32.partialorder %v44, %v44
    %vm109 = vcmp.ne.f32.partialorder %v45, %v45
    %vm110 = vcmp.ne.f32.partialorder %v46, %v46
    %vm111 = vcmp.ne.f32.partialorder %v47, %v47
    %vm112 = vcmp.ne.f32.partialorder %v48, %v48
    %vm113 = vcmp.ne.f32.partialorder %v49, %v49
    %vm114 = vcmp.ne.f32.partialorder %v50, %v50
    %vm115 = vcmp.ne.f32.partialorder %v51, %v51
    %vm116 = vcmp.ne.f32.partialorder %v52, %v52
    %vm117 = vcmp.ne.f32.partialorder %v53, %v53
    %vm118 = vcmp.ne.f32.partialorder %v54, %v54
    %vm119 = vcmp.ne.f32.partialorder %v55, %v55
    %vm120 = vcmp.ne.f32.partialorder %v56, %v56
    %vm121 = vcmp.ne.f32.partialorder %v57, %v57
    %vm122 = vcmp.ne.f32.partialorder %v58, %v58
    %vm123 = vcmp.ne.f32.partialorder %v59, %v59
    %vm124 = vcmp.ne.f32.partialorder %v60, %v60
    %vm125 = vcmp.ne.f32.partialorder %v61, %v61
    %vm126 = vcmp.ne.f32.partialorder %v62, %v62
    %vm127 = vcmp.ne.f32.partialorder %v63, %v63
    %vm128 = vcmp.ne.f32.partialorder %v64, %v64
    %vm129 = vcmp.ne.f32.partialorder %v65, %v65
    %vm130 = vcmp.ne.f32.partialorder %v66, %v66
    %vm131 = vcmp.ne.f32.partialorder %v67, %v67
    %vm132 = vcmp.ne.f32.partialorder %v68, %v68
    %vm133 = vcmp.ne.f32.partialorder %v69, %v69
    %vm134 = vcmp.ne.f32.partialorder %v70, %v70
    %vm135 = vcmp.ne.f32.partialorder %v71, %v71
    %vm136 = vcmp.ne.f32.partialorder %v72, %v72
    %vm137 = vcmp.ne.f32.partialorder %v73, %v73
    %vm138 = vcmp.ne.f32.partialorder %v74, %v74
    %vm139 = vcmp.ne.f32.partialorder %v75, %v75
    %v140 = vsel %vm76, 0.0, %v12
    %v141 = vsel %vm77, 0.0, %v13
    %v142 = vsel %vm78, 0.0, %v14
    %v143 = vsel %vm79, 0.0, %v15
    %v144 = vsel %vm80, 0.0, %v16
    %v145 = vsel %vm81, 0.0, %v17
    %v146 = vsel %vm82, 0.0, %v18
    %v147 = vsel %vm83, 0.0, %v19
    %v148 = vsel %vm84, 0.0, %v20
    %v149 = vsel %vm85, 0.0, %v21
    %v150 = vsel %vm86, 0.0, %v22
    %v151 = vsel %vm87, 0.0, %v23
    %v152 = vsel %vm88, 0.0, %v24
    %v153 = vsel %vm89, 0.0, %v25
    %v154 = vsel %vm90, 0.0, %v26
    %v155 = vsel %vm91, 0.0, %v27
    %v156 = vsel %vm92, 0.0, %v28
    %v157 = vsel %vm93, 0.0, %v29
    %v158 = vsel %vm94, 0.0, %v30
    %v159 = vsel %vm95, 0.0, %v31
    %v160 = vsel %vm96, 0.0, %v32
    %v161 = vsel %vm97, 0.0, %v33
    %v162 = vsel %vm98, 0.0, %v34
    %v163 = vsel %vm99, 0.0, %v35
    %v164 = vsel %vm100, 0.0, %v36
    %v165 = vsel %vm101, 0.0, %v37
    %v166 = vsel %vm102, 0.0, %v38
    %v167 = vsel %vm103, 0.0, %v39
    %v168 = vsel %vm104, 0.0, %v40
    %v169 = vsel %vm105, 0.0, %v41
    %v170 = vsel %vm106, 0.0, %v42
    %v171 = vsel %vm107, 0.0, %v43
    %v172 = vsel %vm108, 0.0, %v44
    %v173 = vsel %vm109, 0.0, %v45
    %v174 = vsel %vm110, 0.0, %v46
    %v175 = vsel %vm111, 0.0, %v47
    %v176 = vsel %vm112, 0.0, %v48
    %v177 = vsel %vm113, 0.0, %v49
    %v178 = vsel %vm114, 0.0, %v50
    %v179 = vsel %vm115, 0.0, %v51
    %v180 = vsel %vm116, 0.0, %v52
    %v181 = vsel %vm117, 0.0, %v53
    %v182 = vsel %vm118, 0.0, %v54
    %v183 = vsel %vm119, 0.0, %v55
    %v184 = vsel %vm120, 0.0, %v56
    %v185 = vsel %vm121, 0.0, %v57
    %v186 = vsel %vm122, 0.0, %v58
    %v187 = vsel %vm123, 0.0, %v59
    %v188 = vsel %vm124, 0.0, %v60
    %v189 = vsel %vm125, 0.0, %v61
    %v190 = vsel %vm126, 0.0, %v62
    %v191 = vsel %vm127, 0.0, %v63
    %v192 = vsel %vm128, 0.0, %v64
    %v193 = vsel %vm129, 0.0, %v65
    %v194 = vsel %vm130, 0.0, %v66
    %v195 = vsel %vm131, 0.0, %v67
    %v196 = vsel %vm132, 0.0, %v68
    %v197 = vsel %vm133, 0.0, %v69
    %v198 = vsel %vm134, 0.0, %v70
    %v199 = vsel %vm135, 0.0, %v71
    %v200 = vsel %vm136, 0.0, %v72
    %v201 = vsel %vm137, 0.0, %v73
    %v202 = vsel %vm138, 0.0, %v74
    %v203 = vsel %vm139, 0.0, %v75
    %v204 = vld [vmem:[%s1 + $0x4] sm:$0x1]
    %v205 = vperm.slane %v204, 0
    %v206 = vld [vmem:[%s1] sm:$0x1]
    %208 = vset.pattern.permute.xlu0 0
    %209 = vperm.xlu0 %208, %v140
    %v210 = vpop.permute.xlu0 %209
    %213 = vset.pattern.permute.xlu0 0
    %214 = vperm.xlu0 %213, %v141
    %v215 = vpop.permute.xlu0 %214
    %218 = vset.pattern.permute.xlu0 0
    %219 = vperm.xlu0 %218, %v142
    %v220 = vpop.permute.xlu0 %219
    %223 = vset.pattern.permute.xlu0 0
    %224 = vperm.xlu0 %223, %v143
    %v225 = vpop.permute.xlu0 %224
    %228 = vset.pattern.permute.xlu0 0
    %229 = vperm.xlu0 %228, %v144
    %v230 = vpop.permute.xlu0 %229
    %233 = vset.pattern.permute.xlu0 0
    %234 = vperm.xlu0 %233, %v145
    %v235 = vpop.permute.xlu0 %234
    %238 = vset.pattern.permute.xlu0 0
    %239 = vperm.xlu0 %238, %v146
    %v240 = vpop.permute.xlu0 %239
    %243 = vset.pattern.permute.xlu0 0
    %244 = vperm.xlu0 %243, %v147
    %v245 = vpop.permute.xlu0 %244
    %248 = vset.pattern.permute.xlu0 0
    %249 = vperm.xlu0 %248, %v148
    %v250 = vpop.permute.xlu0 %249
    %253 = vset.pattern.permute.xlu0 0
    %254 = vperm.xlu0 %253, %v149
    %v255 = vpop.permute.xlu0 %254
    %258 = vset.pattern.permute.xlu0 0
    %259 = vperm.xlu0 %258, %v150
    %v260 = vpop.permute.xlu0 %259
    %263 = vset.pattern.permute.xlu0 0
    %264 = vperm.xlu0 %263, %v151
    %v265 = vpop.permute.xlu0 %264
    %268 = vset.pattern.permute.xlu0 0
    %269 = vperm.xlu0 %268, %v152
    %v270 = vpop.permute.xlu0 %269
    %273 = vset.pattern.permute.xlu0 0
    %274 = vperm.xlu0 %273, %v153
    %v275 = vpop.permute.xlu0 %274
    %278 = vset.pattern.permute.xlu0 0
    %279 = vperm.xlu0 %278, %v154
    %v280 = vpop.permute.xlu0 %279
    %283 = vset.pattern.permute.xlu0 0
    %284 = vperm.xlu0 %283, %v155
    %v285 = vpop.permute.xlu0 %284
    %288 = vset.pattern.permute.xlu0 0
    %289 = vperm.xlu0 %288, %v156
    %v290 = vpop.permute.xlu0 %289
    %293 = vset.pattern.permute.xlu0 0
    %294 = vperm.xlu0 %293, %v157
    %v295 = vpop.permute.xlu0 %294
    %298 = vset.pattern.permute.xlu0 0
    %299 = vperm.xlu0 %298, %v158
    %v300 = vpop.permute.xlu0 %299
    %303 = vset.pattern.permute.xlu0 0
    %304 = vperm.xlu0 %303, %v159
    %v305 = vpop.permute.xlu0 %304
    %308 = vset.pattern.permute.xlu0 0
    %309 = vperm.xlu0 %308, %v160
    %v310 = vpop.permute.xlu0 %309
    %313 = vset.pattern.permute.xlu0 0
    %314 = vperm.xlu0 %313, %v161
    %v315 = vpop.permute.xlu0 %314
    %318 = vset.pattern.permute.xlu0 0
    %319 = vperm.xlu0 %318, %v162
    %v320 = vpop.permute.xlu0 %319
    %323 = vset.pattern.permute.xlu0 0
    %324 = vperm.xlu0 %323, %v163
    %v325 = vpop.permute.xlu0 %324
    %328 = vset.pattern.permute.xlu0 0
    %329 = vperm.xlu0 %328, %v164
    %v330 = vpop.permute.xlu0 %329
    %333 = vset.pattern.permute.xlu0 0
    %334 = vperm.xlu0 %333, %v165
    %v335 = vpop.permute.xlu0 %334
    %338 = vset.pattern.permute.xlu0 0
    %339 = vperm.xlu0 %338, %v166
    %v340 = vpop.permute.xlu0 %339
    %343 = vset.pattern.permute.xlu0 0
    %344 = vperm.xlu0 %343, %v167
    %v345 = vpop.permute.xlu0 %344
    %348 = vset.pattern.permute.xlu0 0
    %349 = vperm.xlu0 %348, %v168
    %v350 = vpop.permute.xlu0 %349
    %353 = vset.pattern.permute.xlu0 0
    %354 = vperm.xlu0 %353, %v169
    %v355 = vpop.permute.xlu0 %354
    %358 = vset.pattern.permute.xlu0 0
    %359 = vperm.xlu0 %358, %v170
    %v360 = vpop.permute.xlu0 %359
    %363 = vset.pattern.permute.xlu0 0
    %364 = vperm.xlu0 %363, %v171
    %v365 = vpop.permute.xlu0 %364
    %368 = vset.pattern.permute.xlu0 0
    %369 = vperm.xlu0 %368, %v172
    %v370 = vpop.permute.xlu0 %369
    %373 = vset.pattern.permute.xlu0 0
    %374 = vperm.xlu0 %373, %v173
    %v375 = vpop.permute.xlu0 %374
    %378 = vset.pattern.permute.xlu0 0
    %379 = vperm.xlu0 %378, %v174
    %v380 = vpop.permute.xlu0 %379
    %383 = vset.pattern.permute.xlu0 0
    %384 = vperm.xlu0 %383, %v175
    %v385 = vpop.permute.xlu0 %384
    %388 = vset.pattern.permute.xlu0 0
    %389 = vperm.xlu0 %388, %v176
    %v390 = vpop.permute.xlu0 %389
    %393 = vset.pattern.permute.xlu0 0
    %394 = vperm.xlu0 %393, %v177
    %v395 = vpop.permute.xlu0 %394
    %398 = vset.pattern.permute.xlu0 0
    %399 = vperm.xlu0 %398, %v178
    %v400 = vpop.permute.xlu0 %399
    %403 = vset.pattern.permute.xlu0 0
    %404 = vperm.xlu0 %403, %v179
    %v405 = vpop.permute.xlu0 %404
    %408 = vset.pattern.permute.xlu0 0
    %409 = vperm.xlu0 %408, %v180
    %v410 = vpop.permute.xlu0 %409
    %413 = vset.pattern.permute.xlu0 0
    %414 = vperm.xlu0 %413, %v181
    %v415 = vpop.permute.xlu0 %414
    %418 = vset.pattern.permute.xlu0 0
    %419 = vperm.xlu0 %418, %v182
    %v420 = vpop.permute.xlu0 %419
    %423 = vset.pattern.permute.xlu0 0
    %424 = vperm.xlu0 %423, %v183
    %v425 = vpop.permute.xlu0 %424
    %428 = vset.pattern.permute.xlu0 0
    %429 = vperm.xlu0 %428, %v184
    %v430 = vpop.permute.xlu0 %429
    %433 = vset.pattern.permute.xlu0 0
    %434 = vperm.xlu0 %433, %v185
    %v435 = vpop.permute.xlu0 %434
    %438 = vset.pattern.permute.xlu0 0
    %439 = vperm.xlu0 %438, %v186
    %v440 = vpop.permute.xlu0 %439
    %443 = vset.pattern.permute.xlu0 0
    %444 = vperm.xlu0 %443, %v187
    %v445 = vpop.permute.xlu0 %444
    %448 = vset.pattern.permute.xlu0 0
    %449 = vperm.xlu0 %448, %v188
    %v450 = vpop.permute.xlu0 %449
    %453 = vset.pattern.permute.xlu0 0
    %454 = vperm.xlu0 %453, %v189
    %v455 = vpop.permute.xlu0 %454
    %458 = vset.pattern.permute.xlu0 0
    %459 = vperm.xlu0 %458, %v190
    %v460 = vpop.permute.xlu0 %459
    %463 = vset.pattern.permute.xlu0 0
    %464 = vperm.xlu0 %463, %v191
    %v465 = vpop.permute.xlu0 %464
    %468 = vset.pattern.permute.xlu0 0
    %469 = vperm.xlu0 %468, %v192
    %v470 = vpop.permute.xlu0 %469
    %473 = vset.pattern.permute.xlu0 0
    %474 = vperm.xlu0 %473, %v193
    %v475 = vpop.permute.xlu0 %474
    %478 = vset.pattern.permute.xlu0 0
    %479 = vperm.xlu0 %478, %v194
    %v480 = vpop.permute.xlu0 %479
    %483 = vset.pattern.permute.xlu0 0
    %484 = vperm.xlu0 %483, %v195
    %v485 = vpop.permute.xlu0 %484
    %488 = vset.pattern.permute.xlu0 0
    %489 = vperm.xlu0 %488, %v196
    %v490 = vpop.permute.xlu0 %489
    %493 = vset.pattern.permute.xlu0 0
    %494 = vperm.xlu0 %493, %v197
    %v495 = vpop.permute.xlu0 %494
    %498 = vset.pattern.permute.xlu0 0
    %499 = vperm.xlu0 %498, %v198
    %v500 = vpop.permute.xlu0 %499
    %503 = vset.pattern.permute.xlu0 0
    %504 = vperm.xlu0 %503, %v199
    %v505 = vpop.permute.xlu0 %504
    %508 = vset.pattern.permute.xlu0 0
    %509 = vperm.xlu0 %508, %v200
    %v510 = vpop.permute.xlu0 %509
    %513 = vset.pattern.permute.xlu0 0
    %514 = vperm.xlu0 %513, %v201
    %v515 = vpop.permute.xlu0 %514
    %518 = vset.pattern.permute.xlu0 0
    %519 = vperm.xlu0 %518, %v202
    %v520 = vpop.permute.xlu0 %519
    %523 = vset.pattern.permute.xlu0 0
    %524 = vperm.xlu0 %523, %v203
    %v525 = vpop.permute.xlu0 %524
    %v527 = vperm.slane %v206, 0
    %v528 = vmul.f32 %v210, %v527
    %v529 = vmul.f32 %v215, %v527
    %v530 = vmul.f32 %v220, %v527
    %v531 = vmul.f32 %v225, %v527
    %v532 = vmul.f32 %v230, %v527
    %v533 = vmul.f32 %v235, %v527
    %v534 = vmul.f32 %v240, %v527
    %v535 = vmul.f32 %v245, %v527
    %v536 = vmul.f32 %v250, %v527
    %v537 = vmul.f32 %v255, %v527
    %v538 = vmul.f32 %v260, %v527
    %v539 = vmul.f32 %v265, %v527
    %v540 = vmul.f32 %v270, %v527
    %v541 = vmul.f32 %v275, %v527
    %v542 = vmul.f32 %v280, %v527
    %v543 = vmul.f32 %v285, %v527
    %v544 = vmul.f32 %v290, %v527
    %v545 = vmul.f32 %v295, %v527
    %v546 = vmul.f32 %v300, %v527
    %v547 = vmul.f32 %v305, %v527
    %v548 = vmul.f32 %v310, %v527
    %v549 = vmul.f32 %v315, %v527
    %v550 = vmul.f32 %v320, %v527
    %v551 = vmul.f32 %v325, %v527
    %v552 = vmul.f32 %v330, %v527
    %v553 = vmul.f32 %v335, %v527
    %v554 = vmul.f32 %v340, %v527
    %v555 = vmul.f32 %v345, %v527
    %v556 = vmul.f32 %v350, %v527
    %v557 = vmul.f32 %v355, %v527
    %v558 = vmul.f32 %v360, %v527
    %v559 = vmul.f32 %v365, %v527
    %v560 = vmul.f32 %v370, %v527
    %v561 = vmul.f32 %v375, %v527
    %v562 = vmul.f32 %v380, %v527
    %v563 = vmul.f32 %v385, %v527
    %v564 = vmul.f32 %v390, %v527
    %v565 = vmul.f32 %v395, %v527
    %v566 = vmul.f32 %v400, %v527
    %v567 = vmul.f32 %v405, %v527
    %v568 = vmul.f32 %v410, %v527
    %v569 = vmul.f32 %v415, %v527
    %v570 = vmul.f32 %v420, %v527
    %v571 = vmul.f32 %v425, %v527
    %v572 = vmul.f32 %v430, %v527
    %v573 = vmul.f32 %v435, %v527
    %v574 = vmul.f32 %v440, %v527
    %v575 = vmul.f32 %v445, %v527
    %v576 = vmul.f32 %v450, %v527
    %v577 = vmul.f32 %v455, %v527
    %v578 = vmul.f32 %v460, %v527
    %v579 = vmul.f32 %v465, %v527
    %v580 = vmul.f32 %v470, %v527
    %v581 = vmul.f32 %v475, %v527
    %v582 = vmul.f32 %v480, %v527
    %v583 = vmul.f32 %v485, %v527
    %v584 = vmul.f32 %v490, %v527
    %v585 = vmul.f32 %v495, %v527
    %v586 = vmul.f32 %v500, %v527
    %v587 = vmul.f32 %v505, %v527
    %v588 = vmul.f32 %v510, %v527
    %v589 = vmul.f32 %v515, %v527
    %v590 = vmul.f32 %v520, %v527
    %v591 = vmul.f32 %v525, %v527
    %v592 = vadd.f32 %v205, %v528
    %v593 = vadd.f32 %v205, %v529
    %v594 = vadd.f32 %v205, %v530
    %v595 = vadd.f32 %v205, %v531
    %v596 = vadd.f32 %v205, %v532
    %v597 = vadd.f32 %v205, %v533
    %v598 = vadd.f32 %v205, %v534
    %v599 = vadd.f32 %v205, %v535
    %v600 = vadd.f32 %v205, %v536
    %v601 = vadd.f32 %v205, %v537
    %v602 = vadd.f32 %v205, %v538
    %v603 = vadd.f32 %v205, %v539
    %v604 = vadd.f32 %v205, %v540
    %v605 = vadd.f32 %v205, %v541
    %v606 = vadd.f32 %v205, %v542
    %v607 = vadd.f32 %v205, %v543
    %v608 = vadd.f32 %v205, %v544
    %v609 = vadd.f32 %v205, %v545
    %v610 = vadd.f32 %v205, %v546
    %v611 = vadd.f32 %v205, %v547
    %v612 = vadd.f32 %v205, %v548
    %v613 = vadd.f32 %v205, %v549
    %v614 = vadd.f32 %v205, %v550
    %v615 = vadd.f32 %v205, %v551
    %v616 = vadd.f32 %v205, %v552
    %v617 = vadd.f32 %v205, %v553
    %v618 = vadd.f32 %v205, %v554
    %v619 = vadd.f32 %v205, %v555
    %v620 = vadd.f32 %v205, %v556
    %v621 = vadd.f32 %v205, %v557
    %v622 = vadd.f32 %v205, %v558
    %v623 = vadd.f32 %v205, %v559
    %v624 = vadd.f32 %v205, %v560
    %v625 = vadd.f32 %v205, %v561
    %v626 = vadd.f32 %v205, %v562
    %v627 = vadd.f32 %v205, %v563
    %v628 = vadd.f32 %v205, %v564
    %v629 = vadd.f32 %v205, %v565
    %v630 = vadd.f32 %v205, %v566
    %v631 = vadd.f32 %v205, %v567
    %v632 = vadd.f32 %v205, %v568
    %v633 = vadd.f32 %v205, %v569
    %v634 = vadd.f32 %v205, %v570
    %v635 = vadd.f32 %v205, %v571
    %v636 = vadd.f32 %v205, %v572
    %v637 = vadd.f32 %v205, %v573
    %v638 = vadd.f32 %v205, %v574
    %v639 = vadd.f32 %v205, %v575
    %v640 = vadd.f32 %v205, %v576
    %v641 = vadd.f32 %v205, %v577
    %v642 = vadd.f32 %v205, %v578
    %v643 = vadd.f32 %v205, %v579
    %v644 = vadd.f32 %v205, %v580
    %v645 = vadd.f32 %v205, %v581
    %v646 = vadd.f32 %v205, %v582
    %v647 = vadd.f32 %v205, %v583
    %v648 = vadd.f32 %v205, %v584
    %v649 = vadd.f32 %v205, %v585
    %v650 = vadd.f32 %v205, %v586
    %v651 = vadd.f32 %v205, %v587
    %v652 = vadd.f32 %v205, %v588
    %v653 = vadd.f32 %v205, %v589
    %v654 = vadd.f32 %v205, %v590
    %v655 = vadd.f32 %v205, %v591
    %v656 = vld [vmem:[%s1 + $0x1] sm:$0x1]
    %657 = vset.pattern.permute.xlu0 1
    %658 = vperm.xlu0 %657, %v140
    %v659 = vpop.permute.xlu0 %658
    %661 = vset.pattern.permute.xlu0 1
    %662 = vperm.xlu0 %661, %v141
    %v663 = vpop.permute.xlu0 %662
    %665 = vset.pattern.permute.xlu0 1
    %666 = vperm.xlu0 %665, %v142
    %v667 = vpop.permute.xlu0 %666
    %669 = vset.pattern.permute.xlu0 1
    %670 = vperm.xlu0 %669, %v143
    %v671 = vpop.permute.xlu0 %670
    %673 = vset.pattern.permute.xlu0 1
    %674 = vperm.xlu0 %673, %v144
    %v675 = vpop.permute.xlu0 %674
    %677 = vset.pattern.permute.xlu0 1
    %678 = vperm.xlu0 %677, %v145
    %v679 = vpop.permute.xlu0 %678
    %681 = vset.pattern.permute.xlu0 1
    %682 = vperm.xlu0 %681, %v146
    %v683 = vpop.permute.xlu0 %682
    %685 = vset.pattern.permute.xlu0 1
    %686 = vperm.xlu0 %685, %v147
    %v687 = vpop.permute.xlu0 %686
    %689 = vset.pattern.permute.xlu0 1
    %690 = vperm.xlu0 %689, %v148
    %v691 = vpop.permute.xlu0 %690
    %693 = vset.pattern.permute.xlu0 1
    %694 = vperm.xlu0 %693, %v149
    %v695 = vpop.permute.xlu0 %694
    %697 = vset.pattern.permute.xlu0 1
    %698 = vperm.xlu0 %697, %v150
    %v699 = vpop.permute.xlu0 %698
    %701 = vset.pattern.permute.xlu0 1
    %702 = vperm.xlu0 %701, %v151
    %v703 = vpop.permute.xlu0 %702
    %705 = vset.pattern.permute.xlu0 1
    %706 = vperm.xlu0 %705, %v152
    %v707 = vpop.permute.xlu0 %706
    %709 = vset.pattern.permute.xlu0 1
    %710 = vperm.xlu0 %709, %v153
    %v711 = vpop.permute.xlu0 %710
    %713 = vset.pattern.permute.xlu0 1
    %714 = vperm.xlu0 %713, %v154
    %v715 = vpop.permute.xlu0 %714
    %717 = vset.pattern.permute.xlu0 1
    %718 = vperm.xlu0 %717, %v155
    %v719 = vpop.permute.xlu0 %718
    %721 = vset.pattern.permute.xlu0 1
    %722 = vperm.xlu0 %721, %v156
    %v723 = vpop.permute.xlu0 %722
    %725 = vset.pattern.permute.xlu0 1
    %726 = vperm.xlu0 %725, %v157
    %v727 = vpop.permute.xlu0 %726
    %729 = vset.pattern.permute.xlu0 1
    %730 = vperm.xlu0 %729, %v158
    %v731 = vpop.permute.xlu0 %730
    %733 = vset.pattern.permute.xlu0 1
    %734 = vperm.xlu0 %733, %v159
    %v735 = vpop.permute.xlu0 %734
    %737 = vset.pattern.permute.xlu0 1
    %738 = vperm.xlu0 %737, %v160
    %v739 = vpop.permute.xlu0 %738
    %741 = vset.pattern.permute.xlu0 1
    %742 = vperm.xlu0 %741, %v161
    %v743 = vpop.permute.xlu0 %742
    %745 = vset.pattern.permute.xlu0 1
    %746 = vperm.xlu0 %745, %v162
    %v747 = vpop.permute.xlu0 %746
    %749 = vset.pattern.permute.xlu0 1
    %750 = vperm.xlu0 %749, %v163
    %v751 = vpop.permute.xlu0 %750
    %753 = vset.pattern.permute.xlu0 1
    %754 = vperm.xlu0 %753, %v164
    %v755 = vpop.permute.xlu0 %754
    %757 = vset.pattern.permute.xlu0 1
    %758 = vperm.xlu0 %757, %v165
    %v759 = vpop.permute.xlu0 %758
    %761 = vset.pattern.permute.xlu0 1
    %762 = vperm.xlu0 %761, %v166
    %v763 = vpop.permute.xlu0 %762
    %765 = vset.pattern.permute.xlu0 1
    %766 = vperm.xlu0 %765, %v167
    %v767 = vpop.permute.xlu0 %766
    %769 = vset.pattern.permute.xlu0 1
    %770 = vperm.xlu0 %769, %v168
    %v771 = vpop.permute.xlu0 %770
    %773 = vset.pattern.permute.xlu0 1
    %774 = vperm.xlu0 %773, %v169
    %v775 = vpop.permute.xlu0 %774
    %777 = vset.pattern.permute.xlu0 1
    %778 = vperm.xlu0 %777, %v170
    %v779 = vpop.permute.xlu0 %778
    %781 = vset.pattern.permute.xlu0 1
    %782 = vperm.xlu0 %781, %v171
    %v783 = vpop.permute.xlu0 %782
    %785 = vset.pattern.permute.xlu0 1
    %786 = vperm.xlu0 %785, %v172
    %v787 = vpop.permute.xlu0 %786
    %789 = vset.pattern.permute.xlu0 1
    %790 = vperm.xlu0 %789, %v173
    %v791 = vpop.permute.xlu0 %790
    %793 = vset.pattern.permute.xlu0 1
    %794 = vperm.xlu0 %793, %v174
    %v795 = vpop.permute.xlu0 %794
    %797 = vset.pattern.permute.xlu0 1
    %798 = vperm.xlu0 %797, %v175
    %v799 = vpop.permute.xlu0 %798
    %801 = vset.pattern.permute.xlu0 1
    %802 = vperm.xlu0 %801, %v176
    %v803 = vpop.permute.xlu0 %802
    %805 = vset.pattern.permute.xlu0 1
    %806 = vperm.xlu0 %805, %v177
    %v807 = vpop.permute.xlu0 %806
    %809 = vset.pattern.permute.xlu0 1
    %810 = vperm.xlu0 %809, %v178
    %v811 = vpop.permute.xlu0 %810
    %813 = vset.pattern.permute.xlu0 1
    %814 = vperm.xlu0 %813, %v179
    %v815 = vpop.permute.xlu0 %814
    %817 = vset.pattern.permute.xlu0 1
    %818 = vperm.xlu0 %817, %v180
    %v819 = vpop.permute.xlu0 %818
    %821 = vset.pattern.permute.xlu0 1
    %822 = vperm.xlu0 %821, %v181
    %v823 = vpop.permute.xlu0 %822
    %825 = vset.pattern.permute.xlu0 1
    %826 = vperm.xlu0 %825, %v182
    %v827 = vpop.permute.xlu0 %826
    %829 = vset.pattern.permute.xlu0 1
    %830 = vperm.xlu0 %829, %v183
    %v831 = vpop.permute.xlu0 %830
    %833 = vset.pattern.permute.xlu0 1
    %834 = vperm.xlu0 %833, %v184
    %v835 = vpop.permute.xlu0 %834
    %837 = vset.pattern.permute.xlu0 1
    %838 = vperm.xlu0 %837, %v185
    %v839 = vpop.permute.xlu0 %838
    %841 = vset.pattern.permute.xlu0 1
    %842 = vperm.xlu0 %841, %v186
    %v843 = vpop.permute.xlu0 %842
    %845 = vset.pattern.permute.xlu0 1
    %846 = vperm.xlu0 %845, %v187
    %v847 = vpop.permute.xlu0 %846
    %849 = vset.pattern.permute.xlu0 1
    %850 = vperm.xlu0 %849, %v188
    %v851 = vpop.permute.xlu0 %850
    %853 = vset.pattern.permute.xlu0 1
    %854 = vperm.xlu0 %853, %v189
    %v855 = vpop.permute.xlu0 %854
    %857 = vset.pattern.permute.xlu0 1
    %858 = vperm.xlu0 %857, %v190
    %v859 = vpop.permute.xlu0 %858
    %861 = vset.pattern.permute.xlu0 1
    %862 = vperm.xlu0 %861, %v191
    %v863 = vpop.permute.xlu0 %862
    %865 = vset.pattern.permute.xlu0 1
    %866 = vperm.xlu0 %865, %v192
    %v867 = vpop.permute.xlu0 %866
    %869 = vset.pattern.permute.xlu0 1
    %870 = vperm.xlu0 %869, %v193
    %v871 = vpop.permute.xlu0 %870
    %873 = vset.pattern.permute.xlu0 1
    %874 = vperm.xlu0 %873, %v194
    %v875 = vpop.permute.xlu0 %874
    %877 = vset.pattern.permute.xlu0 1
    %878 = vperm.xlu0 %877, %v195
    %v879 = vpop.permute.xlu0 %878
    %881 = vset.pattern.permute.xlu0 1
    %882 = vperm.xlu0 %881, %v196
    %v883 = vpop.permute.xlu0 %882
    %885 = vset.pattern.permute.xlu0 1
    %886 = vperm.xlu0 %885, %v197
    %v887 = vpop.permute.xlu0 %886
    %889 = vset.pattern.permute.xlu0 1
    %890 = vperm.xlu0 %889, %v198
    %v891 = vpop.permute.xlu0 %890
    %893 = vset.pattern.permute.xlu0 1
    %894 = vperm.xlu0 %893, %v199
    %v895 = vpop.permute.xlu0 %894
    %897 = vset.pattern.permute.xlu0 1
    %898 = vperm.xlu0 %897, %v200
    %v899 = vpop.permute.xlu0 %898
    %901 = vset.pattern.permute.xlu0 1
    %902 = vperm.xlu0 %901, %v201
    %v903 = vpop.permute.xlu0 %902
    %905 = vset.pattern.permute.xlu0 1
    %906 = vperm.xlu0 %905, %v202
    %v907 = vpop.permute.xlu0 %906
    %909 = vset.pattern.permute.xlu0 1
    %910 = vperm.xlu0 %909, %v203
    %v911 = vpop.permute.xlu0 %910
    %v913 = vperm.slane %v656, 0
    %v914 = vmul.f32 %v659, %v913
    %v915 = vmul.f32 %v663, %v913
    %v916 = vmul.f32 %v667, %v913
    %v917 = vmul.f32 %v671, %v913
    %v918 = vmul.f32 %v675, %v913
    %v919 = vmul.f32 %v679, %v913
    %v920 = vmul.f32 %v683, %v913
    %v921 = vmul.f32 %v687, %v913
    %v922 = vmul.f32 %v691, %v913
    %v923 = vmul.f32 %v695, %v913
    %v924 = vmul.f32 %v699, %v913
    %v925 = vmul.f32 %v703, %v913
    %v926 = vmul.f32 %v707, %v913
    %v927 = vmul.f32 %v711, %v913
    %v928 = vmul.f32 %v715, %v913
    %v929 = vmul.f32 %v719, %v913
    %v930 = vmul.f32 %v723, %v913
    %v931 = vmul.f32 %v727, %v913
    %v932 = vmul.f32 %v731, %v913
    %v933 = vmul.f32 %v735, %v913
    %v934 = vmul.f32 %v739, %v913
    %v935 = vmul.f32 %v743, %v913
    %v936 = vmul.f32 %v747, %v913
    %v937 = vmul.f32 %v751, %v913
    %v938 = vmul.f32 %v755, %v913
    %v939 = vmul.f32 %v759, %v913
    %v940 = vmul.f32 %v763, %v913
    %v941 = vmul.f32 %v767, %v913
    %v942 = vmul.f32 %v771, %v913
    %v943 = vmul.f32 %v775, %v913
    %v944 = vmul.f32 %v779, %v913
    %v945 = vmul.f32 %v783, %v913
    %v946 = vmul.f32 %v787, %v913
    %v947 = vmul.f32 %v791, %v913
    %v948 = vmul.f32 %v795, %v913
    %v949 = vmul.f32 %v799, %v913
    %v950 = vmul.f32 %v803, %v913
    %v951 = vmul.f32 %v807, %v913
    %v952 = vmul.f32 %v811, %v913
    %v953 = vmul.f32 %v815, %v913
    %v954 = vmul.f32 %v819, %v913
    %v955 = vmul.f32 %v823, %v913
    %v956 = vmul.f32 %v827, %v913
    %v957 = vmul.f32 %v831, %v913
    %v958 = vmul.f32 %v835, %v913
    %v959 = vmul.f32 %v839, %v913
    %v960 = vmul.f32 %v843, %v913
    %v961 = vmul.f32 %v847, %v913
    %v962 = vmul.f32 %v851, %v913
    %v963 = vmul.f32 %v855, %v913
    %v964 = vmul.f32 %v859, %v913
    %v965 = vmul.f32 %v863, %v913
    %v966 = vmul.f32 %v867, %v913
    %v967 = vmul.f32 %v871, %v913
    %v968 = vmul.f32 %v875, %v913
    %v969 = vmul.f32 %v879, %v913
    %v970 = vmul.f32 %v883, %v913
    %v971 = vmul.f32 %v887, %v913
    %v972 = vmul.f32 %v891, %v913
    %v973 = vmul.f32 %v895, %v913
    %v974 = vmul.f32 %v899, %v913
    %v975 = vmul.f32 %v903, %v913
    %v976 = vmul.f32 %v907, %v913
    %v977 = vmul.f32 %v911, %v913
    %v978 = vadd.f32 %v592, %v914
    %v979 = vadd.f32 %v593, %v915
    %v980 = vadd.f32 %v594, %v916
    %v981 = vadd.f32 %v595, %v917
    %v982 = vadd.f32 %v596, %v918
    %v983 = vadd.f32 %v597, %v919
    %v984 = vadd.f32 %v598, %v920
    %v985 = vadd.f32 %v599, %v921
    %v986 = vadd.f32 %v600, %v922
    %v987 = vadd.f32 %v601, %v923
    %v988 = vadd.f32 %v602, %v924
    %v989 = vadd.f32 %v603, %v925
    %v990 = vadd.f32 %v604, %v926
    %v991 = vadd.f32 %v605, %v927
    %v992 = vadd.f32 %v606, %v928
    %v993 = vadd.f32 %v607, %v929
    %v994 = vadd.f32 %v608, %v930
    %v995 = vadd.f32 %v609, %v931
    %v996 = vadd.f32 %v610, %v932
    %v997 = vadd.f32 %v611, %v933
    %v998 = vadd.f32 %v612, %v934
    %v999 = vadd.f32 %v613, %v935
    %v1000 = vadd.f32 %v614, %v936
    %v1001 = vadd.f32 %v615, %v937
    %v1002 = vadd.f32 %v616, %v938
    %v1003 = vadd.f32 %v617, %v939
    %v1004 = vadd.f32 %v618, %v940
    %v1005 = vadd.f32 %v619, %v941
    %v1006 = vadd.f32 %v620, %v942
    %v1007 = vadd.f32 %v621, %v943
    %v1008 = vadd.f32 %v622, %v944
    %v1009 = vadd.f32 %v623, %v945
    %v1010 = vadd.f32 %v624, %v946
    %v1011 = vadd.f32 %v625, %v947
    %v1012 = vadd.f32 %v626, %v948
    %v1013 = vadd.f32 %v627, %v949
    %v1014 = vadd.f32 %v628, %v950
    %v1015 = vadd.f32 %v629, %v951
    %v1016 = vadd.f32 %v630, %v952
    %v1017 = vadd.f32 %v631, %v953
    %v1018 = vadd.f32 %v632, %v954
    %v1019 = vadd.f32 %v633, %v955
    %v1020 = vadd.f32 %v634, %v956
    %v1021 = vadd.f32 %v635, %v957
    %v1022 = vadd.f32 %v636, %v958
    %v1023 = vadd.f32 %v637, %v959
    %v1024 = vadd.f32 %v638, %v960
    %v1025 = vadd.f32 %v639, %v961
    %v1026 = vadd.f32 %v640, %v962
    %v1027 = vadd.f32 %v641, %v963
    %v1028 = vadd.f32 %v642, %v964
    %v1029 = vadd.f32 %v643, %v965
    %v1030 = vadd.f32 %v644, %v966
    %v1031 = vadd.f32 %v645, %v967
    %v1032 = vadd.f32 %v646, %v968
    %v1033 = vadd.f32 %v647, %v969
    %v1034 = vadd.f32 %v648, %v970
    %v1035 = vadd.f32 %v649, %v971
    %v1036 = vadd.f32 %v650, %v972
    %v1037 = vadd.f32 %v651, %v973
    %v1038 = vadd.f32 %v652, %v974
    %v1039 = vadd.f32 %v653, %v975
    %v1040 = vadd.f32 %v654, %v976
    %v1041 = vadd.f32 %v655, %v977
    %v1042 = vld [vmem:[%s1 + $0x2] sm:$0x1]
    %1043 = vset.pattern.permute.xlu0 2
    %1044 = vperm.xlu0 %1043, %v140
    %v1045 = vpop.permute.xlu0 %1044
    %1047 = vset.pattern.permute.xlu0 2
    %1048 = vperm.xlu0 %1047, %v141
    %v1049 = vpop.permute.xlu0 %1048
    %1051 = vset.pattern.permute.xlu0 2
    %1052 = vperm.xlu0 %1051, %v142
    %v1053 = vpop.permute.xlu0 %1052
    %1055 = vset.pattern.permute.xlu0 2
    %1056 = vperm.xlu0 %1055, %v143
    %v1057 = vpop.permute.xlu0 %1056
    %1059 = vset.pattern.permute.xlu0 2
    %1060 = vperm.xlu0 %1059, %v144
    %v1061 = vpop.permute.xlu0 %1060
    %1063 = vset.pattern.permute.xlu0 2
    %1064 = vperm.xlu0 %1063, %v145
    %v1065 = vpop.permute.xlu0 %1064
    %1067 = vset.pattern.permute.xlu0 2
    %1068 = vperm.xlu0 %1067, %v146
    %v1069 = vpop.permute.xlu0 %1068
    %1071 = vset.pattern.permute.xlu0 2
    %1072 = vperm.xlu0 %1071, %v147
    %v1073 = vpop.permute.xlu0 %1072
    %1075 = vset.pattern.permute.xlu0 2
    %1076 = vperm.xlu0 %1075, %v148
    %v1077 = vpop.permute.xlu0 %1076
    %1079 = vset.pattern.permute.xlu0 2
    %1080 = vperm.xlu0 %1079, %v149
    %v1081 = vpop.permute.xlu0 %1080
    %1083 = vset.pattern.permute.xlu0 2
    %1084 = vperm.xlu0 %1083, %v150
    %v1085 = vpop.permute.xlu0 %1084
    %1087 = vset.pattern.permute.xlu0 2
    %1088 = vperm.xlu0 %1087, %v151
    %v1089 = vpop.permute.xlu0 %1088
    %1091 = vset.pattern.permute.xlu0 2
    %1092 = vperm.xlu0 %1091, %v152
    %v1093 = vpop.permute.xlu0 %1092
    %1095 = vset.pattern.permute.xlu0 2
    %1096 = vperm.xlu0 %1095, %v153
    %v1097 = vpop.permute.xlu0 %1096
    %1099 = vset.pattern.permute.xlu0 2
    %1100 = vperm.xlu0 %1099, %v154
    %v1101 = vpop.permute.xlu0 %1100
    %1103 = vset.pattern.permute.xlu0 2
    %1104 = vperm.xlu0 %1103, %v155
    %v1105 = vpop.permute.xlu0 %1104
    %1107 = vset.pattern.permute.xlu0 2
    %1108 = vperm.xlu0 %1107, %v156
    %v1109 = vpop.permute.xlu0 %1108
    %1111 = vset.pattern.permute.xlu0 2
    %1112 = vperm.xlu0 %1111, %v157
    %v1113 = vpop.permute.xlu0 %1112
    %1115 = vset.pattern.permute.xlu0 2
    %1116 = vperm.xlu0 %1115, %v158
    %v1117 = vpop.permute.xlu0 %1116
    %1119 = vset.pattern.permute.xlu0 2
    %1120 = vperm.xlu0 %1119, %v159
    %v1121 = vpop.permute.xlu0 %1120
    %1123 = vset.pattern.permute.xlu0 2
    %1124 = vperm.xlu0 %1123, %v160
    %v1125 = vpop.permute.xlu0 %1124
    %1127 = vset.pattern.permute.xlu0 2
    %1128 = vperm.xlu0 %1127, %v161
    %v1129 = vpop.permute.xlu0 %1128
    %1131 = vset.pattern.permute.xlu0 2
    %1132 = vperm.xlu0 %1131, %v162
    %v1133 = vpop.permute.xlu0 %1132
    %1135 = vset.pattern.permute.xlu0 2
    %1136 = vperm.xlu0 %1135, %v163
    %v1137 = vpop.permute.xlu0 %1136
    %1139 = vset.pattern.permute.xlu0 2
    %1140 = vperm.xlu0 %1139, %v164
    %v1141 = vpop.permute.xlu0 %1140
    %1143 = vset.pattern.permute.xlu0 2
    %1144 = vperm.xlu0 %1143, %v165
    %v1145 = vpop.permute.xlu0 %1144
    %1147 = vset.pattern.permute.xlu0 2
    %1148 = vperm.xlu0 %1147, %v166
    %v1149 = vpop.permute.xlu0 %1148
    %1151 = vset.pattern.permute.xlu0 2
    %1152 = vperm.xlu0 %1151, %v167
    %v1153 = vpop.permute.xlu0 %1152
    %1155 = vset.pattern.permute.xlu0 2
    %1156 = vperm.xlu0 %1155, %v168
    %v1157 = vpop.permute.xlu0 %1156
    %1159 = vset.pattern.permute.xlu0 2
    %1160 = vperm.xlu0 %1159, %v169
    %v1161 = vpop.permute.xlu0 %1160
    %1163 = vset.pattern.permute.xlu0 2
    %1164 = vperm.xlu0 %1163, %v170
    %v1165 = vpop.permute.xlu0 %1164
    %1167 = vset.pattern.permute.xlu0 2
    %1168 = vperm.xlu0 %1167, %v171
    %v1169 = vpop.permute.xlu0 %1168
    %1171 = vset.pattern.permute.xlu0 2
    %1172 = vperm.xlu0 %1171, %v172
    %v1173 = vpop.permute.xlu0 %1172
    %1175 = vset.pattern.permute.xlu0 2
    %1176 = vperm.xlu0 %1175, %v173
    %v1177 = vpop.permute.xlu0 %1176
    %1179 = vset.pattern.permute.xlu0 2
    %1180 = vperm.xlu0 %1179, %v174
    %v1181 = vpop.permute.xlu0 %1180
    %1183 = vset.pattern.permute.xlu0 2
    %1184 = vperm.xlu0 %1183, %v175
    %v1185 = vpop.permute.xlu0 %1184
    %1187 = vset.pattern.permute.xlu0 2
    %1188 = vperm.xlu0 %1187, %v176
    %v1189 = vpop.permute.xlu0 %1188
    %1191 = vset.pattern.permute.xlu0 2
    %1192 = vperm.xlu0 %1191, %v177
    %v1193 = vpop.permute.xlu0 %1192
    %1195 = vset.pattern.permute.xlu0 2
    %1196 = vperm.xlu0 %1195, %v178
    %v1197 = vpop.permute.xlu0 %1196
    %1199 = vset.pattern.permute.xlu0 2
    %1200 = vperm.xlu0 %1199, %v179
    %v1201 = vpop.permute.xlu0 %1200
    %1203 = vset.pattern.permute.xlu0 2
    %1204 = vperm.xlu0 %1203, %v180
    %v1205 = vpop.permute.xlu0 %1204
    %1207 = vset.pattern.permute.xlu0 2
    %1208 = vperm.xlu0 %1207, %v181
    %v1209 = vpop.permute.xlu0 %1208
    %1211 = vset.pattern.permute.xlu0 2
    %1212 = vperm.xlu0 %1211, %v182
    %v1213 = vpop.permute.xlu0 %1212
    %1215 = vset.pattern.permute.xlu0 2
    %1216 = vperm.xlu0 %1215, %v183
    %v1217 = vpop.permute.xlu0 %1216
    %1219 = vset.pattern.permute.xlu0 2
    %1220 = vperm.xlu0 %1219, %v184
    %v1221 = vpop.permute.xlu0 %1220
    %1223 = vset.pattern.permute.xlu0 2
    %1224 = vperm.xlu0 %1223, %v185
    %v1225 = vpop.permute.xlu0 %1224
    %1227 = vset.pattern.permute.xlu0 2
    %1228 = vperm.xlu0 %1227, %v186
    %v1229 = vpop.permute.xlu0 %1228
    %1231 = vset.pattern.permute.xlu0 2
    %1232 = vperm.xlu0 %1231, %v187
    %v1233 = vpop.permute.xlu0 %1232
    %1235 = vset.pattern.permute.xlu0 2
    %1236 = vperm.xlu0 %1235, %v188
    %v1237 = vpop.permute.xlu0 %1236
    %1239 = vset.pattern.permute.xlu0 2
    %1240 = vperm.xlu0 %1239, %v189
    %v1241 = vpop.permute.xlu0 %1240
    %1243 = vset.pattern.permute.xlu0 2
    %1244 = vperm.xlu0 %1243, %v190
    %v1245 = vpop.permute.xlu0 %1244
    %1247 = vset.pattern.permute.xlu0 2
    %1248 = vperm.xlu0 %1247, %v191
    %v1249 = vpop.permute.xlu0 %1248
    %1251 = vset.pattern.permute.xlu0 2
    %1252 = vperm.xlu0 %1251, %v192
    %v1253 = vpop.permute.xlu0 %1252
    %1255 = vset.pattern.permute.xlu0 2
    %1256 = vperm.xlu0 %1255, %v193
    %v1257 = vpop.permute.xlu0 %1256
    %1259 = vset.pattern.permute.xlu0 2
    %1260 = vperm.xlu0 %1259, %v194
    %v1261 = vpop.permute.xlu0 %1260
    %1263 = vset.pattern.permute.xlu0 2
    %1264 = vperm.xlu0 %1263, %v195
    %v1265 = vpop.permute.xlu0 %1264
    %1267 = vset.pattern.permute.xlu0 2
    %1268 = vperm.xlu0 %1267, %v196
    %v1269 = vpop.permute.xlu0 %1268
    %1271 = vset.pattern.permute.xlu0 2
    %1272 = vperm.xlu0 %1271, %v197
    %v1273 = vpop.permute.xlu0 %1272
    %1275 = vset.pattern.permute.xlu0 2
    %1276 = vperm.xlu0 %1275, %v198
    %v1277 = vpop.permute.xlu0 %1276
    %1279 = vset.pattern.permute.xlu0 2
    %1280 = vperm.xlu0 %1279, %v199
    %v1281 = vpop.permute.xlu0 %1280
    %1283 = vset.pattern.permute.xlu0 2
    %1284 = vperm.xlu0 %1283, %v200
    %v1285 = vpop.permute.xlu0 %1284
    %1287 = vset.pattern.permute.xlu0 2
    %1288 = vperm.xlu0 %1287, %v201
    %v1289 = vpop.permute.xlu0 %1288
    %1291 = vset.pattern.permute.xlu0 2
    %1292 = vperm.xlu0 %1291, %v202
    %v1293 = vpop.permute.xlu0 %1292
    %1295 = vset.pattern.permute.xlu0 2
    %1296 = vperm.xlu0 %1295, %v203
    %v1297 = vpop.permute.xlu0 %1296
    %v1299 = vperm.slane %v1042, 0
    %v1300 = vmul.f32 %v1045, %v1299
    %v1301 = vmul.f32 %v1049, %v1299
    %v1302 = vmul.f32 %v1053, %v1299
    %v1303 = vmul.f32 %v1057, %v1299
    %v1304 = vmul.f32 %v1061, %v1299
    %v1305 = vmul.f32 %v1065, %v1299
    %v1306 = vmul.f32 %v1069, %v1299
    %v1307 = vmul.f32 %v1073, %v1299
    %v1308 = vmul.f32 %v1077, %v1299
    %v1309 = vmul.f32 %v1081, %v1299
    %v1310 = vmul.f32 %v1085, %v1299
    %v1311 = vmul.f32 %v1089, %v1299
    %v1312 = vmul.f32 %v1093, %v1299
    %v1313 = vmul.f32 %v1097, %v1299
    %v1314 = vmul.f32 %v1101, %v1299
    %v1315 = vmul.f32 %v1105, %v1299
    %v1316 = vmul.f32 %v1109, %v1299
    %v1317 = vmul.f32 %v1113, %v1299
    %v1318 = vmul.f32 %v1117, %v1299
    %v1319 = vmul.f32 %v1121, %v1299
    %v1320 = vmul.f32 %v1125, %v1299
    %v1321 = vmul.f32 %v1129, %v1299
    %v1322 = vmul.f32 %v1133, %v1299
    %v1323 = vmul.f32 %v1137, %v1299
    %v1324 = vmul.f32 %v1141, %v1299
    %v1325 = vmul.f32 %v1145, %v1299
    %v1326 = vmul.f32 %v1149, %v1299
    %v1327 = vmul.f32 %v1153, %v1299
    %v1328 = vmul.f32 %v1157, %v1299
    %v1329 = vmul.f32 %v1161, %v1299
    %v1330 = vmul.f32 %v1165, %v1299
    %v1331 = vmul.f32 %v1169, %v1299
    %v1332 = vmul.f32 %v1173, %v1299
    %v1333 = vmul.f32 %v1177, %v1299
    %v1334 = vmul.f32 %v1181, %v1299
    %v1335 = vmul.f32 %v1185, %v1299
    %v1336 = vmul.f32 %v1189, %v1299
    %v1337 = vmul.f32 %v1193, %v1299
    %v1338 = vmul.f32 %v1197, %v1299
    %v1339 = vmul.f32 %v1201, %v1299
    %v1340 = vmul.f32 %v1205, %v1299
    %v1341 = vmul.f32 %v1209, %v1299
    %v1342 = vmul.f32 %v1213, %v1299
    %v1343 = vmul.f32 %v1217, %v1299
    %v1344 = vmul.f32 %v1221, %v1299
    %v1345 = vmul.f32 %v1225, %v1299
    %v1346 = vmul.f32 %v1229, %v1299
    %v1347 = vmul.f32 %v1233, %v1299
    %v1348 = vmul.f32 %v1237, %v1299
    %v1349 = vmul.f32 %v1241, %v1299
    %v1350 = vmul.f32 %v1245, %v1299
    %v1351 = vmul.f32 %v1249, %v1299
    %v1352 = vmul.f32 %v1253, %v1299
    %v1353 = vmul.f32 %v1257, %v1299
    %v1354 = vmul.f32 %v1261, %v1299
    %v1355 = vmul.f32 %v1265, %v1299
    %v1356 = vmul.f32 %v1269, %v1299
    %v1357 = vmul.f32 %v1273, %v1299
    %v1358 = vmul.f32 %v1277, %v1299
    %v1359 = vmul.f32 %v1281, %v1299
    %v1360 = vmul.f32 %v1285, %v1299
    %v1361 = vmul.f32 %v1289, %v1299
    %v1362 = vmul.f32 %v1293, %v1299
    %v1363 = vmul.f32 %v1297, %v1299
    %v1364 = vadd.f32 %v978, %v1300
    %v1365 = vadd.f32 %v979, %v1301
    %v1366 = vadd.f32 %v980, %v1302
    %v1367 = vadd.f32 %v981, %v1303
    %v1368 = vadd.f32 %v982, %v1304
    %v1369 = vadd.f32 %v983, %v1305
    %v1370 = vadd.f32 %v984, %v1306
    %v1371 = vadd.f32 %v985, %v1307
    %v1372 = vadd.f32 %v986, %v1308
    %v1373 = vadd.f32 %v987, %v1309
    %v1374 = vadd.f32 %v988, %v1310
    %v1375 = vadd.f32 %v989, %v1311
    %v1376 = vadd.f32 %v990, %v1312
    %v1377 = vadd.f32 %v991, %v1313
    %v1378 = vadd.f32 %v992, %v1314
    %v1379 = vadd.f32 %v993, %v1315
    %v1380 = vadd.f32 %v994, %v1316
    %v1381 = vadd.f32 %v995, %v1317
    %v1382 = vadd.f32 %v996, %v1318
    %v1383 = vadd.f32 %v997, %v1319
    %v1384 = vadd.f32 %v998, %v1320
    %v1385 = vadd.f32 %v999, %v1321
    %v1386 = vadd.f32 %v1000, %v1322
    %v1387 = vadd.f32 %v1001, %v1323
    %v1388 = vadd.f32 %v1002, %v1324
    %v1389 = vadd.f32 %v1003, %v1325
    %v1390 = vadd.f32 %v1004, %v1326
    %v1391 = vadd.f32 %v1005, %v1327
    %v1392 = vadd.f32 %v1006, %v1328
    %v1393 = vadd.f32 %v1007, %v1329
    %v1394 = vadd.f32 %v1008, %v1330
    %v1395 = vadd.f32 %v1009, %v1331
    %v1396 = vadd.f32 %v1010, %v1332
    %v1397 = vadd.f32 %v1011, %v1333
    %v1398 = vadd.f32 %v1012, %v1334
    %v1399 = vadd.f32 %v1013, %v1335
    %v1400 = vadd.f32 %v1014, %v1336
    %v1401 = vadd.f32 %v1015, %v1337
    %v1402 = vadd.f32 %v1016, %v1338
    %v1403 = vadd.f32 %v1017, %v1339
    %v1404 = vadd.f32 %v1018, %v1340
    %v1405 = vadd.f32 %v1019, %v1341
    %v1406 = vadd.f32 %v1020, %v1342
    %v1407 = vadd.f32 %v1021, %v1343
    %v1408 = vadd.f32 %v1022, %v1344
    %v1409 = vadd.f32 %v1023, %v1345
    %v1410 = vadd.f32 %v1024, %v1346
    %v1411 = vadd.f32 %v1025, %v1347
    %v1412 = vadd.f32 %v1026, %v1348
    %v1413 = vadd.f32 %v1027, %v1349
    %v1414 = vadd.f32 %v1028, %v1350
    %v1415 = vadd.f32 %v1029, %v1351
    %v1416 = vadd.f32 %v1030, %v1352
    %v1417 = vadd.f32 %v1031, %v1353
    %v1418 = vadd.f32 %v1032, %v1354
    %v1419 = vadd.f32 %v1033, %v1355
    %v1420 = vadd.f32 %v1034, %v1356
    %v1421 = vadd.f32 %v1035, %v1357
    %v1422 = vadd.f32 %v1036, %v1358
    %v1423 = vadd.f32 %v1037, %v1359
    %v1424 = vadd.f32 %v1038, %v1360
    %v1425 = vadd.f32 %v1039, %v1361
    %v1426 = vadd.f32 %v1040, %v1362
    %v1427 = vadd.f32 %v1041, %v1363
    %v1428 = vld [vmem:[%s1 + $0x3] sm:$0x1]
    %1429 = vset.pattern.permute.xlu0 3
    %1430 = vperm.xlu0 %1429, %v140
    %v1431 = vpop.permute.xlu0 %1430
    %1433 = vset.pattern.permute.xlu0 3
    %1434 = vperm.xlu0 %1433, %v141
    %v1435 = vpop.permute.xlu0 %1434
    %1437 = vset.pattern.permute.xlu0 3
    %1438 = vperm.xlu0 %1437, %v142
    %v1439 = vpop.permute.xlu0 %1438
    %1441 = vset.pattern.permute.xlu0 3
    %1442 = vperm.xlu0 %1441, %v143
    %v1443 = vpop.permute.xlu0 %1442
    %1445 = vset.pattern.permute.xlu0 3
    %1446 = vperm.xlu0 %1445, %v144
    %v1447 = vpop.permute.xlu0 %1446
    %1449 = vset.pattern.permute.xlu0 3
    %1450 = vperm.xlu0 %1449, %v145
    %v1451 = vpop.permute.xlu0 %1450
    %1453 = vset.pattern.permute.xlu0 3
    %1454 = vperm.xlu0 %1453, %v146
    %v1455 = vpop.permute.xlu0 %1454
    %1457 = vset.pattern.permute.xlu0 3
    %1458 = vperm.xlu0 %1457, %v147
    %v1459 = vpop.permute.xlu0 %1458
    %1461 = vset.pattern.permute.xlu0 3
    %1462 = vperm.xlu0 %1461, %v148
    %v1463 = vpop.permute.xlu0 %1462
    %1465 = vset.pattern.permute.xlu0 3
    %1466 = vperm.xlu0 %1465, %v149
    %v1467 = vpop.permute.xlu0 %1466
    %1469 = vset.pattern.permute.xlu0 3
    %1470 = vperm.xlu0 %1469, %v150
    %v1471 = vpop.permute.xlu0 %1470
    %1473 = vset.pattern.permute.xlu0 3
    %1474 = vperm.xlu0 %1473, %v151
    %v1475 = vpop.permute.xlu0 %1474
    %1477 = vset.pattern.permute.xlu0 3
    %1478 = vperm.xlu0 %1477, %v152
    %v1479 = vpop.permute.xlu0 %1478
    %1481 = vset.pattern.permute.xlu0 3
    %1482 = vperm.xlu0 %1481, %v153
    %v1483 = vpop.permute.xlu0 %1482
    %1485 = vset.pattern.permute.xlu0 3
    %1486 = vperm.xlu0 %1485, %v154
    %v1487 = vpop.permute.xlu0 %1486
    %1489 = vset.pattern.permute.xlu0 3
    %1490 = vperm.xlu0 %1489, %v155
    %v1491 = vpop.permute.xlu0 %1490
    %1493 = vset.pattern.permute.xlu0 3
    %1494 = vperm.xlu0 %1493, %v156
    %v1495 = vpop.permute.xlu0 %1494
    %1497 = vset.pattern.permute.xlu0 3
    %1498 = vperm.xlu0 %1497, %v157
    %v1499 = vpop.permute.xlu0 %1498
    %1501 = vset.pattern.permute.xlu0 3
    %1502 = vperm.xlu0 %1501, %v158
    %v1503 = vpop.permute.xlu0 %1502
    %1505 = vset.pattern.permute.xlu0 3
    %1506 = vperm.xlu0 %1505, %v159
    %v1507 = vpop.permute.xlu0 %1506
    %1509 = vset.pattern.permute.xlu0 3
    %1510 = vperm.xlu0 %1509, %v160
    %v1511 = vpop.permute.xlu0 %1510
    %1513 = vset.pattern.permute.xlu0 3
    %1514 = vperm.xlu0 %1513, %v161
    %v1515 = vpop.permute.xlu0 %1514
    %1517 = vset.pattern.permute.xlu0 3
    %1518 = vperm.xlu0 %1517, %v162
    %v1519 = vpop.permute.xlu0 %1518
    %1521 = vset.pattern.permute.xlu0 3
    %1522 = vperm.xlu0 %1521, %v163
    %v1523 = vpop.permute.xlu0 %1522
    %1525 = vset.pattern.permute.xlu0 3
    %1526 = vperm.xlu0 %1525, %v164
    %v1527 = vpop.permute.xlu0 %1526
    %1529 = vset.pattern.permute.xlu0 3
    %1530 = vperm.xlu0 %1529, %v165
    %v1531 = vpop.permute.xlu0 %1530
    %1533 = vset.pattern.permute.xlu0 3
    %1534 = vperm.xlu0 %1533, %v166
    %v1535 = vpop.permute.xlu0 %1534
    %1537 = vset.pattern.permute.xlu0 3
    %1538 = vperm.xlu0 %1537, %v167
    %v1539 = vpop.permute.xlu0 %1538
    %1541 = vset.pattern.permute.xlu0 3
    %1542 = vperm.xlu0 %1541, %v168
    %v1543 = vpop.permute.xlu0 %1542
    %1545 = vset.pattern.permute.xlu0 3
    %1546 = vperm.xlu0 %1545, %v169
    %v1547 = vpop.permute.xlu0 %1546
    %1549 = vset.pattern.permute.xlu0 3
    %1550 = vperm.xlu0 %1549, %v170
    %v1551 = vpop.permute.xlu0 %1550
    %1553 = vset.pattern.permute.xlu0 3
    %1554 = vperm.xlu0 %1553, %v171
    %v1555 = vpop.permute.xlu0 %1554
    %1557 = vset.pattern.permute.xlu0 3
    %1558 = vperm.xlu0 %1557, %v172
    %v1559 = vpop.permute.xlu0 %1558
    %1561 = vset.pattern.permute.xlu0 3
    %1562 = vperm.xlu0 %1561, %v173
    %v1563 = vpop.permute.xlu0 %1562
    %1565 = vset.pattern.permute.xlu0 3
    %1566 = vperm.xlu0 %1565, %v174
    %v1567 = vpop.permute.xlu0 %1566
    %1569 = vset.pattern.permute.xlu0 3
    %1570 = vperm.xlu0 %1569, %v175
    %v1571 = vpop.permute.xlu0 %1570
    %1573 = vset.pattern.permute.xlu0 3
    %1574 = vperm.xlu0 %1573, %v176
    %v1575 = vpop.permute.xlu0 %1574
    %1577 = vset.pattern.permute.xlu0 3
    %1578 = vperm.xlu0 %1577, %v177
    %v1579 = vpop.permute.xlu0 %1578
    %1581 = vset.pattern.permute.xlu0 3
    %1582 = vperm.xlu0 %1581, %v178
    %v1583 = vpop.permute.xlu0 %1582
    %1585 = vset.pattern.permute.xlu0 3
    %1586 = vperm.xlu0 %1585, %v179
    %v1587 = vpop.permute.xlu0 %1586
    %1589 = vset.pattern.permute.xlu0 3
    %1590 = vperm.xlu0 %1589, %v180
    %v1591 = vpop.permute.xlu0 %1590
    %1593 = vset.pattern.permute.xlu0 3
    %1594 = vperm.xlu0 %1593, %v181
    %v1595 = vpop.permute.xlu0 %1594
    %1597 = vset.pattern.permute.xlu0 3
    %1598 = vperm.xlu0 %1597, %v182
    %v1599 = vpop.permute.xlu0 %1598
    %1601 = vset.pattern.permute.xlu0 3
    %1602 = vperm.xlu0 %1601, %v183
    %v1603 = vpop.permute.xlu0 %1602
    %1605 = vset.pattern.permute.xlu0 3
    %1606 = vperm.xlu0 %1605, %v184
    %v1607 = vpop.permute.xlu0 %1606
    %1609 = vset.pattern.permute.xlu0 3
    %1610 = vperm.xlu0 %1609, %v185
    %v1611 = vpop.permute.xlu0 %1610
    %1613 = vset.pattern.permute.xlu0 3
    %1614 = vperm.xlu0 %1613, %v186
    %v1615 = vpop.permute.xlu0 %1614
    %1617 = vset.pattern.permute.xlu0 3
    %1618 = vperm.xlu0 %1617, %v187
    %v1619 = vpop.permute.xlu0 %1618
    %1621 = vset.pattern.permute.xlu0 3
    %1622 = vperm.xlu0 %1621, %v188
    %v1623 = vpop.permute.xlu0 %1622
    %1625 = vset.pattern.permute.xlu0 3
    %1626 = vperm.xlu0 %1625, %v189
    %v1627 = vpop.permute.xlu0 %1626
    %1629 = vset.pattern.permute.xlu0 3
    %1630 = vperm.xlu0 %1629, %v190
    %v1631 = vpop.permute.xlu0 %1630
    %1633 = vset.pattern.permute.xlu0 3
    %1634 = vperm.xlu0 %1633, %v191
    %v1635 = vpop.permute.xlu0 %1634
    %1637 = vset.pattern.permute.xlu0 3
    %1638 = vperm.xlu0 %1637, %v192
    %v1639 = vpop.permute.xlu0 %1638
    %1641 = vset.pattern.permute.xlu0 3
    %1642 = vperm.xlu0 %1641, %v193
    %v1643 = vpop.permute.xlu0 %1642
    %1645 = vset.pattern.permute.xlu0 3
    %1646 = vperm.xlu0 %1645, %v194
    %v1647 = vpop.permute.xlu0 %1646
    %1649 = vset.pattern.permute.xlu0 3
    %1650 = vperm.xlu0 %1649, %v195
    %v1651 = vpop.permute.xlu0 %1650
    %1653 = vset.pattern.permute.xlu0 3
    %1654 = vperm.xlu0 %1653, %v196
    %v1655 = vpop.permute.xlu0 %1654
    %1657 = vset.pattern.permute.xlu0 3
    %1658 = vperm.xlu0 %1657, %v197
    %v1659 = vpop.permute.xlu0 %1658
    %1661 = vset.pattern.permute.xlu0 3
    %1662 = vperm.xlu0 %1661, %v198
    %v1663 = vpop.permute.xlu0 %1662
    %1665 = vset.pattern.permute.xlu0 3
    %1666 = vperm.xlu0 %1665, %v199
    %v1667 = vpop.permute.xlu0 %1666
    %1669 = vset.pattern.permute.xlu0 3
    %1670 = vperm.xlu0 %1669, %v200
    %v1671 = vpop.permute.xlu0 %1670
    %1673 = vset.pattern.permute.xlu0 3
    %1674 = vperm.xlu0 %1673, %v201
    %v1675 = vpop.permute.xlu0 %1674
    %1677 = vset.pattern.permute.xlu0 3
    %1678 = vperm.xlu0 %1677, %v202
    %v1679 = vpop.permute.xlu0 %1678
    %1681 = vset.pattern.permute.xlu0 3
    %1682 = vperm.xlu0 %1681, %v203
    %v1683 = vpop.permute.xlu0 %1682
    %v1685 = vperm.slane %v1428, 0
    %v1686 = vmul.f32 %v1431, %v1685
    %v1687 = vmul.f32 %v1435, %v1685
    %v1688 = vmul.f32 %v1439, %v1685
    %v1689 = vmul.f32 %v1443, %v1685
    %v1690 = vmul.f32 %v1447, %v1685
    %v1691 = vmul.f32 %v1451, %v1685
    %v1692 = vmul.f32 %v1455, %v1685
    %v1693 = vmul.f32 %v1459, %v1685
    %v1694 = vmul.f32 %v1463, %v1685
    %v1695 = vmul.f32 %v1467, %v1685
    %v1696 = vmul.f32 %v1471, %v1685
    %v1697 = vmul.f32 %v1475, %v1685
    %v1698 = vmul.f32 %v1479, %v1685
    %v1699 = vmul.f32 %v1483, %v1685
    %v1700 = vmul.f32 %v1487, %v1685
    %v1701 = vmul.f32 %v1491, %v1685
    %v1702 = vmul.f32 %v1495, %v1685
    %v1703 = vmul.f32 %v1499, %v1685
    %v1704 = vmul.f32 %v1503, %v1685
    %v1705 = vmul.f32 %v1507, %v1685
    %v1706 = vmul.f32 %v1511, %v1685
    %v1707 = vmul.f32 %v1515, %v1685
    %v1708 = vmul.f32 %v1519, %v1685
    %v1709 = vmul.f32 %v1523, %v1685
    %v1710 = vmul.f32 %v1527, %v1685
    %v1711 = vmul.f32 %v1531, %v1685
    %v1712 = vmul.f32 %v1535, %v1685
    %v1713 = vmul.f32 %v1539, %v1685
    %v1714 = vmul.f32 %v1543, %v1685
    %v1715 = vmul.f32 %v1547, %v1685
    %v1716 = vmul.f32 %v1551, %v1685
    %v1717 = vmul.f32 %v1555, %v1685
    %v1718 = vmul.f32 %v1559, %v1685
    %v1719 = vmul.f32 %v1563, %v1685
    %v1720 = vmul.f32 %v1567, %v1685
    %v1721 = vmul.f32 %v1571, %v1685
    %v1722 = vmul.f32 %v1575, %v1685
    %v1723 = vmul.f32 %v1579, %v1685
    %v1724 = vmul.f32 %v1583, %v1685
    %v1725 = vmul.f32 %v1587, %v1685
    %v1726 = vmul.f32 %v1591, %v1685
    %v1727 = vmul.f32 %v1595, %v1685
    %v1728 = vmul.f32 %v1599, %v1685
    %v1729 = vmul.f32 %v1603, %v1685
    %v1730 = vmul.f32 %v1607, %v1685
    %v1731 = vmul.f32 %v1611, %v1685
    %v1732 = vmul.f32 %v1615, %v1685
    %v1733 = vmul.f32 %v1619, %v1685
    %v1734 = vmul.f32 %v1623, %v1685
    %v1735 = vmul.f32 %v1627, %v1685
    %v1736 = vmul.f32 %v1631, %v1685
    %v1737 = vmul.f32 %v1635, %v1685
    %v1738 = vmul.f32 %v1639, %v1685
    %v1739 = vmul.f32 %v1643, %v1685
    %v1740 = vmul.f32 %v1647, %v1685
    %v1741 = vmul.f32 %v1651, %v1685
    %v1742 = vmul.f32 %v1655, %v1685
    %v1743 = vmul.f32 %v1659, %v1685
    %v1744 = vmul.f32 %v1663, %v1685
    %v1745 = vmul.f32 %v1667, %v1685
    %v1746 = vmul.f32 %v1671, %v1685
    %v1747 = vmul.f32 %v1675, %v1685
    %v1748 = vmul.f32 %v1679, %v1685
    %v1749 = vmul.f32 %v1683, %v1685
    %v1750 = vadd.f32 %v1364, %v1686
    %v1751 = vadd.f32 %v1365, %v1687
    %v1752 = vadd.f32 %v1366, %v1688
    %v1753 = vadd.f32 %v1367, %v1689
    %v1754 = vadd.f32 %v1368, %v1690
    %v1755 = vadd.f32 %v1369, %v1691
    %v1756 = vadd.f32 %v1370, %v1692
    %v1757 = vadd.f32 %v1371, %v1693
    %v1758 = vadd.f32 %v1372, %v1694
    %v1759 = vadd.f32 %v1373, %v1695
    %v1760 = vadd.f32 %v1374, %v1696
    %v1761 = vadd.f32 %v1375, %v1697
    %v1762 = vadd.f32 %v1376, %v1698
    %v1763 = vadd.f32 %v1377, %v1699
    %v1764 = vadd.f32 %v1378, %v1700
    %v1765 = vadd.f32 %v1379, %v1701
    %v1766 = vadd.f32 %v1380, %v1702
    %v1767 = vadd.f32 %v1381, %v1703
    %v1768 = vadd.f32 %v1382, %v1704
    %v1769 = vadd.f32 %v1383, %v1705
    %v1770 = vadd.f32 %v1384, %v1706
    %v1771 = vadd.f32 %v1385, %v1707
    %v1772 = vadd.f32 %v1386, %v1708
    %v1773 = vadd.f32 %v1387, %v1709
    %v1774 = vadd.f32 %v1388, %v1710
    %v1775 = vadd.f32 %v1389, %v1711
    %v1776 = vadd.f32 %v1390, %v1712
    %v1777 = vadd.f32 %v1391, %v1713
    %v1778 = vadd.f32 %v1392, %v1714
    %v1779 = vadd.f32 %v1393, %v1715
    %v1780 = vadd.f32 %v1394, %v1716
    %v1781 = vadd.f32 %v1395, %v1717
    %v1782 = vadd.f32 %v1396, %v1718
    %v1783 = vadd.f32 %v1397, %v1719
    %v1784 = vadd.f32 %v1398, %v1720
    %v1785 = vadd.f32 %v1399, %v1721
    %v1786 = vadd.f32 %v1400, %v1722
    %v1787 = vadd.f32 %v1401, %v1723
    %v1788 = vadd.f32 %v1402, %v1724
    %v1789 = vadd.f32 %v1403, %v1725
    %v1790 = vadd.f32 %v1404, %v1726
    %v1791 = vadd.f32 %v1405, %v1727
    %v1792 = vadd.f32 %v1406, %v1728
    %v1793 = vadd.f32 %v1407, %v1729
    %v1794 = vadd.f32 %v1408, %v1730
    %v1795 = vadd.f32 %v1409, %v1731
    %v1796 = vadd.f32 %v1410, %v1732
    %v1797 = vadd.f32 %v1411, %v1733
    %v1798 = vadd.f32 %v1412, %v1734
    %v1799 = vadd.f32 %v1413, %v1735
    %v1800 = vadd.f32 %v1414, %v1736
    %v1801 = vadd.f32 %v1415, %v1737
    %v1802 = vadd.f32 %v1416, %v1738
    %v1803 = vadd.f32 %v1417, %v1739
    %v1804 = vadd.f32 %v1418, %v1740
    %v1805 = vadd.f32 %v1419, %v1741
    %v1806 = vadd.f32 %v1420, %v1742
    %v1807 = vadd.f32 %v1421, %v1743
    %v1808 = vadd.f32 %v1422, %v1744
    %v1809 = vadd.f32 %v1423, %v1745
    %v1810 = vadd.f32 %v1424, %v1746
    %v1811 = vadd.f32 %v1425, %v1747
    %v1812 = vadd.f32 %v1426, %v1748
    %v1813 = vadd.f32 %v1427, %v1749
    %v1814 = vmax.f32 %v1750, 0.0
    %v1815 = vmax.f32 %v1751, 0.0
    %v1816 = vmax.f32 %v1752, 0.0
    %v1817 = vmax.f32 %v1753, 0.0
    %v1818 = vmax.f32 %v1754, 0.0
    %v1819 = vmax.f32 %v1755, 0.0
    %v1820 = vmax.f32 %v1756, 0.0
    %v1821 = vmax.f32 %v1757, 0.0
    %v1822 = vmax.f32 %v1758, 0.0
    %v1823 = vmax.f32 %v1759, 0.0
    %v1824 = vmax.f32 %v1760, 0.0
    %v1825 = vmax.f32 %v1761, 0.0
    %v1826 = vmax.f32 %v1762, 0.0
    %v1827 = vmax.f32 %v1763, 0.0
    %v1828 = vmax.f32 %v1764, 0.0
    %v1829 = vmax.f32 %v1765, 0.0
    %v1830 = vmax.f32 %v1766, 0.0
    %v1831 = vmax.f32 %v1767, 0.0
    %v1832 = vmax.f32 %v1768, 0.0
    %v1833 = vmax.f32 %v1769, 0.0
    %v1834 = vmax.f32 %v1770, 0.0
    %v1835 = vmax.f32 %v1771, 0.0
    %v1836 = vmax.f32 %v1772, 0.0
    %v1837 = vmax.f32 %v1773, 0.0
    %v1838 = vmax.f32 %v1774, 0.0
    %v1839 = vmax.f32 %v1775, 0.0
    %v1840 = vmax.f32 %v1776, 0.0
    %v1841 = vmax.f32 %v1777, 0.0
    %v1842 = vmax.f32 %v1778, 0.0
    %v1843 = vmax.f32 %v1779, 0.0
    %v1844 = vmax.f32 %v1780, 0.0
    %v1845 = vmax.f32 %v1781, 0.0
    %v1846 = vmax.f32 %v1782, 0.0
    %v1847 = vmax.f32 %v1783, 0.0
    %v1848 = vmax.f32 %v1784, 0.0
    %v1849 = vmax.f32 %v1785, 0.0
    %v1850 = vmax.f32 %v1786, 0.0
    %v1851 = vmax.f32 %v1787, 0.0
    %v1852 = vmax.f32 %v1788, 0.0
    %v1853 = vmax.f32 %v1789, 0.0
    %v1854 = vmax.f32 %v1790, 0.0
    %v1855 = vmax.f32 %v1791, 0.0
    %v1856 = vmax.f32 %v1792, 0.0
    %v1857 = vmax.f32 %v1793, 0.0
    %v1858 = vmax.f32 %v1794, 0.0
    %v1859 = vmax.f32 %v1795, 0.0
    %v1860 = vmax.f32 %v1796, 0.0
    %v1861 = vmax.f32 %v1797, 0.0
    %v1862 = vmax.f32 %v1798, 0.0
    %v1863 = vmax.f32 %v1799, 0.0
    %v1864 = vmax.f32 %v1800, 0.0
    %v1865 = vmax.f32 %v1801, 0.0
    %v1866 = vmax.f32 %v1802, 0.0
    %v1867 = vmax.f32 %v1803, 0.0
    %v1868 = vmax.f32 %v1804, 0.0
    %v1869 = vmax.f32 %v1805, 0.0
    %v1870 = vmax.f32 %v1806, 0.0
    %v1871 = vmax.f32 %v1807, 0.0
    %v1872 = vmax.f32 %v1808, 0.0
    %v1873 = vmax.f32 %v1809, 0.0
    %v1874 = vmax.f32 %v1810, 0.0
    %v1875 = vmax.f32 %v1811, 0.0
    %v1876 = vmax.f32 %v1812, 0.0
    %v1877 = vmax.f32 %v1813, 0.0
    %v1878 = vld [vmem:[%s1 + $0x8] sm:$0xff]
    %v1879 = vld [vmem:[%s1 + $0x5] sm:$0x1]
    %v1880 = vperm.slane %v1879, 0
    %vm1881 = vcmask 64512
    %v1883 = vsel %vm1881, %v1814, 0
    %v1886 = vsel %vm1881, %v1815, 0
    %v1889 = vsel %vm1881, %v1816, 0
    %v1892 = vsel %vm1881, %v1817, 0
    %v1895 = vsel %vm1881, %v1818, 0
    %v1898 = vsel %vm1881, %v1819, 0
    %v1901 = vsel %vm1881, %v1820, 0
    %v1904 = vsel %vm1881, %v1821, 0
    %v1907 = vsel %vm1881, %v1822, 0
    %v1910 = vsel %vm1881, %v1823, 0
    %v1913 = vsel %vm1881, %v1824, 0
    %v1916 = vsel %vm1881, %v1825, 0
    %v1919 = vsel %vm1881, %v1826, 0
    %v1922 = vsel %vm1881, %v1827, 0
    %v1925 = vsel %vm1881, %v1828, 0
    %v1928 = vsel %vm1881, %v1829, 0
    %v1931 = vsel %vm1881, %v1830, 0
    %v1934 = vsel %vm1881, %v1831, 0
    %v1937 = vsel %vm1881, %v1832, 0
    %v1940 = vsel %vm1881, %v1833, 0
    %v1943 = vsel %vm1881, %v1834, 0
    %v1946 = vsel %vm1881, %v1835, 0
    %v1949 = vsel %vm1881, %v1836, 0
    %v1952 = vsel %vm1881, %v1837, 0
    %v1955 = vsel %vm1881, %v1838, 0
    %v1958 = vsel %vm1881, %v1839, 0
    %v1961 = vsel %vm1881, %v1840, 0
    %v1964 = vsel %vm1881, %v1841, 0
    %v1967 = vsel %vm1881, %v1842, 0
    %v1970 = vsel %vm1881, %v1843, 0
    %v1973 = vsel %vm1881, %v1844, 0
    %v1976 = vsel %vm1881, %v1845, 0
    %v1979 = vsel %vm1881, %v1846, 0
    %v1982 = vsel %vm1881, %v1847, 0
    %v1985 = vsel %vm1881, %v1848, 0
    %v1988 = vsel %vm1881, %v1849, 0
    %v1991 = vsel %vm1881, %v1850, 0
    %v1994 = vsel %vm1881, %v1851, 0
    %v1997 = vsel %vm1881, %v1852, 0
    %v2000 = vsel %vm1881, %v1853, 0
    %v2003 = vsel %vm1881, %v1854, 0
    %v2006 = vsel %vm1881, %v1855, 0
    %v2009 = vsel %vm1881, %v1856, 0
    %v2012 = vsel %vm1881, %v1857, 0
    %v2015 = vsel %vm1881, %v1858, 0
    %v2018 = vsel %vm1881, %v1859, 0
    %v2021 = vsel %vm1881, %v1860, 0
    %v2024 = vsel %vm1881, %v1861, 0
    %v2027 = vsel %vm1881, %v1862, 0
    %v2030 = vsel %vm1881, %v1863, 0
    %v2033 = vsel %vm1881, %v1864, 0
    %v2036 = vsel %vm1881, %v1865, 0
    %v2039 = vsel %vm1881, %v1866, 0
    %v2042 = vsel %vm1881, %v1867, 0
    %v2045 = vsel %vm1881, %v1868, 0
    %v2048 = vsel %vm1881, %v1869, 0
    %v2051 = vsel %vm1881, %v1870, 0
    %v2054 = vsel %vm1881, %v1871, 0
    %v2057 = vsel %vm1881, %v1872, 0
    %v2060 = vsel %vm1881, %v1873, 0
    %v2063 = vsel %vm1881, %v1874, 0
    %v2066 = vsel %vm1881, %v1875, 0
    %v2069 = vsel %vm1881, %v1876, 0
    %v2072 = vsel %vm1881, %v1877, 0
    %2074 = vmatpush.msra.mxu0 0.0
    %2075 = vmatpush.msra.mxu0 0.0
    %2076 = vmatpush.msra.mxu0 0.0
    %2077 = vmatpush.msra.mxu0 0.0
    %2078 = vmatpush.msra.mxu0 0.0
    %2079 = vmatpush.msra.mxu0 0.0
    %2080 = vmatpush.msra.mxu0 0.0
    %2081 = vmatpush.msra.mxu0 0.0
    %2082 = vmatpush.msra.mxu0 0.0
    %2083 = vmatpush.msra.mxu0 0.0
    %2084 = vmatpush.msra.mxu0 0.0
    %2085 = vmatpush.msra.mxu0 0.0
    %2086 = vmatpush.msra.mxu0 0.0
    %2087 = vmatpush.msra.mxu0 0.0
    %2088 = vmatpush.msra.mxu0 0.0
    %v2089 = vand.u32 %v1878, 4294901760
    %2090 = vmatpush.msra.mxu0 %v2089
    %v2091 = vand.u32 %v1883, 4294901760
    %v2092 = vsub.f32 %v1883, %v2091
    %v2093 = vand.u32 %v2092, 4294901760
    %v2094 = vsub.f32 %v2092, %v2093
    %v2095 = vand.u32 %v2094, 4294901760
    %2096 = vmatmul.f32.gmra.mxu0 %v2095
    %v2097 = vpop.f32.mrf.mxu0
    %v2098 = vadd.f32 %v1880, %v2097
    %v2099 = vand.u32 %v1886, 4294901760
    %v2100 = vsub.f32 %v1886, %v2099
    %v2101 = vand.u32 %v2100, 4294901760
    %v2102 = vsub.f32 %v2100, %v2101
    %v2103 = vand.u32 %v2102, 4294901760
    %2104 = vmatmul.f32.gmra.mxu0 %v2103
    %v2105 = vpop.f32.mrf.mxu0
    %v2106 = vadd.f32 %v1880, %v2105
    %v2107 = vand.u32 %v1889, 4294901760
    %v2108 = vsub.f32 %v1889, %v2107
    %v2109 = vand.u32 %v2108, 4294901760
    %v2110 = vsub.f32 %v2108, %v2109
    %v2111 = vand.u32 %v2110, 4294901760
    %2112 = vmatmul.f32.gmra.mxu0 %v2111
    %v2113 = vpop.f32.mrf.mxu0
    %v2114 = vadd.f32 %v1880, %v2113
    %v2115 = vand.u32 %v1892, 4294901760
    %v2116 = vsub.f32 %v1892, %v2115
    %v2117 = vand.u32 %v2116, 4294901760
    %v2118 = vsub.f32 %v2116, %v2117
    %v2119 = vand.u32 %v2118, 4294901760
    %2120 = vmatmul.f32.gmra.mxu0 %v2119
    %v2121 = vpop.f32.mrf.mxu0
    %v2122 = vadd.f32 %v1880, %v2121
    %v2123 = vand.u32 %v1895, 4294901760
    %v2124 = vsub.f32 %v1895, %v2123
    %v2125 = vand.u32 %v2124, 4294901760
    %v2126 = vsub.f32 %v2124, %v2125
    %v2127 = vand.u32 %v2126, 4294901760
    %2128 = vmatmul.f32.gmra.mxu0 %v2127
    %v2129 = vpop.f32.mrf.mxu0
    %v2130 = vadd.f32 %v1880, %v2129
    %v2131 = vand.u32 %v1898, 4294901760
    %v2132 = vsub.f32 %v1898, %v2131
    %v2133 = vand.u32 %v2132, 4294901760
    %v2134 = vsub.f32 %v2132, %v2133
    %v2135 = vand.u32 %v2134, 4294901760
    %2136 = vmatmul.f32.gmra.mxu0 %v2135
    %v2137 = vpop.f32.mrf.mxu0
    %v2138 = vadd.f32 %v1880, %v2137
    %v2139 = vand.u32 %v1901, 4294901760
    %v2140 = vsub.f32 %v1901, %v2139
    %v2141 = vand.u32 %v2140, 4294901760
    %v2142 = vsub.f32 %v2140, %v2141
    %v2143 = vand.u32 %v2142, 4294901760
    %2144 = vmatmul.f32.gmra.mxu0 %v2143
    %v2145 = vpop.f32.mrf.mxu0
    %v2146 = vadd.f32 %v1880, %v2145
    %v2147 = vand.u32 %v1904, 4294901760
    %v2148 = vsub.f32 %v1904, %v2147
    %v2149 = vand.u32 %v2148, 4294901760
    %v2150 = vsub.f32 %v2148, %v2149
    %v2151 = vand.u32 %v2150, 4294901760
    %2152 = vmatmul.f32.gmra.mxu0 %v2151
    %v2153 = vpop.f32.mrf.mxu0
    %v2154 = vadd.f32 %v1880, %v2153
    %v2155 = vand.u32 %v1907, 4294901760
    %v2156 = vsub.f32 %v1907, %v2155
    %v2157 = vand.u32 %v2156, 4294901760
    %v2158 = vsub.f32 %v2156, %v2157
    %v2159 = vand.u32 %v2158, 4294901760
    %2160 = vmatmul.f32.gmra.mxu0 %v2159
    %v2161 = vpop.f32.mrf.mxu0
    %v2162 = vadd.f32 %v1880, %v2161
    %v2163 = vand.u32 %v1910, 4294901760
    %v2164 = vsub.f32 %v1910, %v2163
    %v2165 = vand.u32 %v2164, 4294901760
    %v2166 = vsub.f32 %v2164, %v2165
    %v2167 = vand.u32 %v2166, 4294901760
    %2168 = vmatmul.f32.gmra.mxu0 %v2167
    %v2169 = vpop.f32.mrf.mxu0
    %v2170 = vadd.f32 %v1880, %v2169
    %v2171 = vand.u32 %v1913, 4294901760
    %v2172 = vsub.f32 %v1913, %v2171
    %v2173 = vand.u32 %v2172, 4294901760
    %v2174 = vsub.f32 %v2172, %v2173
    %v2175 = vand.u32 %v2174, 4294901760
    %2176 = vmatmul.f32.gmra.mxu0 %v2175
    %v2177 = vpop.f32.mrf.mxu0
    %v2178 = vadd.f32 %v1880, %v2177
    %v2179 = vand.u32 %v1916, 4294901760
    %v2180 = vsub.f32 %v1916, %v2179
    %v2181 = vand.u32 %v2180, 4294901760
    %v2182 = vsub.f32 %v2180, %v2181
    %v2183 = vand.u32 %v2182, 4294901760
    %2184 = vmatmul.f32.gmra.mxu0 %v2183
    %v2185 = vpop.f32.mrf.mxu0
    %v2186 = vadd.f32 %v1880, %v2185
    %v2187 = vand.u32 %v1919, 4294901760
    %v2188 = vsub.f32 %v1919, %v2187
    %v2189 = vand.u32 %v2188, 4294901760
    %v2190 = vsub.f32 %v2188, %v2189
    %v2191 = vand.u32 %v2190, 4294901760
    %2192 = vmatmul.f32.gmra.mxu0 %v2191
    %v2193 = vpop.f32.mrf.mxu0
    %v2194 = vadd.f32 %v1880, %v2193
    %v2195 = vand.u32 %v1922, 4294901760
    %v2196 = vsub.f32 %v1922, %v2195
    %v2197 = vand.u32 %v2196, 4294901760
    %v2198 = vsub.f32 %v2196, %v2197
    %v2199 = vand.u32 %v2198, 4294901760
    %2200 = vmatmul.f32.gmra.mxu0 %v2199
    %v2201 = vpop.f32.mrf.mxu0
    %v2202 = vadd.f32 %v1880, %v2201
    %v2203 = vand.u32 %v1925, 4294901760
    %v2204 = vsub.f32 %v1925, %v2203
    %v2205 = vand.u32 %v2204, 4294901760
    %v2206 = vsub.f32 %v2204, %v2205
    %v2207 = vand.u32 %v2206, 4294901760
    %2208 = vmatmul.f32.gmra.mxu0 %v2207
    %v2209 = vpop.f32.mrf.mxu0
    %v2210 = vadd.f32 %v1880, %v2209
    %v2211 = vand.u32 %v1928, 4294901760
    %v2212 = vsub.f32 %v1928, %v2211
    %v2213 = vand.u32 %v2212, 4294901760
    %v2214 = vsub.f32 %v2212, %v2213
    %v2215 = vand.u32 %v2214, 4294901760
    %2216 = vmatmul.f32.gmra.mxu0 %v2215
    %v2217 = vpop.f32.mrf.mxu0
    %v2218 = vadd.f32 %v1880, %v2217
    %v2219 = vand.u32 %v1931, 4294901760
    %v2220 = vsub.f32 %v1931, %v2219
    %v2221 = vand.u32 %v2220, 4294901760
    %v2222 = vsub.f32 %v2220, %v2221
    %v2223 = vand.u32 %v2222, 4294901760
    %2224 = vmatmul.f32.gmra.mxu0 %v2223
    %v2225 = vpop.f32.mrf.mxu0
    %v2226 = vadd.f32 %v1880, %v2225
    %v2227 = vand.u32 %v1934, 4294901760
    %v2228 = vsub.f32 %v1934, %v2227
    %v2229 = vand.u32 %v2228, 4294901760
    %v2230 = vsub.f32 %v2228, %v2229
    %v2231 = vand.u32 %v2230, 4294901760
    %2232 = vmatmul.f32.gmra.mxu0 %v2231
    %v2233 = vpop.f32.mrf.mxu0
    %v2234 = vadd.f32 %v1880, %v2233
    %v2235 = vand.u32 %v1937, 4294901760
    %v2236 = vsub.f32 %v1937, %v2235
    %v2237 = vand.u32 %v2236, 4294901760
    %v2238 = vsub.f32 %v2236, %v2237
    %v2239 = vand.u32 %v2238, 4294901760
    %2240 = vmatmul.f32.gmra.mxu0 %v2239
    %v2241 = vpop.f32.mrf.mxu0
    %v2242 = vadd.f32 %v1880, %v2241
    %v2243 = vand.u32 %v1940, 4294901760
    %v2244 = vsub.f32 %v1940, %v2243
    %v2245 = vand.u32 %v2244, 4294901760
    %v2246 = vsub.f32 %v2244, %v2245
    %v2247 = vand.u32 %v2246, 4294901760
    %2248 = vmatmul.f32.gmra.mxu0 %v2247
    %v2249 = vpop.f32.mrf.mxu0
    %v2250 = vadd.f32 %v1880, %v2249
    %v2251 = vand.u32 %v1943, 4294901760
    %v2252 = vsub.f32 %v1943, %v2251
    %v2253 = vand.u32 %v2252, 4294901760
    %v2254 = vsub.f32 %v2252, %v2253
    %v2255 = vand.u32 %v2254, 4294901760
    %2256 = vmatmul.f32.gmra.mxu0 %v2255
    %v2257 = vpop.f32.mrf.mxu0
    %v2258 = vadd.f32 %v1880, %v2257
    %v2259 = vand.u32 %v1946, 4294901760
    %v2260 = vsub.f32 %v1946, %v2259
    %v2261 = vand.u32 %v2260, 4294901760
    %v2262 = vsub.f32 %v2260, %v2261
    %v2263 = vand.u32 %v2262, 4294901760
    %2264 = vmatmul.f32.gmra.mxu0 %v2263
    %v2265 = vpop.f32.mrf.mxu0
    %v2266 = vadd.f32 %v1880, %v2265
    %v2267 = vand.u32 %v1949, 4294901760
    %v2268 = vsub.f32 %v1949, %v2267
    %v2269 = vand.u32 %v2268, 4294901760
    %v2270 = vsub.f32 %v2268, %v2269
    %v2271 = vand.u32 %v2270, 4294901760
    %2272 = vmatmul.f32.gmra.mxu0 %v2271
    %v2273 = vpop.f32.mrf.mxu0
    %v2274 = vadd.f32 %v1880, %v2273
    %v2275 = vand.u32 %v1952, 4294901760
    %v2276 = vsub.f32 %v1952, %v2275
    %v2277 = vand.u32 %v2276, 4294901760
    %v2278 = vsub.f32 %v2276, %v2277
    %v2279 = vand.u32 %v2278, 4294901760
    %2280 = vmatmul.f32.gmra.mxu0 %v2279
    %v2281 = vpop.f32.mrf.mxu0
    %v2282 = vadd.f32 %v1880, %v2281
    %v2283 = vand.u32 %v1955, 4294901760
    %v2284 = vsub.f32 %v1955, %v2283
    %v2285 = vand.u32 %v2284, 4294901760
    %v2286 = vsub.f32 %v2284, %v2285
    %v2287 = vand.u32 %v2286, 4294901760
    %2288 = vmatmul.f32.gmra.mxu0 %v2287
    %v2289 = vpop.f32.mrf.mxu0
    %v2290 = vadd.f32 %v1880, %v2289
    %v2291 = vand.u32 %v1958, 4294901760
    %v2292 = vsub.f32 %v1958, %v2291
    %v2293 = vand.u32 %v2292, 4294901760
    %v2294 = vsub.f32 %v2292, %v2293
    %v2295 = vand.u32 %v2294, 4294901760
    %2296 = vmatmul.f32.gmra.mxu0 %v2295
    %v2297 = vpop.f32.mrf.mxu0
    %v2298 = vadd.f32 %v1880, %v2297
    %v2299 = vand.u32 %v1961, 4294901760
    %v2300 = vsub.f32 %v1961, %v2299
    %v2301 = vand.u32 %v2300, 4294901760
    %v2302 = vsub.f32 %v2300, %v2301
    %v2303 = vand.u32 %v2302, 4294901760
    %2304 = vmatmul.f32.gmra.mxu0 %v2303
    %v2305 = vpop.f32.mrf.mxu0
    %v2306 = vadd.f32 %v1880, %v2305
    %v2307 = vand.u32 %v1964, 4294901760
    %v2308 = vsub.f32 %v1964, %v2307
    %v2309 = vand.u32 %v2308, 4294901760
    %v2310 = vsub.f32 %v2308, %v2309
    %v2311 = vand.u32 %v2310, 4294901760
    %2312 = vmatmul.f32.gmra.mxu0 %v2311
    %v2313 = vpop.f32.mrf.mxu0
    %v2314 = vadd.f32 %v1880, %v2313
    %v2315 = vand.u32 %v1967, 4294901760
    %v2316 = vsub.f32 %v1967, %v2315
    %v2317 = vand.u32 %v2316, 4294901760
    %v2318 = vsub.f32 %v2316, %v2317
    %v2319 = vand.u32 %v2318, 4294901760
    %2320 = vmatmul.f32.gmra.mxu0 %v2319
    %v2321 = vpop.f32.mrf.mxu0
    %v2322 = vadd.f32 %v1880, %v2321
    %v2323 = vand.u32 %v1970, 4294901760
    %v2324 = vsub.f32 %v1970, %v2323
    %v2325 = vand.u32 %v2324, 4294901760
    %v2326 = vsub.f32 %v2324, %v2325
    %v2327 = vand.u32 %v2326, 4294901760
    %2328 = vmatmul.f32.gmra.mxu0 %v2327
    %v2329 = vpop.f32.mrf.mxu0
    %v2330 = vadd.f32 %v1880, %v2329
    %v2331 = vand.u32 %v1973, 4294901760
    %v2332 = vsub.f32 %v1973, %v2331
    %v2333 = vand.u32 %v2332, 4294901760
    %v2334 = vsub.f32 %v2332, %v2333
    %v2335 = vand.u32 %v2334, 4294901760
    %2336 = vmatmul.f32.gmra.mxu0 %v2335
    %v2337 = vpop.f32.mrf.mxu0
    %v2338 = vadd.f32 %v1880, %v2337
    %v2339 = vand.u32 %v1976, 4294901760
    %v2340 = vsub.f32 %v1976, %v2339
    %v2341 = vand.u32 %v2340, 4294901760
    %v2342 = vsub.f32 %v2340, %v2341
    %v2343 = vand.u32 %v2342, 4294901760
    %2344 = vmatmul.f32.gmra.mxu0 %v2343
    %v2345 = vpop.f32.mrf.mxu0
    %v2346 = vadd.f32 %v1880, %v2345
    %v2347 = vand.u32 %v1979, 4294901760
    %v2348 = vsub.f32 %v1979, %v2347
    %v2349 = vand.u32 %v2348, 4294901760
    %v2350 = vsub.f32 %v2348, %v2349
    %v2351 = vand.u32 %v2350, 4294901760
    %2352 = vmatmul.f32.gmra.mxu0 %v2351
    %v2353 = vpop.f32.mrf.mxu0
    %v2354 = vadd.f32 %v1880, %v2353
    %v2355 = vand.u32 %v1982, 4294901760
    %v2356 = vsub.f32 %v1982, %v2355
    %v2357 = vand.u32 %v2356, 4294901760
    %v2358 = vsub.f32 %v2356, %v2357
    %v2359 = vand.u32 %v2358, 4294901760
    %2360 = vmatmul.f32.gmra.mxu0 %v2359
    %v2361 = vpop.f32.mrf.mxu0
    %v2362 = vadd.f32 %v1880, %v2361
    %v2363 = vand.u32 %v1985, 4294901760
    %v2364 = vsub.f32 %v1985, %v2363
    %v2365 = vand.u32 %v2364, 4294901760
    %v2366 = vsub.f32 %v2364, %v2365
    %v2367 = vand.u32 %v2366, 4294901760
    %2368 = vmatmul.f32.gmra.mxu0 %v2367
    %v2369 = vpop.f32.mrf.mxu0
    %v2370 = vadd.f32 %v1880, %v2369
    %v2371 = vand.u32 %v1988, 4294901760
    %v2372 = vsub.f32 %v1988, %v2371
    %v2373 = vand.u32 %v2372, 4294901760
    %v2374 = vsub.f32 %v2372, %v2373
    %v2375 = vand.u32 %v2374, 4294901760
    %2376 = vmatmul.f32.gmra.mxu0 %v2375
    %v2377 = vpop.f32.mrf.mxu0
    %v2378 = vadd.f32 %v1880, %v2377
    %v2379 = vand.u32 %v1991, 4294901760
    %v2380 = vsub.f32 %v1991, %v2379
    %v2381 = vand.u32 %v2380, 4294901760
    %v2382 = vsub.f32 %v2380, %v2381
    %v2383 = vand.u32 %v2382, 4294901760
    %2384 = vmatmul.f32.gmra.mxu0 %v2383
    %v2385 = vpop.f32.mrf.mxu0
    %v2386 = vadd.f32 %v1880, %v2385
    %v2387 = vand.u32 %v1994, 4294901760
    %v2388 = vsub.f32 %v1994, %v2387
    %v2389 = vand.u32 %v2388, 4294901760
    %v2390 = vsub.f32 %v2388, %v2389
    %v2391 = vand.u32 %v2390, 4294901760
    %2392 = vmatmul.f32.gmra.mxu0 %v2391
    %v2393 = vpop.f32.mrf.mxu0
    %v2394 = vadd.f32 %v1880, %v2393
    %v2395 = vand.u32 %v1997, 4294901760
    %v2396 = vsub.f32 %v1997, %v2395
    %v2397 = vand.u32 %v2396, 4294901760
    %v2398 = vsub.f32 %v2396, %v2397
    %v2399 = vand.u32 %v2398, 4294901760
    %2400 = vmatmul.f32.gmra.mxu0 %v2399
    %v2401 = vpop.f32.mrf.mxu0
    %v2402 = vadd.f32 %v1880, %v2401
    %v2403 = vand.u32 %v2000, 4294901760
    %v2404 = vsub.f32 %v2000, %v2403
    %v2405 = vand.u32 %v2404, 4294901760
    %v2406 = vsub.f32 %v2404, %v2405
    %v2407 = vand.u32 %v2406, 4294901760
    %2408 = vmatmul.f32.gmra.mxu0 %v2407
    %v2409 = vpop.f32.mrf.mxu0
    %v2410 = vadd.f32 %v1880, %v2409
    %v2411 = vand.u32 %v2003, 4294901760
    %v2412 = vsub.f32 %v2003, %v2411
    %v2413 = vand.u32 %v2412, 4294901760
    %v2414 = vsub.f32 %v2412, %v2413
    %v2415 = vand.u32 %v2414, 4294901760
    %2416 = vmatmul.f32.gmra.mxu0 %v2415
    %v2417 = vpop.f32.mrf.mxu0
    %v2418 = vadd.f32 %v1880, %v2417
    %v2419 = vand.u32 %v2006, 4294901760
    %v2420 = vsub.f32 %v2006, %v2419
    %v2421 = vand.u32 %v2420, 4294901760
    %v2422 = vsub.f32 %v2420, %v2421
    %v2423 = vand.u32 %v2422, 4294901760
    %2424 = vmatmul.f32.gmra.mxu0 %v2423
    %v2425 = vpop.f32.mrf.mxu0
    %v2426 = vadd.f32 %v1880, %v2425
    %v2427 = vand.u32 %v2009, 4294901760
    %v2428 = vsub.f32 %v2009, %v2427
    %v2429 = vand.u32 %v2428, 4294901760
    %v2430 = vsub.f32 %v2428, %v2429
    %v2431 = vand.u32 %v2430, 4294901760
    %2432 = vmatmul.f32.gmra.mxu0 %v2431
    %v2433 = vpop.f32.mrf.mxu0
    %v2434 = vadd.f32 %v1880, %v2433
    %v2435 = vand.u32 %v2012, 4294901760
    %v2436 = vsub.f32 %v2012, %v2435
    %v2437 = vand.u32 %v2436, 4294901760
    %v2438 = vsub.f32 %v2436, %v2437
    %v2439 = vand.u32 %v2438, 4294901760
    %2440 = vmatmul.f32.gmra.mxu0 %v2439
    %v2441 = vpop.f32.mrf.mxu0
    %v2442 = vadd.f32 %v1880, %v2441
    %v2443 = vand.u32 %v2015, 4294901760
    %v2444 = vsub.f32 %v2015, %v2443
    %v2445 = vand.u32 %v2444, 4294901760
    %v2446 = vsub.f32 %v2444, %v2445
    %v2447 = vand.u32 %v2446, 4294901760
    %2448 = vmatmul.f32.gmra.mxu0 %v2447
    %v2449 = vpop.f32.mrf.mxu0
    %v2450 = vadd.f32 %v1880, %v2449
    %v2451 = vand.u32 %v2018, 4294901760
    %v2452 = vsub.f32 %v2018, %v2451
    %v2453 = vand.u32 %v2452, 4294901760
    %v2454 = vsub.f32 %v2452, %v2453
    %v2455 = vand.u32 %v2454, 4294901760
    %2456 = vmatmul.f32.gmra.mxu0 %v2455
    %v2457 = vpop.f32.mrf.mxu0
    %v2458 = vadd.f32 %v1880, %v2457
    %v2459 = vand.u32 %v2021, 4294901760
    %v2460 = vsub.f32 %v2021, %v2459
    %v2461 = vand.u32 %v2460, 4294901760
    %v2462 = vsub.f32 %v2460, %v2461
    %v2463 = vand.u32 %v2462, 4294901760
    %2464 = vmatmul.f32.gmra.mxu0 %v2463
    %v2465 = vpop.f32.mrf.mxu0
    %v2466 = vadd.f32 %v1880, %v2465
    %v2467 = vand.u32 %v2024, 4294901760
    %v2468 = vsub.f32 %v2024, %v2467
    %v2469 = vand.u32 %v2468, 4294901760
    %v2470 = vsub.f32 %v2468, %v2469
    %v2471 = vand.u32 %v2470, 4294901760
    %2472 = vmatmul.f32.gmra.mxu0 %v2471
    %v2473 = vpop.f32.mrf.mxu0
    %v2474 = vadd.f32 %v1880, %v2473
    %v2475 = vand.u32 %v2027, 4294901760
    %v2476 = vsub.f32 %v2027, %v2475
    %v2477 = vand.u32 %v2476, 4294901760
    %v2478 = vsub.f32 %v2476, %v2477
    %v2479 = vand.u32 %v2478, 4294901760
    %2480 = vmatmul.f32.gmra.mxu0 %v2479
    %v2481 = vpop.f32.mrf.mxu0
    %v2482 = vadd.f32 %v1880, %v2481
    %v2483 = vand.u32 %v2030, 4294901760
    %v2484 = vsub.f32 %v2030, %v2483
    %v2485 = vand.u32 %v2484, 4294901760
    %v2486 = vsub.f32 %v2484, %v2485
    %v2487 = vand.u32 %v2486, 4294901760
    %2488 = vmatmul.f32.gmra.mxu0 %v2487
    %v2489 = vpop.f32.mrf.mxu0
    %v2490 = vadd.f32 %v1880, %v2489
    %v2491 = vand.u32 %v2033, 4294901760
    %v2492 = vsub.f32 %v2033, %v2491
    %v2493 = vand.u32 %v2492, 4294901760
    %v2494 = vsub.f32 %v2492, %v2493
    %v2495 = vand.u32 %v2494, 4294901760
    %2496 = vmatmul.f32.gmra.mxu0 %v2495
    %v2497 = vpop.f32.mrf.mxu0
    %v2498 = vadd.f32 %v1880, %v2497
    %v2499 = vand.u32 %v2036, 4294901760
    %v2500 = vsub.f32 %v2036, %v2499
    %v2501 = vand.u32 %v2500, 4294901760
    %v2502 = vsub.f32 %v2500, %v2501
    %v2503 = vand.u32 %v2502, 4294901760
    %2504 = vmatmul.f32.gmra.mxu0 %v2503
    %v2505 = vpop.f32.mrf.mxu0
    %v2506 = vadd.f32 %v1880, %v2505
    %v2507 = vand.u32 %v2039, 4294901760
    %v2508 = vsub.f32 %v2039, %v2507
    %v2509 = vand.u32 %v2508, 4294901760
    %v2510 = vsub.f32 %v2508, %v2509
    %v2511 = vand.u32 %v2510, 4294901760
    %2512 = vmatmul.f32.gmra.mxu0 %v2511
    %v2513 = vpop.f32.mrf.mxu0
    %v2514 = vadd.f32 %v1880, %v2513
    %v2515 = vand.u32 %v2042, 4294901760
    %v2516 = vsub.f32 %v2042, %v2515
    %v2517 = vand.u32 %v2516, 4294901760
    %v2518 = vsub.f32 %v2516, %v2517
    %v2519 = vand.u32 %v2518, 4294901760
    %2520 = vmatmul.f32.gmra.mxu0 %v2519
    %v2521 = vpop.f32.mrf.mxu0
    %v2522 = vadd.f32 %v1880, %v2521
    %v2523 = vand.u32 %v2045, 4294901760
    %v2524 = vsub.f32 %v2045, %v2523
    %v2525 = vand.u32 %v2524, 4294901760
    %v2526 = vsub.f32 %v2524, %v2525
    %v2527 = vand.u32 %v2526, 4294901760
    %2528 = vmatmul.f32.gmra.mxu0 %v2527
    %v2529 = vpop.f32.mrf.mxu0
    %v2530 = vadd.f32 %v1880, %v2529
    %v2531 = vand.u32 %v2048, 4294901760
    %v2532 = vsub.f32 %v2048, %v2531
    %v2533 = vand.u32 %v2532, 4294901760
    %v2534 = vsub.f32 %v2532, %v2533
    %v2535 = vand.u32 %v2534, 4294901760
    %2536 = vmatmul.f32.gmra.mxu0 %v2535
    %v2537 = vpop.f32.mrf.mxu0
    %v2538 = vadd.f32 %v1880, %v2537
    %v2539 = vand.u32 %v2051, 4294901760
    %v2540 = vsub.f32 %v2051, %v2539
    %v2541 = vand.u32 %v2540, 4294901760
    %v2542 = vsub.f32 %v2540, %v2541
    %v2543 = vand.u32 %v2542, 4294901760
    %2544 = vmatmul.f32.gmra.mxu0 %v2543
    %v2545 = vpop.f32.mrf.mxu0
    %v2546 = vadd.f32 %v1880, %v2545
    %v2547 = vand.u32 %v2054, 4294901760
    %v2548 = vsub.f32 %v2054, %v2547
    %v2549 = vand.u32 %v2548, 4294901760
    %v2550 = vsub.f32 %v2548, %v2549
    %v2551 = vand.u32 %v2550, 4294901760
    %2552 = vmatmul.f32.gmra.mxu0 %v2551
    %v2553 = vpop.f32.mrf.mxu0
    %v2554 = vadd.f32 %v1880, %v2553
    %v2555 = vand.u32 %v2057, 4294901760
    %v2556 = vsub.f32 %v2057, %v2555
    %v2557 = vand.u32 %v2556, 4294901760
    %v2558 = vsub.f32 %v2556, %v2557
    %v2559 = vand.u32 %v2558, 4294901760
    %2560 = vmatmul.f32.gmra.mxu0 %v2559
    %v2561 = vpop.f32.mrf.mxu0
    %v2562 = vadd.f32 %v1880, %v2561
    %v2563 = vand.u32 %v2060, 4294901760
    %v2564 = vsub.f32 %v2060, %v2563
    %v2565 = vand.u32 %v2564, 4294901760
    %v2566 = vsub.f32 %v2564, %v2565
    %v2567 = vand.u32 %v2566, 4294901760
    %2568 = vmatmul.f32.gmra.mxu0 %v2567
    %v2569 = vpop.f32.mrf.mxu0
    %v2570 = vadd.f32 %v1880, %v2569
    %v2571 = vand.u32 %v2063, 4294901760
    %v2572 = vsub.f32 %v2063, %v2571
    %v2573 = vand.u32 %v2572, 4294901760
    %v2574 = vsub.f32 %v2572, %v2573
    %v2575 = vand.u32 %v2574, 4294901760
    %2576 = vmatmul.f32.gmra.mxu0 %v2575
    %v2577 = vpop.f32.mrf.mxu0
    %v2578 = vadd.f32 %v1880, %v2577
    %v2579 = vand.u32 %v2066, 4294901760
    %v2580 = vsub.f32 %v2066, %v2579
    %v2581 = vand.u32 %v2580, 4294901760
    %v2582 = vsub.f32 %v2580, %v2581
    %v2583 = vand.u32 %v2582, 4294901760
    %2584 = vmatmul.f32.gmra.mxu0 %v2583
    %v2585 = vpop.f32.mrf.mxu0
    %v2586 = vadd.f32 %v1880, %v2585
    %v2587 = vand.u32 %v2069, 4294901760
    %v2588 = vsub.f32 %v2069, %v2587
    %v2589 = vand.u32 %v2588, 4294901760
    %v2590 = vsub.f32 %v2588, %v2589
    %v2591 = vand.u32 %v2590, 4294901760
    %2592 = vmatmul.f32.gmra.mxu0 %v2591
    %v2593 = vpop.f32.mrf.mxu0
    %v2594 = vadd.f32 %v1880, %v2593
    %v2595 = vand.u32 %v2072, 4294901760
    %v2596 = vsub.f32 %v2072, %v2595
    %v2597 = vand.u32 %v2596, 4294901760
    %v2598 = vsub.f32 %v2596, %v2597
    %v2599 = vand.u32 %v2598, 4294901760
    %2600 = vmatmul.f32.gmra.mxu0 %v2599
    %v2601 = vpop.f32.mrf.mxu0
    %v2602 = vadd.f32 %v1880, %v2601
    %2603 = vdwg.mxu0
    %2604 = vmatpush.msra.mxu0 0.0
    %2605 = vmatpush.msra.mxu0 0.0
    %2606 = vmatpush.msra.mxu0 0.0
    %2607 = vmatpush.msra.mxu0 0.0
    %2608 = vmatpush.msra.mxu0 0.0
    %2609 = vmatpush.msra.mxu0 0.0
    %2610 = vmatpush.msra.mxu0 0.0
    %2611 = vmatpush.msra.mxu0 0.0
    %2612 = vmatpush.msra.mxu0 0.0
    %2613 = vmatpush.msra.mxu0 0.0
    %2614 = vmatpush.msra.mxu0 0.0
    %2615 = vmatpush.msra.mxu0 0.0
    %2616 = vmatpush.msra.mxu0 0.0
    %2617 = vmatpush.msra.mxu0 0.0
    %2618 = vmatpush.msra.mxu0 0.0
    %v2619 = vand.u32 %v1878, 4294901760
    %v2620 = vsub.f32 %v1878, %v2619
    %v2621 = vand.u32 %v2620, 4294901760
    %v2622 = vsub.f32 %v2620, %v2621
    %v2623 = vand.u32 %v2622, 4294901760
    %2624 = vmatpush.msra.mxu0 %v2623
    %v2625 = vand.u32 %v1883, 4294901760
    %2626 = vmatmul.f32.gmra.mxu0 %v2625
    %v2627 = vpop.f32.mrf.mxu0
    %v2628 = vadd.f32 %v2098, %v2627
    %v2629 = vand.u32 %v1886, 4294901760
    %2630 = vmatmul.f32.gmra.mxu0 %v2629
    %v2631 = vpop.f32.mrf.mxu0
    %v2632 = vadd.f32 %v2106, %v2631
    %v2633 = vand.u32 %v1889, 4294901760
    %2634 = vmatmul.f32.gmra.mxu0 %v2633
    %v2635 = vpop.f32.mrf.mxu0
    %v2636 = vadd.f32 %v2114, %v2635
    %v2637 = vand.u32 %v1892, 4294901760
    %2638 = vmatmul.f32.gmra.mxu0 %v2637
    %v2639 = vpop.f32.mrf.mxu0
    %v2640 = vadd.f32 %v2122, %v2639
    %v2641 = vand.u32 %v1895, 4294901760
    %2642 = vmatmul.f32.gmra.mxu0 %v2641
    %v2643 = vpop.f32.mrf.mxu0
    %v2644 = vadd.f32 %v2130, %v2643
    %v2645 = vand.u32 %v1898, 4294901760
    %2646 = vmatmul.f32.gmra.mxu0 %v2645
    %v2647 = vpop.f32.mrf.mxu0
    %v2648 = vadd.f32 %v2138, %v2647
    %v2649 = vand.u32 %v1901, 4294901760
    %2650 = vmatmul.f32.gmra.mxu0 %v2649
    %v2651 = vpop.f32.mrf.mxu0
    %v2652 = vadd.f32 %v2146, %v2651
    %v2653 = vand.u32 %v1904, 4294901760
    %2654 = vmatmul.f32.gmra.mxu0 %v2653
    %v2655 = vpop.f32.mrf.mxu0
    %v2656 = vadd.f32 %v2154, %v2655
    %v2657 = vand.u32 %v1907, 4294901760
    %2658 = vmatmul.f32.gmra.mxu0 %v2657
    %v2659 = vpop.f32.mrf.mxu0
    %v2660 = vadd.f32 %v2162, %v2659
    %v2661 = vand.u32 %v1910, 4294901760
    %2662 = vmatmul.f32.gmra.mxu0 %v2661
    %v2663 = vpop.f32.mrf.mxu0
    %v2664 = vadd.f32 %v2170, %v2663
    %v2665 = vand.u32 %v1913, 4294901760
    %2666 = vmatmul.f32.gmra.mxu0 %v2665
    %v2667 = vpop.f32.mrf.mxu0
    %v2668 = vadd.f32 %v2178, %v2667
    %v2669 = vand.u32 %v1916, 4294901760
    %2670 = vmatmul.f32.gmra.mxu0 %v2669
    %v2671 = vpop.f32.mrf.mxu0
    %v2672 = vadd.f32 %v2186, %v2671
    %v2673 = vand.u32 %v1919, 4294901760
    %2674 = vmatmul.f32.gmra.mxu0 %v2673
    %v2675 = vpop.f32.mrf.mxu0
    %v2676 = vadd.f32 %v2194, %v2675
    %v2677 = vand.u32 %v1922, 4294901760
    %2678 = vmatmul.f32.gmra.mxu0 %v2677
    %v2679 = vpop.f32.mrf.mxu0
    %v2680 = vadd.f32 %v2202, %v2679
    %v2681 = vand.u32 %v1925, 4294901760
    %2682 = vmatmul.f32.gmra.mxu0 %v2681
    %v2683 = vpop.f32.mrf.mxu0
    %v2684 = vadd.f32 %v2210, %v2683
    %v2685 = vand.u32 %v1928, 4294901760
    %2686 = vmatmul.f32.gmra.mxu0 %v2685
    %v2687 = vpop.f32.mrf.mxu0
    %v2688 = vadd.f32 %v2218, %v2687
    %v2689 = vand.u32 %v1931, 4294901760
    %2690 = vmatmul.f32.gmra.mxu0 %v2689
    %v2691 = vpop.f32.mrf.mxu0
    %v2692 = vadd.f32 %v2226, %v2691
    %v2693 = vand.u32 %v1934, 4294901760
    %2694 = vmatmul.f32.gmra.mxu0 %v2693
    %v2695 = vpop.f32.mrf.mxu0
    %v2696 = vadd.f32 %v2234, %v2695
    %v2697 = vand.u32 %v1937, 4294901760
    %2698 = vmatmul.f32.gmra.mxu0 %v2697
    %v2699 = vpop.f32.mrf.mxu0
    %v2700 = vadd.f32 %v2242, %v2699
    %v2701 = vand.u32 %v1940, 4294901760
    %2702 = vmatmul.f32.gmra.mxu0 %v2701
    %v2703 = vpop.f32.mrf.mxu0
    %v2704 = vadd.f32 %v2250, %v2703
    %v2705 = vand.u32 %v1943, 4294901760
    %2706 = vmatmul.f32.gmra.mxu0 %v2705
    %v2707 = vpop.f32.mrf.mxu0
    %v2708 = vadd.f32 %v2258, %v2707
    %v2709 = vand.u32 %v1946, 4294901760
    %2710 = vmatmul.f32.gmra.mxu0 %v2709
    %v2711 = vpop.f32.mrf.mxu0
    %v2712 = vadd.f32 %v2266, %v2711
    %v2713 = vand.u32 %v1949, 4294901760
    %2714 = vmatmul.f32.gmra.mxu0 %v2713
    %v2715 = vpop.f32.mrf.mxu0
    %v2716 = vadd.f32 %v2274, %v2715
    %v2717 = vand.u32 %v1952, 4294901760
    %2718 = vmatmul.f32.gmra.mxu0 %v2717
    %v2719 = vpop.f32.mrf.mxu0
    %v2720 = vadd.f32 %v2282, %v2719
    %v2721 = vand.u32 %v1955, 4294901760
    %2722 = vmatmul.f32.gmra.mxu0 %v2721
    %v2723 = vpop.f32.mrf.mxu0
    %v2724 = vadd.f32 %v2290, %v2723
    %v2725 = vand.u32 %v1958, 4294901760
    %2726 = vmatmul.f32.gmra.mxu0 %v2725
    %v2727 = vpop.f32.mrf.mxu0
    %v2728 = vadd.f32 %v2298, %v2727
    %v2729 = vand.u32 %v1961, 4294901760
    %2730 = vmatmul.f32.gmra.mxu0 %v2729
    %v2731 = vpop.f32.mrf.mxu0
    %v2732 = vadd.f32 %v2306, %v2731
    %v2733 = vand.u32 %v1964, 4294901760
    %2734 = vmatmul.f32.gmra.mxu0 %v2733
    %v2735 = vpop.f32.mrf.mxu0
    %v2736 = vadd.f32 %v2314, %v2735
    %v2737 = vand.u32 %v1967, 4294901760
    %2738 = vmatmul.f32.gmra.mxu0 %v2737
    %v2739 = vpop.f32.mrf.mxu0
    %v2740 = vadd.f32 %v2322, %v2739
    %v2741 = vand.u32 %v1970, 4294901760
    %2742 = vmatmul.f32.gmra.mxu0 %v2741
    %v2743 = vpop.f32.mrf.mxu0
    %v2744 = vadd.f32 %v2330, %v2743
    %v2745 = vand.u32 %v1973, 4294901760
    %2746 = vmatmul.f32.gmra.mxu0 %v2745
    %v2747 = vpop.f32.mrf.mxu0
    %v2748 = vadd.f32 %v2338, %v2747
    %v2749 = vand.u32 %v1976, 4294901760
    %2750 = vmatmul.f32.gmra.mxu0 %v2749
    %v2751 = vpop.f32.mrf.mxu0
    %v2752 = vadd.f32 %v2346, %v2751
    %v2753 = vand.u32 %v1979, 4294901760
    %2754 = vmatmul.f32.gmra.mxu0 %v2753
    %v2755 = vpop.f32.mrf.mxu0
    %v2756 = vadd.f32 %v2354, %v2755
    %v2757 = vand.u32 %v1982, 4294901760
    %2758 = vmatmul.f32.gmra.mxu0 %v2757
    %v2759 = vpop.f32.mrf.mxu0
    %v2760 = vadd.f32 %v2362, %v2759
    %v2761 = vand.u32 %v1985, 4294901760
    %2762 = vmatmul.f32.gmra.mxu0 %v2761
    %v2763 = vpop.f32.mrf.mxu0
    %v2764 = vadd.f32 %v2370, %v2763
    %v2765 = vand.u32 %v1988, 4294901760
    %2766 = vmatmul.f32.gmra.mxu0 %v2765
    %v2767 = vpop.f32.mrf.mxu0
    %v2768 = vadd.f32 %v2378, %v2767
    %v2769 = vand.u32 %v1991, 4294901760
    %2770 = vmatmul.f32.gmra.mxu0 %v2769
    %v2771 = vpop.f32.mrf.mxu0
    %v2772 = vadd.f32 %v2386, %v2771
    %v2773 = vand.u32 %v1994, 4294901760
    %2774 = vmatmul.f32.gmra.mxu0 %v2773
    %v2775 = vpop.f32.mrf.mxu0
    %v2776 = vadd.f32 %v2394, %v2775
    %v2777 = vand.u32 %v1997, 4294901760
    %2778 = vmatmul.f32.gmra.mxu0 %v2777
    %v2779 = vpop.f32.mrf.mxu0
    %v2780 = vadd.f32 %v2402, %v2779
    %v2781 = vand.u32 %v2000, 4294901760
    %2782 = vmatmul.f32.gmra.mxu0 %v2781
    %v2783 = vpop.f32.mrf.mxu0
    %v2784 = vadd.f32 %v2410, %v2783
    %v2785 = vand.u32 %v2003, 4294901760
    %2786 = vmatmul.f32.gmra.mxu0 %v2785
    %v2787 = vpop.f32.mrf.mxu0
    %v2788 = vadd.f32 %v2418, %v2787
    %v2789 = vand.u32 %v2006, 4294901760
    %2790 = vmatmul.f32.gmra.mxu0 %v2789
    %v2791 = vpop.f32.mrf.mxu0
    %v2792 = vadd.f32 %v2426, %v2791
    %v2793 = vand.u32 %v2009, 4294901760
    %2794 = vmatmul.f32.gmra.mxu0 %v2793
    %v2795 = vpop.f32.mrf.mxu0
    %v2796 = vadd.f32 %v2434, %v2795
    %v2797 = vand.u32 %v2012, 4294901760
    %2798 = vmatmul.f32.gmra.mxu0 %v2797
    %v2799 = vpop.f32.mrf.mxu0
    %v2800 = vadd.f32 %v2442, %v2799
    %v2801 = vand.u32 %v2015, 4294901760
    %2802 = vmatmul.f32.gmra.mxu0 %v2801
    %v2803 = vpop.f32.mrf.mxu0
    %v2804 = vadd.f32 %v2450, %v2803
    %v2805 = vand.u32 %v2018, 4294901760
    %2806 = vmatmul.f32.gmra.mxu0 %v2805
    %v2807 = vpop.f32.mrf.mxu0
    %v2808 = vadd.f32 %v2458, %v2807
    %v2809 = vand.u32 %v2021, 4294901760
    %2810 = vmatmul.f32.gmra.mxu0 %v2809
    %v2811 = vpop.f32.mrf.mxu0
    %v2812 = vadd.f32 %v2466, %v2811
    %v2813 = vand.u32 %v2024, 4294901760
    %2814 = vmatmul.f32.gmra.mxu0 %v2813
    %v2815 = vpop.f32.mrf.mxu0
    %v2816 = vadd.f32 %v2474, %v2815
    %v2817 = vand.u32 %v2027, 4294901760
    %2818 = vmatmul.f32.gmra.mxu0 %v2817
    %v2819 = vpop.f32.mrf.mxu0
    %v2820 = vadd.f32 %v2482, %v2819
    %v2821 = vand.u32 %v2030, 4294901760
    %2822 = vmatmul.f32.gmra.mxu0 %v2821
    %v2823 = vpop.f32.mrf.mxu0
    %v2824 = vadd.f32 %v2490, %v2823
    %v2825 = vand.u32 %v2033, 4294901760
    %2826 = vmatmul.f32.gmra.mxu0 %v2825
    %v2827 = vpop.f32.mrf.mxu0
    %v2828 = vadd.f32 %v2498, %v2827
    %v2829 = vand.u32 %v2036, 4294901760
    %2830 = vmatmul.f32.gmra.mxu0 %v2829
    %v2831 = vpop.f32.mrf.mxu0
    %v2832 = vadd.f32 %v2506, %v2831
    %v2833 = vand.u32 %v2039, 4294901760
    %2834 = vmatmul.f32.gmra.mxu0 %v2833
    %v2835 = vpop.f32.mrf.mxu0
    %v2836 = vadd.f32 %v2514, %v2835
    %v2837 = vand.u32 %v2042, 4294901760
    %2838 = vmatmul.f32.gmra.mxu0 %v2837
    %v2839 = vpop.f32.mrf.mxu0
    %v2840 = vadd.f32 %v2522, %v2839
    %v2841 = vand.u32 %v2045, 4294901760
    %2842 = vmatmul.f32.gmra.mxu0 %v2841
    %v2843 = vpop.f32.mrf.mxu0
    %v2844 = vadd.f32 %v2530, %v2843
    %v2845 = vand.u32 %v2048, 4294901760
    %2846 = vmatmul.f32.gmra.mxu0 %v2845
    %v2847 = vpop.f32.mrf.mxu0
    %v2848 = vadd.f32 %v2538, %v2847
    %v2849 = vand.u32 %v2051, 4294901760
    %2850 = vmatmul.f32.gmra.mxu0 %v2849
    %v2851 = vpop.f32.mrf.mxu0
    %v2852 = vadd.f32 %v2546, %v2851
    %v2853 = vand.u32 %v2054, 4294901760
    %2854 = vmatmul.f32.gmra.mxu0 %v2853
    %v2855 = vpop.f32.mrf.mxu0
    %v2856 = vadd.f32 %v2554, %v2855
    %v2857 = vand.u32 %v2057, 4294901760
    %2858 = vmatmul.f32.gmra.mxu0 %v2857
    %v2859 = vpop.f32.mrf.mxu0
    %v2860 = vadd.f32 %v2562, %v2859
    %v2861 = vand.u32 %v2060, 4294901760
    %2862 = vmatmul.f32.gmra.mxu0 %v2861
    %v2863 = vpop.f32.mrf.mxu0
    %v2864 = vadd.f32 %v2570, %v2863
    %v2865 = vand.u32 %v2063, 4294901760
    %2866 = vmatmul.f32.gmra.mxu0 %v2865
    %v2867 = vpop.f32.mrf.mxu0
    %v2868 = vadd.f32 %v2578, %v2867
    %v2869 = vand.u32 %v2066, 4294901760
    %2870 = vmatmul.f32.gmra.mxu0 %v2869
    %v2871 = vpop.f32.mrf.mxu0
    %v2872 = vadd.f32 %v2586, %v2871
    %v2873 = vand.u32 %v2069, 4294901760
    %2874 = vmatmul.f32.gmra.mxu0 %v2873
    %v2875 = vpop.f32.mrf.mxu0
    %v2876 = vadd.f32 %v2594, %v2875
    %v2877 = vand.u32 %v2072, 4294901760
    %2878 = vmatmul.f32.gmra.mxu0 %v2877
    %v2879 = vpop.f32.mrf.mxu0
    %v2880 = vadd.f32 %v2602, %v2879
    %2881 = vdwg.mxu0
    %2882 = vmatpush.msra.mxu0 0.0
    %2883 = vmatpush.msra.mxu0 0.0
    %2884 = vmatpush.msra.mxu0 0.0
    %2885 = vmatpush.msra.mxu0 0.0
    %2886 = vmatpush.msra.mxu0 0.0
    %2887 = vmatpush.msra.mxu0 0.0
    %2888 = vmatpush.msra.mxu0 0.0
    %2889 = vmatpush.msra.mxu0 0.0
    %2890 = vmatpush.msra.mxu0 0.0
    %2891 = vmatpush.msra.mxu0 0.0
    %2892 = vmatpush.msra.mxu0 0.0
    %2893 = vmatpush.msra.mxu0 0.0
    %2894 = vmatpush.msra.mxu0 0.0
    %2895 = vmatpush.msra.mxu0 0.0
    %2896 = vmatpush.msra.mxu0 0.0
    %v2897 = vand.u32 %v1878, 4294901760
    %v2898 = vsub.f32 %v1878, %v2897
    %2899 = vmatpush.msra.mxu0 %v2898
    %v2900 = vand.u32 %v1883, 4294901760
    %v2901 = vsub.f32 %v1883, %v2900
    %2902 = vmatmul.f32.gmra.mxu0 %v2901
    %v2903 = vpop.f32.mrf.mxu0
    %v2904 = vadd.f32 %v2628, %v2903
    %v2905 = vand.u32 %v1886, 4294901760
    %v2906 = vsub.f32 %v1886, %v2905
    %2907 = vmatmul.f32.gmra.mxu0 %v2906
    %v2908 = vpop.f32.mrf.mxu0
    %v2909 = vadd.f32 %v2632, %v2908
    %v2910 = vand.u32 %v1889, 4294901760
    %v2911 = vsub.f32 %v1889, %v2910
    %2912 = vmatmul.f32.gmra.mxu0 %v2911
    %v2913 = vpop.f32.mrf.mxu0
    %v2914 = vadd.f32 %v2636, %v2913
    %v2915 = vand.u32 %v1892, 4294901760
    %v2916 = vsub.f32 %v1892, %v2915
    %2917 = vmatmul.f32.gmra.mxu0 %v2916
    %v2918 = vpop.f32.mrf.mxu0
    %v2919 = vadd.f32 %v2640, %v2918
    %v2920 = vand.u32 %v1895, 4294901760
    %v2921 = vsub.f32 %v1895, %v2920
    %2922 = vmatmul.f32.gmra.mxu0 %v2921
    %v2923 = vpop.f32.mrf.mxu0
    %v2924 = vadd.f32 %v2644, %v2923
    %v2925 = vand.u32 %v1898, 4294901760
    %v2926 = vsub.f32 %v1898, %v2925
    %2927 = vmatmul.f32.gmra.mxu0 %v2926
    %v2928 = vpop.f32.mrf.mxu0
    %v2929 = vadd.f32 %v2648, %v2928
    %v2930 = vand.u32 %v1901, 4294901760
    %v2931 = vsub.f32 %v1901, %v2930
    %2932 = vmatmul.f32.gmra.mxu0 %v2931
    %v2933 = vpop.f32.mrf.mxu0
    %v2934 = vadd.f32 %v2652, %v2933
    %v2935 = vand.u32 %v1904, 4294901760
    %v2936 = vsub.f32 %v1904, %v2935
    %2937 = vmatmul.f32.gmra.mxu0 %v2936
    %v2938 = vpop.f32.mrf.mxu0
    %v2939 = vadd.f32 %v2656, %v2938
    %v2940 = vand.u32 %v1907, 4294901760
    %v2941 = vsub.f32 %v1907, %v2940
    %2942 = vmatmul.f32.gmra.mxu0 %v2941
    %v2943 = vpop.f32.mrf.mxu0
    %v2944 = vadd.f32 %v2660, %v2943
    %v2945 = vand.u32 %v1910, 4294901760
    %v2946 = vsub.f32 %v1910, %v2945
    %2947 = vmatmul.f32.gmra.mxu0 %v2946
    %v2948 = vpop.f32.mrf.mxu0
    %v2949 = vadd.f32 %v2664, %v2948
    %v2950 = vand.u32 %v1913, 4294901760
    %v2951 = vsub.f32 %v1913, %v2950
    %2952 = vmatmul.f32.gmra.mxu0 %v2951
    %v2953 = vpop.f32.mrf.mxu0
    %v2954 = vadd.f32 %v2668, %v2953
    %v2955 = vand.u32 %v1916, 4294901760
    %v2956 = vsub.f32 %v1916, %v2955
    %2957 = vmatmul.f32.gmra.mxu0 %v2956
    %v2958 = vpop.f32.mrf.mxu0
    %v2959 = vadd.f32 %v2672, %v2958
    %v2960 = vand.u32 %v1919, 4294901760
    %v2961 = vsub.f32 %v1919, %v2960
    %2962 = vmatmul.f32.gmra.mxu0 %v2961
    %v2963 = vpop.f32.mrf.mxu0
    %v2964 = vadd.f32 %v2676, %v2963
    %v2965 = vand.u32 %v1922, 4294901760
    %v2966 = vsub.f32 %v1922, %v2965
    %2967 = vmatmul.f32.gmra.mxu0 %v2966
    %v2968 = vpop.f32.mrf.mxu0
    %v2969 = vadd.f32 %v2680, %v2968
    %v2970 = vand.u32 %v1925, 4294901760
    %v2971 = vsub.f32 %v1925, %v2970
    %2972 = vmatmul.f32.gmra.mxu0 %v2971
    %v2973 = vpop.f32.mrf.mxu0
    %v2974 = vadd.f32 %v2684, %v2973
    %v2975 = vand.u32 %v1928, 4294901760
    %v2976 = vsub.f32 %v1928, %v2975
    %2977 = vmatmul.f32.gmra.mxu0 %v2976
    %v2978 = vpop.f32.mrf.mxu0
    %v2979 = vadd.f32 %v2688, %v2978
    %v2980 = vand.u32 %v1931, 4294901760
    %v2981 = vsub.f32 %v1931, %v2980
    %2982 = vmatmul.f32.gmra.mxu0 %v2981
    %v2983 = vpop.f32.mrf.mxu0
    %v2984 = vadd.f32 %v2692, %v2983
    %v2985 = vand.u32 %v1934, 4294901760
    %v2986 = vsub.f32 %v1934, %v2985
    %2987 = vmatmul.f32.gmra.mxu0 %v2986
    %v2988 = vpop.f32.mrf.mxu0
    %v2989 = vadd.f32 %v2696, %v2988
    %v2990 = vand.u32 %v1937, 4294901760
    %v2991 = vsub.f32 %v1937, %v2990
    %2992 = vmatmul.f32.gmra.mxu0 %v2991
    %v2993 = vpop.f32.mrf.mxu0
    %v2994 = vadd.f32 %v2700, %v2993
    %v2995 = vand.u32 %v1940, 4294901760
    %v2996 = vsub.f32 %v1940, %v2995
    %2997 = vmatmul.f32.gmra.mxu0 %v2996
    %v2998 = vpop.f32.mrf.mxu0
    %v2999 = vadd.f32 %v2704, %v2998
    %v3000 = vand.u32 %v1943, 4294901760
    %v3001 = vsub.f32 %v1943, %v3000
    %3002 = vmatmul.f32.gmra.mxu0 %v3001
    %v3003 = vpop.f32.mrf.mxu0
    %v3004 = vadd.f32 %v2708, %v3003
    %v3005 = vand.u32 %v1946, 4294901760
    %v3006 = vsub.f32 %v1946, %v3005
    %3007 = vmatmul.f32.gmra.mxu0 %v3006
    %v3008 = vpop.f32.mrf.mxu0
    %v3009 = vadd.f32 %v2712, %v3008
    %v3010 = vand.u32 %v1949, 4294901760
    %v3011 = vsub.f32 %v1949, %v3010
    %3012 = vmatmul.f32.gmra.mxu0 %v3011
    %v3013 = vpop.f32.mrf.mxu0
    %v3014 = vadd.f32 %v2716, %v3013
    %v3015 = vand.u32 %v1952, 4294901760
    %v3016 = vsub.f32 %v1952, %v3015
    %3017 = vmatmul.f32.gmra.mxu0 %v3016
    %v3018 = vpop.f32.mrf.mxu0
    %v3019 = vadd.f32 %v2720, %v3018
    %v3020 = vand.u32 %v1955, 4294901760
    %v3021 = vsub.f32 %v1955, %v3020
    %3022 = vmatmul.f32.gmra.mxu0 %v3021
    %v3023 = vpop.f32.mrf.mxu0
    %v3024 = vadd.f32 %v2724, %v3023
    %v3025 = vand.u32 %v1958, 4294901760
    %v3026 = vsub.f32 %v1958, %v3025
    %3027 = vmatmul.f32.gmra.mxu0 %v3026
    %v3028 = vpop.f32.mrf.mxu0
    %v3029 = vadd.f32 %v2728, %v3028
    %v3030 = vand.u32 %v1961, 4294901760
    %v3031 = vsub.f32 %v1961, %v3030
    %3032 = vmatmul.f32.gmra.mxu0 %v3031
    %v3033 = vpop.f32.mrf.mxu0
    %v3034 = vadd.f32 %v2732, %v3033
    %v3035 = vand.u32 %v1964, 4294901760
    %v3036 = vsub.f32 %v1964, %v3035
    %3037 = vmatmul.f32.gmra.mxu0 %v3036
    %v3038 = vpop.f32.mrf.mxu0
    %v3039 = vadd.f32 %v2736, %v3038
    %v3040 = vand.u32 %v1967, 4294901760
    %v3041 = vsub.f32 %v1967, %v3040
    %3042 = vmatmul.f32.gmra.mxu0 %v3041
    %v3043 = vpop.f32.mrf.mxu0
    %v3044 = vadd.f32 %v2740, %v3043
    %v3045 = vand.u32 %v1970, 4294901760
    %v3046 = vsub.f32 %v1970, %v3045
    %3047 = vmatmul.f32.gmra.mxu0 %v3046
    %v3048 = vpop.f32.mrf.mxu0
    %v3049 = vadd.f32 %v2744, %v3048
    %v3050 = vand.u32 %v1973, 4294901760
    %v3051 = vsub.f32 %v1973, %v3050
    %3052 = vmatmul.f32.gmra.mxu0 %v3051
    %v3053 = vpop.f32.mrf.mxu0
    %v3054 = vadd.f32 %v2748, %v3053
    %v3055 = vand.u32 %v1976, 4294901760
    %v3056 = vsub.f32 %v1976, %v3055
    %3057 = vmatmul.f32.gmra.mxu0 %v3056
    %v3058 = vpop.f32.mrf.mxu0
    %v3059 = vadd.f32 %v2752, %v3058
    %v3060 = vand.u32 %v1979, 4294901760
    %v3061 = vsub.f32 %v1979, %v3060
    %3062 = vmatmul.f32.gmra.mxu0 %v3061
    %v3063 = vpop.f32.mrf.mxu0
    %v3064 = vadd.f32 %v2756, %v3063
    %v3065 = vand.u32 %v1982, 4294901760
    %v3066 = vsub.f32 %v1982, %v3065
    %3067 = vmatmul.f32.gmra.mxu0 %v3066
    %v3068 = vpop.f32.mrf.mxu0
    %v3069 = vadd.f32 %v2760, %v3068
    %v3070 = vand.u32 %v1985, 4294901760
    %v3071 = vsub.f32 %v1985, %v3070
    %3072 = vmatmul.f32.gmra.mxu0 %v3071
    %v3073 = vpop.f32.mrf.mxu0
    %v3074 = vadd.f32 %v2764, %v3073
    %v3075 = vand.u32 %v1988, 4294901760
    %v3076 = vsub.f32 %v1988, %v3075
    %3077 = vmatmul.f32.gmra.mxu0 %v3076
    %v3078 = vpop.f32.mrf.mxu0
    %v3079 = vadd.f32 %v2768, %v3078
    %v3080 = vand.u32 %v1991, 4294901760
    %v3081 = vsub.f32 %v1991, %v3080
    %3082 = vmatmul.f32.gmra.mxu0 %v3081
    %v3083 = vpop.f32.mrf.mxu0
    %v3084 = vadd.f32 %v2772, %v3083
    %v3085 = vand.u32 %v1994, 4294901760
    %v3086 = vsub.f32 %v1994, %v3085
    %3087 = vmatmul.f32.gmra.mxu0 %v3086
    %v3088 = vpop.f32.mrf.mxu0
    %v3089 = vadd.f32 %v2776, %v3088
    %v3090 = vand.u32 %v1997, 4294901760
    %v3091 = vsub.f32 %v1997, %v3090
    %3092 = vmatmul.f32.gmra.mxu0 %v3091
    %v3093 = vpop.f32.mrf.mxu0
    %v3094 = vadd.f32 %v2780, %v3093
    %v3095 = vand.u32 %v2000, 4294901760
    %v3096 = vsub.f32 %v2000, %v3095
    %3097 = vmatmul.f32.gmra.mxu0 %v3096
    %v3098 = vpop.f32.mrf.mxu0
    %v3099 = vadd.f32 %v2784, %v3098
    %v3100 = vand.u32 %v2003, 4294901760
    %v3101 = vsub.f32 %v2003, %v3100
    %3102 = vmatmul.f32.gmra.mxu0 %v3101
    %v3103 = vpop.f32.mrf.mxu0
    %v3104 = vadd.f32 %v2788, %v3103
    %v3105 = vand.u32 %v2006, 4294901760
    %v3106 = vsub.f32 %v2006, %v3105
    %3107 = vmatmul.f32.gmra.mxu0 %v3106
    %v3108 = vpop.f32.mrf.mxu0
    %v3109 = vadd.f32 %v2792, %v3108
    %v3110 = vand.u32 %v2009, 4294901760
    %v3111 = vsub.f32 %v2009, %v3110
    %3112 = vmatmul.f32.gmra.mxu0 %v3111
    %v3113 = vpop.f32.mrf.mxu0
    %v3114 = vadd.f32 %v2796, %v3113
    %v3115 = vand.u32 %v2012, 4294901760
    %v3116 = vsub.f32 %v2012, %v3115
    %3117 = vmatmul.f32.gmra.mxu0 %v3116
    %v3118 = vpop.f32.mrf.mxu0
    %v3119 = vadd.f32 %v2800, %v3118
    %v3120 = vand.u32 %v2015, 4294901760
    %v3121 = vsub.f32 %v2015, %v3120
    %3122 = vmatmul.f32.gmra.mxu0 %v3121
    %v3123 = vpop.f32.mrf.mxu0
    %v3124 = vadd.f32 %v2804, %v3123
    %v3125 = vand.u32 %v2018, 4294901760
    %v3126 = vsub.f32 %v2018, %v3125
    %3127 = vmatmul.f32.gmra.mxu0 %v3126
    %v3128 = vpop.f32.mrf.mxu0
    %v3129 = vadd.f32 %v2808, %v3128
    %v3130 = vand.u32 %v2021, 4294901760
    %v3131 = vsub.f32 %v2021, %v3130
    %3132 = vmatmul.f32.gmra.mxu0 %v3131
    %v3133 = vpop.f32.mrf.mxu0
    %v3134 = vadd.f32 %v2812, %v3133
    %v3135 = vand.u32 %v2024, 4294901760
    %v3136 = vsub.f32 %v2024, %v3135
    %3137 = vmatmul.f32.gmra.mxu0 %v3136
    %v3138 = vpop.f32.mrf.mxu0
    %v3139 = vadd.f32 %v2816, %v3138
    %v3140 = vand.u32 %v2027, 4294901760
    %v3141 = vsub.f32 %v2027, %v3140
    %3142 = vmatmul.f32.gmra.mxu0 %v3141
    %v3143 = vpop.f32.mrf.mxu0
    %v3144 = vadd.f32 %v2820, %v3143
    %v3145 = vand.u32 %v2030, 4294901760
    %v3146 = vsub.f32 %v2030, %v3145
    %3147 = vmatmul.f32.gmra.mxu0 %v3146
    %v3148 = vpop.f32.mrf.mxu0
    %v3149 = vadd.f32 %v2824, %v3148
    %v3150 = vand.u32 %v2033, 4294901760
    %v3151 = vsub.f32 %v2033, %v3150
    %3152 = vmatmul.f32.gmra.mxu0 %v3151
    %v3153 = vpop.f32.mrf.mxu0
    %v3154 = vadd.f32 %v2828, %v3153
    %v3155 = vand.u32 %v2036, 4294901760
    %v3156 = vsub.f32 %v2036, %v3155
    %3157 = vmatmul.f32.gmra.mxu0 %v3156
    %v3158 = vpop.f32.mrf.mxu0
    %v3159 = vadd.f32 %v2832, %v3158
    %v3160 = vand.u32 %v2039, 4294901760
    %v3161 = vsub.f32 %v2039, %v3160
    %3162 = vmatmul.f32.gmra.mxu0 %v3161
    %v3163 = vpop.f32.mrf.mxu0
    %v3164 = vadd.f32 %v2836, %v3163
    %v3165 = vand.u32 %v2042, 4294901760
    %v3166 = vsub.f32 %v2042, %v3165
    %3167 = vmatmul.f32.gmra.mxu0 %v3166
    %v3168 = vpop.f32.mrf.mxu0
    %v3169 = vadd.f32 %v2840, %v3168
    %v3170 = vand.u32 %v2045, 4294901760
    %v3171 = vsub.f32 %v2045, %v3170
    %3172 = vmatmul.f32.gmra.mxu0 %v3171
    %v3173 = vpop.f32.mrf.mxu0
    %v3174 = vadd.f32 %v2844, %v3173
    %v3175 = vand.u32 %v2048, 4294901760
    %v3176 = vsub.f32 %v2048, %v3175
    %3177 = vmatmul.f32.gmra.mxu0 %v3176
    %v3178 = vpop.f32.mrf.mxu0
    %v3179 = vadd.f32 %v2848, %v3178
    %v3180 = vand.u32 %v2051, 4294901760
    %v3181 = vsub.f32 %v2051, %v3180
    %3182 = vmatmul.f32.gmra.mxu0 %v3181
    %v3183 = vpop.f32.mrf.mxu0
    %v3184 = vadd.f32 %v2852, %v3183
    %v3185 = vand.u32 %v2054, 4294901760
    %v3186 = vsub.f32 %v2054, %v3185
    %3187 = vmatmul.f32.gmra.mxu0 %v3186
    %v3188 = vpop.f32.mrf.mxu0
    %v3189 = vadd.f32 %v2856, %v3188
    %v3190 = vand.u32 %v2057, 4294901760
    %v3191 = vsub.f32 %v2057, %v3190
    %3192 = vmatmul.f32.gmra.mxu0 %v3191
    %v3193 = vpop.f32.mrf.mxu0
    %v3194 = vadd.f32 %v2860, %v3193
    %v3195 = vand.u32 %v2060, 4294901760
    %v3196 = vsub.f32 %v2060, %v3195
    %3197 = vmatmul.f32.gmra.mxu0 %v3196
    %v3198 = vpop.f32.mrf.mxu0
    %v3199 = vadd.f32 %v2864, %v3198
    %v3200 = vand.u32 %v2063, 4294901760
    %v3201 = vsub.f32 %v2063, %v3200
    %3202 = vmatmul.f32.gmra.mxu0 %v3201
    %v3203 = vpop.f32.mrf.mxu0
    %v3204 = vadd.f32 %v2868, %v3203
    %v3205 = vand.u32 %v2066, 4294901760
    %v3206 = vsub.f32 %v2066, %v3205
    %3207 = vmatmul.f32.gmra.mxu0 %v3206
    %v3208 = vpop.f32.mrf.mxu0
    %v3209 = vadd.f32 %v2872, %v3208
    %v3210 = vand.u32 %v2069, 4294901760
    %v3211 = vsub.f32 %v2069, %v3210
    %3212 = vmatmul.f32.gmra.mxu0 %v3211
    %v3213 = vpop.f32.mrf.mxu0
    %v3214 = vadd.f32 %v2876, %v3213
    %v3215 = vand.u32 %v2072, 4294901760
    %v3216 = vsub.f32 %v2072, %v3215
    %3217 = vmatmul.f32.gmra.mxu0 %v3216
    %v3218 = vpop.f32.mrf.mxu0
    %v3219 = vadd.f32 %v2880, %v3218
    %3220 = vdwg.mxu0
    %3221 = vmatpush.msra.mxu0 0.0
    %3222 = vmatpush.msra.mxu0 0.0
    %3223 = vmatpush.msra.mxu0 0.0
    %3224 = vmatpush.msra.mxu0 0.0
    %3225 = vmatpush.msra.mxu0 0.0
    %3226 = vmatpush.msra.mxu0 0.0
    %3227 = vmatpush.msra.mxu0 0.0
    %3228 = vmatpush.msra.mxu0 0.0
    %3229 = vmatpush.msra.mxu0 0.0
    %3230 = vmatpush.msra.mxu0 0.0
    %3231 = vmatpush.msra.mxu0 0.0
    %3232 = vmatpush.msra.mxu0 0.0
    %3233 = vmatpush.msra.mxu0 0.0
    %3234 = vmatpush.msra.mxu0 0.0
    %3235 = vmatpush.msra.mxu0 0.0
    %v3236 = vand.u32 %v1878, 4294901760
    %3237 = vmatpush.msra.mxu0 %v3236
    %v3238 = vand.u32 %v1883, 4294901760
    %v3239 = vsub.f32 %v1883, %v3238
    %v3240 = vand.u32 %v3239, 4294901760
    %3241 = vmatmul.f32.gmra.mxu0 %v3240
    %v3242 = vpop.f32.mrf.mxu0
    %v3243 = vadd.f32 %v2904, %v3242
    %v3244 = vand.u32 %v1886, 4294901760
    %v3245 = vsub.f32 %v1886, %v3244
    %v3246 = vand.u32 %v3245, 4294901760
    %3247 = vmatmul.f32.gmra.mxu0 %v3246
    %v3248 = vpop.f32.mrf.mxu0
    %v3249 = vadd.f32 %v2909, %v3248
    %v3250 = vand.u32 %v1889, 4294901760
    %v3251 = vsub.f32 %v1889, %v3250
    %v3252 = vand.u32 %v3251, 4294901760
    %3253 = vmatmul.f32.gmra.mxu0 %v3252
    %v3254 = vpop.f32.mrf.mxu0
    %v3255 = vadd.f32 %v2914, %v3254
    %v3256 = vand.u32 %v1892, 4294901760
    %v3257 = vsub.f32 %v1892, %v3256
    %v3258 = vand.u32 %v3257, 4294901760
    %3259 = vmatmul.f32.gmra.mxu0 %v3258
    %v3260 = vpop.f32.mrf.mxu0
    %v3261 = vadd.f32 %v2919, %v3260
    %v3262 = vand.u32 %v1895, 4294901760
    %v3263 = vsub.f32 %v1895, %v3262
    %v3264 = vand.u32 %v3263, 4294901760
    %3265 = vmatmul.f32.gmra.mxu0 %v3264
    %v3266 = vpop.f32.mrf.mxu0
    %v3267 = vadd.f32 %v2924, %v3266
    %v3268 = vand.u32 %v1898, 4294901760
    %v3269 = vsub.f32 %v1898, %v3268
    %v3270 = vand.u32 %v3269, 4294901760
    %3271 = vmatmul.f32.gmra.mxu0 %v3270
    %v3272 = vpop.f32.mrf.mxu0
    %v3273 = vadd.f32 %v2929, %v3272
    %v3274 = vand.u32 %v1901, 4294901760
    %v3275 = vsub.f32 %v1901, %v3274
    %v3276 = vand.u32 %v3275, 4294901760
    %3277 = vmatmul.f32.gmra.mxu0 %v3276
    %v3278 = vpop.f32.mrf.mxu0
    %v3279 = vadd.f32 %v2934, %v3278
    %v3280 = vand.u32 %v1904, 4294901760
    %v3281 = vsub.f32 %v1904, %v3280
    %v3282 = vand.u32 %v3281, 4294901760
    %3283 = vmatmul.f32.gmra.mxu0 %v3282
    %v3284 = vpop.f32.mrf.mxu0
    %v3285 = vadd.f32 %v2939, %v3284
    %v3286 = vand.u32 %v1907, 4294901760
    %v3287 = vsub.f32 %v1907, %v3286
    %v3288 = vand.u32 %v3287, 4294901760
    %3289 = vmatmul.f32.gmra.mxu0 %v3288
    %v3290 = vpop.f32.mrf.mxu0
    %v3291 = vadd.f32 %v2944, %v3290
    %v3292 = vand.u32 %v1910, 4294901760
    %v3293 = vsub.f32 %v1910, %v3292
    %v3294 = vand.u32 %v3293, 4294901760
    %3295 = vmatmul.f32.gmra.mxu0 %v3294
    %v3296 = vpop.f32.mrf.mxu0
    %v3297 = vadd.f32 %v2949, %v3296
    %v3298 = vand.u32 %v1913, 4294901760
    %v3299 = vsub.f32 %v1913, %v3298
    %v3300 = vand.u32 %v3299, 4294901760
    %3301 = vmatmul.f32.gmra.mxu0 %v3300
    %v3302 = vpop.f32.mrf.mxu0
    %v3303 = vadd.f32 %v2954, %v3302
    %v3304 = vand.u32 %v1916, 4294901760
    %v3305 = vsub.f32 %v1916, %v3304
    %v3306 = vand.u32 %v3305, 4294901760
    %3307 = vmatmul.f32.gmra.mxu0 %v3306
    %v3308 = vpop.f32.mrf.mxu0
    %v3309 = vadd.f32 %v2959, %v3308
    %v3310 = vand.u32 %v1919, 4294901760
    %v3311 = vsub.f32 %v1919, %v3310
    %v3312 = vand.u32 %v3311, 4294901760
    %3313 = vmatmul.f32.gmra.mxu0 %v3312
    %v3314 = vpop.f32.mrf.mxu0
    %v3315 = vadd.f32 %v2964, %v3314
    %v3316 = vand.u32 %v1922, 4294901760
    %v3317 = vsub.f32 %v1922, %v3316
    %v3318 = vand.u32 %v3317, 4294901760
    %3319 = vmatmul.f32.gmra.mxu0 %v3318
    %v3320 = vpop.f32.mrf.mxu0
    %v3321 = vadd.f32 %v2969, %v3320
    %v3322 = vand.u32 %v1925, 4294901760
    %v3323 = vsub.f32 %v1925, %v3322
    %v3324 = vand.u32 %v3323, 4294901760
    %3325 = vmatmul.f32.gmra.mxu0 %v3324
    %v3326 = vpop.f32.mrf.mxu0
    %v3327 = vadd.f32 %v2974, %v3326
    %v3328 = vand.u32 %v1928, 4294901760
    %v3329 = vsub.f32 %v1928, %v3328
    %v3330 = vand.u32 %v3329, 4294901760
    %3331 = vmatmul.f32.gmra.mxu0 %v3330
    %v3332 = vpop.f32.mrf.mxu0
    %v3333 = vadd.f32 %v2979, %v3332
    %v3334 = vand.u32 %v1931, 4294901760
    %v3335 = vsub.f32 %v1931, %v3334
    %v3336 = vand.u32 %v3335, 4294901760
    %3337 = vmatmul.f32.gmra.mxu0 %v3336
    %v3338 = vpop.f32.mrf.mxu0
    %v3339 = vadd.f32 %v2984, %v3338
    %v3340 = vand.u32 %v1934, 4294901760
    %v3341 = vsub.f32 %v1934, %v3340
    %v3342 = vand.u32 %v3341, 4294901760
    %3343 = vmatmul.f32.gmra.mxu0 %v3342
    %v3344 = vpop.f32.mrf.mxu0
    %v3345 = vadd.f32 %v2989, %v3344
    %v3346 = vand.u32 %v1937, 4294901760
    %v3347 = vsub.f32 %v1937, %v3346
    %v3348 = vand.u32 %v3347, 4294901760
    %3349 = vmatmul.f32.gmra.mxu0 %v3348
    %v3350 = vpop.f32.mrf.mxu0
    %v3351 = vadd.f32 %v2994, %v3350
    %v3352 = vand.u32 %v1940, 4294901760
    %v3353 = vsub.f32 %v1940, %v3352
    %v3354 = vand.u32 %v3353, 4294901760
    %3355 = vmatmul.f32.gmra.mxu0 %v3354
    %v3356 = vpop.f32.mrf.mxu0
    %v3357 = vadd.f32 %v2999, %v3356
    %v3358 = vand.u32 %v1943, 4294901760
    %v3359 = vsub.f32 %v1943, %v3358
    %v3360 = vand.u32 %v3359, 4294901760
    %3361 = vmatmul.f32.gmra.mxu0 %v3360
    %v3362 = vpop.f32.mrf.mxu0
    %v3363 = vadd.f32 %v3004, %v3362
    %v3364 = vand.u32 %v1946, 4294901760
    %v3365 = vsub.f32 %v1946, %v3364
    %v3366 = vand.u32 %v3365, 4294901760
    %3367 = vmatmul.f32.gmra.mxu0 %v3366
    %v3368 = vpop.f32.mrf.mxu0
    %v3369 = vadd.f32 %v3009, %v3368
    %v3370 = vand.u32 %v1949, 4294901760
    %v3371 = vsub.f32 %v1949, %v3370
    %v3372 = vand.u32 %v3371, 4294901760
    %3373 = vmatmul.f32.gmra.mxu0 %v3372
    %v3374 = vpop.f32.mrf.mxu0
    %v3375 = vadd.f32 %v3014, %v3374
    %v3376 = vand.u32 %v1952, 4294901760
    %v3377 = vsub.f32 %v1952, %v3376
    %v3378 = vand.u32 %v3377, 4294901760
    %3379 = vmatmul.f32.gmra.mxu0 %v3378
    %v3380 = vpop.f32.mrf.mxu0
    %v3381 = vadd.f32 %v3019, %v3380
    %v3382 = vand.u32 %v1955, 4294901760
    %v3383 = vsub.f32 %v1955, %v3382
    %v3384 = vand.u32 %v3383, 4294901760
    %3385 = vmatmul.f32.gmra.mxu0 %v3384
    %v3386 = vpop.f32.mrf.mxu0
    %v3387 = vadd.f32 %v3024, %v3386
    %v3388 = vand.u32 %v1958, 4294901760
    %v3389 = vsub.f32 %v1958, %v3388
    %v3390 = vand.u32 %v3389, 4294901760
    %3391 = vmatmul.f32.gmra.mxu0 %v3390
    %v3392 = vpop.f32.mrf.mxu0
    %v3393 = vadd.f32 %v3029, %v3392
    %v3394 = vand.u32 %v1961, 4294901760
    %v3395 = vsub.f32 %v1961, %v3394
    %v3396 = vand.u32 %v3395, 4294901760
    %3397 = vmatmul.f32.gmra.mxu0 %v3396
    %v3398 = vpop.f32.mrf.mxu0
    %v3399 = vadd.f32 %v3034, %v3398
    %v3400 = vand.u32 %v1964, 4294901760
    %v3401 = vsub.f32 %v1964, %v3400
    %v3402 = vand.u32 %v3401, 4294901760
    %3403 = vmatmul.f32.gmra.mxu0 %v3402
    %v3404 = vpop.f32.mrf.mxu0
    %v3405 = vadd.f32 %v3039, %v3404
    %v3406 = vand.u32 %v1967, 4294901760
    %v3407 = vsub.f32 %v1967, %v3406
    %v3408 = vand.u32 %v3407, 4294901760
    %3409 = vmatmul.f32.gmra.mxu0 %v3408
    %v3410 = vpop.f32.mrf.mxu0
    %v3411 = vadd.f32 %v3044, %v3410
    %v3412 = vand.u32 %v1970, 4294901760
    %v3413 = vsub.f32 %v1970, %v3412
    %v3414 = vand.u32 %v3413, 4294901760
    %3415 = vmatmul.f32.gmra.mxu0 %v3414
    %v3416 = vpop.f32.mrf.mxu0
    %v3417 = vadd.f32 %v3049, %v3416
    %v3418 = vand.u32 %v1973, 4294901760
    %v3419 = vsub.f32 %v1973, %v3418
    %v3420 = vand.u32 %v3419, 4294901760
    %3421 = vmatmul.f32.gmra.mxu0 %v3420
    %v3422 = vpop.f32.mrf.mxu0
    %v3423 = vadd.f32 %v3054, %v3422
    %v3424 = vand.u32 %v1976, 4294901760
    %v3425 = vsub.f32 %v1976, %v3424
    %v3426 = vand.u32 %v3425, 4294901760
    %3427 = vmatmul.f32.gmra.mxu0 %v3426
    %v3428 = vpop.f32.mrf.mxu0
    %v3429 = vadd.f32 %v3059, %v3428
    %v3430 = vand.u32 %v1979, 4294901760
    %v3431 = vsub.f32 %v1979, %v3430
    %v3432 = vand.u32 %v3431, 4294901760
    %3433 = vmatmul.f32.gmra.mxu0 %v3432
    %v3434 = vpop.f32.mrf.mxu0
    %v3435 = vadd.f32 %v3064, %v3434
    %v3436 = vand.u32 %v1982, 4294901760
    %v3437 = vsub.f32 %v1982, %v3436
    %v3438 = vand.u32 %v3437, 4294901760
    %3439 = vmatmul.f32.gmra.mxu0 %v3438
    %v3440 = vpop.f32.mrf.mxu0
    %v3441 = vadd.f32 %v3069, %v3440
    %v3442 = vand.u32 %v1985, 4294901760
    %v3443 = vsub.f32 %v1985, %v3442
    %v3444 = vand.u32 %v3443, 4294901760
    %3445 = vmatmul.f32.gmra.mxu0 %v3444
    %v3446 = vpop.f32.mrf.mxu0
    %v3447 = vadd.f32 %v3074, %v3446
    %v3448 = vand.u32 %v1988, 4294901760
    %v3449 = vsub.f32 %v1988, %v3448
    %v3450 = vand.u32 %v3449, 4294901760
    %3451 = vmatmul.f32.gmra.mxu0 %v3450
    %v3452 = vpop.f32.mrf.mxu0
    %v3453 = vadd.f32 %v3079, %v3452
    %v3454 = vand.u32 %v1991, 4294901760
    %v3455 = vsub.f32 %v1991, %v3454
    %v3456 = vand.u32 %v3455, 4294901760
    %3457 = vmatmul.f32.gmra.mxu0 %v3456
    %v3458 = vpop.f32.mrf.mxu0
    %v3459 = vadd.f32 %v3084, %v3458
    %v3460 = vand.u32 %v1994, 4294901760
    %v3461 = vsub.f32 %v1994, %v3460
    %v3462 = vand.u32 %v3461, 4294901760
    %3463 = vmatmul.f32.gmra.mxu0 %v3462
    %v3464 = vpop.f32.mrf.mxu0
    %v3465 = vadd.f32 %v3089, %v3464
    %v3466 = vand.u32 %v1997, 4294901760
    %v3467 = vsub.f32 %v1997, %v3466
    %v3468 = vand.u32 %v3467, 4294901760
    %3469 = vmatmul.f32.gmra.mxu0 %v3468
    %v3470 = vpop.f32.mrf.mxu0
    %v3471 = vadd.f32 %v3094, %v3470
    %v3472 = vand.u32 %v2000, 4294901760
    %v3473 = vsub.f32 %v2000, %v3472
    %v3474 = vand.u32 %v3473, 4294901760
    %3475 = vmatmul.f32.gmra.mxu0 %v3474
    %v3476 = vpop.f32.mrf.mxu0
    %v3477 = vadd.f32 %v3099, %v3476
    %v3478 = vand.u32 %v2003, 4294901760
    %v3479 = vsub.f32 %v2003, %v3478
    %v3480 = vand.u32 %v3479, 4294901760
    %3481 = vmatmul.f32.gmra.mxu0 %v3480
    %v3482 = vpop.f32.mrf.mxu0
    %v3483 = vadd.f32 %v3104, %v3482
    %v3484 = vand.u32 %v2006, 4294901760
    %v3485 = vsub.f32 %v2006, %v3484
    %v3486 = vand.u32 %v3485, 4294901760
    %3487 = vmatmul.f32.gmra.mxu0 %v3486
    %v3488 = vpop.f32.mrf.mxu0
    %v3489 = vadd.f32 %v3109, %v3488
    %v3490 = vand.u32 %v2009, 4294901760
    %v3491 = vsub.f32 %v2009, %v3490
    %v3492 = vand.u32 %v3491, 4294901760
    %3493 = vmatmul.f32.gmra.mxu0 %v3492
    %v3494 = vpop.f32.mrf.mxu0
    %v3495 = vadd.f32 %v3114, %v3494
    %v3496 = vand.u32 %v2012, 4294901760
    %v3497 = vsub.f32 %v2012, %v3496
    %v3498 = vand.u32 %v3497, 4294901760
    %3499 = vmatmul.f32.gmra.mxu0 %v3498
    %v3500 = vpop.f32.mrf.mxu0
    %v3501 = vadd.f32 %v3119, %v3500
    %v3502 = vand.u32 %v2015, 4294901760
    %v3503 = vsub.f32 %v2015, %v3502
    %v3504 = vand.u32 %v3503, 4294901760
    %3505 = vmatmul.f32.gmra.mxu0 %v3504
    %v3506 = vpop.f32.mrf.mxu0
    %v3507 = vadd.f32 %v3124, %v3506
    %v3508 = vand.u32 %v2018, 4294901760
    %v3509 = vsub.f32 %v2018, %v3508
    %v3510 = vand.u32 %v3509, 4294901760
    %3511 = vmatmul.f32.gmra.mxu0 %v3510
    %v3512 = vpop.f32.mrf.mxu0
    %v3513 = vadd.f32 %v3129, %v3512
    %v3514 = vand.u32 %v2021, 4294901760
    %v3515 = vsub.f32 %v2021, %v3514
    %v3516 = vand.u32 %v3515, 4294901760
    %3517 = vmatmul.f32.gmra.mxu0 %v3516
    %v3518 = vpop.f32.mrf.mxu0
    %v3519 = vadd.f32 %v3134, %v3518
    %v3520 = vand.u32 %v2024, 4294901760
    %v3521 = vsub.f32 %v2024, %v3520
    %v3522 = vand.u32 %v3521, 4294901760
    %3523 = vmatmul.f32.gmra.mxu0 %v3522
    %v3524 = vpop.f32.mrf.mxu0
    %v3525 = vadd.f32 %v3139, %v3524
    %v3526 = vand.u32 %v2027, 4294901760
    %v3527 = vsub.f32 %v2027, %v3526
    %v3528 = vand.u32 %v3527, 4294901760
    %3529 = vmatmul.f32.gmra.mxu0 %v3528
    %v3530 = vpop.f32.mrf.mxu0
    %v3531 = vadd.f32 %v3144, %v3530
    %v3532 = vand.u32 %v2030, 4294901760
    %v3533 = vsub.f32 %v2030, %v3532
    %v3534 = vand.u32 %v3533, 4294901760
    %3535 = vmatmul.f32.gmra.mxu0 %v3534
    %v3536 = vpop.f32.mrf.mxu0
    %v3537 = vadd.f32 %v3149, %v3536
    %v3538 = vand.u32 %v2033, 4294901760
    %v3539 = vsub.f32 %v2033, %v3538
    %v3540 = vand.u32 %v3539, 4294901760
    %3541 = vmatmul.f32.gmra.mxu0 %v3540
    %v3542 = vpop.f32.mrf.mxu0
    %v3543 = vadd.f32 %v3154, %v3542
    %v3544 = vand.u32 %v2036, 4294901760
    %v3545 = vsub.f32 %v2036, %v3544
    %v3546 = vand.u32 %v3545, 4294901760
    %3547 = vmatmul.f32.gmra.mxu0 %v3546
    %v3548 = vpop.f32.mrf.mxu0
    %v3549 = vadd.f32 %v3159, %v3548
    %v3550 = vand.u32 %v2039, 4294901760
    %v3551 = vsub.f32 %v2039, %v3550
    %v3552 = vand.u32 %v3551, 4294901760
    %3553 = vmatmul.f32.gmra.mxu0 %v3552
    %v3554 = vpop.f32.mrf.mxu0
    %v3555 = vadd.f32 %v3164, %v3554
    %v3556 = vand.u32 %v2042, 4294901760
    %v3557 = vsub.f32 %v2042, %v3556
    %v3558 = vand.u32 %v3557, 4294901760
    %3559 = vmatmul.f32.gmra.mxu0 %v3558
    %v3560 = vpop.f32.mrf.mxu0
    %v3561 = vadd.f32 %v3169, %v3560
    %v3562 = vand.u32 %v2045, 4294901760
    %v3563 = vsub.f32 %v2045, %v3562
    %v3564 = vand.u32 %v3563, 4294901760
    %3565 = vmatmul.f32.gmra.mxu0 %v3564
    %v3566 = vpop.f32.mrf.mxu0
    %v3567 = vadd.f32 %v3174, %v3566
    %v3568 = vand.u32 %v2048, 4294901760
    %v3569 = vsub.f32 %v2048, %v3568
    %v3570 = vand.u32 %v3569, 4294901760
    %3571 = vmatmul.f32.gmra.mxu0 %v3570
    %v3572 = vpop.f32.mrf.mxu0
    %v3573 = vadd.f32 %v3179, %v3572
    %v3574 = vand.u32 %v2051, 4294901760
    %v3575 = vsub.f32 %v2051, %v3574
    %v3576 = vand.u32 %v3575, 4294901760
    %3577 = vmatmul.f32.gmra.mxu0 %v3576
    %v3578 = vpop.f32.mrf.mxu0
    %v3579 = vadd.f32 %v3184, %v3578
    %v3580 = vand.u32 %v2054, 4294901760
    %v3581 = vsub.f32 %v2054, %v3580
    %v3582 = vand.u32 %v3581, 4294901760
    %3583 = vmatmul.f32.gmra.mxu0 %v3582
    %v3584 = vpop.f32.mrf.mxu0
    %v3585 = vadd.f32 %v3189, %v3584
    %v3586 = vand.u32 %v2057, 4294901760
    %v3587 = vsub.f32 %v2057, %v3586
    %v3588 = vand.u32 %v3587, 4294901760
    %3589 = vmatmul.f32.gmra.mxu0 %v3588
    %v3590 = vpop.f32.mrf.mxu0
    %v3591 = vadd.f32 %v3194, %v3590
    %v3592 = vand.u32 %v2060, 4294901760
    %v3593 = vsub.f32 %v2060, %v3592
    %v3594 = vand.u32 %v3593, 4294901760
    %3595 = vmatmul.f32.gmra.mxu0 %v3594
    %v3596 = vpop.f32.mrf.mxu0
    %v3597 = vadd.f32 %v3199, %v3596
    %v3598 = vand.u32 %v2063, 4294901760
    %v3599 = vsub.f32 %v2063, %v3598
    %v3600 = vand.u32 %v3599, 4294901760
    %3601 = vmatmul.f32.gmra.mxu0 %v3600
    %v3602 = vpop.f32.mrf.mxu0
    %v3603 = vadd.f32 %v3204, %v3602
    %v3604 = vand.u32 %v2066, 4294901760
    %v3605 = vsub.f32 %v2066, %v3604
    %v3606 = vand.u32 %v3605, 4294901760
    %3607 = vmatmul.f32.gmra.mxu0 %v3606
    %v3608 = vpop.f32.mrf.mxu0
    %v3609 = vadd.f32 %v3209, %v3608
    %v3610 = vand.u32 %v2069, 4294901760
    %v3611 = vsub.f32 %v2069, %v3610
    %v3612 = vand.u32 %v3611, 4294901760
    %3613 = vmatmul.f32.gmra.mxu0 %v3612
    %v3614 = vpop.f32.mrf.mxu0
    %v3615 = vadd.f32 %v3214, %v3614
    %v3616 = vand.u32 %v2072, 4294901760
    %v3617 = vsub.f32 %v2072, %v3616
    %v3618 = vand.u32 %v3617, 4294901760
    %3619 = vmatmul.f32.gmra.mxu0 %v3618
    %v3620 = vpop.f32.mrf.mxu0
    %v3621 = vadd.f32 %v3219, %v3620
    %3622 = vdwg.mxu0
    %3623 = vmatpush.msra.mxu0 0.0
    %3624 = vmatpush.msra.mxu0 0.0
    %3625 = vmatpush.msra.mxu0 0.0
    %3626 = vmatpush.msra.mxu0 0.0
    %3627 = vmatpush.msra.mxu0 0.0
    %3628 = vmatpush.msra.mxu0 0.0
    %3629 = vmatpush.msra.mxu0 0.0
    %3630 = vmatpush.msra.mxu0 0.0
    %3631 = vmatpush.msra.mxu0 0.0
    %3632 = vmatpush.msra.mxu0 0.0
    %3633 = vmatpush.msra.mxu0 0.0
    %3634 = vmatpush.msra.mxu0 0.0
    %3635 = vmatpush.msra.mxu0 0.0
    %3636 = vmatpush.msra.mxu0 0.0
    %3637 = vmatpush.msra.mxu0 0.0
    %v3638 = vand.u32 %v1878, 4294901760
    %v3639 = vsub.f32 %v1878, %v3638
    %v3640 = vand.u32 %v3639, 4294901760
    %3641 = vmatpush.msra.mxu0 %v3640
    %v3642 = vand.u32 %v1883, 4294901760
    %3643 = vmatmul.f32.gmra.mxu0 %v3642
    %v3644 = vpop.f32.mrf.mxu0
    %v3645 = vadd.f32 %v3243, %v3644
    %v3646 = vand.u32 %v1886, 4294901760
    %3647 = vmatmul.f32.gmra.mxu0 %v3646
    %v3648 = vpop.f32.mrf.mxu0
    %v3649 = vadd.f32 %v3249, %v3648
    %v3650 = vand.u32 %v1889, 4294901760
    %3651 = vmatmul.f32.gmra.mxu0 %v3650
    %v3652 = vpop.f32.mrf.mxu0
    %v3653 = vadd.f32 %v3255, %v3652
    %v3654 = vand.u32 %v1892, 4294901760
    %3655 = vmatmul.f32.gmra.mxu0 %v3654
    %v3656 = vpop.f32.mrf.mxu0
    %v3657 = vadd.f32 %v3261, %v3656
    %v3658 = vand.u32 %v1895, 4294901760
    %3659 = vmatmul.f32.gmra.mxu0 %v3658
    %v3660 = vpop.f32.mrf.mxu0
    %v3661 = vadd.f32 %v3267, %v3660
    %v3662 = vand.u32 %v1898, 4294901760
    %3663 = vmatmul.f32.gmra.mxu0 %v3662
    %v3664 = vpop.f32.mrf.mxu0
    %v3665 = vadd.f32 %v3273, %v3664
    %v3666 = vand.u32 %v1901, 4294901760
    %3667 = vmatmul.f32.gmra.mxu0 %v3666
    %v3668 = vpop.f32.mrf.mxu0
    %v3669 = vadd.f32 %v3279, %v3668
    %v3670 = vand.u32 %v1904, 4294901760
    %3671 = vmatmul.f32.gmra.mxu0 %v3670
    %v3672 = vpop.f32.mrf.mxu0
    %v3673 = vadd.f32 %v3285, %v3672
    %v3674 = vand.u32 %v1907, 4294901760
    %3675 = vmatmul.f32.gmra.mxu0 %v3674
    %v3676 = vpop.f32.mrf.mxu0
    %v3677 = vadd.f32 %v3291, %v3676
    %v3678 = vand.u32 %v1910, 4294901760
    %3679 = vmatmul.f32.gmra.mxu0 %v3678
    %v3680 = vpop.f32.mrf.mxu0
    %v3681 = vadd.f32 %v3297, %v3680
    %v3682 = vand.u32 %v1913, 4294901760
    %3683 = vmatmul.f32.gmra.mxu0 %v3682
    %v3684 = vpop.f32.mrf.mxu0
    %v3685 = vadd.f32 %v3303, %v3684
    %v3686 = vand.u32 %v1916, 4294901760
    %3687 = vmatmul.f32.gmra.mxu0 %v3686
    %v3688 = vpop.f32.mrf.mxu0
    %v3689 = vadd.f32 %v3309, %v3688
    %v3690 = vand.u32 %v1919, 4294901760
    %3691 = vmatmul.f32.gmra.mxu0 %v3690
    %v3692 = vpop.f32.mrf.mxu0
    %v3693 = vadd.f32 %v3315, %v3692
    %v3694 = vand.u32 %v1922, 4294901760
    %3695 = vmatmul.f32.gmra.mxu0 %v3694
    %v3696 = vpop.f32.mrf.mxu0
    %v3697 = vadd.f32 %v3321, %v3696
    %v3698 = vand.u32 %v1925, 4294901760
    %3699 = vmatmul.f32.gmra.mxu0 %v3698
    %v3700 = vpop.f32.mrf.mxu0
    %v3701 = vadd.f32 %v3327, %v3700
    %v3702 = vand.u32 %v1928, 4294901760
    %3703 = vmatmul.f32.gmra.mxu0 %v3702
    %v3704 = vpop.f32.mrf.mxu0
    %v3705 = vadd.f32 %v3333, %v3704
    %v3706 = vand.u32 %v1931, 4294901760
    %3707 = vmatmul.f32.gmra.mxu0 %v3706
    %v3708 = vpop.f32.mrf.mxu0
    %v3709 = vadd.f32 %v3339, %v3708
    %v3710 = vand.u32 %v1934, 4294901760
    %3711 = vmatmul.f32.gmra.mxu0 %v3710
    %v3712 = vpop.f32.mrf.mxu0
    %v3713 = vadd.f32 %v3345, %v3712
    %v3714 = vand.u32 %v1937, 4294901760
    %3715 = vmatmul.f32.gmra.mxu0 %v3714
    %v3716 = vpop.f32.mrf.mxu0
    %v3717 = vadd.f32 %v3351, %v3716
    %v3718 = vand.u32 %v1940, 4294901760
    %3719 = vmatmul.f32.gmra.mxu0 %v3718
    %v3720 = vpop.f32.mrf.mxu0
    %v3721 = vadd.f32 %v3357, %v3720
    %v3722 = vand.u32 %v1943, 4294901760
    %3723 = vmatmul.f32.gmra.mxu0 %v3722
    %v3724 = vpop.f32.mrf.mxu0
    %v3725 = vadd.f32 %v3363, %v3724
    %v3726 = vand.u32 %v1946, 4294901760
    %3727 = vmatmul.f32.gmra.mxu0 %v3726
    %v3728 = vpop.f32.mrf.mxu0
    %v3729 = vadd.f32 %v3369, %v3728
    %v3730 = vand.u32 %v1949, 4294901760
    %3731 = vmatmul.f32.gmra.mxu0 %v3730
    %v3732 = vpop.f32.mrf.mxu0
    %v3733 = vadd.f32 %v3375, %v3732
    %v3734 = vand.u32 %v1952, 4294901760
    %3735 = vmatmul.f32.gmra.mxu0 %v3734
    %v3736 = vpop.f32.mrf.mxu0
    %v3737 = vadd.f32 %v3381, %v3736
    %v3738 = vand.u32 %v1955, 4294901760
    %3739 = vmatmul.f32.gmra.mxu0 %v3738
    %v3740 = vpop.f32.mrf.mxu0
    %v3741 = vadd.f32 %v3387, %v3740
    %v3742 = vand.u32 %v1958, 4294901760
    %3743 = vmatmul.f32.gmra.mxu0 %v3742
    %v3744 = vpop.f32.mrf.mxu0
    %v3745 = vadd.f32 %v3393, %v3744
    %v3746 = vand.u32 %v1961, 4294901760
    %3747 = vmatmul.f32.gmra.mxu0 %v3746
    %v3748 = vpop.f32.mrf.mxu0
    %v3749 = vadd.f32 %v3399, %v3748
    %v3750 = vand.u32 %v1964, 4294901760
    %3751 = vmatmul.f32.gmra.mxu0 %v3750
    %v3752 = vpop.f32.mrf.mxu0
    %v3753 = vadd.f32 %v3405, %v3752
    %v3754 = vand.u32 %v1967, 4294901760
    %3755 = vmatmul.f32.gmra.mxu0 %v3754
    %v3756 = vpop.f32.mrf.mxu0
    %v3757 = vadd.f32 %v3411, %v3756
    %v3758 = vand.u32 %v1970, 4294901760
    %3759 = vmatmul.f32.gmra.mxu0 %v3758
    %v3760 = vpop.f32.mrf.mxu0
    %v3761 = vadd.f32 %v3417, %v3760
    %v3762 = vand.u32 %v1973, 4294901760
    %3763 = vmatmul.f32.gmra.mxu0 %v3762
    %v3764 = vpop.f32.mrf.mxu0
    %v3765 = vadd.f32 %v3423, %v3764
    %v3766 = vand.u32 %v1976, 4294901760
    %3767 = vmatmul.f32.gmra.mxu0 %v3766
    %v3768 = vpop.f32.mrf.mxu0
    %v3769 = vadd.f32 %v3429, %v3768
    %v3770 = vand.u32 %v1979, 4294901760
    %3771 = vmatmul.f32.gmra.mxu0 %v3770
    %v3772 = vpop.f32.mrf.mxu0
    %v3773 = vadd.f32 %v3435, %v3772
    %v3774 = vand.u32 %v1982, 4294901760
    %3775 = vmatmul.f32.gmra.mxu0 %v3774
    %v3776 = vpop.f32.mrf.mxu0
    %v3777 = vadd.f32 %v3441, %v3776
    %v3778 = vand.u32 %v1985, 4294901760
    %3779 = vmatmul.f32.gmra.mxu0 %v3778
    %v3780 = vpop.f32.mrf.mxu0
    %v3781 = vadd.f32 %v3447, %v3780
    %v3782 = vand.u32 %v1988, 4294901760
    %3783 = vmatmul.f32.gmra.mxu0 %v3782
    %v3784 = vpop.f32.mrf.mxu0
    %v3785 = vadd.f32 %v3453, %v3784
    %v3786 = vand.u32 %v1991, 4294901760
    %3787 = vmatmul.f32.gmra.mxu0 %v3786
    %v3788 = vpop.f32.mrf.mxu0
    %v3789 = vadd.f32 %v3459, %v3788
    %v3790 = vand.u32 %v1994, 4294901760
    %3791 = vmatmul.f32.gmra.mxu0 %v3790
    %v3792 = vpop.f32.mrf.mxu0
    %v3793 = vadd.f32 %v3465, %v3792
    %v3794 = vand.u32 %v1997, 4294901760
    %3795 = vmatmul.f32.gmra.mxu0 %v3794
    %v3796 = vpop.f32.mrf.mxu0
    %v3797 = vadd.f32 %v3471, %v3796
    %v3798 = vand.u32 %v2000, 4294901760
    %3799 = vmatmul.f32.gmra.mxu0 %v3798
    %v3800 = vpop.f32.mrf.mxu0
    %v3801 = vadd.f32 %v3477, %v3800
    %v3802 = vand.u32 %v2003, 4294901760
    %3803 = vmatmul.f32.gmra.mxu0 %v3802
    %v3804 = vpop.f32.mrf.mxu0
    %v3805 = vadd.f32 %v3483, %v3804
    %v3806 = vand.u32 %v2006, 4294901760
    %3807 = vmatmul.f32.gmra.mxu0 %v3806
    %v3808 = vpop.f32.mrf.mxu0
    %v3809 = vadd.f32 %v3489, %v3808
    %v3810 = vand.u32 %v2009, 4294901760
    %3811 = vmatmul.f32.gmra.mxu0 %v3810
    %v3812 = vpop.f32.mrf.mxu0
    %v3813 = vadd.f32 %v3495, %v3812
    %v3814 = vand.u32 %v2012, 4294901760
    %3815 = vmatmul.f32.gmra.mxu0 %v3814
    %v3816 = vpop.f32.mrf.mxu0
    %v3817 = vadd.f32 %v3501, %v3816
    %v3818 = vand.u32 %v2015, 4294901760
    %3819 = vmatmul.f32.gmra.mxu0 %v3818
    %v3820 = vpop.f32.mrf.mxu0
    %v3821 = vadd.f32 %v3507, %v3820
    %v3822 = vand.u32 %v2018, 4294901760
    %3823 = vmatmul.f32.gmra.mxu0 %v3822
    %v3824 = vpop.f32.mrf.mxu0
    %v3825 = vadd.f32 %v3513, %v3824
    %v3826 = vand.u32 %v2021, 4294901760
    %3827 = vmatmul.f32.gmra.mxu0 %v3826
    %v3828 = vpop.f32.mrf.mxu0
    %v3829 = vadd.f32 %v3519, %v3828
    %v3830 = vand.u32 %v2024, 4294901760
    %3831 = vmatmul.f32.gmra.mxu0 %v3830
    %v3832 = vpop.f32.mrf.mxu0
    %v3833 = vadd.f32 %v3525, %v3832
    %v3834 = vand.u32 %v2027, 4294901760
    %3835 = vmatmul.f32.gmra.mxu0 %v3834
    %v3836 = vpop.f32.mrf.mxu0
    %v3837 = vadd.f32 %v3531, %v3836
    %v3838 = vand.u32 %v2030, 4294901760
    %3839 = vmatmul.f32.gmra.mxu0 %v3838
    %v3840 = vpop.f32.mrf.mxu0
    %v3841 = vadd.f32 %v3537, %v3840
    %v3842 = vand.u32 %v2033, 4294901760
    %3843 = vmatmul.f32.gmra.mxu0 %v3842
    %v3844 = vpop.f32.mrf.mxu0
    %v3845 = vadd.f32 %v3543, %v3844
    %v3846 = vand.u32 %v2036, 4294901760
    %3847 = vmatmul.f32.gmra.mxu0 %v3846
    %v3848 = vpop.f32.mrf.mxu0
    %v3849 = vadd.f32 %v3549, %v3848
    %v3850 = vand.u32 %v2039, 4294901760
    %3851 = vmatmul.f32.gmra.mxu0 %v3850
    %v3852 = vpop.f32.mrf.mxu0
    %v3853 = vadd.f32 %v3555, %v3852
    %v3854 = vand.u32 %v2042, 4294901760
    %3855 = vmatmul.f32.gmra.mxu0 %v3854
    %v3856 = vpop.f32.mrf.mxu0
    %v3857 = vadd.f32 %v3561, %v3856
    %v3858 = vand.u32 %v2045, 4294901760
    %3859 = vmatmul.f32.gmra.mxu0 %v3858
    %v3860 = vpop.f32.mrf.mxu0
    %v3861 = vadd.f32 %v3567, %v3860
    %v3862 = vand.u32 %v2048, 4294901760
    %3863 = vmatmul.f32.gmra.mxu0 %v3862
    %v3864 = vpop.f32.mrf.mxu0
    %v3865 = vadd.f32 %v3573, %v3864
    %v3866 = vand.u32 %v2051, 4294901760
    %3867 = vmatmul.f32.gmra.mxu0 %v3866
    %v3868 = vpop.f32.mrf.mxu0
    %v3869 = vadd.f32 %v3579, %v3868
    %v3870 = vand.u32 %v2054, 4294901760
    %3871 = vmatmul.f32.gmra.mxu0 %v3870
    %v3872 = vpop.f32.mrf.mxu0
    %v3873 = vadd.f32 %v3585, %v3872
    %v3874 = vand.u32 %v2057, 4294901760
    %3875 = vmatmul.f32.gmra.mxu0 %v3874
    %v3876 = vpop.f32.mrf.mxu0
    %v3877 = vadd.f32 %v3591, %v3876
    %v3878 = vand.u32 %v2060, 4294901760
    %3879 = vmatmul.f32.gmra.mxu0 %v3878
    %v3880 = vpop.f32.mrf.mxu0
    %v3881 = vadd.f32 %v3597, %v3880
    %v3882 = vand.u32 %v2063, 4294901760
    %3883 = vmatmul.f32.gmra.mxu0 %v3882
    %v3884 = vpop.f32.mrf.mxu0
    %v3885 = vadd.f32 %v3603, %v3884
    %v3886 = vand.u32 %v2066, 4294901760
    %3887 = vmatmul.f32.gmra.mxu0 %v3886
    %v3888 = vpop.f32.mrf.mxu0
    %v3889 = vadd.f32 %v3609, %v3888
    %v3890 = vand.u32 %v2069, 4294901760
    %3891 = vmatmul.f32.gmra.mxu0 %v3890
    %v3892 = vpop.f32.mrf.mxu0
    %v3893 = vadd.f32 %v3615, %v3892
    %v3894 = vand.u32 %v2072, 4294901760
    %3895 = vmatmul.f32.gmra.mxu0 %v3894
    %v3896 = vpop.f32.mrf.mxu0
    %v3897 = vadd.f32 %v3621, %v3896
    %3898 = vdwg.mxu0
    %3899 = vmatpush.msra.mxu0 0.0
    %3900 = vmatpush.msra.mxu0 0.0
    %3901 = vmatpush.msra.mxu0 0.0
    %3902 = vmatpush.msra.mxu0 0.0
    %3903 = vmatpush.msra.mxu0 0.0
    %3904 = vmatpush.msra.mxu0 0.0
    %3905 = vmatpush.msra.mxu0 0.0
    %3906 = vmatpush.msra.mxu0 0.0
    %3907 = vmatpush.msra.mxu0 0.0
    %3908 = vmatpush.msra.mxu0 0.0
    %3909 = vmatpush.msra.mxu0 0.0
    %3910 = vmatpush.msra.mxu0 0.0
    %3911 = vmatpush.msra.mxu0 0.0
    %3912 = vmatpush.msra.mxu0 0.0
    %3913 = vmatpush.msra.mxu0 0.0
    %v3914 = vand.u32 %v1878, 4294901760
    %3915 = vmatpush.msra.mxu0 %v3914
    %v3916 = vand.u32 %v1883, 4294901760
    %3917 = vmatmul.f32.gmra.mxu0 %v3916
    %v3918 = vpop.f32.mrf.mxu0
    %v3919 = vadd.f32 %v3645, %v3918
    %v3920 = vand.u32 %v1886, 4294901760
    %3921 = vmatmul.f32.gmra.mxu0 %v3920
    %v3922 = vpop.f32.mrf.mxu0
    %v3923 = vadd.f32 %v3649, %v3922
    %v3924 = vand.u32 %v1889, 4294901760
    %3925 = vmatmul.f32.gmra.mxu0 %v3924
    %v3926 = vpop.f32.mrf.mxu0
    %v3927 = vadd.f32 %v3653, %v3926
    %v3928 = vand.u32 %v1892, 4294901760
    %3929 = vmatmul.f32.gmra.mxu0 %v3928
    %v3930 = vpop.f32.mrf.mxu0
    %v3931 = vadd.f32 %v3657, %v3930
    %v3932 = vand.u32 %v1895, 4294901760
    %3933 = vmatmul.f32.gmra.mxu0 %v3932
    %v3934 = vpop.f32.mrf.mxu0
    %v3935 = vadd.f32 %v3661, %v3934
    %v3936 = vand.u32 %v1898, 4294901760
    %3937 = vmatmul.f32.gmra.mxu0 %v3936
    %v3938 = vpop.f32.mrf.mxu0
    %v3939 = vadd.f32 %v3665, %v3938
    %v3940 = vand.u32 %v1901, 4294901760
    %3941 = vmatmul.f32.gmra.mxu0 %v3940
    %v3942 = vpop.f32.mrf.mxu0
    %v3943 = vadd.f32 %v3669, %v3942
    %v3944 = vand.u32 %v1904, 4294901760
    %3945 = vmatmul.f32.gmra.mxu0 %v3944
    %v3946 = vpop.f32.mrf.mxu0
    %v3947 = vadd.f32 %v3673, %v3946
    %v3948 = vand.u32 %v1907, 4294901760
    %3949 = vmatmul.f32.gmra.mxu0 %v3948
    %v3950 = vpop.f32.mrf.mxu0
    %v3951 = vadd.f32 %v3677, %v3950
    %v3952 = vand.u32 %v1910, 4294901760
    %3953 = vmatmul.f32.gmra.mxu0 %v3952
    %v3954 = vpop.f32.mrf.mxu0
    %v3955 = vadd.f32 %v3681, %v3954
    %v3956 = vand.u32 %v1913, 4294901760
    %3957 = vmatmul.f32.gmra.mxu0 %v3956
    %v3958 = vpop.f32.mrf.mxu0
    %v3959 = vadd.f32 %v3685, %v3958
    %v3960 = vand.u32 %v1916, 4294901760
    %3961 = vmatmul.f32.gmra.mxu0 %v3960
    %v3962 = vpop.f32.mrf.mxu0
    %v3963 = vadd.f32 %v3689, %v3962
    %v3964 = vand.u32 %v1919, 4294901760
    %3965 = vmatmul.f32.gmra.mxu0 %v3964
    %v3966 = vpop.f32.mrf.mxu0
    %v3967 = vadd.f32 %v3693, %v3966
    %v3968 = vand.u32 %v1922, 4294901760
    %3969 = vmatmul.f32.gmra.mxu0 %v3968
    %v3970 = vpop.f32.mrf.mxu0
    %v3971 = vadd.f32 %v3697, %v3970
    %v3972 = vand.u32 %v1925, 4294901760
    %3973 = vmatmul.f32.gmra.mxu0 %v3972
    %v3974 = vpop.f32.mrf.mxu0
    %v3975 = vadd.f32 %v3701, %v3974
    %v3976 = vand.u32 %v1928, 4294901760
    %3977 = vmatmul.f32.gmra.mxu0 %v3976
    %v3978 = vpop.f32.mrf.mxu0
    %v3979 = vadd.f32 %v3705, %v3978
    %v3980 = vand.u32 %v1931, 4294901760
    %3981 = vmatmul.f32.gmra.mxu0 %v3980
    %v3982 = vpop.f32.mrf.mxu0
    %v3983 = vadd.f32 %v3709, %v3982
    %v3984 = vand.u32 %v1934, 4294901760
    %3985 = vmatmul.f32.gmra.mxu0 %v3984
    %v3986 = vpop.f32.mrf.mxu0
    %v3987 = vadd.f32 %v3713, %v3986
    %v3988 = vand.u32 %v1937, 4294901760
    %3989 = vmatmul.f32.gmra.mxu0 %v3988
    %v3990 = vpop.f32.mrf.mxu0
    %v3991 = vadd.f32 %v3717, %v3990
    %v3992 = vand.u32 %v1940, 4294901760
    %3993 = vmatmul.f32.gmra.mxu0 %v3992
    %v3994 = vpop.f32.mrf.mxu0
    %v3995 = vadd.f32 %v3721, %v3994
    %v3996 = vand.u32 %v1943, 4294901760
    %3997 = vmatmul.f32.gmra.mxu0 %v3996
    %v3998 = vpop.f32.mrf.mxu0
    %v3999 = vadd.f32 %v3725, %v3998
    %v4000 = vand.u32 %v1946, 4294901760
    %4001 = vmatmul.f32.gmra.mxu0 %v4000
    %v4002 = vpop.f32.mrf.mxu0
    %v4003 = vadd.f32 %v3729, %v4002
    %v4004 = vand.u32 %v1949, 4294901760
    %4005 = vmatmul.f32.gmra.mxu0 %v4004
    %v4006 = vpop.f32.mrf.mxu0
    %v4007 = vadd.f32 %v3733, %v4006
    %v4008 = vand.u32 %v1952, 4294901760
    %4009 = vmatmul.f32.gmra.mxu0 %v4008
    %v4010 = vpop.f32.mrf.mxu0
    %v4011 = vadd.f32 %v3737, %v4010
    %v4012 = vand.u32 %v1955, 4294901760
    %4013 = vmatmul.f32.gmra.mxu0 %v4012
    %v4014 = vpop.f32.mrf.mxu0
    %v4015 = vadd.f32 %v3741, %v4014
    %v4016 = vand.u32 %v1958, 4294901760
    %4017 = vmatmul.f32.gmra.mxu0 %v4016
    %v4018 = vpop.f32.mrf.mxu0
    %v4019 = vadd.f32 %v3745, %v4018
    %v4020 = vand.u32 %v1961, 4294901760
    %4021 = vmatmul.f32.gmra.mxu0 %v4020
    %v4022 = vpop.f32.mrf.mxu0
    %v4023 = vadd.f32 %v3749, %v4022
    %v4024 = vand.u32 %v1964, 4294901760
    %4025 = vmatmul.f32.gmra.mxu0 %v4024
    %v4026 = vpop.f32.mrf.mxu0
    %v4027 = vadd.f32 %v3753, %v4026
    %v4028 = vand.u32 %v1967, 4294901760
    %4029 = vmatmul.f32.gmra.mxu0 %v4028
    %v4030 = vpop.f32.mrf.mxu0
    %v4031 = vadd.f32 %v3757, %v4030
    %v4032 = vand.u32 %v1970, 4294901760
    %4033 = vmatmul.f32.gmra.mxu0 %v4032
    %v4034 = vpop.f32.mrf.mxu0
    %v4035 = vadd.f32 %v3761, %v4034
    %v4036 = vand.u32 %v1973, 4294901760
    %4037 = vmatmul.f32.gmra.mxu0 %v4036
    %v4038 = vpop.f32.mrf.mxu0
    %v4039 = vadd.f32 %v3765, %v4038
    %v4040 = vand.u32 %v1976, 4294901760
    %4041 = vmatmul.f32.gmra.mxu0 %v4040
    %v4042 = vpop.f32.mrf.mxu0
    %v4043 = vadd.f32 %v3769, %v4042
    %v4044 = vand.u32 %v1979, 4294901760
    %4045 = vmatmul.f32.gmra.mxu0 %v4044
    %v4046 = vpop.f32.mrf.mxu0
    %v4047 = vadd.f32 %v3773, %v4046
    %v4048 = vand.u32 %v1982, 4294901760
    %4049 = vmatmul.f32.gmra.mxu0 %v4048
    %v4050 = vpop.f32.mrf.mxu0
    %v4051 = vadd.f32 %v3777, %v4050
    %v4052 = vand.u32 %v1985, 4294901760
    %4053 = vmatmul.f32.gmra.mxu0 %v4052
    %v4054 = vpop.f32.mrf.mxu0
    %v4055 = vadd.f32 %v3781, %v4054
    %v4056 = vand.u32 %v1988, 4294901760
    %4057 = vmatmul.f32.gmra.mxu0 %v4056
    %v4058 = vpop.f32.mrf.mxu0
    %v4059 = vadd.f32 %v3785, %v4058
    %v4060 = vand.u32 %v1991, 4294901760
    %4061 = vmatmul.f32.gmra.mxu0 %v4060
    %v4062 = vpop.f32.mrf.mxu0
    %v4063 = vadd.f32 %v3789, %v4062
    %v4064 = vand.u32 %v1994, 4294901760
    %4065 = vmatmul.f32.gmra.mxu0 %v4064
    %v4066 = vpop.f32.mrf.mxu0
    %v4067 = vadd.f32 %v3793, %v4066
    %v4068 = vand.u32 %v1997, 4294901760
    %4069 = vmatmul.f32.gmra.mxu0 %v4068
    %v4070 = vpop.f32.mrf.mxu0
    %v4071 = vadd.f32 %v3797, %v4070
    %v4072 = vand.u32 %v2000, 4294901760
    %4073 = vmatmul.f32.gmra.mxu0 %v4072
    %v4074 = vpop.f32.mrf.mxu0
    %v4075 = vadd.f32 %v3801, %v4074
    %v4076 = vand.u32 %v2003, 4294901760
    %4077 = vmatmul.f32.gmra.mxu0 %v4076
    %v4078 = vpop.f32.mrf.mxu0
    %v4079 = vadd.f32 %v3805, %v4078
    %v4080 = vand.u32 %v2006, 4294901760
    %4081 = vmatmul.f32.gmra.mxu0 %v4080
    %v4082 = vpop.f32.mrf.mxu0
    %v4083 = vadd.f32 %v3809, %v4082
    %v4084 = vand.u32 %v2009, 4294901760
    %4085 = vmatmul.f32.gmra.mxu0 %v4084
    %v4086 = vpop.f32.mrf.mxu0
    %v4087 = vadd.f32 %v3813, %v4086
    %v4088 = vand.u32 %v2012, 4294901760
    %4089 = vmatmul.f32.gmra.mxu0 %v4088
    %v4090 = vpop.f32.mrf.mxu0
    %v4091 = vadd.f32 %v3817, %v4090
    %v4092 = vand.u32 %v2015, 4294901760
    %4093 = vmatmul.f32.gmra.mxu0 %v4092
    %v4094 = vpop.f32.mrf.mxu0
    %v4095 = vadd.f32 %v3821, %v4094
    %v4096 = vand.u32 %v2018, 4294901760
    %4097 = vmatmul.f32.gmra.mxu0 %v4096
    %v4098 = vpop.f32.mrf.mxu0
    %v4099 = vadd.f32 %v3825, %v4098
    %v4100 = vand.u32 %v2021, 4294901760
    %4101 = vmatmul.f32.gmra.mxu0 %v4100
    %v4102 = vpop.f32.mrf.mxu0
    %v4103 = vadd.f32 %v3829, %v4102
    %v4104 = vand.u32 %v2024, 4294901760
    %4105 = vmatmul.f32.gmra.mxu0 %v4104
    %v4106 = vpop.f32.mrf.mxu0
    %v4107 = vadd.f32 %v3833, %v4106
    %v4108 = vand.u32 %v2027, 4294901760
    %4109 = vmatmul.f32.gmra.mxu0 %v4108
    %v4110 = vpop.f32.mrf.mxu0
    %v4111 = vadd.f32 %v3837, %v4110
    %v4112 = vand.u32 %v2030, 4294901760
    %4113 = vmatmul.f32.gmra.mxu0 %v4112
    %v4114 = vpop.f32.mrf.mxu0
    %v4115 = vadd.f32 %v3841, %v4114
    %v4116 = vand.u32 %v2033, 4294901760
    %4117 = vmatmul.f32.gmra.mxu0 %v4116
    %v4118 = vpop.f32.mrf.mxu0
    %v4119 = vadd.f32 %v3845, %v4118
    %v4120 = vand.u32 %v2036, 4294901760
    %4121 = vmatmul.f32.gmra.mxu0 %v4120
    %v4122 = vpop.f32.mrf.mxu0
    %v4123 = vadd.f32 %v3849, %v4122
    %v4124 = vand.u32 %v2039, 4294901760
    %4125 = vmatmul.f32.gmra.mxu0 %v4124
    %v4126 = vpop.f32.mrf.mxu0
    %v4127 = vadd.f32 %v3853, %v4126
    %v4128 = vand.u32 %v2042, 4294901760
    %4129 = vmatmul.f32.gmra.mxu0 %v4128
    %v4130 = vpop.f32.mrf.mxu0
    %v4131 = vadd.f32 %v3857, %v4130
    %v4132 = vand.u32 %v2045, 4294901760
    %4133 = vmatmul.f32.gmra.mxu0 %v4132
    %v4134 = vpop.f32.mrf.mxu0
    %v4135 = vadd.f32 %v3861, %v4134
    %v4136 = vand.u32 %v2048, 4294901760
    %4137 = vmatmul.f32.gmra.mxu0 %v4136
    %v4138 = vpop.f32.mrf.mxu0
    %v4139 = vadd.f32 %v3865, %v4138
    %v4140 = vand.u32 %v2051, 4294901760
    %4141 = vmatmul.f32.gmra.mxu0 %v4140
    %v4142 = vpop.f32.mrf.mxu0
    %v4143 = vadd.f32 %v3869, %v4142
    %v4144 = vand.u32 %v2054, 4294901760
    %4145 = vmatmul.f32.gmra.mxu0 %v4144
    %v4146 = vpop.f32.mrf.mxu0
    %v4147 = vadd.f32 %v3873, %v4146
    %v4148 = vand.u32 %v2057, 4294901760
    %4149 = vmatmul.f32.gmra.mxu0 %v4148
    %v4150 = vpop.f32.mrf.mxu0
    %v4151 = vadd.f32 %v3877, %v4150
    %v4152 = vand.u32 %v2060, 4294901760
    %4153 = vmatmul.f32.gmra.mxu0 %v4152
    %v4154 = vpop.f32.mrf.mxu0
    %v4155 = vadd.f32 %v3881, %v4154
    %v4156 = vand.u32 %v2063, 4294901760
    %4157 = vmatmul.f32.gmra.mxu0 %v4156
    %v4158 = vpop.f32.mrf.mxu0
    %v4159 = vadd.f32 %v3885, %v4158
    %v4160 = vand.u32 %v2066, 4294901760
    %4161 = vmatmul.f32.gmra.mxu0 %v4160
    %v4162 = vpop.f32.mrf.mxu0
    %v4163 = vadd.f32 %v3889, %v4162
    %v4164 = vand.u32 %v2069, 4294901760
    %4165 = vmatmul.f32.gmra.mxu0 %v4164
    %v4166 = vpop.f32.mrf.mxu0
    %v4167 = vadd.f32 %v3893, %v4166
    %v4168 = vand.u32 %v2072, 4294901760
    %4169 = vmatmul.f32.gmra.mxu0 %v4168
    %v4170 = vpop.f32.mrf.mxu0
    %v4171 = vadd.f32 %v3897, %v4170
    %4172 = vdwg.mxu0
    %v4173 = vmax.f32 %v3919, 0.0
    %v4174 = vmax.f32 %v3923, 0.0
    %v4175 = vmax.f32 %v3927, 0.0
    %v4176 = vmax.f32 %v3931, 0.0
    %v4177 = vmax.f32 %v3935, 0.0
    %v4178 = vmax.f32 %v3939, 0.0
    %v4179 = vmax.f32 %v3943, 0.0
    %v4180 = vmax.f32 %v3947, 0.0
    %v4181 = vmax.f32 %v3951, 0.0
    %v4182 = vmax.f32 %v3955, 0.0
    %v4183 = vmax.f32 %v3959, 0.0
    %v4184 = vmax.f32 %v3963, 0.0
    %v4185 = vmax.f32 %v3967, 0.0
    %v4186 = vmax.f32 %v3971, 0.0
    %v4187 = vmax.f32 %v3975, 0.0
    %v4188 = vmax.f32 %v3979, 0.0
    %v4189 = vmax.f32 %v3983, 0.0
    %v4190 = vmax.f32 %v3987, 0.0
    %v4191 = vmax.f32 %v3991, 0.0
    %v4192 = vmax.f32 %v3995, 0.0
    %v4193 = vmax.f32 %v3999, 0.0
    %v4194 = vmax.f32 %v4003, 0.0
    %v4195 = vmax.f32 %v4007, 0.0
    %v4196 = vmax.f32 %v4011, 0.0
    %v4197 = vmax.f32 %v4015, 0.0
    %v4198 = vmax.f32 %v4019, 0.0
    %v4199 = vmax.f32 %v4023, 0.0
    %v4200 = vmax.f32 %v4027, 0.0
    %v4201 = vmax.f32 %v4031, 0.0
    %v4202 = vmax.f32 %v4035, 0.0
    %v4203 = vmax.f32 %v4039, 0.0
    %v4204 = vmax.f32 %v4043, 0.0
    %v4205 = vmax.f32 %v4047, 0.0
    %v4206 = vmax.f32 %v4051, 0.0
    %v4207 = vmax.f32 %v4055, 0.0
    %v4208 = vmax.f32 %v4059, 0.0
    %v4209 = vmax.f32 %v4063, 0.0
    %v4210 = vmax.f32 %v4067, 0.0
    %v4211 = vmax.f32 %v4071, 0.0
    %v4212 = vmax.f32 %v4075, 0.0
    %v4213 = vmax.f32 %v4079, 0.0
    %v4214 = vmax.f32 %v4083, 0.0
    %v4215 = vmax.f32 %v4087, 0.0
    %v4216 = vmax.f32 %v4091, 0.0
    %v4217 = vmax.f32 %v4095, 0.0
    %v4218 = vmax.f32 %v4099, 0.0
    %v4219 = vmax.f32 %v4103, 0.0
    %v4220 = vmax.f32 %v4107, 0.0
    %v4221 = vmax.f32 %v4111, 0.0
    %v4222 = vmax.f32 %v4115, 0.0
    %v4223 = vmax.f32 %v4119, 0.0
    %v4224 = vmax.f32 %v4123, 0.0
    %v4225 = vmax.f32 %v4127, 0.0
    %v4226 = vmax.f32 %v4131, 0.0
    %v4227 = vmax.f32 %v4135, 0.0
    %v4228 = vmax.f32 %v4139, 0.0
    %v4229 = vmax.f32 %v4143, 0.0
    %v4230 = vmax.f32 %v4147, 0.0
    %v4231 = vmax.f32 %v4151, 0.0
    %v4232 = vmax.f32 %v4155, 0.0
    %v4233 = vmax.f32 %v4159, 0.0
    %v4234 = vmax.f32 %v4163, 0.0
    %v4235 = vmax.f32 %v4167, 0.0
    %v4236 = vmax.f32 %v4171, 0.0
    %v4237 = vcvt.f32.s32.to.zero.pseudo %v12
    %v4238 = vcvt.f32.s32.to.zero.pseudo %v13
    %v4239 = vcvt.f32.s32.to.zero.pseudo %v14
    %v4240 = vcvt.f32.s32.to.zero.pseudo %v15
    %v4241 = vcvt.f32.s32.to.zero.pseudo %v16
    %v4242 = vcvt.f32.s32.to.zero.pseudo %v17
    %v4243 = vcvt.f32.s32.to.zero.pseudo %v18
    %v4244 = vcvt.f32.s32.to.zero.pseudo %v19
    %v4245 = vcvt.f32.s32.to.zero.pseudo %v20
    %v4246 = vcvt.f32.s32.to.zero.pseudo %v21
    %v4247 = vcvt.f32.s32.to.zero.pseudo %v22
    %v4248 = vcvt.f32.s32.to.zero.pseudo %v23
    %v4249 = vcvt.f32.s32.to.zero.pseudo %v24
    %v4250 = vcvt.f32.s32.to.zero.pseudo %v25
    %v4251 = vcvt.f32.s32.to.zero.pseudo %v26
    %v4252 = vcvt.f32.s32.to.zero.pseudo %v27
    %v4253 = vcvt.f32.s32.to.zero.pseudo %v28
    %v4254 = vcvt.f32.s32.to.zero.pseudo %v29
    %v4255 = vcvt.f32.s32.to.zero.pseudo %v30
    %v4256 = vcvt.f32.s32.to.zero.pseudo %v31
    %v4257 = vcvt.f32.s32.to.zero.pseudo %v32
    %v4258 = vcvt.f32.s32.to.zero.pseudo %v33
    %v4259 = vcvt.f32.s32.to.zero.pseudo %v34
    %v4260 = vcvt.f32.s32.to.zero.pseudo %v35
    %v4261 = vcvt.f32.s32.to.zero.pseudo %v36
    %v4262 = vcvt.f32.s32.to.zero.pseudo %v37
    %v4263 = vcvt.f32.s32.to.zero.pseudo %v38
    %v4264 = vcvt.f32.s32.to.zero.pseudo %v39
    %v4265 = vcvt.f32.s32.to.zero.pseudo %v40
    %v4266 = vcvt.f32.s32.to.zero.pseudo %v41
    %v4267 = vcvt.f32.s32.to.zero.pseudo %v42
    %v4268 = vcvt.f32.s32.to.zero.pseudo %v43
    %v4269 = vcvt.f32.s32.to.zero.pseudo %v44
    %v4270 = vcvt.f32.s32.to.zero.pseudo %v45
    %v4271 = vcvt.f32.s32.to.zero.pseudo %v46
    %v4272 = vcvt.f32.s32.to.zero.pseudo %v47
    %v4273 = vcvt.f32.s32.to.zero.pseudo %v48
    %v4274 = vcvt.f32.s32.to.zero.pseudo %v49
    %v4275 = vcvt.f32.s32.to.zero.pseudo %v50
    %v4276 = vcvt.f32.s32.to.zero.pseudo %v51
    %v4277 = vcvt.f32.s32.to.zero.pseudo %v52
    %v4278 = vcvt.f32.s32.to.zero.pseudo %v53
    %v4279 = vcvt.f32.s32.to.zero.pseudo %v54
    %v4280 = vcvt.f32.s32.to.zero.pseudo %v55
    %v4281 = vcvt.f32.s32.to.zero.pseudo %v56
    %v4282 = vcvt.f32.s32.to.zero.pseudo %v57
    %v4283 = vcvt.f32.s32.to.zero.pseudo %v58
    %v4284 = vcvt.f32.s32.to.zero.pseudo %v59
    %v4285 = vcvt.f32.s32.to.zero.pseudo %v60
    %v4286 = vcvt.f32.s32.to.zero.pseudo %v61
    %v4287 = vcvt.f32.s32.to.zero.pseudo %v62
    %v4288 = vcvt.f32.s32.to.zero.pseudo %v63
    %v4289 = vcvt.f32.s32.to.zero.pseudo %v64
    %v4290 = vcvt.f32.s32.to.zero.pseudo %v65
    %v4291 = vcvt.f32.s32.to.zero.pseudo %v66
    %v4292 = vcvt.f32.s32.to.zero.pseudo %v67
    %v4293 = vcvt.f32.s32.to.zero.pseudo %v68
    %v4294 = vcvt.f32.s32.to.zero.pseudo %v69
    %v4295 = vcvt.f32.s32.to.zero.pseudo %v70
    %v4296 = vcvt.f32.s32.to.zero.pseudo %v71
    %v4297 = vcvt.f32.s32.to.zero.pseudo %v72
    %v4298 = vcvt.f32.s32.to.zero.pseudo %v73
    %v4299 = vcvt.f32.s32.to.zero.pseudo %v74
    %v4300 = vcvt.f32.s32.to.zero.pseudo %v75
    %v4301 = vlaneseq
    %v4302 = vand.u32 %v4301, 127
    %4303 = vset.pattern.permute.xlu0 4
    %4304 = vperm.xlu0 %4303, %v4237
    %v4305 = vpop.permute.xlu0 %4304
    %4306 = vset.pattern.permute.xlu0 4
    %4307 = vperm.xlu0 %4306, %v4238
    %v4308 = vpop.permute.xlu0 %4307
    %4309 = vset.pattern.permute.xlu0 4
    %4310 = vperm.xlu0 %4309, %v4239
    %v4311 = vpop.permute.xlu0 %4310
    %4312 = vset.pattern.permute.xlu0 4
    %4313 = vperm.xlu0 %4312, %v4240
    %v4314 = vpop.permute.xlu0 %4313
    %4315 = vset.pattern.permute.xlu0 4
    %4316 = vperm.xlu0 %4315, %v4241
    %v4317 = vpop.permute.xlu0 %4316
    %4318 = vset.pattern.permute.xlu0 4
    %4319 = vperm.xlu0 %4318, %v4242
    %v4320 = vpop.permute.xlu0 %4319
    %4321 = vset.pattern.permute.xlu0 4
    %4322 = vperm.xlu0 %4321, %v4243
    %v4323 = vpop.permute.xlu0 %4322
    %4324 = vset.pattern.permute.xlu0 4
    %4325 = vperm.xlu0 %4324, %v4244
    %v4326 = vpop.permute.xlu0 %4325
    %4327 = vset.pattern.permute.xlu0 4
    %4328 = vperm.xlu0 %4327, %v4245
    %v4329 = vpop.permute.xlu0 %4328
    %4330 = vset.pattern.permute.xlu0 4
    %4331 = vperm.xlu0 %4330, %v4246
    %v4332 = vpop.permute.xlu0 %4331
    %4333 = vset.pattern.permute.xlu0 4
    %4334 = vperm.xlu0 %4333, %v4247
    %v4335 = vpop.permute.xlu0 %4334
    %4336 = vset.pattern.permute.xlu0 4
    %4337 = vperm.xlu0 %4336, %v4248
    %v4338 = vpop.permute.xlu0 %4337
    %4339 = vset.pattern.permute.xlu0 4
    %4340 = vperm.xlu0 %4339, %v4249
    %v4341 = vpop.permute.xlu0 %4340
    %4342 = vset.pattern.permute.xlu0 4
    %4343 = vperm.xlu0 %4342, %v4250
    %v4344 = vpop.permute.xlu0 %4343
    %4345 = vset.pattern.permute.xlu0 4
    %4346 = vperm.xlu0 %4345, %v4251
    %v4347 = vpop.permute.xlu0 %4346
    %4348 = vset.pattern.permute.xlu0 4
    %4349 = vperm.xlu0 %4348, %v4252
    %v4350 = vpop.permute.xlu0 %4349
    %4351 = vset.pattern.permute.xlu0 4
    %4352 = vperm.xlu0 %4351, %v4253
    %v4353 = vpop.permute.xlu0 %4352
    %4354 = vset.pattern.permute.xlu0 4
    %4355 = vperm.xlu0 %4354, %v4254
    %v4356 = vpop.permute.xlu0 %4355
    %4357 = vset.pattern.permute.xlu0 4
    %4358 = vperm.xlu0 %4357, %v4255
    %v4359 = vpop.permute.xlu0 %4358
    %4360 = vset.pattern.permute.xlu0 4
    %4361 = vperm.xlu0 %4360, %v4256
    %v4362 = vpop.permute.xlu0 %4361
    %4363 = vset.pattern.permute.xlu0 4
    %4364 = vperm.xlu0 %4363, %v4257
    %v4365 = vpop.permute.xlu0 %4364
    %4366 = vset.pattern.permute.xlu0 4
    %4367 = vperm.xlu0 %4366, %v4258
    %v4368 = vpop.permute.xlu0 %4367
    %4369 = vset.pattern.permute.xlu0 4
    %4370 = vperm.xlu0 %4369, %v4259
    %v4371 = vpop.permute.xlu0 %4370
    %4372 = vset.pattern.permute.xlu0 4
    %4373 = vperm.xlu0 %4372, %v4260
    %v4374 = vpop.permute.xlu0 %4373
    %4375 = vset.pattern.permute.xlu0 4
    %4376 = vperm.xlu0 %4375, %v4261
    %v4377 = vpop.permute.xlu0 %4376
    %4378 = vset.pattern.permute.xlu0 4
    %4379 = vperm.xlu0 %4378, %v4262
    %v4380 = vpop.permute.xlu0 %4379
    %4381 = vset.pattern.permute.xlu0 4
    %4382 = vperm.xlu0 %4381, %v4263
    %v4383 = vpop.permute.xlu0 %4382
    %4384 = vset.pattern.permute.xlu0 4
    %4385 = vperm.xlu0 %4384, %v4264
    %v4386 = vpop.permute.xlu0 %4385
    %4387 = vset.pattern.permute.xlu0 4
    %4388 = vperm.xlu0 %4387, %v4265
    %v4389 = vpop.permute.xlu0 %4388
    %4390 = vset.pattern.permute.xlu0 4
    %4391 = vperm.xlu0 %4390, %v4266
    %v4392 = vpop.permute.xlu0 %4391
    %4393 = vset.pattern.permute.xlu0 4
    %4394 = vperm.xlu0 %4393, %v4267
    %v4395 = vpop.permute.xlu0 %4394
    %4396 = vset.pattern.permute.xlu0 4
    %4397 = vperm.xlu0 %4396, %v4268
    %v4398 = vpop.permute.xlu0 %4397
    %4399 = vset.pattern.permute.xlu0 4
    %4400 = vperm.xlu0 %4399, %v4269
    %v4401 = vpop.permute.xlu0 %4400
    %4402 = vset.pattern.permute.xlu0 4
    %4403 = vperm.xlu0 %4402, %v4270
    %v4404 = vpop.permute.xlu0 %4403
    %4405 = vset.pattern.permute.xlu0 4
    %4406 = vperm.xlu0 %4405, %v4271
    %v4407 = vpop.permute.xlu0 %4406
    %4408 = vset.pattern.permute.xlu0 4
    %4409 = vperm.xlu0 %4408, %v4272
    %v4410 = vpop.permute.xlu0 %4409
    %4411 = vset.pattern.permute.xlu0 4
    %4412 = vperm.xlu0 %4411, %v4273
    %v4413 = vpop.permute.xlu0 %4412
    %4414 = vset.pattern.permute.xlu0 4
    %4415 = vperm.xlu0 %4414, %v4274
    %v4416 = vpop.permute.xlu0 %4415
    %4417 = vset.pattern.permute.xlu0 4
    %4418 = vperm.xlu0 %4417, %v4275
    %v4419 = vpop.permute.xlu0 %4418
    %4420 = vset.pattern.permute.xlu0 4
    %4421 = vperm.xlu0 %4420, %v4276
    %v4422 = vpop.permute.xlu0 %4421
    %4423 = vset.pattern.permute.xlu0 4
    %4424 = vperm.xlu0 %4423, %v4277
    %v4425 = vpop.permute.xlu0 %4424
    %4426 = vset.pattern.permute.xlu0 4
    %4427 = vperm.xlu0 %4426, %v4278
    %v4428 = vpop.permute.xlu0 %4427
    %4429 = vset.pattern.permute.xlu0 4
    %4430 = vperm.xlu0 %4429, %v4279
    %v4431 = vpop.permute.xlu0 %4430
    %4432 = vset.pattern.permute.xlu0 4
    %4433 = vperm.xlu0 %4432, %v4280
    %v4434 = vpop.permute.xlu0 %4433
    %4435 = vset.pattern.permute.xlu0 4
    %4436 = vperm.xlu0 %4435, %v4281
    %v4437 = vpop.permute.xlu0 %4436
    %4438 = vset.pattern.permute.xlu0 4
    %4439 = vperm.xlu0 %4438, %v4282
    %v4440 = vpop.permute.xlu0 %4439
    %4441 = vset.pattern.permute.xlu0 4
    %4442 = vperm.xlu0 %4441, %v4283
    %v4443 = vpop.permute.xlu0 %4442
    %4444 = vset.pattern.permute.xlu0 4
    %4445 = vperm.xlu0 %4444, %v4284
    %v4446 = vpop.permute.xlu0 %4445
    %4447 = vset.pattern.permute.xlu0 4
    %4448 = vperm.xlu0 %4447, %v4285
    %v4449 = vpop.permute.xlu0 %4448
    %4450 = vset.pattern.permute.xlu0 4
    %4451 = vperm.xlu0 %4450, %v4286
    %v4452 = vpop.permute.xlu0 %4451
    %4453 = vset.pattern.permute.xlu0 4
    %4454 = vperm.xlu0 %4453, %v4287
    %v4455 = vpop.permute.xlu0 %4454
    %4456 = vset.pattern.permute.xlu0 4
    %4457 = vperm.xlu0 %4456, %v4288
    %v4458 = vpop.permute.xlu0 %4457
    %4459 = vset.pattern.permute.xlu0 4
    %4460 = vperm.xlu0 %4459, %v4289
    %v4461 = vpop.permute.xlu0 %4460
    %4462 = vset.pattern.permute.xlu0 4
    %4463 = vperm.xlu0 %4462, %v4290
    %v4464 = vpop.permute.xlu0 %4463
    %4465 = vset.pattern.permute.xlu0 4
    %4466 = vperm.xlu0 %4465, %v4291
    %v4467 = vpop.permute.xlu0 %4466
    %4468 = vset.pattern.permute.xlu0 4
    %4469 = vperm.xlu0 %4468, %v4292
    %v4470 = vpop.permute.xlu0 %4469
    %4471 = vset.pattern.permute.xlu0 4
    %4472 = vperm.xlu0 %4471, %v4293
    %v4473 = vpop.permute.xlu0 %4472
    %4474 = vset.pattern.permute.xlu0 4
    %4475 = vperm.xlu0 %4474, %v4294
    %v4476 = vpop.permute.xlu0 %4475
    %4477 = vset.pattern.permute.xlu0 4
    %4478 = vperm.xlu0 %4477, %v4295
    %v4479 = vpop.permute.xlu0 %4478
    %4480 = vset.pattern.permute.xlu0 4
    %4481 = vperm.xlu0 %4480, %v4296
    %v4482 = vpop.permute.xlu0 %4481
    %4483 = vset.pattern.permute.xlu0 4
    %4484 = vperm.xlu0 %4483, %v4297
    %v4485 = vpop.permute.xlu0 %4484
    %4486 = vset.pattern.permute.xlu0 4
    %4487 = vperm.xlu0 %4486, %v4298
    %v4488 = vpop.permute.xlu0 %4487
    %4489 = vset.pattern.permute.xlu0 4
    %4490 = vperm.xlu0 %4489, %v4299
    %v4491 = vpop.permute.xlu0 %4490
    %4492 = vset.pattern.permute.xlu0 4
    %4493 = vperm.xlu0 %4492, %v4300
    %v4494 = vpop.permute.xlu0 %4493
    %vm4495 = vcmp.eq.s32.totalorder %v4305, %v4302
    %vm4496 = vcmp.eq.s32.totalorder %v4308, %v4302
    %vm4497 = vcmp.eq.s32.totalorder %v4311, %v4302
    %vm4498 = vcmp.eq.s32.totalorder %v4314, %v4302
    %vm4499 = vcmp.eq.s32.totalorder %v4317, %v4302
    %vm4500 = vcmp.eq.s32.totalorder %v4320, %v4302
    %vm4501 = vcmp.eq.s32.totalorder %v4323, %v4302
    %vm4502 = vcmp.eq.s32.totalorder %v4326, %v4302
    %vm4503 = vcmp.eq.s32.totalorder %v4329, %v4302
    %vm4504 = vcmp.eq.s32.totalorder %v4332, %v4302
    %vm4505 = vcmp.eq.s32.totalorder %v4335, %v4302
    %vm4506 = vcmp.eq.s32.totalorder %v4338, %v4302
    %vm4507 = vcmp.eq.s32.totalorder %v4341, %v4302
    %vm4508 = vcmp.eq.s32.totalorder %v4344, %v4302
    %vm4509 = vcmp.eq.s32.totalorder %v4347, %v4302
    %vm4510 = vcmp.eq.s32.totalorder %v4350, %v4302
    %vm4511 = vcmp.eq.s32.totalorder %v4353, %v4302
    %vm4512 = vcmp.eq.s32.totalorder %v4356, %v4302
    %vm4513 = vcmp.eq.s32.totalorder %v4359, %v4302
    %vm4514 = vcmp.eq.s32.totalorder %v4362, %v4302
    %vm4515 = vcmp.eq.s32.totalorder %v4365, %v4302
    %vm4516 = vcmp.eq.s32.totalorder %v4368, %v4302
    %vm4517 = vcmp.eq.s32.totalorder %v4371, %v4302
    %vm4518 = vcmp.eq.s32.totalorder %v4374, %v4302
    %vm4519 = vcmp.eq.s32.totalorder %v4377, %v4302
    %vm4520 = vcmp.eq.s32.totalorder %v4380, %v4302
    %vm4521 = vcmp.eq.s32.totalorder %v4383, %v4302
    %vm4522 = vcmp.eq.s32.totalorder %v4386, %v4302
    %vm4523 = vcmp.eq.s32.totalorder %v4389, %v4302
    %vm4524 = vcmp.eq.s32.totalorder %v4392, %v4302
    %vm4525 = vcmp.eq.s32.totalorder %v4395, %v4302
    %vm4526 = vcmp.eq.s32.totalorder %v4398, %v4302
    %vm4527 = vcmp.eq.s32.totalorder %v4401, %v4302
    %vm4528 = vcmp.eq.s32.totalorder %v4404, %v4302
    %vm4529 = vcmp.eq.s32.totalorder %v4407, %v4302
    %vm4530 = vcmp.eq.s32.totalorder %v4410, %v4302
    %vm4531 = vcmp.eq.s32.totalorder %v4413, %v4302
    %vm4532 = vcmp.eq.s32.totalorder %v4416, %v4302
    %vm4533 = vcmp.eq.s32.totalorder %v4419, %v4302
    %vm4534 = vcmp.eq.s32.totalorder %v4422, %v4302
    %vm4535 = vcmp.eq.s32.totalorder %v4425, %v4302
    %vm4536 = vcmp.eq.s32.totalorder %v4428, %v4302
    %vm4537 = vcmp.eq.s32.totalorder %v4431, %v4302
    %vm4538 = vcmp.eq.s32.totalorder %v4434, %v4302
    %vm4539 = vcmp.eq.s32.totalorder %v4437, %v4302
    %vm4540 = vcmp.eq.s32.totalorder %v4440, %v4302
    %vm4541 = vcmp.eq.s32.totalorder %v4443, %v4302
    %vm4542 = vcmp.eq.s32.totalorder %v4446, %v4302
    %vm4543 = vcmp.eq.s32.totalorder %v4449, %v4302
    %vm4544 = vcmp.eq.s32.totalorder %v4452, %v4302
    %vm4545 = vcmp.eq.s32.totalorder %v4455, %v4302
    %vm4546 = vcmp.eq.s32.totalorder %v4458, %v4302
    %vm4547 = vcmp.eq.s32.totalorder %v4461, %v4302
    %vm4548 = vcmp.eq.s32.totalorder %v4464, %v4302
    %vm4549 = vcmp.eq.s32.totalorder %v4467, %v4302
    %vm4550 = vcmp.eq.s32.totalorder %v4470, %v4302
    %vm4551 = vcmp.eq.s32.totalorder %v4473, %v4302
    %vm4552 = vcmp.eq.s32.totalorder %v4476, %v4302
    %vm4553 = vcmp.eq.s32.totalorder %v4479, %v4302
    %vm4554 = vcmp.eq.s32.totalorder %v4482, %v4302
    %vm4555 = vcmp.eq.s32.totalorder %v4485, %v4302
    %vm4556 = vcmp.eq.s32.totalorder %v4488, %v4302
    %vm4557 = vcmp.eq.s32.totalorder %v4491, %v4302
    %vm4558 = vcmp.eq.s32.totalorder %v4494, %v4302
    %4559 = vset.pattern.permute.xlu0 5
    %4560 = vperm.xlu0 %4559, %v4237
    %v4561 = vpop.permute.xlu0 %4560
    %4562 = vset.pattern.permute.xlu0 5
    %4563 = vperm.xlu0 %4562, %v4238
    %v4564 = vpop.permute.xlu0 %4563
    %4565 = vset.pattern.permute.xlu0 5
    %4566 = vperm.xlu0 %4565, %v4239
    %v4567 = vpop.permute.xlu0 %4566
    %4568 = vset.pattern.permute.xlu0 5
    %4569 = vperm.xlu0 %4568, %v4240
    %v4570 = vpop.permute.xlu0 %4569
    %4571 = vset.pattern.permute.xlu0 5
    %4572 = vperm.xlu0 %4571, %v4241
    %v4573 = vpop.permute.xlu0 %4572
    %4574 = vset.pattern.permute.xlu0 5
    %4575 = vperm.xlu0 %4574, %v4242
    %v4576 = vpop.permute.xlu0 %4575
    %4577 = vset.pattern.permute.xlu0 5
    %4578 = vperm.xlu0 %4577, %v4243
    %v4579 = vpop.permute.xlu0 %4578
    %4580 = vset.pattern.permute.xlu0 5
    %4581 = vperm.xlu0 %4580, %v4244
    %v4582 = vpop.permute.xlu0 %4581
    %4583 = vset.pattern.permute.xlu0 5
    %4584 = vperm.xlu0 %4583, %v4245
    %v4585 = vpop.permute.xlu0 %4584
    %4586 = vset.pattern.permute.xlu0 5
    %4587 = vperm.xlu0 %4586, %v4246
    %v4588 = vpop.permute.xlu0 %4587
    %4589 = vset.pattern.permute.xlu0 5
    %4590 = vperm.xlu0 %4589, %v4247
    %v4591 = vpop.permute.xlu0 %4590
    %4592 = vset.pattern.permute.xlu0 5
    %4593 = vperm.xlu0 %4592, %v4248
    %v4594 = vpop.permute.xlu0 %4593
    %4595 = vset.pattern.permute.xlu0 5
    %4596 = vperm.xlu0 %4595, %v4249
    %v4597 = vpop.permute.xlu0 %4596
    %4598 = vset.pattern.permute.xlu0 5
    %4599 = vperm.xlu0 %4598, %v4250
    %v4600 = vpop.permute.xlu0 %4599
    %4601 = vset.pattern.permute.xlu0 5
    %4602 = vperm.xlu0 %4601, %v4251
    %v4603 = vpop.permute.xlu0 %4602
    %4604 = vset.pattern.permute.xlu0 5
    %4605 = vperm.xlu0 %4604, %v4252
    %v4606 = vpop.permute.xlu0 %4605
    %4607 = vset.pattern.permute.xlu0 5
    %4608 = vperm.xlu0 %4607, %v4253
    %v4609 = vpop.permute.xlu0 %4608
    %4610 = vset.pattern.permute.xlu0 5
    %4611 = vperm.xlu0 %4610, %v4254
    %v4612 = vpop.permute.xlu0 %4611
    %4613 = vset.pattern.permute.xlu0 5
    %4614 = vperm.xlu0 %4613, %v4255
    %v4615 = vpop.permute.xlu0 %4614
    %4616 = vset.pattern.permute.xlu0 5
    %4617 = vperm.xlu0 %4616, %v4256
    %v4618 = vpop.permute.xlu0 %4617
    %4619 = vset.pattern.permute.xlu0 5
    %4620 = vperm.xlu0 %4619, %v4257
    %v4621 = vpop.permute.xlu0 %4620
    %4622 = vset.pattern.permute.xlu0 5
    %4623 = vperm.xlu0 %4622, %v4258
    %v4624 = vpop.permute.xlu0 %4623
    %4625 = vset.pattern.permute.xlu0 5
    %4626 = vperm.xlu0 %4625, %v4259
    %v4627 = vpop.permute.xlu0 %4626
    %4628 = vset.pattern.permute.xlu0 5
    %4629 = vperm.xlu0 %4628, %v4260
    %v4630 = vpop.permute.xlu0 %4629
    %4631 = vset.pattern.permute.xlu0 5
    %4632 = vperm.xlu0 %4631, %v4261
    %v4633 = vpop.permute.xlu0 %4632
    %4634 = vset.pattern.permute.xlu0 5
    %4635 = vperm.xlu0 %4634, %v4262
    %v4636 = vpop.permute.xlu0 %4635
    %4637 = vset.pattern.permute.xlu0 5
    %4638 = vperm.xlu0 %4637, %v4263
    %v4639 = vpop.permute.xlu0 %4638
    %4640 = vset.pattern.permute.xlu0 5
    %4641 = vperm.xlu0 %4640, %v4264
    %v4642 = vpop.permute.xlu0 %4641
    %4643 = vset.pattern.permute.xlu0 5
    %4644 = vperm.xlu0 %4643, %v4265
    %v4645 = vpop.permute.xlu0 %4644
    %4646 = vset.pattern.permute.xlu0 5
    %4647 = vperm.xlu0 %4646, %v4266
    %v4648 = vpop.permute.xlu0 %4647
    %4649 = vset.pattern.permute.xlu0 5
    %4650 = vperm.xlu0 %4649, %v4267
    %v4651 = vpop.permute.xlu0 %4650
    %4652 = vset.pattern.permute.xlu0 5
    %4653 = vperm.xlu0 %4652, %v4268
    %v4654 = vpop.permute.xlu0 %4653
    %4655 = vset.pattern.permute.xlu0 5
    %4656 = vperm.xlu0 %4655, %v4269
    %v4657 = vpop.permute.xlu0 %4656
    %4658 = vset.pattern.permute.xlu0 5
    %4659 = vperm.xlu0 %4658, %v4270
    %v4660 = vpop.permute.xlu0 %4659
    %4661 = vset.pattern.permute.xlu0 5
    %4662 = vperm.xlu0 %4661, %v4271
    %v4663 = vpop.permute.xlu0 %4662
    %4664 = vset.pattern.permute.xlu0 5
    %4665 = vperm.xlu0 %4664, %v4272
    %v4666 = vpop.permute.xlu0 %4665
    %4667 = vset.pattern.permute.xlu0 5
    %4668 = vperm.xlu0 %4667, %v4273
    %v4669 = vpop.permute.xlu0 %4668
    %4670 = vset.pattern.permute.xlu0 5
    %4671 = vperm.xlu0 %4670, %v4274
    %v4672 = vpop.permute.xlu0 %4671
    %4673 = vset.pattern.permute.xlu0 5
    %4674 = vperm.xlu0 %4673, %v4275
    %v4675 = vpop.permute.xlu0 %4674
    %4676 = vset.pattern.permute.xlu0 5
    %4677 = vperm.xlu0 %4676, %v4276
    %v4678 = vpop.permute.xlu0 %4677
    %4679 = vset.pattern.permute.xlu0 5
    %4680 = vperm.xlu0 %4679, %v4277
    %v4681 = vpop.permute.xlu0 %4680
    %4682 = vset.pattern.permute.xlu0 5
    %4683 = vperm.xlu0 %4682, %v4278
    %v4684 = vpop.permute.xlu0 %4683
    %4685 = vset.pattern.permute.xlu0 5
    %4686 = vperm.xlu0 %4685, %v4279
    %v4687 = vpop.permute.xlu0 %4686
    %4688 = vset.pattern.permute.xlu0 5
    %4689 = vperm.xlu0 %4688, %v4280
    %v4690 = vpop.permute.xlu0 %4689
    %4691 = vset.pattern.permute.xlu0 5
    %4692 = vperm.xlu0 %4691, %v4281
    %v4693 = vpop.permute.xlu0 %4692
    %4694 = vset.pattern.permute.xlu0 5
    %4695 = vperm.xlu0 %4694, %v4282
    %v4696 = vpop.permute.xlu0 %4695
    %4697 = vset.pattern.permute.xlu0 5
    %4698 = vperm.xlu0 %4697, %v4283
    %v4699 = vpop.permute.xlu0 %4698
    %4700 = vset.pattern.permute.xlu0 5
    %4701 = vperm.xlu0 %4700, %v4284
    %v4702 = vpop.permute.xlu0 %4701
    %4703 = vset.pattern.permute.xlu0 5
    %4704 = vperm.xlu0 %4703, %v4285
    %v4705 = vpop.permute.xlu0 %4704
    %4706 = vset.pattern.permute.xlu0 5
    %4707 = vperm.xlu0 %4706, %v4286
    %v4708 = vpop.permute.xlu0 %4707
    %4709 = vset.pattern.permute.xlu0 5
    %4710 = vperm.xlu0 %4709, %v4287
    %v4711 = vpop.permute.xlu0 %4710
    %4712 = vset.pattern.permute.xlu0 5
    %4713 = vperm.xlu0 %4712, %v4288
    %v4714 = vpop.permute.xlu0 %4713
    %4715 = vset.pattern.permute.xlu0 5
    %4716 = vperm.xlu0 %4715, %v4289
    %v4717 = vpop.permute.xlu0 %4716
    %4718 = vset.pattern.permute.xlu0 5
    %4719 = vperm.xlu0 %4718, %v4290
    %v4720 = vpop.permute.xlu0 %4719
    %4721 = vset.pattern.permute.xlu0 5
    %4722 = vperm.xlu0 %4721, %v4291
    %v4723 = vpop.permute.xlu0 %4722
    %4724 = vset.pattern.permute.xlu0 5
    %4725 = vperm.xlu0 %4724, %v4292
    %v4726 = vpop.permute.xlu0 %4725
    %4727 = vset.pattern.permute.xlu0 5
    %4728 = vperm.xlu0 %4727, %v4293
    %v4729 = vpop.permute.xlu0 %4728
    %4730 = vset.pattern.permute.xlu0 5
    %4731 = vperm.xlu0 %4730, %v4294
    %v4732 = vpop.permute.xlu0 %4731
    %4733 = vset.pattern.permute.xlu0 5
    %4734 = vperm.xlu0 %4733, %v4295
    %v4735 = vpop.permute.xlu0 %4734
    %4736 = vset.pattern.permute.xlu0 5
    %4737 = vperm.xlu0 %4736, %v4296
    %v4738 = vpop.permute.xlu0 %4737
    %4739 = vset.pattern.permute.xlu0 5
    %4740 = vperm.xlu0 %4739, %v4297
    %v4741 = vpop.permute.xlu0 %4740
    %4742 = vset.pattern.permute.xlu0 5
    %4743 = vperm.xlu0 %4742, %v4298
    %v4744 = vpop.permute.xlu0 %4743
    %4745 = vset.pattern.permute.xlu0 5
    %4746 = vperm.xlu0 %4745, %v4299
    %v4747 = vpop.permute.xlu0 %4746
    %4748 = vset.pattern.permute.xlu0 5
    %4749 = vperm.xlu0 %4748, %v4300
    %v4750 = vpop.permute.xlu0 %4749
    %vm4751 = vcmp.eq.s32.totalorder %v4561, %v4302
    %vm4752 = vcmp.eq.s32.totalorder %v4564, %v4302
    %vm4753 = vcmp.eq.s32.totalorder %v4567, %v4302
    %vm4754 = vcmp.eq.s32.totalorder %v4570, %v4302
    %vm4755 = vcmp.eq.s32.totalorder %v4573, %v4302
    %vm4756 = vcmp.eq.s32.totalorder %v4576, %v4302
    %vm4757 = vcmp.eq.s32.totalorder %v4579, %v4302
    %vm4758 = vcmp.eq.s32.totalorder %v4582, %v4302
    %vm4759 = vcmp.eq.s32.totalorder %v4585, %v4302
    %vm4760 = vcmp.eq.s32.totalorder %v4588, %v4302
    %vm4761 = vcmp.eq.s32.totalorder %v4591, %v4302
    %vm4762 = vcmp.eq.s32.totalorder %v4594, %v4302
    %vm4763 = vcmp.eq.s32.totalorder %v4597, %v4302
    %vm4764 = vcmp.eq.s32.totalorder %v4600, %v4302
    %vm4765 = vcmp.eq.s32.totalorder %v4603, %v4302
    %vm4766 = vcmp.eq.s32.totalorder %v4606, %v4302
    %vm4767 = vcmp.eq.s32.totalorder %v4609, %v4302
    %vm4768 = vcmp.eq.s32.totalorder %v4612, %v4302
    %vm4769 = vcmp.eq.s32.totalorder %v4615, %v4302
    %vm4770 = vcmp.eq.s32.totalorder %v4618, %v4302
    %vm4771 = vcmp.eq.s32.totalorder %v4621, %v4302
    %vm4772 = vcmp.eq.s32.totalorder %v4624, %v4302
    %vm4773 = vcmp.eq.s32.totalorder %v4627, %v4302
    %vm4774 = vcmp.eq.s32.totalorder %v4630, %v4302
    %vm4775 = vcmp.eq.s32.totalorder %v4633, %v4302
    %vm4776 = vcmp.eq.s32.totalorder %v4636, %v4302
    %vm4777 = vcmp.eq.s32.totalorder %v4639, %v4302
    %vm4778 = vcmp.eq.s32.totalorder %v4642, %v4302
    %vm4779 = vcmp.eq.s32.totalorder %v4645, %v4302
    %vm4780 = vcmp.eq.s32.totalorder %v4648, %v4302
    %vm4781 = vcmp.eq.s32.totalorder %v4651, %v4302
    %vm4782 = vcmp.eq.s32.totalorder %v4654, %v4302
    %vm4783 = vcmp.eq.s32.totalorder %v4657, %v4302
    %vm4784 = vcmp.eq.s32.totalorder %v4660, %v4302
    %vm4785 = vcmp.eq.s32.totalorder %v4663, %v4302
    %vm4786 = vcmp.eq.s32.totalorder %v4666, %v4302
    %vm4787 = vcmp.eq.s32.totalorder %v4669, %v4302
    %vm4788 = vcmp.eq.s32.totalorder %v4672, %v4302
    %vm4789 = vcmp.eq.s32.totalorder %v4675, %v4302
    %vm4790 = vcmp.eq.s32.totalorder %v4678, %v4302
    %vm4791 = vcmp.eq.s32.totalorder %v4681, %v4302
    %vm4792 = vcmp.eq.s32.totalorder %v4684, %v4302
    %vm4793 = vcmp.eq.s32.totalorder %v4687, %v4302
    %vm4794 = vcmp.eq.s32.totalorder %v4690, %v4302
    %vm4795 = vcmp.eq.s32.totalorder %v4693, %v4302
    %vm4796 = vcmp.eq.s32.totalorder %v4696, %v4302
    %vm4797 = vcmp.eq.s32.totalorder %v4699, %v4302
    %vm4798 = vcmp.eq.s32.totalorder %v4702, %v4302
    %vm4799 = vcmp.eq.s32.totalorder %v4705, %v4302
    %vm4800 = vcmp.eq.s32.totalorder %v4708, %v4302
    %vm4801 = vcmp.eq.s32.totalorder %v4711, %v4302
    %vm4802 = vcmp.eq.s32.totalorder %v4714, %v4302
    %vm4803 = vcmp.eq.s32.totalorder %v4717, %v4302
    %vm4804 = vcmp.eq.s32.totalorder %v4720, %v4302
    %vm4805 = vcmp.eq.s32.totalorder %v4723, %v4302
    %vm4806 = vcmp.eq.s32.totalorder %v4726, %v4302
    %vm4807 = vcmp.eq.s32.totalorder %v4729, %v4302
    %vm4808 = vcmp.eq.s32.totalorder %v4732, %v4302
    %vm4809 = vcmp.eq.s32.totalorder %v4735, %v4302
    %vm4810 = vcmp.eq.s32.totalorder %v4738, %v4302
    %vm4811 = vcmp.eq.s32.totalorder %v4741, %v4302
    %vm4812 = vcmp.eq.s32.totalorder %v4744, %v4302
    %vm4813 = vcmp.eq.s32.totalorder %v4747, %v4302
    %vm4814 = vcmp.eq.s32.totalorder %v4750, %v4302
    %vm4815 = vmor %vm4495, %vm4751
    %vm4816 = vmor %vm4496, %vm4752
    %vm4817 = vmor %vm4497, %vm4753
    %vm4818 = vmor %vm4498, %vm4754
    %vm4819 = vmor %vm4499, %vm4755
    %vm4820 = vmor %vm4500, %vm4756
    %vm4821 = vmor %vm4501, %vm4757
    %vm4822 = vmor %vm4502, %vm4758
    %vm4823 = vmor %vm4503, %vm4759
    %vm4824 = vmor %vm4504, %vm4760
    %vm4825 = vmor %vm4505, %vm4761
    %vm4826 = vmor %vm4506, %vm4762
    %vm4827 = vmor %vm4507, %vm4763
    %vm4828 = vmor %vm4508, %vm4764
    %vm4829 = vmor %vm4509, %vm4765
    %vm4830 = vmor %vm4510, %vm4766
    %vm4831 = vmor %vm4511, %vm4767
    %vm4832 = vmor %vm4512, %vm4768
    %vm4833 = vmor %vm4513, %vm4769
    %vm4834 = vmor %vm4514, %vm4770
    %vm4835 = vmor %vm4515, %vm4771
    %vm4836 = vmor %vm4516, %vm4772
    %vm4837 = vmor %vm4517, %vm4773
    %vm4838 = vmor %vm4518, %vm4774
    %vm4839 = vmor %vm4519, %vm4775
    %vm4840 = vmor %vm4520, %vm4776
    %vm4841 = vmor %vm4521, %vm4777
    %vm4842 = vmor %vm4522, %vm4778
    %vm4843 = vmor %vm4523, %vm4779
    %vm4844 = vmor %vm4524, %vm4780
    %vm4845 = vmor %vm4525, %vm4781
    %vm4846 = vmor %vm4526, %vm4782
    %vm4847 = vmor %vm4527, %vm4783
    %vm4848 = vmor %vm4528, %vm4784
    %vm4849 = vmor %vm4529, %vm4785
    %vm4850 = vmor %vm4530, %vm4786
    %vm4851 = vmor %vm4531, %vm4787
    %vm4852 = vmor %vm4532, %vm4788
    %vm4853 = vmor %vm4533, %vm4789
    %vm4854 = vmor %vm4534, %vm4790
    %vm4855 = vmor %vm4535, %vm4791
    %vm4856 = vmor %vm4536, %vm4792
    %vm4857 = vmor %vm4537, %vm4793
    %vm4858 = vmor %vm4538, %vm4794
    %vm4859 = vmor %vm4539, %vm4795
    %vm4860 = vmor %vm4540, %vm4796
    %vm4861 = vmor %vm4541, %vm4797
    %vm4862 = vmor %vm4542, %vm4798
    %vm4863 = vmor %vm4543, %vm4799
    %vm4864 = vmor %vm4544, %vm4800
    %vm4865 = vmor %vm4545, %vm4801
    %vm4866 = vmor %vm4546, %vm4802
    %vm4867 = vmor %vm4547, %vm4803
    %vm4868 = vmor %vm4548, %vm4804
    %vm4869 = vmor %vm4549, %vm4805
    %vm4870 = vmor %vm4550, %vm4806
    %vm4871 = vmor %vm4551, %vm4807
    %vm4872 = vmor %vm4552, %vm4808
    %vm4873 = vmor %vm4553, %vm4809
    %vm4874 = vmor %vm4554, %vm4810
    %vm4875 = vmor %vm4555, %vm4811
    %vm4876 = vmor %vm4556, %vm4812
    %vm4877 = vmor %vm4557, %vm4813
    %vm4878 = vmor %vm4558, %vm4814
    %v4879 = vsel %vm4815, 1, 0
    %v4880 = vsel %vm4816, 1, 0
    %v4881 = vsel %vm4817, 1, 0
    %v4882 = vsel %vm4818, 1, 0
    %v4883 = vsel %vm4819, 1, 0
    %v4884 = vsel %vm4820, 1, 0
    %v4885 = vsel %vm4821, 1, 0
    %v4886 = vsel %vm4822, 1, 0
    %v4887 = vsel %vm4823, 1, 0
    %v4888 = vsel %vm4824, 1, 0
    %v4889 = vsel %vm4825, 1, 0
    %v4890 = vsel %vm4826, 1, 0
    %v4891 = vsel %vm4827, 1, 0
    %v4892 = vsel %vm4828, 1, 0
    %v4893 = vsel %vm4829, 1, 0
    %v4894 = vsel %vm4830, 1, 0
    %v4895 = vsel %vm4831, 1, 0
    %v4896 = vsel %vm4832, 1, 0
    %v4897 = vsel %vm4833, 1, 0
    %v4898 = vsel %vm4834, 1, 0
    %v4899 = vsel %vm4835, 1, 0
    %v4900 = vsel %vm4836, 1, 0
    %v4901 = vsel %vm4837, 1, 0
    %v4902 = vsel %vm4838, 1, 0
    %v4903 = vsel %vm4839, 1, 0
    %v4904 = vsel %vm4840, 1, 0
    %v4905 = vsel %vm4841, 1, 0
    %v4906 = vsel %vm4842, 1, 0
    %v4907 = vsel %vm4843, 1, 0
    %v4908 = vsel %vm4844, 1, 0
    %v4909 = vsel %vm4845, 1, 0
    %v4910 = vsel %vm4846, 1, 0
    %v4911 = vsel %vm4847, 1, 0
    %v4912 = vsel %vm4848, 1, 0
    %v4913 = vsel %vm4849, 1, 0
    %v4914 = vsel %vm4850, 1, 0
    %v4915 = vsel %vm4851, 1, 0
    %v4916 = vsel %vm4852, 1, 0
    %v4917 = vsel %vm4853, 1, 0
    %v4918 = vsel %vm4854, 1, 0
    %v4919 = vsel %vm4855, 1, 0
    %v4920 = vsel %vm4856, 1, 0
    %v4921 = vsel %vm4857, 1, 0
    %v4922 = vsel %vm4858, 1, 0
    %v4923 = vsel %vm4859, 1, 0
    %v4924 = vsel %vm4860, 1, 0
    %v4925 = vsel %vm4861, 1, 0
    %v4926 = vsel %vm4862, 1, 0
    %v4927 = vsel %vm4863, 1, 0
    %v4928 = vsel %vm4864, 1, 0
    %v4929 = vsel %vm4865, 1, 0
    %v4930 = vsel %vm4866, 1, 0
    %v4931 = vsel %vm4867, 1, 0
    %v4932 = vsel %vm4868, 1, 0
    %v4933 = vsel %vm4869, 1, 0
    %v4934 = vsel %vm4870, 1, 0
    %v4935 = vsel %vm4871, 1, 0
    %v4936 = vsel %vm4872, 1, 0
    %v4937 = vsel %vm4873, 1, 0
    %v4938 = vsel %vm4874, 1, 0
    %v4939 = vsel %vm4875, 1, 0
    %v4940 = vsel %vm4876, 1, 0
    %v4941 = vsel %vm4877, 1, 0
    %v4942 = vsel %vm4878, 1, 0
    %v4943 = vcvt.s32.f32 %v4879
    %v4944 = vcvt.s32.f32 %v4880
    %v4945 = vcvt.s32.f32 %v4881
    %v4946 = vcvt.s32.f32 %v4882
    %v4947 = vcvt.s32.f32 %v4883
    %v4948 = vcvt.s32.f32 %v4884
    %v4949 = vcvt.s32.f32 %v4885
    %v4950 = vcvt.s32.f32 %v4886
    %v4951 = vcvt.s32.f32 %v4887
    %v4952 = vcvt.s32.f32 %v4888
    %v4953 = vcvt.s32.f32 %v4889
    %v4954 = vcvt.s32.f32 %v4890
    %v4955 = vcvt.s32.f32 %v4891
    %v4956 = vcvt.s32.f32 %v4892
    %v4957 = vcvt.s32.f32 %v4893
    %v4958 = vcvt.s32.f32 %v4894
    %v4959 = vcvt.s32.f32 %v4895
    %v4960 = vcvt.s32.f32 %v4896
    %v4961 = vcvt.s32.f32 %v4897
    %v4962 = vcvt.s32.f32 %v4898
    %v4963 = vcvt.s32.f32 %v4899
    %v4964 = vcvt.s32.f32 %v4900
    %v4965 = vcvt.s32.f32 %v4901
    %v4966 = vcvt.s32.f32 %v4902
    %v4967 = vcvt.s32.f32 %v4903
    %v4968 = vcvt.s32.f32 %v4904
    %v4969 = vcvt.s32.f32 %v4905
    %v4970 = vcvt.s32.f32 %v4906
    %v4971 = vcvt.s32.f32 %v4907
    %v4972 = vcvt.s32.f32 %v4908
    %v4973 = vcvt.s32.f32 %v4909
    %v4974 = vcvt.s32.f32 %v4910
    %v4975 = vcvt.s32.f32 %v4911
    %v4976 = vcvt.s32.f32 %v4912
    %v4977 = vcvt.s32.f32 %v4913
    %v4978 = vcvt.s32.f32 %v4914
    %v4979 = vcvt.s32.f32 %v4915
    %v4980 = vcvt.s32.f32 %v4916
    %v4981 = vcvt.s32.f32 %v4917
    %v4982 = vcvt.s32.f32 %v4918
    %v4983 = vcvt.s32.f32 %v4919
    %v4984 = vcvt.s32.f32 %v4920
    %v4985 = vcvt.s32.f32 %v4921
    %v4986 = vcvt.s32.f32 %v4922
    %v4987 = vcvt.s32.f32 %v4923
    %v4988 = vcvt.s32.f32 %v4924
    %v4989 = vcvt.s32.f32 %v4925
    %v4990 = vcvt.s32.f32 %v4926
    %v4991 = vcvt.s32.f32 %v4927
    %v4992 = vcvt.s32.f32 %v4928
    %v4993 = vcvt.s32.f32 %v4929
    %v4994 = vcvt.s32.f32 %v4930
    %v4995 = vcvt.s32.f32 %v4931
    %v4996 = vcvt.s32.f32 %v4932
    %v4997 = vcvt.s32.f32 %v4933
    %v4998 = vcvt.s32.f32 %v4934
    %v4999 = vcvt.s32.f32 %v4935
    %v5000 = vcvt.s32.f32 %v4936
    %v5001 = vcvt.s32.f32 %v4937
    %v5002 = vcvt.s32.f32 %v4938
    %v5003 = vcvt.s32.f32 %v4939
    %v5004 = vcvt.s32.f32 %v4940
    %v5005 = vcvt.s32.f32 %v4941
    %v5006 = vcvt.s32.f32 %v4942
    %v5007 = vld [vmem:[%s1 + $0x10] sm:$0xff]
    %v5008 = vld [vmem:[%s1 + $0x18] sm:$0xff]
    %v5009 = vld [vmem:[%s1 + $0x20] sm:$0xff]
    %v5010 = vld [vmem:[%s1 + $0x28] sm:$0xff]
    %vm5011 = vcmask 261120
    %v5013 = vsel %vm5011, %v4943, 0
    %v5016 = vsel %vm5011, %v4944, 0
    %v5019 = vsel %vm5011, %v4945, 0
    %v5022 = vsel %vm5011, %v4946, 0
    %v5025 = vsel %vm5011, %v4947, 0
    %v5028 = vsel %vm5011, %v4948, 0
    %v5031 = vsel %vm5011, %v4949, 0
    %v5034 = vsel %vm5011, %v4950, 0
    %v5037 = vsel %vm5011, %v4951, 0
    %v5040 = vsel %vm5011, %v4952, 0
    %v5043 = vsel %vm5011, %v4953, 0
    %v5046 = vsel %vm5011, %v4954, 0
    %v5049 = vsel %vm5011, %v4955, 0
    %v5052 = vsel %vm5011, %v4956, 0
    %v5055 = vsel %vm5011, %v4957, 0
    %v5058 = vsel %vm5011, %v4958, 0
    %v5061 = vsel %vm5011, %v4959, 0
    %v5064 = vsel %vm5011, %v4960, 0
    %v5067 = vsel %vm5011, %v4961, 0
    %v5070 = vsel %vm5011, %v4962, 0
    %v5073 = vsel %vm5011, %v4963, 0
    %v5076 = vsel %vm5011, %v4964, 0
    %v5079 = vsel %vm5011, %v4965, 0
    %v5082 = vsel %vm5011, %v4966, 0
    %v5085 = vsel %vm5011, %v4967, 0
    %v5088 = vsel %vm5011, %v4968, 0
    %v5091 = vsel %vm5011, %v4969, 0
    %v5094 = vsel %vm5011, %v4970, 0
    %v5097 = vsel %vm5011, %v4971, 0
    %v5100 = vsel %vm5011, %v4972, 0
    %v5103 = vsel %vm5011, %v4973, 0
    %v5106 = vsel %vm5011, %v4974, 0
    %v5109 = vsel %vm5011, %v4975, 0
    %v5112 = vsel %vm5011, %v4976, 0
    %v5115 = vsel %vm5011, %v4977, 0
    %v5118 = vsel %vm5011, %v4978, 0
    %v5121 = vsel %vm5011, %v4979, 0
    %v5124 = vsel %vm5011, %v4980, 0
    %v5127 = vsel %vm5011, %v4981, 0
    %v5130 = vsel %vm5011, %v4982, 0
    %v5133 = vsel %vm5011, %v4983, 0
    %v5136 = vsel %vm5011, %v4984, 0
    %v5139 = vsel %vm5011, %v4985, 0
    %v5142 = vsel %vm5011, %v4986, 0
    %v5145 = vsel %vm5011, %v4987, 0
    %v5148 = vsel %vm5011, %v4988, 0
    %v5151 = vsel %vm5011, %v4989, 0
    %v5154 = vsel %vm5011, %v4990, 0
    %v5157 = vsel %vm5011, %v4991, 0
    %v5160 = vsel %vm5011, %v4992, 0
    %v5163 = vsel %vm5011, %v4993, 0
    %v5166 = vsel %vm5011, %v4994, 0
    %v5169 = vsel %vm5011, %v4995, 0
    %v5172 = vsel %vm5011, %v4996, 0
    %v5175 = vsel %vm5011, %v4997, 0
    %v5178 = vsel %vm5011, %v4998, 0
    %v5181 = vsel %vm5011, %v4999, 0
    %v5184 = vsel %vm5011, %v5000, 0
    %v5187 = vsel %vm5011, %v5001, 0
    %v5190 = vsel %vm5011, %v5002, 0
    %v5193 = vsel %vm5011, %v5003, 0
    %v5196 = vsel %vm5011, %v5004, 0
    %v5199 = vsel %vm5011, %v5005, 0
    %v5202 = vsel %vm5011, %v5006, 0
    %5204 = vmatpush.msra.mxu0 0.0
    %5205 = vmatpush.msra.mxu0 0.0
    %5206 = vmatpush.msra.mxu0 0.0
    %5207 = vmatpush.msra.mxu0 0.0
    %5208 = vmatpush.msra.mxu0 0.0
    %5209 = vmatpush.msra.mxu0 0.0
    %5210 = vmatpush.msra.mxu0 0.0
    %5211 = vmatpush.msra.mxu0 0.0
    %5212 = vmatpush.msra.mxu0 0.0
    %5213 = vmatpush.msra.mxu0 0.0
    %5214 = vmatpush.msra.mxu0 0.0
    %5215 = vmatpush.msra.mxu0 0.0
    %v5216 = vand.u32 %v5010, 4294901760
    %5217 = vmatpush.msra.mxu0 %v5216
    %v5218 = vand.u32 %v5009, 4294901760
    %5219 = vmatpush.msra.mxu0 %v5218
    %v5220 = vand.u32 %v5008, 4294901760
    %5221 = vmatpush.msra.mxu0 %v5220
    %v5222 = vand.u32 %v5007, 4294901760
    %5223 = vmatpush.msra.mxu0 %v5222
    %v5224 = vand.u32 %v5013, 4294901760
    %v5225 = vsub.f32 %v5013, %v5224
    %v5226 = vand.u32 %v5225, 4294901760
    %v5227 = vsub.f32 %v5225, %v5226
    %v5228 = vand.u32 %v5227, 4294901760
    %5229 = vmatmul.f32.gmra.mxu0 %v5228
    %v5230 = vpop.f32.mrf.mxu0
    %v5231 = vadd.f32 0.0, %v5230
    %v5232 = vand.u32 %v5016, 4294901760
    %v5233 = vsub.f32 %v5016, %v5232
    %v5234 = vand.u32 %v5233, 4294901760
    %v5235 = vsub.f32 %v5233, %v5234
    %v5236 = vand.u32 %v5235, 4294901760
    %5237 = vmatmul.f32.gmra.mxu0 %v5236
    %v5238 = vpop.f32.mrf.mxu0
    %v5239 = vadd.f32 0.0, %v5238
    %v5240 = vand.u32 %v5019, 4294901760
    %v5241 = vsub.f32 %v5019, %v5240
    %v5242 = vand.u32 %v5241, 4294901760
    %v5243 = vsub.f32 %v5241, %v5242
    %v5244 = vand.u32 %v5243, 4294901760
    %5245 = vmatmul.f32.gmra.mxu0 %v5244
    %v5246 = vpop.f32.mrf.mxu0
    %v5247 = vadd.f32 0.0, %v5246
    %v5248 = vand.u32 %v5022, 4294901760
    %v5249 = vsub.f32 %v5022, %v5248
    %v5250 = vand.u32 %v5249, 4294901760
    %v5251 = vsub.f32 %v5249, %v5250
    %v5252 = vand.u32 %v5251, 4294901760
    %5253 = vmatmul.f32.gmra.mxu0 %v5252
    %v5254 = vpop.f32.mrf.mxu0
    %v5255 = vadd.f32 0.0, %v5254
    %v5256 = vand.u32 %v5025, 4294901760
    %v5257 = vsub.f32 %v5025, %v5256
    %v5258 = vand.u32 %v5257, 4294901760
    %v5259 = vsub.f32 %v5257, %v5258
    %v5260 = vand.u32 %v5259, 4294901760
    %5261 = vmatmul.f32.gmra.mxu0 %v5260
    %v5262 = vpop.f32.mrf.mxu0
    %v5263 = vadd.f32 0.0, %v5262
    %v5264 = vand.u32 %v5028, 4294901760
    %v5265 = vsub.f32 %v5028, %v5264
    %v5266 = vand.u32 %v5265, 4294901760
    %v5267 = vsub.f32 %v5265, %v5266
    %v5268 = vand.u32 %v5267, 4294901760
    %5269 = vmatmul.f32.gmra.mxu0 %v5268
    %v5270 = vpop.f32.mrf.mxu0
    %v5271 = vadd.f32 0.0, %v5270
    %v5272 = vand.u32 %v5031, 4294901760
    %v5273 = vsub.f32 %v5031, %v5272
    %v5274 = vand.u32 %v5273, 4294901760
    %v5275 = vsub.f32 %v5273, %v5274
    %v5276 = vand.u32 %v5275, 4294901760
    %5277 = vmatmul.f32.gmra.mxu0 %v5276
    %v5278 = vpop.f32.mrf.mxu0
    %v5279 = vadd.f32 0.0, %v5278
    %v5280 = vand.u32 %v5034, 4294901760
    %v5281 = vsub.f32 %v5034, %v5280
    %v5282 = vand.u32 %v5281, 4294901760
    %v5283 = vsub.f32 %v5281, %v5282
    %v5284 = vand.u32 %v5283, 4294901760
    %5285 = vmatmul.f32.gmra.mxu0 %v5284
    %v5286 = vpop.f32.mrf.mxu0
    %v5287 = vadd.f32 0.0, %v5286
    %v5288 = vand.u32 %v5037, 4294901760
    %v5289 = vsub.f32 %v5037, %v5288
    %v5290 = vand.u32 %v5289, 4294901760
    %v5291 = vsub.f32 %v5289, %v5290
    %v5292 = vand.u32 %v5291, 4294901760
    %5293 = vmatmul.f32.gmra.mxu0 %v5292
    %v5294 = vpop.f32.mrf.mxu0
    %v5295 = vadd.f32 0.0, %v5294
    %v5296 = vand.u32 %v5040, 4294901760
    %v5297 = vsub.f32 %v5040, %v5296
    %v5298 = vand.u32 %v5297, 4294901760
    %v5299 = vsub.f32 %v5297, %v5298
    %v5300 = vand.u32 %v5299, 4294901760
    %5301 = vmatmul.f32.gmra.mxu0 %v5300
    %v5302 = vpop.f32.mrf.mxu0
    %v5303 = vadd.f32 0.0, %v5302
    %v5304 = vand.u32 %v5043, 4294901760
    %v5305 = vsub.f32 %v5043, %v5304
    %v5306 = vand.u32 %v5305, 4294901760
    %v5307 = vsub.f32 %v5305, %v5306
    %v5308 = vand.u32 %v5307, 4294901760
    %5309 = vmatmul.f32.gmra.mxu0 %v5308
    %v5310 = vpop.f32.mrf.mxu0
    %v5311 = vadd.f32 0.0, %v5310
    %v5312 = vand.u32 %v5046, 4294901760
    %v5313 = vsub.f32 %v5046, %v5312
    %v5314 = vand.u32 %v5313, 4294901760
    %v5315 = vsub.f32 %v5313, %v5314
    %v5316 = vand.u32 %v5315, 4294901760
    %5317 = vmatmul.f32.gmra.mxu0 %v5316
    %v5318 = vpop.f32.mrf.mxu0
    %v5319 = vadd.f32 0.0, %v5318
    %v5320 = vand.u32 %v5049, 4294901760
    %v5321 = vsub.f32 %v5049, %v5320
    %v5322 = vand.u32 %v5321, 4294901760
    %v5323 = vsub.f32 %v5321, %v5322
    %v5324 = vand.u32 %v5323, 4294901760
    %5325 = vmatmul.f32.gmra.mxu0 %v5324
    %v5326 = vpop.f32.mrf.mxu0
    %v5327 = vadd.f32 0.0, %v5326
    %v5328 = vand.u32 %v5052, 4294901760
    %v5329 = vsub.f32 %v5052, %v5328
    %v5330 = vand.u32 %v5329, 4294901760
    %v5331 = vsub.f32 %v5329, %v5330
    %v5332 = vand.u32 %v5331, 4294901760
    %5333 = vmatmul.f32.gmra.mxu0 %v5332
    %v5334 = vpop.f32.mrf.mxu0
    %v5335 = vadd.f32 0.0, %v5334
    %v5336 = vand.u32 %v5055, 4294901760
    %v5337 = vsub.f32 %v5055, %v5336
    %v5338 = vand.u32 %v5337, 4294901760
    %v5339 = vsub.f32 %v5337, %v5338
    %v5340 = vand.u32 %v5339, 4294901760
    %5341 = vmatmul.f32.gmra.mxu0 %v5340
    %v5342 = vpop.f32.mrf.mxu0
    %v5343 = vadd.f32 0.0, %v5342
    %v5344 = vand.u32 %v5058, 4294901760
    %v5345 = vsub.f32 %v5058, %v5344
    %v5346 = vand.u32 %v5345, 4294901760
    %v5347 = vsub.f32 %v5345, %v5346
    %v5348 = vand.u32 %v5347, 4294901760
    %5349 = vmatmul.f32.gmra.mxu0 %v5348
    %v5350 = vpop.f32.mrf.mxu0
    %v5351 = vadd.f32 0.0, %v5350
    %v5352 = vand.u32 %v5061, 4294901760
    %v5353 = vsub.f32 %v5061, %v5352
    %v5354 = vand.u32 %v5353, 4294901760
    %v5355 = vsub.f32 %v5353, %v5354
    %v5356 = vand.u32 %v5355, 4294901760
    %5357 = vmatmul.f32.gmra.mxu0 %v5356
    %v5358 = vpop.f32.mrf.mxu0
    %v5359 = vadd.f32 0.0, %v5358
    %v5360 = vand.u32 %v5064, 4294901760
    %v5361 = vsub.f32 %v5064, %v5360
    %v5362 = vand.u32 %v5361, 4294901760
    %v5363 = vsub.f32 %v5361, %v5362
    %v5364 = vand.u32 %v5363, 4294901760
    %5365 = vmatmul.f32.gmra.mxu0 %v5364
    %v5366 = vpop.f32.mrf.mxu0
    %v5367 = vadd.f32 0.0, %v5366
    %v5368 = vand.u32 %v5067, 4294901760
    %v5369 = vsub.f32 %v5067, %v5368
    %v5370 = vand.u32 %v5369, 4294901760
    %v5371 = vsub.f32 %v5369, %v5370
    %v5372 = vand.u32 %v5371, 4294901760
    %5373 = vmatmul.f32.gmra.mxu0 %v5372
    %v5374 = vpop.f32.mrf.mxu0
    %v5375 = vadd.f32 0.0, %v5374
    %v5376 = vand.u32 %v5070, 4294901760
    %v5377 = vsub.f32 %v5070, %v5376
    %v5378 = vand.u32 %v5377, 4294901760
    %v5379 = vsub.f32 %v5377, %v5378
    %v5380 = vand.u32 %v5379, 4294901760
    %5381 = vmatmul.f32.gmra.mxu0 %v5380
    %v5382 = vpop.f32.mrf.mxu0
    %v5383 = vadd.f32 0.0, %v5382
    %v5384 = vand.u32 %v5073, 4294901760
    %v5385 = vsub.f32 %v5073, %v5384
    %v5386 = vand.u32 %v5385, 4294901760
    %v5387 = vsub.f32 %v5385, %v5386
    %v5388 = vand.u32 %v5387, 4294901760
    %5389 = vmatmul.f32.gmra.mxu0 %v5388
    %v5390 = vpop.f32.mrf.mxu0
    %v5391 = vadd.f32 0.0, %v5390
    %v5392 = vand.u32 %v5076, 4294901760
    %v5393 = vsub.f32 %v5076, %v5392
    %v5394 = vand.u32 %v5393, 4294901760
    %v5395 = vsub.f32 %v5393, %v5394
    %v5396 = vand.u32 %v5395, 4294901760
    %5397 = vmatmul.f32.gmra.mxu0 %v5396
    %v5398 = vpop.f32.mrf.mxu0
    %v5399 = vadd.f32 0.0, %v5398
    %v5400 = vand.u32 %v5079, 4294901760
    %v5401 = vsub.f32 %v5079, %v5400
    %v5402 = vand.u32 %v5401, 4294901760
    %v5403 = vsub.f32 %v5401, %v5402
    %v5404 = vand.u32 %v5403, 4294901760
    %5405 = vmatmul.f32.gmra.mxu0 %v5404
    %v5406 = vpop.f32.mrf.mxu0
    %v5407 = vadd.f32 0.0, %v5406
    %v5408 = vand.u32 %v5082, 4294901760
    %v5409 = vsub.f32 %v5082, %v5408
    %v5410 = vand.u32 %v5409, 4294901760
    %v5411 = vsub.f32 %v5409, %v5410
    %v5412 = vand.u32 %v5411, 4294901760
    %5413 = vmatmul.f32.gmra.mxu0 %v5412
    %v5414 = vpop.f32.mrf.mxu0
    %v5415 = vadd.f32 0.0, %v5414
    %v5416 = vand.u32 %v5085, 4294901760
    %v5417 = vsub.f32 %v5085, %v5416
    %v5418 = vand.u32 %v5417, 4294901760
    %v5419 = vsub.f32 %v5417, %v5418
    %v5420 = vand.u32 %v5419, 4294901760
    %5421 = vmatmul.f32.gmra.mxu0 %v5420
    %v5422 = vpop.f32.mrf.mxu0
    %v5423 = vadd.f32 0.0, %v5422
    %v5424 = vand.u32 %v5088, 4294901760
    %v5425 = vsub.f32 %v5088, %v5424
    %v5426 = vand.u32 %v5425, 4294901760
    %v5427 = vsub.f32 %v5425, %v5426
    %v5428 = vand.u32 %v5427, 4294901760
    %5429 = vmatmul.f32.gmra.mxu0 %v5428
    %v5430 = vpop.f32.mrf.mxu0
    %v5431 = vadd.f32 0.0, %v5430
    %v5432 = vand.u32 %v5091, 4294901760
    %v5433 = vsub.f32 %v5091, %v5432
    %v5434 = vand.u32 %v5433, 4294901760
    %v5435 = vsub.f32 %v5433, %v5434
    %v5436 = vand.u32 %v5435, 4294901760
    %5437 = vmatmul.f32.gmra.mxu0 %v5436
    %v5438 = vpop.f32.mrf.mxu0
    %v5439 = vadd.f32 0.0, %v5438
    %v5440 = vand.u32 %v5094, 4294901760
    %v5441 = vsub.f32 %v5094, %v5440
    %v5442 = vand.u32 %v5441, 4294901760
    %v5443 = vsub.f32 %v5441, %v5442
    %v5444 = vand.u32 %v5443, 4294901760
    %5445 = vmatmul.f32.gmra.mxu0 %v5444
    %v5446 = vpop.f32.mrf.mxu0
    %v5447 = vadd.f32 0.0, %v5446
    %v5448 = vand.u32 %v5097, 4294901760
    %v5449 = vsub.f32 %v5097, %v5448
    %v5450 = vand.u32 %v5449, 4294901760
    %v5451 = vsub.f32 %v5449, %v5450
    %v5452 = vand.u32 %v5451, 4294901760
    %5453 = vmatmul.f32.gmra.mxu0 %v5452
    %v5454 = vpop.f32.mrf.mxu0
    %v5455 = vadd.f32 0.0, %v5454
    %v5456 = vand.u32 %v5100, 4294901760
    %v5457 = vsub.f32 %v5100, %v5456
    %v5458 = vand.u32 %v5457, 4294901760
    %v5459 = vsub.f32 %v5457, %v5458
    %v5460 = vand.u32 %v5459, 4294901760
    %5461 = vmatmul.f32.gmra.mxu0 %v5460
    %v5462 = vpop.f32.mrf.mxu0
    %v5463 = vadd.f32 0.0, %v5462
    %v5464 = vand.u32 %v5103, 4294901760
    %v5465 = vsub.f32 %v5103, %v5464
    %v5466 = vand.u32 %v5465, 4294901760
    %v5467 = vsub.f32 %v5465, %v5466
    %v5468 = vand.u32 %v5467, 4294901760
    %5469 = vmatmul.f32.gmra.mxu0 %v5468
    %v5470 = vpop.f32.mrf.mxu0
    %v5471 = vadd.f32 0.0, %v5470
    %v5472 = vand.u32 %v5106, 4294901760
    %v5473 = vsub.f32 %v5106, %v5472
    %v5474 = vand.u32 %v5473, 4294901760
    %v5475 = vsub.f32 %v5473, %v5474
    %v5476 = vand.u32 %v5475, 4294901760
    %5477 = vmatmul.f32.gmra.mxu0 %v5476
    %v5478 = vpop.f32.mrf.mxu0
    %v5479 = vadd.f32 0.0, %v5478
    %v5480 = vand.u32 %v5109, 4294901760
    %v5481 = vsub.f32 %v5109, %v5480
    %v5482 = vand.u32 %v5481, 4294901760
    %v5483 = vsub.f32 %v5481, %v5482
    %v5484 = vand.u32 %v5483, 4294901760
    %5485 = vmatmul.f32.gmra.mxu0 %v5484
    %v5486 = vpop.f32.mrf.mxu0
    %v5487 = vadd.f32 0.0, %v5486
    %v5488 = vand.u32 %v5112, 4294901760
    %v5489 = vsub.f32 %v5112, %v5488
    %v5490 = vand.u32 %v5489, 4294901760
    %v5491 = vsub.f32 %v5489, %v5490
    %v5492 = vand.u32 %v5491, 4294901760
    %5493 = vmatmul.f32.gmra.mxu0 %v5492
    %v5494 = vpop.f32.mrf.mxu0
    %v5495 = vadd.f32 0.0, %v5494
    %v5496 = vand.u32 %v5115, 4294901760
    %v5497 = vsub.f32 %v5115, %v5496
    %v5498 = vand.u32 %v5497, 4294901760
    %v5499 = vsub.f32 %v5497, %v5498
    %v5500 = vand.u32 %v5499, 4294901760
    %5501 = vmatmul.f32.gmra.mxu0 %v5500
    %v5502 = vpop.f32.mrf.mxu0
    %v5503 = vadd.f32 0.0, %v5502
    %v5504 = vand.u32 %v5118, 4294901760
    %v5505 = vsub.f32 %v5118, %v5504
    %v5506 = vand.u32 %v5505, 4294901760
    %v5507 = vsub.f32 %v5505, %v5506
    %v5508 = vand.u32 %v5507, 4294901760
    %5509 = vmatmul.f32.gmra.mxu0 %v5508
    %v5510 = vpop.f32.mrf.mxu0
    %v5511 = vadd.f32 0.0, %v5510
    %v5512 = vand.u32 %v5121, 4294901760
    %v5513 = vsub.f32 %v5121, %v5512
    %v5514 = vand.u32 %v5513, 4294901760
    %v5515 = vsub.f32 %v5513, %v5514
    %v5516 = vand.u32 %v5515, 4294901760
    %5517 = vmatmul.f32.gmra.mxu0 %v5516
    %v5518 = vpop.f32.mrf.mxu0
    %v5519 = vadd.f32 0.0, %v5518
    %v5520 = vand.u32 %v5124, 4294901760
    %v5521 = vsub.f32 %v5124, %v5520
    %v5522 = vand.u32 %v5521, 4294901760
    %v5523 = vsub.f32 %v5521, %v5522
    %v5524 = vand.u32 %v5523, 4294901760
    %5525 = vmatmul.f32.gmra.mxu0 %v5524
    %v5526 = vpop.f32.mrf.mxu0
    %v5527 = vadd.f32 0.0, %v5526
    %v5528 = vand.u32 %v5127, 4294901760
    %v5529 = vsub.f32 %v5127, %v5528
    %v5530 = vand.u32 %v5529, 4294901760
    %v5531 = vsub.f32 %v5529, %v5530
    %v5532 = vand.u32 %v5531, 4294901760
    %5533 = vmatmul.f32.gmra.mxu0 %v5532
    %v5534 = vpop.f32.mrf.mxu0
    %v5535 = vadd.f32 0.0, %v5534
    %v5536 = vand.u32 %v5130, 4294901760
    %v5537 = vsub.f32 %v5130, %v5536
    %v5538 = vand.u32 %v5537, 4294901760
    %v5539 = vsub.f32 %v5537, %v5538
    %v5540 = vand.u32 %v5539, 4294901760
    %5541 = vmatmul.f32.gmra.mxu0 %v5540
    %v5542 = vpop.f32.mrf.mxu0
    %v5543 = vadd.f32 0.0, %v5542
    %v5544 = vand.u32 %v5133, 4294901760
    %v5545 = vsub.f32 %v5133, %v5544
    %v5546 = vand.u32 %v5545, 4294901760
    %v5547 = vsub.f32 %v5545, %v5546
    %v5548 = vand.u32 %v5547, 4294901760
    %5549 = vmatmul.f32.gmra.mxu0 %v5548
    %v5550 = vpop.f32.mrf.mxu0
    %v5551 = vadd.f32 0.0, %v5550
    %v5552 = vand.u32 %v5136, 4294901760
    %v5553 = vsub.f32 %v5136, %v5552
    %v5554 = vand.u32 %v5553, 4294901760
    %v5555 = vsub.f32 %v5553, %v5554
    %v5556 = vand.u32 %v5555, 4294901760
    %5557 = vmatmul.f32.gmra.mxu0 %v5556
    %v5558 = vpop.f32.mrf.mxu0
    %v5559 = vadd.f32 0.0, %v5558
    %v5560 = vand.u32 %v5139, 4294901760
    %v5561 = vsub.f32 %v5139, %v5560
    %v5562 = vand.u32 %v5561, 4294901760
    %v5563 = vsub.f32 %v5561, %v5562
    %v5564 = vand.u32 %v5563, 4294901760
    %5565 = vmatmul.f32.gmra.mxu0 %v5564
    %v5566 = vpop.f32.mrf.mxu0
    %v5567 = vadd.f32 0.0, %v5566
    %v5568 = vand.u32 %v5142, 4294901760
    %v5569 = vsub.f32 %v5142, %v5568
    %v5570 = vand.u32 %v5569, 4294901760
    %v5571 = vsub.f32 %v5569, %v5570
    %v5572 = vand.u32 %v5571, 4294901760
    %5573 = vmatmul.f32.gmra.mxu0 %v5572
    %v5574 = vpop.f32.mrf.mxu0
    %v5575 = vadd.f32 0.0, %v5574
    %v5576 = vand.u32 %v5145, 4294901760
    %v5577 = vsub.f32 %v5145, %v5576
    %v5578 = vand.u32 %v5577, 4294901760
    %v5579 = vsub.f32 %v5577, %v5578
    %v5580 = vand.u32 %v5579, 4294901760
    %5581 = vmatmul.f32.gmra.mxu0 %v5580
    %v5582 = vpop.f32.mrf.mxu0
    %v5583 = vadd.f32 0.0, %v5582
    %v5584 = vand.u32 %v5148, 4294901760
    %v5585 = vsub.f32 %v5148, %v5584
    %v5586 = vand.u32 %v5585, 4294901760
    %v5587 = vsub.f32 %v5585, %v5586
    %v5588 = vand.u32 %v5587, 4294901760
    %5589 = vmatmul.f32.gmra.mxu0 %v5588
    %v5590 = vpop.f32.mrf.mxu0
    %v5591 = vadd.f32 0.0, %v5590
    %v5592 = vand.u32 %v5151, 4294901760
    %v5593 = vsub.f32 %v5151, %v5592
    %v5594 = vand.u32 %v5593, 4294901760
    %v5595 = vsub.f32 %v5593, %v5594
    %v5596 = vand.u32 %v5595, 4294901760
    %5597 = vmatmul.f32.gmra.mxu0 %v5596
    %v5598 = vpop.f32.mrf.mxu0
    %v5599 = vadd.f32 0.0, %v5598
    %v5600 = vand.u32 %v5154, 4294901760
    %v5601 = vsub.f32 %v5154, %v5600
    %v5602 = vand.u32 %v5601, 4294901760
    %v5603 = vsub.f32 %v5601, %v5602
    %v5604 = vand.u32 %v5603, 4294901760
    %5605 = vmatmul.f32.gmra.mxu0 %v5604
    %v5606 = vpop.f32.mrf.mxu0
    %v5607 = vadd.f32 0.0, %v5606
    %v5608 = vand.u32 %v5157, 4294901760
    %v5609 = vsub.f32 %v5157, %v5608
    %v5610 = vand.u32 %v5609, 4294901760
    %v5611 = vsub.f32 %v5609, %v5610
    %v5612 = vand.u32 %v5611, 4294901760
    %5613 = vmatmul.f32.gmra.mxu0 %v5612
    %v5614 = vpop.f32.mrf.mxu0
    %v5615 = vadd.f32 0.0, %v5614
    %v5616 = vand.u32 %v5160, 4294901760
    %v5617 = vsub.f32 %v5160, %v5616
    %v5618 = vand.u32 %v5617, 4294901760
    %v5619 = vsub.f32 %v5617, %v5618
    %v5620 = vand.u32 %v5619, 4294901760
    %5621 = vmatmul.f32.gmra.mxu0 %v5620
    %v5622 = vpop.f32.mrf.mxu0
    %v5623 = vadd.f32 0.0, %v5622
    %v5624 = vand.u32 %v5163, 4294901760
    %v5625 = vsub.f32 %v5163, %v5624
    %v5626 = vand.u32 %v5625, 4294901760
    %v5627 = vsub.f32 %v5625, %v5626
    %v5628 = vand.u32 %v5627, 4294901760
    %5629 = vmatmul.f32.gmra.mxu0 %v5628
    %v5630 = vpop.f32.mrf.mxu0
    %v5631 = vadd.f32 0.0, %v5630
    %v5632 = vand.u32 %v5166, 4294901760
    %v5633 = vsub.f32 %v5166, %v5632
    %v5634 = vand.u32 %v5633, 4294901760
    %v5635 = vsub.f32 %v5633, %v5634
    %v5636 = vand.u32 %v5635, 4294901760
    %5637 = vmatmul.f32.gmra.mxu0 %v5636
    %v5638 = vpop.f32.mrf.mxu0
    %v5639 = vadd.f32 0.0, %v5638
    %v5640 = vand.u32 %v5169, 4294901760
    %v5641 = vsub.f32 %v5169, %v5640
    %v5642 = vand.u32 %v5641, 4294901760
    %v5643 = vsub.f32 %v5641, %v5642
    %v5644 = vand.u32 %v5643, 4294901760
    %5645 = vmatmul.f32.gmra.mxu0 %v5644
    %v5646 = vpop.f32.mrf.mxu0
    %v5647 = vadd.f32 0.0, %v5646
    %v5648 = vand.u32 %v5172, 4294901760
    %v5649 = vsub.f32 %v5172, %v5648
    %v5650 = vand.u32 %v5649, 4294901760
    %v5651 = vsub.f32 %v5649, %v5650
    %v5652 = vand.u32 %v5651, 4294901760
    %5653 = vmatmul.f32.gmra.mxu0 %v5652
    %v5654 = vpop.f32.mrf.mxu0
    %v5655 = vadd.f32 0.0, %v5654
    %v5656 = vand.u32 %v5175, 4294901760
    %v5657 = vsub.f32 %v5175, %v5656
    %v5658 = vand.u32 %v5657, 4294901760
    %v5659 = vsub.f32 %v5657, %v5658
    %v5660 = vand.u32 %v5659, 4294901760
    %5661 = vmatmul.f32.gmra.mxu0 %v5660
    %v5662 = vpop.f32.mrf.mxu0
    %v5663 = vadd.f32 0.0, %v5662
    %v5664 = vand.u32 %v5178, 4294901760
    %v5665 = vsub.f32 %v5178, %v5664
    %v5666 = vand.u32 %v5665, 4294901760
    %v5667 = vsub.f32 %v5665, %v5666
    %v5668 = vand.u32 %v5667, 4294901760
    %5669 = vmatmul.f32.gmra.mxu0 %v5668
    %v5670 = vpop.f32.mrf.mxu0
    %v5671 = vadd.f32 0.0, %v5670
    %v5672 = vand.u32 %v5181, 4294901760
    %v5673 = vsub.f32 %v5181, %v5672
    %v5674 = vand.u32 %v5673, 4294901760
    %v5675 = vsub.f32 %v5673, %v5674
    %v5676 = vand.u32 %v5675, 4294901760
    %5677 = vmatmul.f32.gmra.mxu0 %v5676
    %v5678 = vpop.f32.mrf.mxu0
    %v5679 = vadd.f32 0.0, %v5678
    %v5680 = vand.u32 %v5184, 4294901760
    %v5681 = vsub.f32 %v5184, %v5680
    %v5682 = vand.u32 %v5681, 4294901760
    %v5683 = vsub.f32 %v5681, %v5682
    %v5684 = vand.u32 %v5683, 4294901760
    %5685 = vmatmul.f32.gmra.mxu0 %v5684
    %v5686 = vpop.f32.mrf.mxu0
    %v5687 = vadd.f32 0.0, %v5686
    %v5688 = vand.u32 %v5187, 4294901760
    %v5689 = vsub.f32 %v5187, %v5688
    %v5690 = vand.u32 %v5689, 4294901760
    %v5691 = vsub.f32 %v5689, %v5690
    %v5692 = vand.u32 %v5691, 4294901760
    %5693 = vmatmul.f32.gmra.mxu0 %v5692
    %v5694 = vpop.f32.mrf.mxu0
    %v5695 = vadd.f32 0.0, %v5694
    %v5696 = vand.u32 %v5190, 4294901760
    %v5697 = vsub.f32 %v5190, %v5696
    %v5698 = vand.u32 %v5697, 4294901760
    %v5699 = vsub.f32 %v5697, %v5698
    %v5700 = vand.u32 %v5699, 4294901760
    %5701 = vmatmul.f32.gmra.mxu0 %v5700
    %v5702 = vpop.f32.mrf.mxu0
    %v5703 = vadd.f32 0.0, %v5702
    %v5704 = vand.u32 %v5193, 4294901760
    %v5705 = vsub.f32 %v5193, %v5704
    %v5706 = vand.u32 %v5705, 4294901760
    %v5707 = vsub.f32 %v5705, %v5706
    %v5708 = vand.u32 %v5707, 4294901760
    %5709 = vmatmul.f32.gmra.mxu0 %v5708
    %v5710 = vpop.f32.mrf.mxu0
    %v5711 = vadd.f32 0.0, %v5710
    %v5712 = vand.u32 %v5196, 4294901760
    %v5713 = vsub.f32 %v5196, %v5712
    %v5714 = vand.u32 %v5713, 4294901760
    %v5715 = vsub.f32 %v5713, %v5714
    %v5716 = vand.u32 %v5715, 4294901760
    %5717 = vmatmul.f32.gmra.mxu0 %v5716
    %v5718 = vpop.f32.mrf.mxu0
    %v5719 = vadd.f32 0.0, %v5718
    %v5720 = vand.u32 %v5199, 4294901760
    %v5721 = vsub.f32 %v5199, %v5720
    %v5722 = vand.u32 %v5721, 4294901760
    %v5723 = vsub.f32 %v5721, %v5722
    %v5724 = vand.u32 %v5723, 4294901760
    %5725 = vmatmul.f32.gmra.mxu0 %v5724
    %v5726 = vpop.f32.mrf.mxu0
    %v5727 = vadd.f32 0.0, %v5726
    %v5728 = vand.u32 %v5202, 4294901760
    %v5729 = vsub.f32 %v5202, %v5728
    %v5730 = vand.u32 %v5729, 4294901760
    %v5731 = vsub.f32 %v5729, %v5730
    %v5732 = vand.u32 %v5731, 4294901760
    %5733 = vmatmul.f32.gmra.mxu0 %v5732
    %v5734 = vpop.f32.mrf.mxu0
    %v5735 = vadd.f32 0.0, %v5734
    %5736 = vdwg.mxu0
    %5737 = vmatpush.msra.mxu0 0.0
    %5738 = vmatpush.msra.mxu0 0.0
    %5739 = vmatpush.msra.mxu0 0.0
    %5740 = vmatpush.msra.mxu0 0.0
    %5741 = vmatpush.msra.mxu0 0.0
    %5742 = vmatpush.msra.mxu0 0.0
    %5743 = vmatpush.msra.mxu0 0.0
    %5744 = vmatpush.msra.mxu0 0.0
    %5745 = vmatpush.msra.mxu0 0.0
    %5746 = vmatpush.msra.mxu0 0.0
    %5747 = vmatpush.msra.mxu0 0.0
    %5748 = vmatpush.msra.mxu0 0.0
    %v5749 = vand.u32 %v5010, 4294901760
    %v5750 = vsub.f32 %v5010, %v5749
    %v5751 = vand.u32 %v5750, 4294901760
    %v5752 = vsub.f32 %v5750, %v5751
    %v5753 = vand.u32 %v5752, 4294901760
    %5754 = vmatpush.msra.mxu0 %v5753
    %v5755 = vand.u32 %v5009, 4294901760
    %v5756 = vsub.f32 %v5009, %v5755
    %v5757 = vand.u32 %v5756, 4294901760
    %v5758 = vsub.f32 %v5756, %v5757
    %v5759 = vand.u32 %v5758, 4294901760
    %5760 = vmatpush.msra.mxu0 %v5759
    %v5761 = vand.u32 %v5008, 4294901760
    %v5762 = vsub.f32 %v5008, %v5761
    %v5763 = vand.u32 %v5762, 4294901760
    %v5764 = vsub.f32 %v5762, %v5763
    %v5765 = vand.u32 %v5764, 4294901760
    %5766 = vmatpush.msra.mxu0 %v5765
    %v5767 = vand.u32 %v5007, 4294901760
    %v5768 = vsub.f32 %v5007, %v5767
    %v5769 = vand.u32 %v5768, 4294901760
    %v5770 = vsub.f32 %v5768, %v5769
    %v5771 = vand.u32 %v5770, 4294901760
    %5772 = vmatpush.msra.mxu0 %v5771
    %v5773 = vand.u32 %v5013, 4294901760
    %5774 = vmatmul.f32.gmra.mxu0 %v5773
    %v5775 = vpop.f32.mrf.mxu0
    %v5776 = vadd.f32 %v5231, %v5775
    %v5777 = vand.u32 %v5016, 4294901760
    %5778 = vmatmul.f32.gmra.mxu0 %v5777
    %v5779 = vpop.f32.mrf.mxu0
    %v5780 = vadd.f32 %v5239, %v5779
    %v5781 = vand.u32 %v5019, 4294901760
    %5782 = vmatmul.f32.gmra.mxu0 %v5781
    %v5783 = vpop.f32.mrf.mxu0
    %v5784 = vadd.f32 %v5247, %v5783
    %v5785 = vand.u32 %v5022, 4294901760
    %5786 = vmatmul.f32.gmra.mxu0 %v5785
    %v5787 = vpop.f32.mrf.mxu0
    %v5788 = vadd.f32 %v5255, %v5787
    %v5789 = vand.u32 %v5025, 4294901760
    %5790 = vmatmul.f32.gmra.mxu0 %v5789
    %v5791 = vpop.f32.mrf.mxu0
    %v5792 = vadd.f32 %v5263, %v5791
    %v5793 = vand.u32 %v5028, 4294901760
    %5794 = vmatmul.f32.gmra.mxu0 %v5793
    %v5795 = vpop.f32.mrf.mxu0
    %v5796 = vadd.f32 %v5271, %v5795
    %v5797 = vand.u32 %v5031, 4294901760
    %5798 = vmatmul.f32.gmra.mxu0 %v5797
    %v5799 = vpop.f32.mrf.mxu0
    %v5800 = vadd.f32 %v5279, %v5799
    %v5801 = vand.u32 %v5034, 4294901760
    %5802 = vmatmul.f32.gmra.mxu0 %v5801
    %v5803 = vpop.f32.mrf.mxu0
    %v5804 = vadd.f32 %v5287, %v5803
    %v5805 = vand.u32 %v5037, 4294901760
    %5806 = vmatmul.f32.gmra.mxu0 %v5805
    %v5807 = vpop.f32.mrf.mxu0
    %v5808 = vadd.f32 %v5295, %v5807
    %v5809 = vand.u32 %v5040, 4294901760
    %5810 = vmatmul.f32.gmra.mxu0 %v5809
    %v5811 = vpop.f32.mrf.mxu0
    %v5812 = vadd.f32 %v5303, %v5811
    %v5813 = vand.u32 %v5043, 4294901760
    %5814 = vmatmul.f32.gmra.mxu0 %v5813
    %v5815 = vpop.f32.mrf.mxu0
    %v5816 = vadd.f32 %v5311, %v5815
    %v5817 = vand.u32 %v5046, 4294901760
    %5818 = vmatmul.f32.gmra.mxu0 %v5817
    %v5819 = vpop.f32.mrf.mxu0
    %v5820 = vadd.f32 %v5319, %v5819
    %v5821 = vand.u32 %v5049, 4294901760
    %5822 = vmatmul.f32.gmra.mxu0 %v5821
    %v5823 = vpop.f32.mrf.mxu0
    %v5824 = vadd.f32 %v5327, %v5823
    %v5825 = vand.u32 %v5052, 4294901760
    %5826 = vmatmul.f32.gmra.mxu0 %v5825
    %v5827 = vpop.f32.mrf.mxu0
    %v5828 = vadd.f32 %v5335, %v5827
    %v5829 = vand.u32 %v5055, 4294901760
    %5830 = vmatmul.f32.gmra.mxu0 %v5829
    %v5831 = vpop.f32.mrf.mxu0
    %v5832 = vadd.f32 %v5343, %v5831
    %v5833 = vand.u32 %v5058, 4294901760
    %5834 = vmatmul.f32.gmra.mxu0 %v5833
    %v5835 = vpop.f32.mrf.mxu0
    %v5836 = vadd.f32 %v5351, %v5835
    %v5837 = vand.u32 %v5061, 4294901760
    %5838 = vmatmul.f32.gmra.mxu0 %v5837
    %v5839 = vpop.f32.mrf.mxu0
    %v5840 = vadd.f32 %v5359, %v5839
    %v5841 = vand.u32 %v5064, 4294901760
    %5842 = vmatmul.f32.gmra.mxu0 %v5841
    %v5843 = vpop.f32.mrf.mxu0
    %v5844 = vadd.f32 %v5367, %v5843
    %v5845 = vand.u32 %v5067, 4294901760
    %5846 = vmatmul.f32.gmra.mxu0 %v5845
    %v5847 = vpop.f32.mrf.mxu0
    %v5848 = vadd.f32 %v5375, %v5847
    %v5849 = vand.u32 %v5070, 4294901760
    %5850 = vmatmul.f32.gmra.mxu0 %v5849
    %v5851 = vpop.f32.mrf.mxu0
    %v5852 = vadd.f32 %v5383, %v5851
    %v5853 = vand.u32 %v5073, 4294901760
    %5854 = vmatmul.f32.gmra.mxu0 %v5853
    %v5855 = vpop.f32.mrf.mxu0
    %v5856 = vadd.f32 %v5391, %v5855
    %v5857 = vand.u32 %v5076, 4294901760
    %5858 = vmatmul.f32.gmra.mxu0 %v5857
    %v5859 = vpop.f32.mrf.mxu0
    %v5860 = vadd.f32 %v5399, %v5859
    %v5861 = vand.u32 %v5079, 4294901760
    %5862 = vmatmul.f32.gmra.mxu0 %v5861
    %v5863 = vpop.f32.mrf.mxu0
    %v5864 = vadd.f32 %v5407, %v5863
    %v5865 = vand.u32 %v5082, 4294901760
    %5866 = vmatmul.f32.gmra.mxu0 %v5865
    %v5867 = vpop.f32.mrf.mxu0
    %v5868 = vadd.f32 %v5415, %v5867
    %v5869 = vand.u32 %v5085, 4294901760
    %5870 = vmatmul.f32.gmra.mxu0 %v5869
    %v5871 = vpop.f32.mrf.mxu0
    %v5872 = vadd.f32 %v5423, %v5871
    %v5873 = vand.u32 %v5088, 4294901760
    %5874 = vmatmul.f32.gmra.mxu0 %v5873
    %v5875 = vpop.f32.mrf.mxu0
    %v5876 = vadd.f32 %v5431, %v5875
    %v5877 = vand.u32 %v5091, 4294901760
    %5878 = vmatmul.f32.gmra.mxu0 %v5877
    %v5879 = vpop.f32.mrf.mxu0
    %v5880 = vadd.f32 %v5439, %v5879
    %v5881 = vand.u32 %v5094, 4294901760
    %5882 = vmatmul.f32.gmra.mxu0 %v5881
    %v5883 = vpop.f32.mrf.mxu0
    %v5884 = vadd.f32 %v5447, %v5883
    %v5885 = vand.u32 %v5097, 4294901760
    %5886 = vmatmul.f32.gmra.mxu0 %v5885
    %v5887 = vpop.f32.mrf.mxu0
    %v5888 = vadd.f32 %v5455, %v5887
    %v5889 = vand.u32 %v5100, 4294901760
    %5890 = vmatmul.f32.gmra.mxu0 %v5889
    %v5891 = vpop.f32.mrf.mxu0
    %v5892 = vadd.f32 %v5463, %v5891
    %v5893 = vand.u32 %v5103, 4294901760
    %5894 = vmatmul.f32.gmra.mxu0 %v5893
    %v5895 = vpop.f32.mrf.mxu0
    %v5896 = vadd.f32 %v5471, %v5895
    %v5897 = vand.u32 %v5106, 4294901760
    %5898 = vmatmul.f32.gmra.mxu0 %v5897
    %v5899 = vpop.f32.mrf.mxu0
    %v5900 = vadd.f32 %v5479, %v5899
    %v5901 = vand.u32 %v5109, 4294901760
    %5902 = vmatmul.f32.gmra.mxu0 %v5901
    %v5903 = vpop.f32.mrf.mxu0
    %v5904 = vadd.f32 %v5487, %v5903
    %v5905 = vand.u32 %v5112, 4294901760
    %5906 = vmatmul.f32.gmra.mxu0 %v5905
    %v5907 = vpop.f32.mrf.mxu0
    %v5908 = vadd.f32 %v5495, %v5907
    %v5909 = vand.u32 %v5115, 4294901760
    %5910 = vmatmul.f32.gmra.mxu0 %v5909
    %v5911 = vpop.f32.mrf.mxu0
    %v5912 = vadd.f32 %v5503, %v5911
    %v5913 = vand.u32 %v5118, 4294901760
    %5914 = vmatmul.f32.gmra.mxu0 %v5913
    %v5915 = vpop.f32.mrf.mxu0
    %v5916 = vadd.f32 %v5511, %v5915
    %v5917 = vand.u32 %v5121, 4294901760
    %5918 = vmatmul.f32.gmra.mxu0 %v5917
    %v5919 = vpop.f32.mrf.mxu0
    %v5920 = vadd.f32 %v5519, %v5919
    %v5921 = vand.u32 %v5124, 4294901760
    %5922 = vmatmul.f32.gmra.mxu0 %v5921
    %v5923 = vpop.f32.mrf.mxu0
    %v5924 = vadd.f32 %v5527, %v5923
    %v5925 = vand.u32 %v5127, 4294901760
    %5926 = vmatmul.f32.gmra.mxu0 %v5925
    %v5927 = vpop.f32.mrf.mxu0
    %v5928 = vadd.f32 %v5535, %v5927
    %v5929 = vand.u32 %v5130, 4294901760
    %5930 = vmatmul.f32.gmra.mxu0 %v5929
    %v5931 = vpop.f32.mrf.mxu0
    %v5932 = vadd.f32 %v5543, %v5931
    %v5933 = vand.u32 %v5133, 4294901760
    %5934 = vmatmul.f32.gmra.mxu0 %v5933
    %v5935 = vpop.f32.mrf.mxu0
    %v5936 = vadd.f32 %v5551, %v5935
    %v5937 = vand.u32 %v5136, 4294901760
    %5938 = vmatmul.f32.gmra.mxu0 %v5937
    %v5939 = vpop.f32.mrf.mxu0
    %v5940 = vadd.f32 %v5559, %v5939
    %v5941 = vand.u32 %v5139, 4294901760
    %5942 = vmatmul.f32.gmra.mxu0 %v5941
    %v5943 = vpop.f32.mrf.mxu0
    %v5944 = vadd.f32 %v5567, %v5943
    %v5945 = vand.u32 %v5142, 4294901760
    %5946 = vmatmul.f32.gmra.mxu0 %v5945
    %v5947 = vpop.f32.mrf.mxu0
    %v5948 = vadd.f32 %v5575, %v5947
    %v5949 = vand.u32 %v5145, 4294901760
    %5950 = vmatmul.f32.gmra.mxu0 %v5949
    %v5951 = vpop.f32.mrf.mxu0
    %v5952 = vadd.f32 %v5583, %v5951
    %v5953 = vand.u32 %v5148, 4294901760
    %5954 = vmatmul.f32.gmra.mxu0 %v5953
    %v5955 = vpop.f32.mrf.mxu0
    %v5956 = vadd.f32 %v5591, %v5955
    %v5957 = vand.u32 %v5151, 4294901760
    %5958 = vmatmul.f32.gmra.mxu0 %v5957
    %v5959 = vpop.f32.mrf.mxu0
    %v5960 = vadd.f32 %v5599, %v5959
    %v5961 = vand.u32 %v5154, 4294901760
    %5962 = vmatmul.f32.gmra.mxu0 %v5961
    %v5963 = vpop.f32.mrf.mxu0
    %v5964 = vadd.f32 %v5607, %v5963
    %v5965 = vand.u32 %v5157, 4294901760
    %5966 = vmatmul.f32.gmra.mxu0 %v5965
    %v5967 = vpop.f32.mrf.mxu0
    %v5968 = vadd.f32 %v5615, %v5967
    %v5969 = vand.u32 %v5160, 4294901760
    %5970 = vmatmul.f32.gmra.mxu0 %v5969
    %v5971 = vpop.f32.mrf.mxu0
    %v5972 = vadd.f32 %v5623, %v5971
    %v5973 = vand.u32 %v5163, 4294901760
    %5974 = vmatmul.f32.gmra.mxu0 %v5973
    %v5975 = vpop.f32.mrf.mxu0
    %v5976 = vadd.f32 %v5631, %v5975
    %v5977 = vand.u32 %v5166, 4294901760
    %5978 = vmatmul.f32.gmra.mxu0 %v5977
    %v5979 = vpop.f32.mrf.mxu0
    %v5980 = vadd.f32 %v5639, %v5979
    %v5981 = vand.u32 %v5169, 4294901760
    %5982 = vmatmul.f32.gmra.mxu0 %v5981
    %v5983 = vpop.f32.mrf.mxu0
    %v5984 = vadd.f32 %v5647, %v5983
    %v5985 = vand.u32 %v5172, 4294901760
    %5986 = vmatmul.f32.gmra.mxu0 %v5985
    %v5987 = vpop.f32.mrf.mxu0
    %v5988 = vadd.f32 %v5655, %v5987
    %v5989 = vand.u32 %v5175, 4294901760
    %5990 = vmatmul.f32.gmra.mxu0 %v5989
    %v5991 = vpop.f32.mrf.mxu0
    %v5992 = vadd.f32 %v5663, %v5991
    %v5993 = vand.u32 %v5178, 4294901760
    %5994 = vmatmul.f32.gmra.mxu0 %v5993
    %v5995 = vpop.f32.mrf.mxu0
    %v5996 = vadd.f32 %v5671, %v5995
    %v5997 = vand.u32 %v5181, 4294901760
    %5998 = vmatmul.f32.gmra.mxu0 %v5997
    %v5999 = vpop.f32.mrf.mxu0
    %v6000 = vadd.f32 %v5679, %v5999
    %v6001 = vand.u32 %v5184, 4294901760
    %6002 = vmatmul.f32.gmra.mxu0 %v6001
    %v6003 = vpop.f32.mrf.mxu0
    %v6004 = vadd.f32 %v5687, %v6003
    %v6005 = vand.u32 %v5187, 4294901760
    %6006 = vmatmul.f32.gmra.mxu0 %v6005
    %v6007 = vpop.f32.mrf.mxu0
    %v6008 = vadd.f32 %v5695, %v6007
    %v6009 = vand.u32 %v5190, 4294901760
    %6010 = vmatmul.f32.gmra.mxu0 %v6009
    %v6011 = vpop.f32.mrf.mxu0
    %v6012 = vadd.f32 %v5703, %v6011
    %v6013 = vand.u32 %v5193, 4294901760
    %6014 = vmatmul.f32.gmra.mxu0 %v6013
    %v6015 = vpop.f32.mrf.mxu0
    %v6016 = vadd.f32 %v5711, %v6015
    %v6017 = vand.u32 %v5196, 4294901760
    %6018 = vmatmul.f32.gmra.mxu0 %v6017
    %v6019 = vpop.f32.mrf.mxu0
    %v6020 = vadd.f32 %v5719, %v6019
    %v6021 = vand.u32 %v5199, 4294901760
    %6022 = vmatmul.f32.gmra.mxu0 %v6021
    %v6023 = vpop.f32.mrf.mxu0
    %v6024 = vadd.f32 %v5727, %v6023
    %v6025 = vand.u32 %v5202, 4294901760
    %6026 = vmatmul.f32.gmra.mxu0 %v6025
    %v6027 = vpop.f32.mrf.mxu0
    %v6028 = vadd.f32 %v5735, %v6027
    %6029 = vdwg.mxu0
    %6030 = vmatpush.msra.mxu0 0.0
    %6031 = vmatpush.msra.mxu0 0.0
    %6032 = vmatpush.msra.mxu0 0.0
    %6033 = vmatpush.msra.mxu0 0.0
    %6034 = vmatpush.msra.mxu0 0.0
    %6035 = vmatpush.msra.mxu0 0.0
    %6036 = vmatpush.msra.mxu0 0.0
    %6037 = vmatpush.msra.mxu0 0.0
    %6038 = vmatpush.msra.mxu0 0.0
    %6039 = vmatpush.msra.mxu0 0.0
    %6040 = vmatpush.msra.mxu0 0.0
    %6041 = vmatpush.msra.mxu0 0.0
    %v6042 = vand.u32 %v5010, 4294901760
    %v6043 = vsub.f32 %v5010, %v6042
    %6044 = vmatpush.msra.mxu0 %v6043
    %v6045 = vand.u32 %v5009, 4294901760
    %v6046 = vsub.f32 %v5009, %v6045
    %6047 = vmatpush.msra.mxu0 %v6046
    %v6048 = vand.u32 %v5008, 4294901760
    %v6049 = vsub.f32 %v5008, %v6048
    %6050 = vmatpush.msra.mxu0 %v6049
    %v6051 = vand.u32 %v5007, 4294901760
    %v6052 = vsub.f32 %v5007, %v6051
    %6053 = vmatpush.msra.mxu0 %v6052
    %v6054 = vand.u32 %v5013, 4294901760
    %v6055 = vsub.f32 %v5013, %v6054
    %6056 = vmatmul.f32.gmra.mxu0 %v6055
    %v6057 = vpop.f32.mrf.mxu0
    %v6058 = vadd.f32 %v5776, %v6057
    %v6059 = vand.u32 %v5016, 4294901760
    %v6060 = vsub.f32 %v5016, %v6059
    %6061 = vmatmul.f32.gmra.mxu0 %v6060
    %v6062 = vpop.f32.mrf.mxu0
    %v6063 = vadd.f32 %v5780, %v6062
    %v6064 = vand.u32 %v5019, 4294901760
    %v6065 = vsub.f32 %v5019, %v6064
    %6066 = vmatmul.f32.gmra.mxu0 %v6065
    %v6067 = vpop.f32.mrf.mxu0
    %v6068 = vadd.f32 %v5784, %v6067
    %v6069 = vand.u32 %v5022, 4294901760
    %v6070 = vsub.f32 %v5022, %v6069
    %6071 = vmatmul.f32.gmra.mxu0 %v6070
    %v6072 = vpop.f32.mrf.mxu0
    %v6073 = vadd.f32 %v5788, %v6072
    %v6074 = vand.u32 %v5025, 4294901760
    %v6075 = vsub.f32 %v5025, %v6074
    %6076 = vmatmul.f32.gmra.mxu0 %v6075
    %v6077 = vpop.f32.mrf.mxu0
    %v6078 = vadd.f32 %v5792, %v6077
    %v6079 = vand.u32 %v5028, 4294901760
    %v6080 = vsub.f32 %v5028, %v6079
    %6081 = vmatmul.f32.gmra.mxu0 %v6080
    %v6082 = vpop.f32.mrf.mxu0
    %v6083 = vadd.f32 %v5796, %v6082
    %v6084 = vand.u32 %v5031, 4294901760
    %v6085 = vsub.f32 %v5031, %v6084
    %6086 = vmatmul.f32.gmra.mxu0 %v6085
    %v6087 = vpop.f32.mrf.mxu0
    %v6088 = vadd.f32 %v5800, %v6087
    %v6089 = vand.u32 %v5034, 4294901760
    %v6090 = vsub.f32 %v5034, %v6089
    %6091 = vmatmul.f32.gmra.mxu0 %v6090
    %v6092 = vpop.f32.mrf.mxu0
    %v6093 = vadd.f32 %v5804, %v6092
    %v6094 = vand.u32 %v5037, 4294901760
    %v6095 = vsub.f32 %v5037, %v6094
    %6096 = vmatmul.f32.gmra.mxu0 %v6095
    %v6097 = vpop.f32.mrf.mxu0
    %v6098 = vadd.f32 %v5808, %v6097
    %v6099 = vand.u32 %v5040, 4294901760
    %v6100 = vsub.f32 %v5040, %v6099
    %6101 = vmatmul.f32.gmra.mxu0 %v6100
    %v6102 = vpop.f32.mrf.mxu0
    %v6103 = vadd.f32 %v5812, %v6102
    %v6104 = vand.u32 %v5043, 4294901760
    %v6105 = vsub.f32 %v5043, %v6104
    %6106 = vmatmul.f32.gmra.mxu0 %v6105
    %v6107 = vpop.f32.mrf.mxu0
    %v6108 = vadd.f32 %v5816, %v6107
    %v6109 = vand.u32 %v5046, 4294901760
    %v6110 = vsub.f32 %v5046, %v6109
    %6111 = vmatmul.f32.gmra.mxu0 %v6110
    %v6112 = vpop.f32.mrf.mxu0
    %v6113 = vadd.f32 %v5820, %v6112
    %v6114 = vand.u32 %v5049, 4294901760
    %v6115 = vsub.f32 %v5049, %v6114
    %6116 = vmatmul.f32.gmra.mxu0 %v6115
    %v6117 = vpop.f32.mrf.mxu0
    %v6118 = vadd.f32 %v5824, %v6117
    %v6119 = vand.u32 %v5052, 4294901760
    %v6120 = vsub.f32 %v5052, %v6119
    %6121 = vmatmul.f32.gmra.mxu0 %v6120
    %v6122 = vpop.f32.mrf.mxu0
    %v6123 = vadd.f32 %v5828, %v6122
    %v6124 = vand.u32 %v5055, 4294901760
    %v6125 = vsub.f32 %v5055, %v6124
    %6126 = vmatmul.f32.gmra.mxu0 %v6125
    %v6127 = vpop.f32.mrf.mxu0
    %v6128 = vadd.f32 %v5832, %v6127
    %v6129 = vand.u32 %v5058, 4294901760
    %v6130 = vsub.f32 %v5058, %v6129
    %6131 = vmatmul.f32.gmra.mxu0 %v6130
    %v6132 = vpop.f32.mrf.mxu0
    %v6133 = vadd.f32 %v5836, %v6132
    %v6134 = vand.u32 %v5061, 4294901760
    %v6135 = vsub.f32 %v5061, %v6134
    %6136 = vmatmul.f32.gmra.mxu0 %v6135
    %v6137 = vpop.f32.mrf.mxu0
    %v6138 = vadd.f32 %v5840, %v6137
    %v6139 = vand.u32 %v5064, 4294901760
    %v6140 = vsub.f32 %v5064, %v6139
    %6141 = vmatmul.f32.gmra.mxu0 %v6140
    %v6142 = vpop.f32.mrf.mxu0
    %v6143 = vadd.f32 %v5844, %v6142
    %v6144 = vand.u32 %v5067, 4294901760
    %v6145 = vsub.f32 %v5067, %v6144
    %6146 = vmatmul.f32.gmra.mxu0 %v6145
    %v6147 = vpop.f32.mrf.mxu0
    %v6148 = vadd.f32 %v5848, %v6147
    %v6149 = vand.u32 %v5070, 4294901760
    %v6150 = vsub.f32 %v5070, %v6149
    %6151 = vmatmul.f32.gmra.mxu0 %v6150
    %v6152 = vpop.f32.mrf.mxu0
    %v6153 = vadd.f32 %v5852, %v6152
    %v6154 = vand.u32 %v5073, 4294901760
    %v6155 = vsub.f32 %v5073, %v6154
    %6156 = vmatmul.f32.gmra.mxu0 %v6155
    %v6157 = vpop.f32.mrf.mxu0
    %v6158 = vadd.f32 %v5856, %v6157
    %v6159 = vand.u32 %v5076, 4294901760
    %v6160 = vsub.f32 %v5076, %v6159
    %6161 = vmatmul.f32.gmra.mxu0 %v6160
    %v6162 = vpop.f32.mrf.mxu0
    %v6163 = vadd.f32 %v5860, %v6162
    %v6164 = vand.u32 %v5079, 4294901760
    %v6165 = vsub.f32 %v5079, %v6164
    %6166 = vmatmul.f32.gmra.mxu0 %v6165
    %v6167 = vpop.f32.mrf.mxu0
    %v6168 = vadd.f32 %v5864, %v6167
    %v6169 = vand.u32 %v5082, 4294901760
    %v6170 = vsub.f32 %v5082, %v6169
    %6171 = vmatmul.f32.gmra.mxu0 %v6170
    %v6172 = vpop.f32.mrf.mxu0
    %v6173 = vadd.f32 %v5868, %v6172
    %v6174 = vand.u32 %v5085, 4294901760
    %v6175 = vsub.f32 %v5085, %v6174
    %6176 = vmatmul.f32.gmra.mxu0 %v6175
    %v6177 = vpop.f32.mrf.mxu0
    %v6178 = vadd.f32 %v5872, %v6177
    %v6179 = vand.u32 %v5088, 4294901760
    %v6180 = vsub.f32 %v5088, %v6179
    %6181 = vmatmul.f32.gmra.mxu0 %v6180
    %v6182 = vpop.f32.mrf.mxu0
    %v6183 = vadd.f32 %v5876, %v6182
    %v6184 = vand.u32 %v5091, 4294901760
    %v6185 = vsub.f32 %v5091, %v6184
    %6186 = vmatmul.f32.gmra.mxu0 %v6185
    %v6187 = vpop.f32.mrf.mxu0
    %v6188 = vadd.f32 %v5880, %v6187
    %v6189 = vand.u32 %v5094, 4294901760
    %v6190 = vsub.f32 %v5094, %v6189
    %6191 = vmatmul.f32.gmra.mxu0 %v6190
    %v6192 = vpop.f32.mrf.mxu0
    %v6193 = vadd.f32 %v5884, %v6192
    %v6194 = vand.u32 %v5097, 4294901760
    %v6195 = vsub.f32 %v5097, %v6194
    %6196 = vmatmul.f32.gmra.mxu0 %v6195
    %v6197 = vpop.f32.mrf.mxu0
    %v6198 = vadd.f32 %v5888, %v6197
    %v6199 = vand.u32 %v5100, 4294901760
    %v6200 = vsub.f32 %v5100, %v6199
    %6201 = vmatmul.f32.gmra.mxu0 %v6200
    %v6202 = vpop.f32.mrf.mxu0
    %v6203 = vadd.f32 %v5892, %v6202
    %v6204 = vand.u32 %v5103, 4294901760
    %v6205 = vsub.f32 %v5103, %v6204
    %6206 = vmatmul.f32.gmra.mxu0 %v6205
    %v6207 = vpop.f32.mrf.mxu0
    %v6208 = vadd.f32 %v5896, %v6207
    %v6209 = vand.u32 %v5106, 4294901760
    %v6210 = vsub.f32 %v5106, %v6209
    %6211 = vmatmul.f32.gmra.mxu0 %v6210
    %v6212 = vpop.f32.mrf.mxu0
    %v6213 = vadd.f32 %v5900, %v6212
    %v6214 = vand.u32 %v5109, 4294901760
    %v6215 = vsub.f32 %v5109, %v6214
    %6216 = vmatmul.f32.gmra.mxu0 %v6215
    %v6217 = vpop.f32.mrf.mxu0
    %v6218 = vadd.f32 %v5904, %v6217
    %v6219 = vand.u32 %v5112, 4294901760
    %v6220 = vsub.f32 %v5112, %v6219
    %6221 = vmatmul.f32.gmra.mxu0 %v6220
    %v6222 = vpop.f32.mrf.mxu0
    %v6223 = vadd.f32 %v5908, %v6222
    %v6224 = vand.u32 %v5115, 4294901760
    %v6225 = vsub.f32 %v5115, %v6224
    %6226 = vmatmul.f32.gmra.mxu0 %v6225
    %v6227 = vpop.f32.mrf.mxu0
    %v6228 = vadd.f32 %v5912, %v6227
    %v6229 = vand.u32 %v5118, 4294901760
    %v6230 = vsub.f32 %v5118, %v6229
    %6231 = vmatmul.f32.gmra.mxu0 %v6230
    %v6232 = vpop.f32.mrf.mxu0
    %v6233 = vadd.f32 %v5916, %v6232
    %v6234 = vand.u32 %v5121, 4294901760
    %v6235 = vsub.f32 %v5121, %v6234
    %6236 = vmatmul.f32.gmra.mxu0 %v6235
    %v6237 = vpop.f32.mrf.mxu0
    %v6238 = vadd.f32 %v5920, %v6237
    %v6239 = vand.u32 %v5124, 4294901760
    %v6240 = vsub.f32 %v5124, %v6239
    %6241 = vmatmul.f32.gmra.mxu0 %v6240
    %v6242 = vpop.f32.mrf.mxu0
    %v6243 = vadd.f32 %v5924, %v6242
    %v6244 = vand.u32 %v5127, 4294901760
    %v6245 = vsub.f32 %v5127, %v6244
    %6246 = vmatmul.f32.gmra.mxu0 %v6245
    %v6247 = vpop.f32.mrf.mxu0
    %v6248 = vadd.f32 %v5928, %v6247
    %v6249 = vand.u32 %v5130, 4294901760
    %v6250 = vsub.f32 %v5130, %v6249
    %6251 = vmatmul.f32.gmra.mxu0 %v6250
    %v6252 = vpop.f32.mrf.mxu0
    %v6253 = vadd.f32 %v5932, %v6252
    %v6254 = vand.u32 %v5133, 4294901760
    %v6255 = vsub.f32 %v5133, %v6254
    %6256 = vmatmul.f32.gmra.mxu0 %v6255
    %v6257 = vpop.f32.mrf.mxu0
    %v6258 = vadd.f32 %v5936, %v6257
    %v6259 = vand.u32 %v5136, 4294901760
    %v6260 = vsub.f32 %v5136, %v6259
    %6261 = vmatmul.f32.gmra.mxu0 %v6260
    %v6262 = vpop.f32.mrf.mxu0
    %v6263 = vadd.f32 %v5940, %v6262
    %v6264 = vand.u32 %v5139, 4294901760
    %v6265 = vsub.f32 %v5139, %v6264
    %6266 = vmatmul.f32.gmra.mxu0 %v6265
    %v6267 = vpop.f32.mrf.mxu0
    %v6268 = vadd.f32 %v5944, %v6267
    %v6269 = vand.u32 %v5142, 4294901760
    %v6270 = vsub.f32 %v5142, %v6269
    %6271 = vmatmul.f32.gmra.mxu0 %v6270
    %v6272 = vpop.f32.mrf.mxu0
    %v6273 = vadd.f32 %v5948, %v6272
    %v6274 = vand.u32 %v5145, 4294901760
    %v6275 = vsub.f32 %v5145, %v6274
    %6276 = vmatmul.f32.gmra.mxu0 %v6275
    %v6277 = vpop.f32.mrf.mxu0
    %v6278 = vadd.f32 %v5952, %v6277
    %v6279 = vand.u32 %v5148, 4294901760
    %v6280 = vsub.f32 %v5148, %v6279
    %6281 = vmatmul.f32.gmra.mxu0 %v6280
    %v6282 = vpop.f32.mrf.mxu0
    %v6283 = vadd.f32 %v5956, %v6282
    %v6284 = vand.u32 %v5151, 4294901760
    %v6285 = vsub.f32 %v5151, %v6284
    %6286 = vmatmul.f32.gmra.mxu0 %v6285
    %v6287 = vpop.f32.mrf.mxu0
    %v6288 = vadd.f32 %v5960, %v6287
    %v6289 = vand.u32 %v5154, 4294901760
    %v6290 = vsub.f32 %v5154, %v6289
    %6291 = vmatmul.f32.gmra.mxu0 %v6290
    %v6292 = vpop.f32.mrf.mxu0
    %v6293 = vadd.f32 %v5964, %v6292
    %v6294 = vand.u32 %v5157, 4294901760
    %v6295 = vsub.f32 %v5157, %v6294
    %6296 = vmatmul.f32.gmra.mxu0 %v6295
    %v6297 = vpop.f32.mrf.mxu0
    %v6298 = vadd.f32 %v5968, %v6297
    %v6299 = vand.u32 %v5160, 4294901760
    %v6300 = vsub.f32 %v5160, %v6299
    %6301 = vmatmul.f32.gmra.mxu0 %v6300
    %v6302 = vpop.f32.mrf.mxu0
    %v6303 = vadd.f32 %v5972, %v6302
    %v6304 = vand.u32 %v5163, 4294901760
    %v6305 = vsub.f32 %v5163, %v6304
    %6306 = vmatmul.f32.gmra.mxu0 %v6305
    %v6307 = vpop.f32.mrf.mxu0
    %v6308 = vadd.f32 %v5976, %v6307
    %v6309 = vand.u32 %v5166, 4294901760
    %v6310 = vsub.f32 %v5166, %v6309
    %6311 = vmatmul.f32.gmra.mxu0 %v6310
    %v6312 = vpop.f32.mrf.mxu0
    %v6313 = vadd.f32 %v5980, %v6312
    %v6314 = vand.u32 %v5169, 4294901760
    %v6315 = vsub.f32 %v5169, %v6314
    %6316 = vmatmul.f32.gmra.mxu0 %v6315
    %v6317 = vpop.f32.mrf.mxu0
    %v6318 = vadd.f32 %v5984, %v6317
    %v6319 = vand.u32 %v5172, 4294901760
    %v6320 = vsub.f32 %v5172, %v6319
    %6321 = vmatmul.f32.gmra.mxu0 %v6320
    %v6322 = vpop.f32.mrf.mxu0
    %v6323 = vadd.f32 %v5988, %v6322
    %v6324 = vand.u32 %v5175, 4294901760
    %v6325 = vsub.f32 %v5175, %v6324
    %6326 = vmatmul.f32.gmra.mxu0 %v6325
    %v6327 = vpop.f32.mrf.mxu0
    %v6328 = vadd.f32 %v5992, %v6327
    %v6329 = vand.u32 %v5178, 4294901760
    %v6330 = vsub.f32 %v5178, %v6329
    %6331 = vmatmul.f32.gmra.mxu0 %v6330
    %v6332 = vpop.f32.mrf.mxu0
    %v6333 = vadd.f32 %v5996, %v6332
    %v6334 = vand.u32 %v5181, 4294901760
    %v6335 = vsub.f32 %v5181, %v6334
    %6336 = vmatmul.f32.gmra.mxu0 %v6335
    %v6337 = vpop.f32.mrf.mxu0
    %v6338 = vadd.f32 %v6000, %v6337
    %v6339 = vand.u32 %v5184, 4294901760
    %v6340 = vsub.f32 %v5184, %v6339
    %6341 = vmatmul.f32.gmra.mxu0 %v6340
    %v6342 = vpop.f32.mrf.mxu0
    %v6343 = vadd.f32 %v6004, %v6342
    %v6344 = vand.u32 %v5187, 4294901760
    %v6345 = vsub.f32 %v5187, %v6344
    %6346 = vmatmul.f32.gmra.mxu0 %v6345
    %v6347 = vpop.f32.mrf.mxu0
    %v6348 = vadd.f32 %v6008, %v6347
    %v6349 = vand.u32 %v5190, 4294901760
    %v6350 = vsub.f32 %v5190, %v6349
    %6351 = vmatmul.f32.gmra.mxu0 %v6350
    %v6352 = vpop.f32.mrf.mxu0
    %v6353 = vadd.f32 %v6012, %v6352
    %v6354 = vand.u32 %v5193, 4294901760
    %v6355 = vsub.f32 %v5193, %v6354
    %6356 = vmatmul.f32.gmra.mxu0 %v6355
    %v6357 = vpop.f32.mrf.mxu0
    %v6358 = vadd.f32 %v6016, %v6357
    %v6359 = vand.u32 %v5196, 4294901760
    %v6360 = vsub.f32 %v5196, %v6359
    %6361 = vmatmul.f32.gmra.mxu0 %v6360
    %v6362 = vpop.f32.mrf.mxu0
    %v6363 = vadd.f32 %v6020, %v6362
    %v6364 = vand.u32 %v5199, 4294901760
    %v6365 = vsub.f32 %v5199, %v6364
    %6366 = vmatmul.f32.gmra.mxu0 %v6365
    %v6367 = vpop.f32.mrf.mxu0
    %v6368 = vadd.f32 %v6024, %v6367
    %v6369 = vand.u32 %v5202, 4294901760
    %v6370 = vsub.f32 %v5202, %v6369
    %6371 = vmatmul.f32.gmra.mxu0 %v6370
    %v6372 = vpop.f32.mrf.mxu0
    %v6373 = vadd.f32 %v6028, %v6372
    %6374 = vdwg.mxu0
    %6375 = vmatpush.msra.mxu0 0.0
    %6376 = vmatpush.msra.mxu0 0.0
    %6377 = vmatpush.msra.mxu0 0.0
    %6378 = vmatpush.msra.mxu0 0.0
    %6379 = vmatpush.msra.mxu0 0.0
    %6380 = vmatpush.msra.mxu0 0.0
    %6381 = vmatpush.msra.mxu0 0.0
    %6382 = vmatpush.msra.mxu0 0.0
    %6383 = vmatpush.msra.mxu0 0.0
    %6384 = vmatpush.msra.mxu0 0.0
    %6385 = vmatpush.msra.mxu0 0.0
    %6386 = vmatpush.msra.mxu0 0.0
    %v6387 = vand.u32 %v5010, 4294901760
    %6388 = vmatpush.msra.mxu0 %v6387
    %v6389 = vand.u32 %v5009, 4294901760
    %6390 = vmatpush.msra.mxu0 %v6389
    %v6391 = vand.u32 %v5008, 4294901760
    %6392 = vmatpush.msra.mxu0 %v6391
    %v6393 = vand.u32 %v5007, 4294901760
    %6394 = vmatpush.msra.mxu0 %v6393
    %v6395 = vand.u32 %v5013, 4294901760
    %v6396 = vsub.f32 %v5013, %v6395
    %v6397 = vand.u32 %v6396, 4294901760
    %6398 = vmatmul.f32.gmra.mxu0 %v6397
    %v6399 = vpop.f32.mrf.mxu0
    %v6400 = vadd.f32 %v6058, %v6399
    %v6401 = vand.u32 %v5016, 4294901760
    %v6402 = vsub.f32 %v5016, %v6401
    %v6403 = vand.u32 %v6402, 4294901760
    %6404 = vmatmul.f32.gmra.mxu0 %v6403
    %v6405 = vpop.f32.mrf.mxu0
    %v6406 = vadd.f32 %v6063, %v6405
    %v6407 = vand.u32 %v5019, 4294901760
    %v6408 = vsub.f32 %v5019, %v6407
    %v6409 = vand.u32 %v6408, 4294901760
    %6410 = vmatmul.f32.gmra.mxu0 %v6409
    %v6411 = vpop.f32.mrf.mxu0
    %v6412 = vadd.f32 %v6068, %v6411
    %v6413 = vand.u32 %v5022, 4294901760
    %v6414 = vsub.f32 %v5022, %v6413
    %v6415 = vand.u32 %v6414, 4294901760
    %6416 = vmatmul.f32.gmra.mxu0 %v6415
    %v6417 = vpop.f32.mrf.mxu0
    %v6418 = vadd.f32 %v6073, %v6417
    %v6419 = vand.u32 %v5025, 4294901760
    %v6420 = vsub.f32 %v5025, %v6419
    %v6421 = vand.u32 %v6420, 4294901760
    %6422 = vmatmul.f32.gmra.mxu0 %v6421
    %v6423 = vpop.f32.mrf.mxu0
    %v6424 = vadd.f32 %v6078, %v6423
    %v6425 = vand.u32 %v5028, 4294901760
    %v6426 = vsub.f32 %v5028, %v6425
    %v6427 = vand.u32 %v6426, 4294901760
    %6428 = vmatmul.f32.gmra.mxu0 %v6427
    %v6429 = vpop.f32.mrf.mxu0
    %v6430 = vadd.f32 %v6083, %v6429
    %v6431 = vand.u32 %v5031, 4294901760
    %v6432 = vsub.f32 %v5031, %v6431
    %v6433 = vand.u32 %v6432, 4294901760
    %6434 = vmatmul.f32.gmra.mxu0 %v6433
    %v6435 = vpop.f32.mrf.mxu0
    %v6436 = vadd.f32 %v6088, %v6435
    %v6437 = vand.u32 %v5034, 4294901760
    %v6438 = vsub.f32 %v5034, %v6437
    %v6439 = vand.u32 %v6438, 4294901760
    %6440 = vmatmul.f32.gmra.mxu0 %v6439
    %v6441 = vpop.f32.mrf.mxu0
    %v6442 = vadd.f32 %v6093, %v6441
    %v6443 = vand.u32 %v5037, 4294901760
    %v6444 = vsub.f32 %v5037, %v6443
    %v6445 = vand.u32 %v6444, 4294901760
    %6446 = vmatmul.f32.gmra.mxu0 %v6445
    %v6447 = vpop.f32.mrf.mxu0
    %v6448 = vadd.f32 %v6098, %v6447
    %v6449 = vand.u32 %v5040, 4294901760
    %v6450 = vsub.f32 %v5040, %v6449
    %v6451 = vand.u32 %v6450, 4294901760
    %6452 = vmatmul.f32.gmra.mxu0 %v6451
    %v6453 = vpop.f32.mrf.mxu0
    %v6454 = vadd.f32 %v6103, %v6453
    %v6455 = vand.u32 %v5043, 4294901760
    %v6456 = vsub.f32 %v5043, %v6455
    %v6457 = vand.u32 %v6456, 4294901760
    %6458 = vmatmul.f32.gmra.mxu0 %v6457
    %v6459 = vpop.f32.mrf.mxu0
    %v6460 = vadd.f32 %v6108, %v6459
    %v6461 = vand.u32 %v5046, 4294901760
    %v6462 = vsub.f32 %v5046, %v6461
    %v6463 = vand.u32 %v6462, 4294901760
    %6464 = vmatmul.f32.gmra.mxu0 %v6463
    %v6465 = vpop.f32.mrf.mxu0
    %v6466 = vadd.f32 %v6113, %v6465
    %v6467 = vand.u32 %v5049, 4294901760
    %v6468 = vsub.f32 %v5049, %v6467
    %v6469 = vand.u32 %v6468, 4294901760
    %6470 = vmatmul.f32.gmra.mxu0 %v6469
    %v6471 = vpop.f32.mrf.mxu0
    %v6472 = vadd.f32 %v6118, %v6471
    %v6473 = vand.u32 %v5052, 4294901760
    %v6474 = vsub.f32 %v5052, %v6473
    %v6475 = vand.u32 %v6474, 4294901760
    %6476 = vmatmul.f32.gmra.mxu0 %v6475
    %v6477 = vpop.f32.mrf.mxu0
    %v6478 = vadd.f32 %v6123, %v6477
    %v6479 = vand.u32 %v5055, 4294901760
    %v6480 = vsub.f32 %v5055, %v6479
    %v6481 = vand.u32 %v6480, 4294901760
    %6482 = vmatmul.f32.gmra.mxu0 %v6481
    %v6483 = vpop.f32.mrf.mxu0
    %v6484 = vadd.f32 %v6128, %v6483
    %v6485 = vand.u32 %v5058, 4294901760
    %v6486 = vsub.f32 %v5058, %v6485
    %v6487 = vand.u32 %v6486, 4294901760
    %6488 = vmatmul.f32.gmra.mxu0 %v6487
    %v6489 = vpop.f32.mrf.mxu0
    %v6490 = vadd.f32 %v6133, %v6489
    %v6491 = vand.u32 %v5061, 4294901760
    %v6492 = vsub.f32 %v5061, %v6491
    %v6493 = vand.u32 %v6492, 4294901760
    %6494 = vmatmul.f32.gmra.mxu0 %v6493
    %v6495 = vpop.f32.mrf.mxu0
    %v6496 = vadd.f32 %v6138, %v6495
    %v6497 = vand.u32 %v5064, 4294901760
    %v6498 = vsub.f32 %v5064, %v6497
    %v6499 = vand.u32 %v6498, 4294901760
    %6500 = vmatmul.f32.gmra.mxu0 %v6499
    %v6501 = vpop.f32.mrf.mxu0
    %v6502 = vadd.f32 %v6143, %v6501
    %v6503 = vand.u32 %v5067, 4294901760
    %v6504 = vsub.f32 %v5067, %v6503
    %v6505 = vand.u32 %v6504, 4294901760
    %6506 = vmatmul.f32.gmra.mxu0 %v6505
    %v6507 = vpop.f32.mrf.mxu0
    %v6508 = vadd.f32 %v6148, %v6507
    %v6509 = vand.u32 %v5070, 4294901760
    %v6510 = vsub.f32 %v5070, %v6509
    %v6511 = vand.u32 %v6510, 4294901760
    %6512 = vmatmul.f32.gmra.mxu0 %v6511
    %v6513 = vpop.f32.mrf.mxu0
    %v6514 = vadd.f32 %v6153, %v6513
    %v6515 = vand.u32 %v5073, 4294901760
    %v6516 = vsub.f32 %v5073, %v6515
    %v6517 = vand.u32 %v6516, 4294901760
    %6518 = vmatmul.f32.gmra.mxu0 %v6517
    %v6519 = vpop.f32.mrf.mxu0
    %v6520 = vadd.f32 %v6158, %v6519
    %v6521 = vand.u32 %v5076, 4294901760
    %v6522 = vsub.f32 %v5076, %v6521
    %v6523 = vand.u32 %v6522, 4294901760
    %6524 = vmatmul.f32.gmra.mxu0 %v6523
    %v6525 = vpop.f32.mrf.mxu0
    %v6526 = vadd.f32 %v6163, %v6525
    %v6527 = vand.u32 %v5079, 4294901760
    %v6528 = vsub.f32 %v5079, %v6527
    %v6529 = vand.u32 %v6528, 4294901760
    %6530 = vmatmul.f32.gmra.mxu0 %v6529
    %v6531 = vpop.f32.mrf.mxu0
    %v6532 = vadd.f32 %v6168, %v6531
    %v6533 = vand.u32 %v5082, 4294901760
    %v6534 = vsub.f32 %v5082, %v6533
    %v6535 = vand.u32 %v6534, 4294901760
    %6536 = vmatmul.f32.gmra.mxu0 %v6535
    %v6537 = vpop.f32.mrf.mxu0
    %v6538 = vadd.f32 %v6173, %v6537
    %v6539 = vand.u32 %v5085, 4294901760
    %v6540 = vsub.f32 %v5085, %v6539
    %v6541 = vand.u32 %v6540, 4294901760
    %6542 = vmatmul.f32.gmra.mxu0 %v6541
    %v6543 = vpop.f32.mrf.mxu0
    %v6544 = vadd.f32 %v6178, %v6543
    %v6545 = vand.u32 %v5088, 4294901760
    %v6546 = vsub.f32 %v5088, %v6545
    %v6547 = vand.u32 %v6546, 4294901760
    %6548 = vmatmul.f32.gmra.mxu0 %v6547
    %v6549 = vpop.f32.mrf.mxu0
    %v6550 = vadd.f32 %v6183, %v6549
    %v6551 = vand.u32 %v5091, 4294901760
    %v6552 = vsub.f32 %v5091, %v6551
    %v6553 = vand.u32 %v6552, 4294901760
    %6554 = vmatmul.f32.gmra.mxu0 %v6553
    %v6555 = vpop.f32.mrf.mxu0
    %v6556 = vadd.f32 %v6188, %v6555
    %v6557 = vand.u32 %v5094, 4294901760
    %v6558 = vsub.f32 %v5094, %v6557
    %v6559 = vand.u32 %v6558, 4294901760
    %6560 = vmatmul.f32.gmra.mxu0 %v6559
    %v6561 = vpop.f32.mrf.mxu0
    %v6562 = vadd.f32 %v6193, %v6561
    %v6563 = vand.u32 %v5097, 4294901760
    %v6564 = vsub.f32 %v5097, %v6563
    %v6565 = vand.u32 %v6564, 4294901760
    %6566 = vmatmul.f32.gmra.mxu0 %v6565
    %v6567 = vpop.f32.mrf.mxu0
    %v6568 = vadd.f32 %v6198, %v6567
    %v6569 = vand.u32 %v5100, 4294901760
    %v6570 = vsub.f32 %v5100, %v6569
    %v6571 = vand.u32 %v6570, 4294901760
    %6572 = vmatmul.f32.gmra.mxu0 %v6571
    %v6573 = vpop.f32.mrf.mxu0
    %v6574 = vadd.f32 %v6203, %v6573
    %v6575 = vand.u32 %v5103, 4294901760
    %v6576 = vsub.f32 %v5103, %v6575
    %v6577 = vand.u32 %v6576, 4294901760
    %6578 = vmatmul.f32.gmra.mxu0 %v6577
    %v6579 = vpop.f32.mrf.mxu0
    %v6580 = vadd.f32 %v6208, %v6579
    %v6581 = vand.u32 %v5106, 4294901760
    %v6582 = vsub.f32 %v5106, %v6581
    %v6583 = vand.u32 %v6582, 4294901760
    %6584 = vmatmul.f32.gmra.mxu0 %v6583
    %v6585 = vpop.f32.mrf.mxu0
    %v6586 = vadd.f32 %v6213, %v6585
    %v6587 = vand.u32 %v5109, 4294901760
    %v6588 = vsub.f32 %v5109, %v6587
    %v6589 = vand.u32 %v6588, 4294901760
    %6590 = vmatmul.f32.gmra.mxu0 %v6589
    %v6591 = vpop.f32.mrf.mxu0
    %v6592 = vadd.f32 %v6218, %v6591
    %v6593 = vand.u32 %v5112, 4294901760
    %v6594 = vsub.f32 %v5112, %v6593
    %v6595 = vand.u32 %v6594, 4294901760
    %6596 = vmatmul.f32.gmra.mxu0 %v6595
    %v6597 = vpop.f32.mrf.mxu0
    %v6598 = vadd.f32 %v6223, %v6597
    %v6599 = vand.u32 %v5115, 4294901760
    %v6600 = vsub.f32 %v5115, %v6599
    %v6601 = vand.u32 %v6600, 4294901760
    %6602 = vmatmul.f32.gmra.mxu0 %v6601
    %v6603 = vpop.f32.mrf.mxu0
    %v6604 = vadd.f32 %v6228, %v6603
    %v6605 = vand.u32 %v5118, 4294901760
    %v6606 = vsub.f32 %v5118, %v6605
    %v6607 = vand.u32 %v6606, 4294901760
    %6608 = vmatmul.f32.gmra.mxu0 %v6607
    %v6609 = vpop.f32.mrf.mxu0
    %v6610 = vadd.f32 %v6233, %v6609
    %v6611 = vand.u32 %v5121, 4294901760
    %v6612 = vsub.f32 %v5121, %v6611
    %v6613 = vand.u32 %v6612, 4294901760
    %6614 = vmatmul.f32.gmra.mxu0 %v6613
    %v6615 = vpop.f32.mrf.mxu0
    %v6616 = vadd.f32 %v6238, %v6615
    %v6617 = vand.u32 %v5124, 4294901760
    %v6618 = vsub.f32 %v5124, %v6617
    %v6619 = vand.u32 %v6618, 4294901760
    %6620 = vmatmul.f32.gmra.mxu0 %v6619
    %v6621 = vpop.f32.mrf.mxu0
    %v6622 = vadd.f32 %v6243, %v6621
    %v6623 = vand.u32 %v5127, 4294901760
    %v6624 = vsub.f32 %v5127, %v6623
    %v6625 = vand.u32 %v6624, 4294901760
    %6626 = vmatmul.f32.gmra.mxu0 %v6625
    %v6627 = vpop.f32.mrf.mxu0
    %v6628 = vadd.f32 %v6248, %v6627
    %v6629 = vand.u32 %v5130, 4294901760
    %v6630 = vsub.f32 %v5130, %v6629
    %v6631 = vand.u32 %v6630, 4294901760
    %6632 = vmatmul.f32.gmra.mxu0 %v6631
    %v6633 = vpop.f32.mrf.mxu0
    %v6634 = vadd.f32 %v6253, %v6633
    %v6635 = vand.u32 %v5133, 4294901760
    %v6636 = vsub.f32 %v5133, %v6635
    %v6637 = vand.u32 %v6636, 4294901760
    %6638 = vmatmul.f32.gmra.mxu0 %v6637
    %v6639 = vpop.f32.mrf.mxu0
    %v6640 = vadd.f32 %v6258, %v6639
    %v6641 = vand.u32 %v5136, 4294901760
    %v6642 = vsub.f32 %v5136, %v6641
    %v6643 = vand.u32 %v6642, 4294901760
    %6644 = vmatmul.f32.gmra.mxu0 %v6643
    %v6645 = vpop.f32.mrf.mxu0
    %v6646 = vadd.f32 %v6263, %v6645
    %v6647 = vand.u32 %v5139, 4294901760
    %v6648 = vsub.f32 %v5139, %v6647
    %v6649 = vand.u32 %v6648, 4294901760
    %6650 = vmatmul.f32.gmra.mxu0 %v6649
    %v6651 = vpop.f32.mrf.mxu0
    %v6652 = vadd.f32 %v6268, %v6651
    %v6653 = vand.u32 %v5142, 4294901760
    %v6654 = vsub.f32 %v5142, %v6653
    %v6655 = vand.u32 %v6654, 4294901760
    %6656 = vmatmul.f32.gmra.mxu0 %v6655
    %v6657 = vpop.f32.mrf.mxu0
    %v6658 = vadd.f32 %v6273, %v6657
    %v6659 = vand.u32 %v5145, 4294901760
    %v6660 = vsub.f32 %v5145, %v6659
    %v6661 = vand.u32 %v6660, 4294901760
    %6662 = vmatmul.f32.gmra.mxu0 %v6661
    %v6663 = vpop.f32.mrf.mxu0
    %v6664 = vadd.f32 %v6278, %v6663
    %v6665 = vand.u32 %v5148, 4294901760
    %v6666 = vsub.f32 %v5148, %v6665
    %v6667 = vand.u32 %v6666, 4294901760
    %6668 = vmatmul.f32.gmra.mxu0 %v6667
    %v6669 = vpop.f32.mrf.mxu0
    %v6670 = vadd.f32 %v6283, %v6669
    %v6671 = vand.u32 %v5151, 4294901760
    %v6672 = vsub.f32 %v5151, %v6671
    %v6673 = vand.u32 %v6672, 4294901760
    %6674 = vmatmul.f32.gmra.mxu0 %v6673
    %v6675 = vpop.f32.mrf.mxu0
    %v6676 = vadd.f32 %v6288, %v6675
    %v6677 = vand.u32 %v5154, 4294901760
    %v6678 = vsub.f32 %v5154, %v6677
    %v6679 = vand.u32 %v6678, 4294901760
    %6680 = vmatmul.f32.gmra.mxu0 %v6679
    %v6681 = vpop.f32.mrf.mxu0
    %v6682 = vadd.f32 %v6293, %v6681
    %v6683 = vand.u32 %v5157, 4294901760
    %v6684 = vsub.f32 %v5157, %v6683
    %v6685 = vand.u32 %v6684, 4294901760
    %6686 = vmatmul.f32.gmra.mxu0 %v6685
    %v6687 = vpop.f32.mrf.mxu0
    %v6688 = vadd.f32 %v6298, %v6687
    %v6689 = vand.u32 %v5160, 4294901760
    %v6690 = vsub.f32 %v5160, %v6689
    %v6691 = vand.u32 %v6690, 4294901760
    %6692 = vmatmul.f32.gmra.mxu0 %v6691
    %v6693 = vpop.f32.mrf.mxu0
    %v6694 = vadd.f32 %v6303, %v6693
    %v6695 = vand.u32 %v5163, 4294901760
    %v6696 = vsub.f32 %v5163, %v6695
    %v6697 = vand.u32 %v6696, 4294901760
    %6698 = vmatmul.f32.gmra.mxu0 %v6697
    %v6699 = vpop.f32.mrf.mxu0
    %v6700 = vadd.f32 %v6308, %v6699
    %v6701 = vand.u32 %v5166, 4294901760
    %v6702 = vsub.f32 %v5166, %v6701
    %v6703 = vand.u32 %v6702, 4294901760
    %6704 = vmatmul.f32.gmra.mxu0 %v6703
    %v6705 = vpop.f32.mrf.mxu0
    %v6706 = vadd.f32 %v6313, %v6705
    %v6707 = vand.u32 %v5169, 4294901760
    %v6708 = vsub.f32 %v5169, %v6707
    %v6709 = vand.u32 %v6708, 4294901760
    %6710 = vmatmul.f32.gmra.mxu0 %v6709
    %v6711 = vpop.f32.mrf.mxu0
    %v6712 = vadd.f32 %v6318, %v6711
    %v6713 = vand.u32 %v5172, 4294901760
    %v6714 = vsub.f32 %v5172, %v6713
    %v6715 = vand.u32 %v6714, 4294901760
    %6716 = vmatmul.f32.gmra.mxu0 %v6715
    %v6717 = vpop.f32.mrf.mxu0
    %v6718 = vadd.f32 %v6323, %v6717
    %v6719 = vand.u32 %v5175, 4294901760
    %v6720 = vsub.f32 %v5175, %v6719
    %v6721 = vand.u32 %v6720, 4294901760
    %6722 = vmatmul.f32.gmra.mxu0 %v6721
    %v6723 = vpop.f32.mrf.mxu0
    %v6724 = vadd.f32 %v6328, %v6723
    %v6725 = vand.u32 %v5178, 4294901760
    %v6726 = vsub.f32 %v5178, %v6725
    %v6727 = vand.u32 %v6726, 4294901760
    %6728 = vmatmul.f32.gmra.mxu0 %v6727
    %v6729 = vpop.f32.mrf.mxu0
    %v6730 = vadd.f32 %v6333, %v6729
    %v6731 = vand.u32 %v5181, 4294901760
    %v6732 = vsub.f32 %v5181, %v6731
    %v6733 = vand.u32 %v6732, 4294901760
    %6734 = vmatmul.f32.gmra.mxu0 %v6733
    %v6735 = vpop.f32.mrf.mxu0
    %v6736 = vadd.f32 %v6338, %v6735
    %v6737 = vand.u32 %v5184, 4294901760
    %v6738 = vsub.f32 %v5184, %v6737
    %v6739 = vand.u32 %v6738, 4294901760
    %6740 = vmatmul.f32.gmra.mxu0 %v6739
    %v6741 = vpop.f32.mrf.mxu0
    %v6742 = vadd.f32 %v6343, %v6741
    %v6743 = vand.u32 %v5187, 4294901760
    %v6744 = vsub.f32 %v5187, %v6743
    %v6745 = vand.u32 %v6744, 4294901760
    %6746 = vmatmul.f32.gmra.mxu0 %v6745
    %v6747 = vpop.f32.mrf.mxu0
    %v6748 = vadd.f32 %v6348, %v6747
    %v6749 = vand.u32 %v5190, 4294901760
    %v6750 = vsub.f32 %v5190, %v6749
    %v6751 = vand.u32 %v6750, 4294901760
    %6752 = vmatmul.f32.gmra.mxu0 %v6751
    %v6753 = vpop.f32.mrf.mxu0
    %v6754 = vadd.f32 %v6353, %v6753
    %v6755 = vand.u32 %v5193, 4294901760
    %v6756 = vsub.f32 %v5193, %v6755
    %v6757 = vand.u32 %v6756, 4294901760
    %6758 = vmatmul.f32.gmra.mxu0 %v6757
    %v6759 = vpop.f32.mrf.mxu0
    %v6760 = vadd.f32 %v6358, %v6759
    %v6761 = vand.u32 %v5196, 4294901760
    %v6762 = vsub.f32 %v5196, %v6761
    %v6763 = vand.u32 %v6762, 4294901760
    %6764 = vmatmul.f32.gmra.mxu0 %v6763
    %v6765 = vpop.f32.mrf.mxu0
    %v6766 = vadd.f32 %v6363, %v6765
    %v6767 = vand.u32 %v5199, 4294901760
    %v6768 = vsub.f32 %v5199, %v6767
    %v6769 = vand.u32 %v6768, 4294901760
    %6770 = vmatmul.f32.gmra.mxu0 %v6769
    %v6771 = vpop.f32.mrf.mxu0
    %v6772 = vadd.f32 %v6368, %v6771
    %v6773 = vand.u32 %v5202, 4294901760
    %v6774 = vsub.f32 %v5202, %v6773
    %v6775 = vand.u32 %v6774, 4294901760
    %6776 = vmatmul.f32.gmra.mxu0 %v6775
    %v6777 = vpop.f32.mrf.mxu0
    %v6778 = vadd.f32 %v6373, %v6777
    %6779 = vdwg.mxu0
    %6780 = vmatpush.msra.mxu0 0.0
    %6781 = vmatpush.msra.mxu0 0.0
    %6782 = vmatpush.msra.mxu0 0.0
    %6783 = vmatpush.msra.mxu0 0.0
    %6784 = vmatpush.msra.mxu0 0.0
    %6785 = vmatpush.msra.mxu0 0.0
    %6786 = vmatpush.msra.mxu0 0.0
    %6787 = vmatpush.msra.mxu0 0.0
    %6788 = vmatpush.msra.mxu0 0.0
    %6789 = vmatpush.msra.mxu0 0.0
    %6790 = vmatpush.msra.mxu0 0.0
    %6791 = vmatpush.msra.mxu0 0.0
    %v6792 = vand.u32 %v5010, 4294901760
    %v6793 = vsub.f32 %v5010, %v6792
    %v6794 = vand.u32 %v6793, 4294901760
    %6795 = vmatpush.msra.mxu0 %v6794
    %v6796 = vand.u32 %v5009, 4294901760
    %v6797 = vsub.f32 %v5009, %v6796
    %v6798 = vand.u32 %v6797, 4294901760
    %6799 = vmatpush.msra.mxu0 %v6798
    %v6800 = vand.u32 %v5008, 4294901760
    %v6801 = vsub.f32 %v5008, %v6800
    %v6802 = vand.u32 %v6801, 4294901760
    %6803 = vmatpush.msra.mxu0 %v6802
    %v6804 = vand.u32 %v5007, 4294901760
    %v6805 = vsub.f32 %v5007, %v6804
    %v6806 = vand.u32 %v6805, 4294901760
    %6807 = vmatpush.msra.mxu0 %v6806
    %v6808 = vand.u32 %v5013, 4294901760
    %6809 = vmatmul.f32.gmra.mxu0 %v6808
    %v6810 = vpop.f32.mrf.mxu0
    %v6811 = vadd.f32 %v6400, %v6810
    %v6812 = vand.u32 %v5016, 4294901760
    %6813 = vmatmul.f32.gmra.mxu0 %v6812
    %v6814 = vpop.f32.mrf.mxu0
    %v6815 = vadd.f32 %v6406, %v6814
    %v6816 = vand.u32 %v5019, 4294901760
    %6817 = vmatmul.f32.gmra.mxu0 %v6816
    %v6818 = vpop.f32.mrf.mxu0
    %v6819 = vadd.f32 %v6412, %v6818
    %v6820 = vand.u32 %v5022, 4294901760
    %6821 = vmatmul.f32.gmra.mxu0 %v6820
    %v6822 = vpop.f32.mrf.mxu0
    %v6823 = vadd.f32 %v6418, %v6822
    %v6824 = vand.u32 %v5025, 4294901760
    %6825 = vmatmul.f32.gmra.mxu0 %v6824
    %v6826 = vpop.f32.mrf.mxu0
    %v6827 = vadd.f32 %v6424, %v6826
    %v6828 = vand.u32 %v5028, 4294901760
    %6829 = vmatmul.f32.gmra.mxu0 %v6828
    %v6830 = vpop.f32.mrf.mxu0
    %v6831 = vadd.f32 %v6430, %v6830
    %v6832 = vand.u32 %v5031, 4294901760
    %6833 = vmatmul.f32.gmra.mxu0 %v6832
    %v6834 = vpop.f32.mrf.mxu0
    %v6835 = vadd.f32 %v6436, %v6834
    %v6836 = vand.u32 %v5034, 4294901760
    %6837 = vmatmul.f32.gmra.mxu0 %v6836
    %v6838 = vpop.f32.mrf.mxu0
    %v6839 = vadd.f32 %v6442, %v6838
    %v6840 = vand.u32 %v5037, 4294901760
    %6841 = vmatmul.f32.gmra.mxu0 %v6840
    %v6842 = vpop.f32.mrf.mxu0
    %v6843 = vadd.f32 %v6448, %v6842
    %v6844 = vand.u32 %v5040, 4294901760
    %6845 = vmatmul.f32.gmra.mxu0 %v6844
    %v6846 = vpop.f32.mrf.mxu0
    %v6847 = vadd.f32 %v6454, %v6846
    %v6848 = vand.u32 %v5043, 4294901760
    %6849 = vmatmul.f32.gmra.mxu0 %v6848
    %v6850 = vpop.f32.mrf.mxu0
    %v6851 = vadd.f32 %v6460, %v6850
    %v6852 = vand.u32 %v5046, 4294901760
    %6853 = vmatmul.f32.gmra.mxu0 %v6852
    %v6854 = vpop.f32.mrf.mxu0
    %v6855 = vadd.f32 %v6466, %v6854
    %v6856 = vand.u32 %v5049, 4294901760
    %6857 = vmatmul.f32.gmra.mxu0 %v6856
    %v6858 = vpop.f32.mrf.mxu0
    %v6859 = vadd.f32 %v6472, %v6858
    %v6860 = vand.u32 %v5052, 4294901760
    %6861 = vmatmul.f32.gmra.mxu0 %v6860
    %v6862 = vpop.f32.mrf.mxu0
    %v6863 = vadd.f32 %v6478, %v6862
    %v6864 = vand.u32 %v5055, 4294901760
    %6865 = vmatmul.f32.gmra.mxu0 %v6864
    %v6866 = vpop.f32.mrf.mxu0
    %v6867 = vadd.f32 %v6484, %v6866
    %v6868 = vand.u32 %v5058, 4294901760
    %6869 = vmatmul.f32.gmra.mxu0 %v6868
    %v6870 = vpop.f32.mrf.mxu0
    %v6871 = vadd.f32 %v6490, %v6870
    %v6872 = vand.u32 %v5061, 4294901760
    %6873 = vmatmul.f32.gmra.mxu0 %v6872
    %v6874 = vpop.f32.mrf.mxu0
    %v6875 = vadd.f32 %v6496, %v6874
    %v6876 = vand.u32 %v5064, 4294901760
    %6877 = vmatmul.f32.gmra.mxu0 %v6876
    %v6878 = vpop.f32.mrf.mxu0
    %v6879 = vadd.f32 %v6502, %v6878
    %v6880 = vand.u32 %v5067, 4294901760
    %6881 = vmatmul.f32.gmra.mxu0 %v6880
    %v6882 = vpop.f32.mrf.mxu0
    %v6883 = vadd.f32 %v6508, %v6882
    %v6884 = vand.u32 %v5070, 4294901760
    %6885 = vmatmul.f32.gmra.mxu0 %v6884
    %v6886 = vpop.f32.mrf.mxu0
    %v6887 = vadd.f32 %v6514, %v6886
    %v6888 = vand.u32 %v5073, 4294901760
    %6889 = vmatmul.f32.gmra.mxu0 %v6888
    %v6890 = vpop.f32.mrf.mxu0
    %v6891 = vadd.f32 %v6520, %v6890
    %v6892 = vand.u32 %v5076, 4294901760
    %6893 = vmatmul.f32.gmra.mxu0 %v6892
    %v6894 = vpop.f32.mrf.mxu0
    %v6895 = vadd.f32 %v6526, %v6894
    %v6896 = vand.u32 %v5079, 4294901760
    %6897 = vmatmul.f32.gmra.mxu0 %v6896
    %v6898 = vpop.f32.mrf.mxu0
    %v6899 = vadd.f32 %v6532, %v6898
    %v6900 = vand.u32 %v5082, 4294901760
    %6901 = vmatmul.f32.gmra.mxu0 %v6900
    %v6902 = vpop.f32.mrf.mxu0
    %v6903 = vadd.f32 %v6538, %v6902
    %v6904 = vand.u32 %v5085, 4294901760
    %6905 = vmatmul.f32.gmra.mxu0 %v6904
    %v6906 = vpop.f32.mrf.mxu0
    %v6907 = vadd.f32 %v6544, %v6906
    %v6908 = vand.u32 %v5088, 4294901760
    %6909 = vmatmul.f32.gmra.mxu0 %v6908
    %v6910 = vpop.f32.mrf.mxu0
    %v6911 = vadd.f32 %v6550, %v6910
    %v6912 = vand.u32 %v5091, 4294901760
    %6913 = vmatmul.f32.gmra.mxu0 %v6912
    %v6914 = vpop.f32.mrf.mxu0
    %v6915 = vadd.f32 %v6556, %v6914
    %v6916 = vand.u32 %v5094, 4294901760
    %6917 = vmatmul.f32.gmra.mxu0 %v6916
    %v6918 = vpop.f32.mrf.mxu0
    %v6919 = vadd.f32 %v6562, %v6918
    %v6920 = vand.u32 %v5097, 4294901760
    %6921 = vmatmul.f32.gmra.mxu0 %v6920
    %v6922 = vpop.f32.mrf.mxu0
    %v6923 = vadd.f32 %v6568, %v6922
    %v6924 = vand.u32 %v5100, 4294901760
    %6925 = vmatmul.f32.gmra.mxu0 %v6924
    %v6926 = vpop.f32.mrf.mxu0
    %v6927 = vadd.f32 %v6574, %v6926
    %v6928 = vand.u32 %v5103, 4294901760
    %6929 = vmatmul.f32.gmra.mxu0 %v6928
    %v6930 = vpop.f32.mrf.mxu0
    %v6931 = vadd.f32 %v6580, %v6930
    %v6932 = vand.u32 %v5106, 4294901760
    %6933 = vmatmul.f32.gmra.mxu0 %v6932
    %v6934 = vpop.f32.mrf.mxu0
    %v6935 = vadd.f32 %v6586, %v6934
    %v6936 = vand.u32 %v5109, 4294901760
    %6937 = vmatmul.f32.gmra.mxu0 %v6936
    %v6938 = vpop.f32.mrf.mxu0
    %v6939 = vadd.f32 %v6592, %v6938
    %v6940 = vand.u32 %v5112, 4294901760
    %6941 = vmatmul.f32.gmra.mxu0 %v6940
    %v6942 = vpop.f32.mrf.mxu0
    %v6943 = vadd.f32 %v6598, %v6942
    %v6944 = vand.u32 %v5115, 4294901760
    %6945 = vmatmul.f32.gmra.mxu0 %v6944
    %v6946 = vpop.f32.mrf.mxu0
    %v6947 = vadd.f32 %v6604, %v6946
    %v6948 = vand.u32 %v5118, 4294901760
    %6949 = vmatmul.f32.gmra.mxu0 %v6948
    %v6950 = vpop.f32.mrf.mxu0
    %v6951 = vadd.f32 %v6610, %v6950
    %v6952 = vand.u32 %v5121, 4294901760
    %6953 = vmatmul.f32.gmra.mxu0 %v6952
    %v6954 = vpop.f32.mrf.mxu0
    %v6955 = vadd.f32 %v6616, %v6954
    %v6956 = vand.u32 %v5124, 4294901760
    %6957 = vmatmul.f32.gmra.mxu0 %v6956
    %v6958 = vpop.f32.mrf.mxu0
    %v6959 = vadd.f32 %v6622, %v6958
    %v6960 = vand.u32 %v5127, 4294901760
    %6961 = vmatmul.f32.gmra.mxu0 %v6960
    %v6962 = vpop.f32.mrf.mxu0
    %v6963 = vadd.f32 %v6628, %v6962
    %v6964 = vand.u32 %v5130, 4294901760
    %6965 = vmatmul.f32.gmra.mxu0 %v6964
    %v6966 = vpop.f32.mrf.mxu0
    %v6967 = vadd.f32 %v6634, %v6966
    %v6968 = vand.u32 %v5133, 4294901760
    %6969 = vmatmul.f32.gmra.mxu0 %v6968
    %v6970 = vpop.f32.mrf.mxu0
    %v6971 = vadd.f32 %v6640, %v6970
    %v6972 = vand.u32 %v5136, 4294901760
    %6973 = vmatmul.f32.gmra.mxu0 %v6972
    %v6974 = vpop.f32.mrf.mxu0
    %v6975 = vadd.f32 %v6646, %v6974
    %v6976 = vand.u32 %v5139, 4294901760
    %6977 = vmatmul.f32.gmra.mxu0 %v6976
    %v6978 = vpop.f32.mrf.mxu0
    %v6979 = vadd.f32 %v6652, %v6978
    %v6980 = vand.u32 %v5142, 4294901760
    %6981 = vmatmul.f32.gmra.mxu0 %v6980
    %v6982 = vpop.f32.mrf.mxu0
    %v6983 = vadd.f32 %v6658, %v6982
    %v6984 = vand.u32 %v5145, 4294901760
    %6985 = vmatmul.f32.gmra.mxu0 %v6984
    %v6986 = vpop.f32.mrf.mxu0
    %v6987 = vadd.f32 %v6664, %v6986
    %v6988 = vand.u32 %v5148, 4294901760
    %6989 = vmatmul.f32.gmra.mxu0 %v6988
    %v6990 = vpop.f32.mrf.mxu0
    %v6991 = vadd.f32 %v6670, %v6990
    %v6992 = vand.u32 %v5151, 4294901760
    %6993 = vmatmul.f32.gmra.mxu0 %v6992
    %v6994 = vpop.f32.mrf.mxu0
    %v6995 = vadd.f32 %v6676, %v6994
    %v6996 = vand.u32 %v5154, 4294901760
    %6997 = vmatmul.f32.gmra.mxu0 %v6996
    %v6998 = vpop.f32.mrf.mxu0
    %v6999 = vadd.f32 %v6682, %v6998
    %v7000 = vand.u32 %v5157, 4294901760
    %7001 = vmatmul.f32.gmra.mxu0 %v7000
    %v7002 = vpop.f32.mrf.mxu0
    %v7003 = vadd.f32 %v6688, %v7002
    %v7004 = vand.u32 %v5160, 4294901760
    %7005 = vmatmul.f32.gmra.mxu0 %v7004
    %v7006 = vpop.f32.mrf.mxu0
    %v7007 = vadd.f32 %v6694, %v7006
    %v7008 = vand.u32 %v5163, 4294901760
    %7009 = vmatmul.f32.gmra.mxu0 %v7008
    %v7010 = vpop.f32.mrf.mxu0
    %v7011 = vadd.f32 %v6700, %v7010
    %v7012 = vand.u32 %v5166, 4294901760
    %7013 = vmatmul.f32.gmra.mxu0 %v7012
    %v7014 = vpop.f32.mrf.mxu0
    %v7015 = vadd.f32 %v6706, %v7014
    %v7016 = vand.u32 %v5169, 4294901760
    %7017 = vmatmul.f32.gmra.mxu0 %v7016
    %v7018 = vpop.f32.mrf.mxu0
    %v7019 = vadd.f32 %v6712, %v7018
    %v7020 = vand.u32 %v5172, 4294901760
    %7021 = vmatmul.f32.gmra.mxu0 %v7020
    %v7022 = vpop.f32.mrf.mxu0
    %v7023 = vadd.f32 %v6718, %v7022
    %v7024 = vand.u32 %v5175, 4294901760
    %7025 = vmatmul.f32.gmra.mxu0 %v7024
    %v7026 = vpop.f32.mrf.mxu0
    %v7027 = vadd.f32 %v6724, %v7026
    %v7028 = vand.u32 %v5178, 4294901760
    %7029 = vmatmul.f32.gmra.mxu0 %v7028
    %v7030 = vpop.f32.mrf.mxu0
    %v7031 = vadd.f32 %v6730, %v7030
    %v7032 = vand.u32 %v5181, 4294901760
    %7033 = vmatmul.f32.gmra.mxu0 %v7032
    %v7034 = vpop.f32.mrf.mxu0
    %v7035 = vadd.f32 %v6736, %v7034
    %v7036 = vand.u32 %v5184, 4294901760
    %7037 = vmatmul.f32.gmra.mxu0 %v7036
    %v7038 = vpop.f32.mrf.mxu0
    %v7039 = vadd.f32 %v6742, %v7038
    %v7040 = vand.u32 %v5187, 4294901760
    %7041 = vmatmul.f32.gmra.mxu0 %v7040
    %v7042 = vpop.f32.mrf.mxu0
    %v7043 = vadd.f32 %v6748, %v7042
    %v7044 = vand.u32 %v5190, 4294901760
    %7045 = vmatmul.f32.gmra.mxu0 %v7044
    %v7046 = vpop.f32.mrf.mxu0
    %v7047 = vadd.f32 %v6754, %v7046
    %v7048 = vand.u32 %v5193, 4294901760
    %7049 = vmatmul.f32.gmra.mxu0 %v7048
    %v7050 = vpop.f32.mrf.mxu0
    %v7051 = vadd.f32 %v6760, %v7050
    %v7052 = vand.u32 %v5196, 4294901760
    %7053 = vmatmul.f32.gmra.mxu0 %v7052
    %v7054 = vpop.f32.mrf.mxu0
    %v7055 = vadd.f32 %v6766, %v7054
    %v7056 = vand.u32 %v5199, 4294901760
    %7057 = vmatmul.f32.gmra.mxu0 %v7056
    %v7058 = vpop.f32.mrf.mxu0
    %v7059 = vadd.f32 %v6772, %v7058
    %v7060 = vand.u32 %v5202, 4294901760
    %7061 = vmatmul.f32.gmra.mxu0 %v7060
    %v7062 = vpop.f32.mrf.mxu0
    %v7063 = vadd.f32 %v6778, %v7062
    %7064 = vdwg.mxu0
    %7065 = vmatpush.msra.mxu0 0.0
    %7066 = vmatpush.msra.mxu0 0.0
    %7067 = vmatpush.msra.mxu0 0.0
    %7068 = vmatpush.msra.mxu0 0.0
    %7069 = vmatpush.msra.mxu0 0.0
    %7070 = vmatpush.msra.mxu0 0.0
    %7071 = vmatpush.msra.mxu0 0.0
    %7072 = vmatpush.msra.mxu0 0.0
    %7073 = vmatpush.msra.mxu0 0.0
    %7074 = vmatpush.msra.mxu0 0.0
    %7075 = vmatpush.msra.mxu0 0.0
    %7076 = vmatpush.msra.mxu0 0.0
    %v7077 = vand.u32 %v5010, 4294901760
    %7078 = vmatpush.msra.mxu0 %v7077
    %v7079 = vand.u32 %v5009, 4294901760
    %7080 = vmatpush.msra.mxu0 %v7079
    %v7081 = vand.u32 %v5008, 4294901760
    %7082 = vmatpush.msra.mxu0 %v7081
    %v7083 = vand.u32 %v5007, 4294901760
    %7084 = vmatpush.msra.mxu0 %v7083
    %v7085 = vand.u32 %v5013, 4294901760
    %7086 = vmatmul.f32.gmra.mxu0 %v7085
    %v7087 = vpop.f32.mrf.mxu0
    %v7088 = vadd.f32 %v6811, %v7087
    %v7089 = vand.u32 %v5016, 4294901760
    %7090 = vmatmul.f32.gmra.mxu0 %v7089
    %v7091 = vpop.f32.mrf.mxu0
    %v7092 = vadd.f32 %v6815, %v7091
    %v7093 = vand.u32 %v5019, 4294901760
    %7094 = vmatmul.f32.gmra.mxu0 %v7093
    %v7095 = vpop.f32.mrf.mxu0
    %v7096 = vadd.f32 %v6819, %v7095
    %v7097 = vand.u32 %v5022, 4294901760
    %7098 = vmatmul.f32.gmra.mxu0 %v7097
    %v7099 = vpop.f32.mrf.mxu0
    %v7100 = vadd.f32 %v6823, %v7099
    %v7101 = vand.u32 %v5025, 4294901760
    %7102 = vmatmul.f32.gmra.mxu0 %v7101
    %v7103 = vpop.f32.mrf.mxu0
    %v7104 = vadd.f32 %v6827, %v7103
    %v7105 = vand.u32 %v5028, 4294901760
    %7106 = vmatmul.f32.gmra.mxu0 %v7105
    %v7107 = vpop.f32.mrf.mxu0
    %v7108 = vadd.f32 %v6831, %v7107
    %v7109 = vand.u32 %v5031, 4294901760
    %7110 = vmatmul.f32.gmra.mxu0 %v7109
    %v7111 = vpop.f32.mrf.mxu0
    %v7112 = vadd.f32 %v6835, %v7111
    %v7113 = vand.u32 %v5034, 4294901760
    %7114 = vmatmul.f32.gmra.mxu0 %v7113
    %v7115 = vpop.f32.mrf.mxu0
    %v7116 = vadd.f32 %v6839, %v7115
    %v7117 = vand.u32 %v5037, 4294901760
    %7118 = vmatmul.f32.gmra.mxu0 %v7117
    %v7119 = vpop.f32.mrf.mxu0
    %v7120 = vadd.f32 %v6843, %v7119
    %v7121 = vand.u32 %v5040, 4294901760
    %7122 = vmatmul.f32.gmra.mxu0 %v7121
    %v7123 = vpop.f32.mrf.mxu0
    %v7124 = vadd.f32 %v6847, %v7123
    %v7125 = vand.u32 %v5043, 4294901760
    %7126 = vmatmul.f32.gmra.mxu0 %v7125
    %v7127 = vpop.f32.mrf.mxu0
    %v7128 = vadd.f32 %v6851, %v7127
    %v7129 = vand.u32 %v5046, 4294901760
    %7130 = vmatmul.f32.gmra.mxu0 %v7129
    %v7131 = vpop.f32.mrf.mxu0
    %v7132 = vadd.f32 %v6855, %v7131
    %v7133 = vand.u32 %v5049, 4294901760
    %7134 = vmatmul.f32.gmra.mxu0 %v7133
    %v7135 = vpop.f32.mrf.mxu0
    %v7136 = vadd.f32 %v6859, %v7135
    %v7137 = vand.u32 %v5052, 4294901760
    %7138 = vmatmul.f32.gmra.mxu0 %v7137
    %v7139 = vpop.f32.mrf.mxu0
    %v7140 = vadd.f32 %v6863, %v7139
    %v7141 = vand.u32 %v5055, 4294901760
    %7142 = vmatmul.f32.gmra.mxu0 %v7141
    %v7143 = vpop.f32.mrf.mxu0
    %v7144 = vadd.f32 %v6867, %v7143
    %v7145 = vand.u32 %v5058, 4294901760
    %7146 = vmatmul.f32.gmra.mxu0 %v7145
    %v7147 = vpop.f32.mrf.mxu0
    %v7148 = vadd.f32 %v6871, %v7147
    %v7149 = vand.u32 %v5061, 4294901760
    %7150 = vmatmul.f32.gmra.mxu0 %v7149
    %v7151 = vpop.f32.mrf.mxu0
    %v7152 = vadd.f32 %v6875, %v7151
    %v7153 = vand.u32 %v5064, 4294901760
    %7154 = vmatmul.f32.gmra.mxu0 %v7153
    %v7155 = vpop.f32.mrf.mxu0
    %v7156 = vadd.f32 %v6879, %v7155
    %v7157 = vand.u32 %v5067, 4294901760
    %7158 = vmatmul.f32.gmra.mxu0 %v7157
    %v7159 = vpop.f32.mrf.mxu0
    %v7160 = vadd.f32 %v6883, %v7159
    %v7161 = vand.u32 %v5070, 4294901760
    %7162 = vmatmul.f32.gmra.mxu0 %v7161
    %v7163 = vpop.f32.mrf.mxu0
    %v7164 = vadd.f32 %v6887, %v7163
    %v7165 = vand.u32 %v5073, 4294901760
    %7166 = vmatmul.f32.gmra.mxu0 %v7165
    %v7167 = vpop.f32.mrf.mxu0
    %v7168 = vadd.f32 %v6891, %v7167
    %v7169 = vand.u32 %v5076, 4294901760
    %7170 = vmatmul.f32.gmra.mxu0 %v7169
    %v7171 = vpop.f32.mrf.mxu0
    %v7172 = vadd.f32 %v6895, %v7171
    %v7173 = vand.u32 %v5079, 4294901760
    %7174 = vmatmul.f32.gmra.mxu0 %v7173
    %v7175 = vpop.f32.mrf.mxu0
    %v7176 = vadd.f32 %v6899, %v7175
    %v7177 = vand.u32 %v5082, 4294901760
    %7178 = vmatmul.f32.gmra.mxu0 %v7177
    %v7179 = vpop.f32.mrf.mxu0
    %v7180 = vadd.f32 %v6903, %v7179
    %v7181 = vand.u32 %v5085, 4294901760
    %7182 = vmatmul.f32.gmra.mxu0 %v7181
    %v7183 = vpop.f32.mrf.mxu0
    %v7184 = vadd.f32 %v6907, %v7183
    %v7185 = vand.u32 %v5088, 4294901760
    %7186 = vmatmul.f32.gmra.mxu0 %v7185
    %v7187 = vpop.f32.mrf.mxu0
    %v7188 = vadd.f32 %v6911, %v7187
    %v7189 = vand.u32 %v5091, 4294901760
    %7190 = vmatmul.f32.gmra.mxu0 %v7189
    %v7191 = vpop.f32.mrf.mxu0
    %v7192 = vadd.f32 %v6915, %v7191
    %v7193 = vand.u32 %v5094, 4294901760
    %7194 = vmatmul.f32.gmra.mxu0 %v7193
    %v7195 = vpop.f32.mrf.mxu0
    %v7196 = vadd.f32 %v6919, %v7195
    %v7197 = vand.u32 %v5097, 4294901760
    %7198 = vmatmul.f32.gmra.mxu0 %v7197
    %v7199 = vpop.f32.mrf.mxu0
    %v7200 = vadd.f32 %v6923, %v7199
    %v7201 = vand.u32 %v5100, 4294901760
    %7202 = vmatmul.f32.gmra.mxu0 %v7201
    %v7203 = vpop.f32.mrf.mxu0
    %v7204 = vadd.f32 %v6927, %v7203
    %v7205 = vand.u32 %v5103, 4294901760
    %7206 = vmatmul.f32.gmra.mxu0 %v7205
    %v7207 = vpop.f32.mrf.mxu0
    %v7208 = vadd.f32 %v6931, %v7207
    %v7209 = vand.u32 %v5106, 4294901760
    %7210 = vmatmul.f32.gmra.mxu0 %v7209
    %v7211 = vpop.f32.mrf.mxu0
    %v7212 = vadd.f32 %v6935, %v7211
    %v7213 = vand.u32 %v5109, 4294901760
    %7214 = vmatmul.f32.gmra.mxu0 %v7213
    %v7215 = vpop.f32.mrf.mxu0
    %v7216 = vadd.f32 %v6939, %v7215
    %v7217 = vand.u32 %v5112, 4294901760
    %7218 = vmatmul.f32.gmra.mxu0 %v7217
    %v7219 = vpop.f32.mrf.mxu0
    %v7220 = vadd.f32 %v6943, %v7219
    %v7221 = vand.u32 %v5115, 4294901760
    %7222 = vmatmul.f32.gmra.mxu0 %v7221
    %v7223 = vpop.f32.mrf.mxu0
    %v7224 = vadd.f32 %v6947, %v7223
    %v7225 = vand.u32 %v5118, 4294901760
    %7226 = vmatmul.f32.gmra.mxu0 %v7225
    %v7227 = vpop.f32.mrf.mxu0
    %v7228 = vadd.f32 %v6951, %v7227
    %v7229 = vand.u32 %v5121, 4294901760
    %7230 = vmatmul.f32.gmra.mxu0 %v7229
    %v7231 = vpop.f32.mrf.mxu0
    %v7232 = vadd.f32 %v6955, %v7231
    %v7233 = vand.u32 %v5124, 4294901760
    %7234 = vmatmul.f32.gmra.mxu0 %v7233
    %v7235 = vpop.f32.mrf.mxu0
    %v7236 = vadd.f32 %v6959, %v7235
    %v7237 = vand.u32 %v5127, 4294901760
    %7238 = vmatmul.f32.gmra.mxu0 %v7237
    %v7239 = vpop.f32.mrf.mxu0
    %v7240 = vadd.f32 %v6963, %v7239
    %v7241 = vand.u32 %v5130, 4294901760
    %7242 = vmatmul.f32.gmra.mxu0 %v7241
    %v7243 = vpop.f32.mrf.mxu0
    %v7244 = vadd.f32 %v6967, %v7243
    %v7245 = vand.u32 %v5133, 4294901760
    %7246 = vmatmul.f32.gmra.mxu0 %v7245
    %v7247 = vpop.f32.mrf.mxu0
    %v7248 = vadd.f32 %v6971, %v7247
    %v7249 = vand.u32 %v5136, 4294901760
    %7250 = vmatmul.f32.gmra.mxu0 %v7249
    %v7251 = vpop.f32.mrf.mxu0
    %v7252 = vadd.f32 %v6975, %v7251
    %v7253 = vand.u32 %v5139, 4294901760
    %7254 = vmatmul.f32.gmra.mxu0 %v7253
    %v7255 = vpop.f32.mrf.mxu0
    %v7256 = vadd.f32 %v6979, %v7255
    %v7257 = vand.u32 %v5142, 4294901760
    %7258 = vmatmul.f32.gmra.mxu0 %v7257
    %v7259 = vpop.f32.mrf.mxu0
    %v7260 = vadd.f32 %v6983, %v7259
    %v7261 = vand.u32 %v5145, 4294901760
    %7262 = vmatmul.f32.gmra.mxu0 %v7261
    %v7263 = vpop.f32.mrf.mxu0
    %v7264 = vadd.f32 %v6987, %v7263
    %v7265 = vand.u32 %v5148, 4294901760
    %7266 = vmatmul.f32.gmra.mxu0 %v7265
    %v7267 = vpop.f32.mrf.mxu0
    %v7268 = vadd.f32 %v6991, %v7267
    %v7269 = vand.u32 %v5151, 4294901760
    %7270 = vmatmul.f32.gmra.mxu0 %v7269
    %v7271 = vpop.f32.mrf.mxu0
    %v7272 = vadd.f32 %v6995, %v7271
    %v7273 = vand.u32 %v5154, 4294901760
    %7274 = vmatmul.f32.gmra.mxu0 %v7273
    %v7275 = vpop.f32.mrf.mxu0
    %v7276 = vadd.f32 %v6999, %v7275
    %v7277 = vand.u32 %v5157, 4294901760
    %7278 = vmatmul.f32.gmra.mxu0 %v7277
    %v7279 = vpop.f32.mrf.mxu0
    %v7280 = vadd.f32 %v7003, %v7279
    %v7281 = vand.u32 %v5160, 4294901760
    %7282 = vmatmul.f32.gmra.mxu0 %v7281
    %v7283 = vpop.f32.mrf.mxu0
    %v7284 = vadd.f32 %v7007, %v7283
    %v7285 = vand.u32 %v5163, 4294901760
    %7286 = vmatmul.f32.gmra.mxu0 %v7285
    %v7287 = vpop.f32.mrf.mxu0
    %v7288 = vadd.f32 %v7011, %v7287
    %v7289 = vand.u32 %v5166, 4294901760
    %7290 = vmatmul.f32.gmra.mxu0 %v7289
    %v7291 = vpop.f32.mrf.mxu0
    %v7292 = vadd.f32 %v7015, %v7291
    %v7293 = vand.u32 %v5169, 4294901760
    %7294 = vmatmul.f32.gmra.mxu0 %v7293
    %v7295 = vpop.f32.mrf.mxu0
    %v7296 = vadd.f32 %v7019, %v7295
    %v7297 = vand.u32 %v5172, 4294901760
    %7298 = vmatmul.f32.gmra.mxu0 %v7297
    %v7299 = vpop.f32.mrf.mxu0
    %v7300 = vadd.f32 %v7023, %v7299
    %v7301 = vand.u32 %v5175, 4294901760
    %7302 = vmatmul.f32.gmra.mxu0 %v7301
    %v7303 = vpop.f32.mrf.mxu0
    %v7304 = vadd.f32 %v7027, %v7303
    %v7305 = vand.u32 %v5178, 4294901760
    %7306 = vmatmul.f32.gmra.mxu0 %v7305
    %v7307 = vpop.f32.mrf.mxu0
    %v7308 = vadd.f32 %v7031, %v7307
    %v7309 = vand.u32 %v5181, 4294901760
    %7310 = vmatmul.f32.gmra.mxu0 %v7309
    %v7311 = vpop.f32.mrf.mxu0
    %v7312 = vadd.f32 %v7035, %v7311
    %v7313 = vand.u32 %v5184, 4294901760
    %7314 = vmatmul.f32.gmra.mxu0 %v7313
    %v7315 = vpop.f32.mrf.mxu0
    %v7316 = vadd.f32 %v7039, %v7315
    %v7317 = vand.u32 %v5187, 4294901760
    %7318 = vmatmul.f32.gmra.mxu0 %v7317
    %v7319 = vpop.f32.mrf.mxu0
    %v7320 = vadd.f32 %v7043, %v7319
    %v7321 = vand.u32 %v5190, 4294901760
    %7322 = vmatmul.f32.gmra.mxu0 %v7321
    %v7323 = vpop.f32.mrf.mxu0
    %v7324 = vadd.f32 %v7047, %v7323
    %v7325 = vand.u32 %v5193, 4294901760
    %7326 = vmatmul.f32.gmra.mxu0 %v7325
    %v7327 = vpop.f32.mrf.mxu0
    %v7328 = vadd.f32 %v7051, %v7327
    %v7329 = vand.u32 %v5196, 4294901760
    %7330 = vmatmul.f32.gmra.mxu0 %v7329
    %v7331 = vpop.f32.mrf.mxu0
    %v7332 = vadd.f32 %v7055, %v7331
    %v7333 = vand.u32 %v5199, 4294901760
    %7334 = vmatmul.f32.gmra.mxu0 %v7333
    %v7335 = vpop.f32.mrf.mxu0
    %v7336 = vadd.f32 %v7059, %v7335
    %v7337 = vand.u32 %v5202, 4294901760
    %7338 = vmatmul.f32.gmra.mxu0 %v7337
    %v7339 = vpop.f32.mrf.mxu0
    %v7340 = vadd.f32 %v7063, %v7339
    %7341 = vdwg.mxu0
    %v7342 = vld [vmem:[%s1 + $0x6] sm:$0x1]
    %v7343 = vperm.slane %v7342, 0
    %v7344 = vmul.f32 %v7343, %v4173
    %v7345 = vmul.f32 %v7343, %v4174
    %v7346 = vmul.f32 %v7343, %v4175
    %v7347 = vmul.f32 %v7343, %v4176
    %v7348 = vmul.f32 %v7343, %v4177
    %v7349 = vmul.f32 %v7343, %v4178
    %v7350 = vmul.f32 %v7343, %v4179
    %v7351 = vmul.f32 %v7343, %v4180
    %v7352 = vmul.f32 %v7343, %v4181
    %v7353 = vmul.f32 %v7343, %v4182
    %v7354 = vmul.f32 %v7343, %v4183
    %v7355 = vmul.f32 %v7343, %v4184
    %v7356 = vmul.f32 %v7343, %v4185
    %v7357 = vmul.f32 %v7343, %v4186
    %v7358 = vmul.f32 %v7343, %v4187
    %v7359 = vmul.f32 %v7343, %v4188
    %v7360 = vmul.f32 %v7343, %v4189
    %v7361 = vmul.f32 %v7343, %v4190
    %v7362 = vmul.f32 %v7343, %v4191
    %v7363 = vmul.f32 %v7343, %v4192
    %v7364 = vmul.f32 %v7343, %v4193
    %v7365 = vmul.f32 %v7343, %v4194
    %v7366 = vmul.f32 %v7343, %v4195
    %v7367 = vmul.f32 %v7343, %v4196
    %v7368 = vmul.f32 %v7343, %v4197
    %v7369 = vmul.f32 %v7343, %v4198
    %v7370 = vmul.f32 %v7343, %v4199
    %v7371 = vmul.f32 %v7343, %v4200
    %v7372 = vmul.f32 %v7343, %v4201
    %v7373 = vmul.f32 %v7343, %v4202
    %v7374 = vmul.f32 %v7343, %v4203
    %v7375 = vmul.f32 %v7343, %v4204
    %v7376 = vmul.f32 %v7343, %v4205
    %v7377 = vmul.f32 %v7343, %v4206
    %v7378 = vmul.f32 %v7343, %v4207
    %v7379 = vmul.f32 %v7343, %v4208
    %v7380 = vmul.f32 %v7343, %v4209
    %v7381 = vmul.f32 %v7343, %v4210
    %v7382 = vmul.f32 %v7343, %v4211
    %v7383 = vmul.f32 %v7343, %v4212
    %v7384 = vmul.f32 %v7343, %v4213
    %v7385 = vmul.f32 %v7343, %v4214
    %v7386 = vmul.f32 %v7343, %v4215
    %v7387 = vmul.f32 %v7343, %v4216
    %v7388 = vmul.f32 %v7343, %v4217
    %v7389 = vmul.f32 %v7343, %v4218
    %v7390 = vmul.f32 %v7343, %v4219
    %v7391 = vmul.f32 %v7343, %v4220
    %v7392 = vmul.f32 %v7343, %v4221
    %v7393 = vmul.f32 %v7343, %v4222
    %v7394 = vmul.f32 %v7343, %v4223
    %v7395 = vmul.f32 %v7343, %v4224
    %v7396 = vmul.f32 %v7343, %v4225
    %v7397 = vmul.f32 %v7343, %v4226
    %v7398 = vmul.f32 %v7343, %v4227
    %v7399 = vmul.f32 %v7343, %v4228
    %v7400 = vmul.f32 %v7343, %v4229
    %v7401 = vmul.f32 %v7343, %v4230
    %v7402 = vmul.f32 %v7343, %v4231
    %v7403 = vmul.f32 %v7343, %v4232
    %v7404 = vmul.f32 %v7343, %v4233
    %v7405 = vmul.f32 %v7343, %v4234
    %v7406 = vmul.f32 %v7343, %v4235
    %v7407 = vmul.f32 %v7343, %v4236
    %v7408 = vadd.f32 %v7344, %v7088
    %v7409 = vadd.f32 %v7345, %v7092
    %v7410 = vadd.f32 %v7346, %v7096
    %v7411 = vadd.f32 %v7347, %v7100
    %v7412 = vadd.f32 %v7348, %v7104
    %v7413 = vadd.f32 %v7349, %v7108
    %v7414 = vadd.f32 %v7350, %v7112
    %v7415 = vadd.f32 %v7351, %v7116
    %v7416 = vadd.f32 %v7352, %v7120
    %v7417 = vadd.f32 %v7353, %v7124
    %v7418 = vadd.f32 %v7354, %v7128
    %v7419 = vadd.f32 %v7355, %v7132
    %v7420 = vadd.f32 %v7356, %v7136
    %v7421 = vadd.f32 %v7357, %v7140
    %v7422 = vadd.f32 %v7358, %v7144
    %v7423 = vadd.f32 %v7359, %v7148
    %v7424 = vadd.f32 %v7360, %v7152
    %v7425 = vadd.f32 %v7361, %v7156
    %v7426 = vadd.f32 %v7362, %v7160
    %v7427 = vadd.f32 %v7363, %v7164
    %v7428 = vadd.f32 %v7364, %v7168
    %v7429 = vadd.f32 %v7365, %v7172
    %v7430 = vadd.f32 %v7366, %v7176
    %v7431 = vadd.f32 %v7367, %v7180
    %v7432 = vadd.f32 %v7368, %v7184
    %v7433 = vadd.f32 %v7369, %v7188
    %v7434 = vadd.f32 %v7370, %v7192
    %v7435 = vadd.f32 %v7371, %v7196
    %v7436 = vadd.f32 %v7372, %v7200
    %v7437 = vadd.f32 %v7373, %v7204
    %v7438 = vadd.f32 %v7374, %v7208
    %v7439 = vadd.f32 %v7375, %v7212
    %v7440 = vadd.f32 %v7376, %v7216
    %v7441 = vadd.f32 %v7377, %v7220
    %v7442 = vadd.f32 %v7378, %v7224
    %v7443 = vadd.f32 %v7379, %v7228
    %v7444 = vadd.f32 %v7380, %v7232
    %v7445 = vadd.f32 %v7381, %v7236
    %v7446 = vadd.f32 %v7382, %v7240
    %v7447 = vadd.f32 %v7383, %v7244
    %v7448 = vadd.f32 %v7384, %v7248
    %v7449 = vadd.f32 %v7385, %v7252
    %v7450 = vadd.f32 %v7386, %v7256
    %v7451 = vadd.f32 %v7387, %v7260
    %v7452 = vadd.f32 %v7388, %v7264
    %v7453 = vadd.f32 %v7389, %v7268
    %v7454 = vadd.f32 %v7390, %v7272
    %v7455 = vadd.f32 %v7391, %v7276
    %v7456 = vadd.f32 %v7392, %v7280
    %v7457 = vadd.f32 %v7393, %v7284
    %v7458 = vadd.f32 %v7394, %v7288
    %v7459 = vadd.f32 %v7395, %v7292
    %v7460 = vadd.f32 %v7396, %v7296
    %v7461 = vadd.f32 %v7397, %v7300
    %v7462 = vadd.f32 %v7398, %v7304
    %v7463 = vadd.f32 %v7399, %v7308
    %v7464 = vadd.f32 %v7400, %v7312
    %v7465 = vadd.f32 %v7401, %v7316
    %v7466 = vadd.f32 %v7402, %v7320
    %v7467 = vadd.f32 %v7403, %v7324
    %v7468 = vadd.f32 %v7404, %v7328
    %v7469 = vadd.f32 %v7405, %v7332
    %v7470 = vadd.f32 %v7406, %v7336
    %v7471 = vadd.f32 %v7407, %v7340
    %7472 = vst [vmem:[#allocation2] sm:$0xff] %v7408
    %7473 = vst [vmem:[#allocation2 + $0x8] sm:$0xff] %v7409
    %7474 = vst [vmem:[#allocation2 + $0x10] sm:$0xff] %v7410
    %7475 = vst [vmem:[#allocation2 + $0x18] sm:$0xff] %v7411
    %7476 = vst [vmem:[#allocation2 + $0x20] sm:$0xff] %v7412
    %7477 = vst [vmem:[#allocation2 + $0x28] sm:$0xff] %v7413
    %7478 = vst [vmem:[#allocation2 + $0x30] sm:$0xff] %v7414
    %7479 = vst [vmem:[#allocation2 + $0x38] sm:$0xff] %v7415
    %7480 = vst [vmem:[#allocation2 + $0x40] sm:$0xff] %v7416
    %7481 = vst [vmem:[#allocation2 + $0x48] sm:$0xff] %v7417
    %7482 = vst [vmem:[#allocation2 + $0x50] sm:$0xff] %v7418
    %7483 = vst [vmem:[#allocation2 + $0x58] sm:$0xff] %v7419
    %7484 = vst [vmem:[#allocation2 + $0x60] sm:$0xff] %v7420
    %7485 = vst [vmem:[#allocation2 + $0x68] sm:$0xff] %v7421
    %7486 = vst [vmem:[#allocation2 + $0x70] sm:$0xff] %v7422
    %7487 = vst [vmem:[#allocation2 + $0x78] sm:$0xff] %v7423
    %7488 = vst [vmem:[#allocation2 + $0x80] sm:$0xff] %v7424
    %7489 = vst [vmem:[#allocation2 + $0x88] sm:$0xff] %v7425
    %7490 = vst [vmem:[#allocation2 + $0x90] sm:$0xff] %v7426
    %7491 = vst [vmem:[#allocation2 + $0x98] sm:$0xff] %v7427
    %7492 = vst [vmem:[#allocation2 + $0xa0] sm:$0xff] %v7428
    %7493 = vst [vmem:[#allocation2 + $0xa8] sm:$0xff] %v7429
    %7494 = vst [vmem:[#allocation2 + $0xb0] sm:$0xff] %v7430
    %7495 = vst [vmem:[#allocation2 + $0xb8] sm:$0xff] %v7431
    %7496 = vst [vmem:[#allocation2 + $0xc0] sm:$0xff] %v7432
    %7497 = vst [vmem:[#allocation2 + $0xc8] sm:$0xff] %v7433
    %7498 = vst [vmem:[#allocation2 + $0xd0] sm:$0xff] %v7434
    %7499 = vst [vmem:[#allocation2 + $0xd8] sm:$0xff] %v7435
    %7500 = vst [vmem:[#allocation2 + $0xe0] sm:$0xff] %v7436
    %7501 = vst [vmem:[#allocation2 + $0xe8] sm:$0xff] %v7437
    %7502 = vst [vmem:[#allocation2 + $0xf0] sm:$0xff] %v7438
    %7503 = vst [vmem:[#allocation2 + $0xf8] sm:$0xff] %v7439
    %7504 = vst [vmem:[#allocation2 + $0x100] sm:$0xff] %v7440
    %7505 = vst [vmem:[#allocation2 + $0x108] sm:$0xff] %v7441
    %7506 = vst [vmem:[#allocation2 + $0x110] sm:$0xff] %v7442
    %7507 = vst [vmem:[#allocation2 + $0x118] sm:$0xff] %v7443
    %7508 = vst [vmem:[#allocation2 + $0x120] sm:$0xff] %v7444
    %7509 = vst [vmem:[#allocation2 + $0x128] sm:$0xff] %v7445
    %7510 = vst [vmem:[#allocation2 + $0x130] sm:$0xff] %v7446
    %7511 = vst [vmem:[#allocation2 + $0x138] sm:$0xff] %v7447
    %7512 = vst [vmem:[#allocation2 + $0x140] sm:$0xff] %v7448
    %7513 = vst [vmem:[#allocation2 + $0x148] sm:$0xff] %v7449
    %7514 = vst [vmem:[#allocation2 + $0x150] sm:$0xff] %v7450
    %7515 = vst [vmem:[#allocation2 + $0x158] sm:$0xff] %v7451
    %7516 = vst [vmem:[#allocation2 + $0x160] sm:$0xff] %v7452
    %7517 = vst [vmem:[#allocation2 + $0x168] sm:$0xff] %v7453
    %7518 = vst [vmem:[#allocation2 + $0x170] sm:$0xff] %v7454
    %7519 = vst [vmem:[#allocation2 + $0x178] sm:$0xff] %v7455
    %7520 = vst [vmem:[#allocation2 + $0x180] sm:$0xff] %v7456
    %7521 = vst [vmem:[#allocation2 + $0x188] sm:$0xff] %v7457
    %7522 = vst [vmem:[#allocation2 + $0x190] sm:$0xff] %v7458
    %7523 = vst [vmem:[#allocation2 + $0x198] sm:$0xff] %v7459
    %7524 = vst [vmem:[#allocation2 + $0x1a0] sm:$0xff] %v7460
    %7525 = vst [vmem:[#allocation2 + $0x1a8] sm:$0xff] %v7461
    %7526 = vst [vmem:[#allocation2 + $0x1b0] sm:$0xff] %v7462
    %7527 = vst [vmem:[#allocation2 + $0x1b8] sm:$0xff] %v7463
    %7528 = vst [vmem:[#allocation2 + $0x1c0] sm:$0xff] %v7464
    %7529 = vst [vmem:[#allocation2 + $0x1c8] sm:$0xff] %v7465
    %7530 = vst [vmem:[#allocation2 + $0x1d0] sm:$0xff] %v7466
    %7531 = vst [vmem:[#allocation2 + $0x1d8] sm:$0xff] %v7467
    %7532 = vst [vmem:[#allocation2 + $0x1e0] sm:$0xff] %v7468
    %7533 = vst [vmem:[#allocation2 + $0x1e8] sm:$0xff] %v7469
    %7534 = vst [vmem:[#allocation2 + $0x1f0] sm:$0xff] %v7470
    %7535 = vst [vmem:[#allocation2 + $0x1f8] sm:$0xff] %v7471
    // Predicated region
    $region10: #{tpu_custom_call.1} parent=1 // pred_check
      _
    $region11: #{tpu_custom_call.1} parent=1 // pred_check_branch
      %7537 = sbr.rel (0) target = $region13
    $region12: #{tpu_custom_call.1} parent=1 // pred_region
      %7539 = vsyncadd [#allocation3], 0
      %s7540 = sshll.u32 [#allocation2], 4
      %s7541 = int_to_ptr.vmem [resolvable:$true] %s7540
      %s7542 = sshll.u32 %s2, 4
      %s7543 = int_to_ptr.hbm [resolvable:$true] %s7542
      %7548 = dma.vmem_to_hbm [thread:$0]  %s7541, 8192, %s7543, [#allocation3], 128, 128, 8
    $region13: #{tpu_custom_call.1} parent=1 // pred_fallthru
      _
    // Predicated region
    $region14: #{tpu_custom_call.1} parent=1 // pred_check
      _
    $region15: #{tpu_custom_call.1} parent=1 // pred_check_branch
      %7550 = sbr.rel (0) target = $region17
    $region16: #{tpu_custom_call.1} parent=1 // pred_region
      %7552 = dma.done [#allocation3], 8192
    $region17: #{tpu_custom_call.1} parent=1 // pred_fallthru
      _
    %7553 = vsyncpa [#allocation3], 1

</llo_original>
